<compile_context>
chip_gen: v6e
topology: v6e:2x2x1
jax: 0.10.0
libtpu: 0.0.40
codegen_flags: <defaults>
</compile_context>

<pallas_src>
import jax
import jax.numpy as jnp
from jax.experimental import pallas as pl
from jax.experimental.pallas import tpu as pltpu

# ------------------- synthetic (small) UNI2 hyper-parameters -----------------
# real UNI2-h: dim=1536, depth=24, heads=24, packed-hidden=8192, extract=(6,12,18,24)
PATCH = 14
IN_CHANS = 3
DIM = 128                 # toy dim chosen as a 128-lane multiple (real 1536 = 12*128)
DEPTH = 8
NUM_HEADS = 4
HEAD_DIM = DIM // NUM_HEADS
# SwiGLUPacked: fc1 -> HIDDEN (packed halves), fc2: HIDDEN//2 -> DIM.
# Real model: int(1536 * 2.66667 * 2) = 8192 (naturally lane-aligned).  The toy
# value int(128*5.33334)=682 is rounded up to 768 so both halves are 128-multiples.
HIDDEN = 768
HID_HALF = HIDDEN // 2
REG_TOKENS = 8
NUM_PREFIX = 1 + REG_TOKENS              # class token + register tokens
INIT_VALUES = 1e-5                       # LayerScale init
EXTRACT_LAYERS = (2, 4, 6, 8)            # scaled-down (6, 12, 18, 24)
TAKE = tuple(i - 1 for i in EXTRACT_LAYERS)
RESIZE_RATIO = 224.0 / 256.0
EPS = 1e-6                               # timm ViT LayerNorm eps
SCALE = HEAD_DIM ** -0.5

# TODO(synk): pretrained HF-hub checkpoint loading and dynamic_img_size bicubic
# pos-embed resampling are not reproduced; weights are synthetic and the pos
# table is defined directly at the runtime grid size.


# ------------------------------ helpers (traced) -----------------------------
def _layernorm(x, w, b):
    mu = jnp.mean(x, axis=-1, keepdims=True)
    xc = x - mu
    var = jnp.mean(xc * xc, axis=-1, keepdims=True)
    return xc * jax.lax.rsqrt(var + EPS) * w + b


def _trunk_vmem_limit():
    """Generation-aware scoped-VMEM limit: leave headroom under physical VMEM
    (v5e/v6e: 128 MiB -> ~100 MiB, v7x: 64 MiB -> ~48 MiB)."""
    cap = 64 * 1024 * 1024
    try:
        cap = int(getattr(pltpu.get_tpu_info(), 'vmem_capacity_bytes', cap))
    except Exception:
        pass
    return max(32 * 1024 * 1024, min(cap - 16 * 1024 * 1024, 100 * 1024 * 1024))


# ------------------------- fused transformer trunk ---------------------------
def make_encoder_kernel(batch, n_pad, n_valid):
    """Builds the per-layer kernel.  grid = (n_layers,); the residual stream of
    the WHOLE batch lives in `x_scr` (f32 VMEM, (B, Npad, D)) for all layers,
    so each layer's weights are DMA'd from HBM exactly once."""
    bn = batch * n_pad

    def kernel(tok_hbm, ln1w, ln1b, qkvw, qkvb, projw, projb, ls1,
               ln2w, ln2b, fc1w, fc1b, fc2w, fc2b, ls2, nw, nb,
               o0, o1, o2, o3, x_scr, dma_sem):
        layer = pl.program_id(0)

        # one-shot token load: tokens stay in HBM (pl.ANY); copied once.
        @pl.when(layer == 0)
        def _():
            cp = pltpu.make_async_copy(tok_hbm, x_scr, dma_sem)
            cp.start()
            cp.wait()

        x = x_scr[...].reshape(bn, DIM)                        # (B*N, D) f32 residual

        # ---- attention: x = x + ls1 * proj(attn(norm1(x))) ----
        h16 = _layernorm(x, ln1w[0], ln1b[0]).astype(jnp.bfloat16)
        qkv = jnp.dot(h16, qkvw[0], preferred_element_type=jnp.float32) + qkvb[0]
        q = qkv[:, :DIM].reshape(batch, n_pad, DIM)            # 128-aligned lane slices
        k = qkv[:, DIM:2 * DIM].reshape(batch, n_pad, DIM)
        v = qkv[:, 2 * DIM:].reshape(batch, n_pad, DIM)

        ctx_heads = []
        for hh in range(NUM_HEADS):
            s0 = hh * HEAD_DIM
            qh = q[..., s0:s0 + HEAD_DIM].astype(jnp.bfloat16)
            kh = k[..., s0:s0 + HEAD_DIM].astype(jnp.bfloat16)
            vh = v[..., s0:s0 + HEAD_DIM].astype(jnp.bfloat16)
            # scores for the whole batch at once (one batch dim, 3-D dot_general)
            s = jax.lax.dot_general(qh, kh, (((2,), (2,)), ((0,), (0,))),
                                    preferred_element_type=jnp.float32) * SCALE
            if n_valid < n_pad:        # mask padded key tokens (static check)
                kmask = jnp.where(
                    jax.lax.broadcasted_iota(jnp.int32, (1, 1, n_pad), 2) < n_valid,
                    jnp.float32(0.0), jnp.float32(-1e30))
                s = s + kmask
            m = jnp.max(s, axis=-1, keepdims=True)
            e = jnp.exp(s - m)
            p = e * pl.reciprocal(jnp.sum(e, axis=-1, keepdims=True), approx=True)
            ctx_heads.append(
                jax.lax.dot_general(p.astype(jnp.bfloat16), vh,
                                    (((2,), (1,)), ((0,), (0,))),
                                    preferred_element_type=jnp.float32))
        # hoisted output projection: one full-depth (B*N, D)@(D, D) MXU matmul
        ctx = jnp.concatenate(ctx_heads, axis=-1).reshape(bn, DIM).astype(jnp.bfloat16)
        attn = jnp.dot(ctx, projw[0], preferred_element_type=jnp.float32) + projb[0]
        x = x + ls1[0] * attn

        # ---- MLP: SwiGLUPacked (act=SiLU, gate_last=False) ----
        h16 = _layernorm(x, ln2w[0], ln2b[0]).astype(jnp.bfloat16)
        hid = jnp.dot(h16, fc1w[0], preferred_element_type=jnp.float32) + fc1b[0]
        gated = (jax.nn.silu(hid[:, :HID_HALF]) * hid[:, HID_HALF:]).astype(jnp.bfloat16)
        mlp = jnp.dot(gated, fc2w[0], preferred_element_type=jnp.float32) + fc2b[0]
        x = x + ls2[0] * mlp

        x_scr[...] = x.reshape(batch, n_pad, DIM)

        # ---- normalized intermediates (timm norm=True): full lane-dense,
        # sublane-aligned (B, Npad, D) writes; prefix/pad dropped in XLA glue.
        out_refs = (o0, o1, o2, o3)
        for idx, lyr in enumerate(TAKE):
            @pl.when(layer == lyr)
            def _(o_ref=out_refs[idx]):
                o_ref[...] = _layernorm(x, nw[...], nb[...]).reshape(batch, n_pad, DIM)

    return kernel


_BLOCK_WEIGHTS = ('ln1_w', 'ln1_b', 'qkv_w', 'qkv_b', 'proj_w', 'proj_b', 'ls1',
                  'ln2_w', 'ln2_b', 'fc1_w', 'fc1_b', 'fc2_w', 'fc2_b', 'ls2')


def encoder_trunk(tokens, params, n_valid):
    """All ViT blocks + intermediate extraction in ONE pallas_call.
    grid=(depth,): whole batch resident in VMEM, weights streamed once/layer."""
    b, n_pad, d = tokens.shape
    n_layers = max(TAKE) + 1                       # stop_early=True
    blk = params['blocks']

    in_specs = [pl.BlockSpec(memory_space=pl.ANY)]          # tokens stay in HBM
    args = [tokens]
    for name in _BLOCK_WEIGHTS:                    # stacked (DEPTH, ...) tensors
        w = blk[name]
        in_specs.append(pl.BlockSpec((1,) + w.shape[1:], lambda li: (li, 0, 0)))
        args.append(w)
    for name in ('norm_w', 'norm_b'):              # final norm, shared across layers
        w = params[name]
        in_specs.append(pl.BlockSpec(w.shape, lambda li: (0, 0)))
        args.append(w)

    out_spec = pl.BlockSpec((b, n_pad, d), lambda li: (0, 0, 0))
    out_shape = jax.ShapeDtypeStruct((b, n_pad, d), jnp.float32)

    return pl.pallas_call(
        make_encoder_kernel(b, n_pad, n_valid),
        grid=(n_layers,),
        in_specs=in_specs,
        out_specs=tuple(out_spec for _ in TAKE),
        out_shape=tuple(out_shape for _ in TAKE),
        scratch_shapes=[pltpu.VMEM((b, n_pad, d), jnp.float32),
                        pltpu.SemaphoreType.DMA(())],
        compiler_params=pltpu.CompilerParams(
            dimension_semantics=("arbitrary",),            # depth is sequential
            vmem_limit_bytes=_trunk_vmem_limit()),
    )(*args)


# ------------------------------- bilinear resize ------------------------------
def _interp_matrix(in_size, out_size):
    """Bilinear weights, half-pixel, align_corners=False (= F.interpolate)."""
    scale = in_size / out_size
    dst = jnp.arange(out_size, dtype=jnp.float32)
    src = jnp.maximum((dst + 0.5) * scale - 0.5, 0.0)
    i0 = jnp.minimum(jnp.floor(src).astype(jnp.int32), in_size - 1)
    i1 = jnp.minimum(i0 + 1, in_size - 1)
    f = src - i0.astype(jnp.float32)
    return (jax.nn.one_hot(i0, in_size) * (1.0 - f)[:, None]
            + jax.nn.one_hot(i1, in_size) * f[:, None])


def _resize_kernel(x_ref, rh_ref, rwT_ref, o_ref):
    t = jnp.dot(rh_ref[...], x_ref[0], preferred_element_type=jnp.float32)
    o_ref[0] = jnp.dot(t, rwT_ref[...], preferred_element_type=jnp.float32)


def bilinear_resize_nchw(x, out_h, out_w):
    """F.interpolate(mode='bilinear') fused into one Rh @ X @ Rw^T kernel per plane."""
    b, c, h, w = x.shape
    rh = _interp_matrix(h, out_h)                  # (out_h, H)
    rwT = _interp_matrix(w, out_w).T               # (W, out_w)
    planes = x.reshape(b * c, h, w)
    out = pl.pallas_call(
        _resize_kernel,
        grid=(b * c,),
        in_specs=[pl.BlockSpec((1, h, w), lambda i: (i, 0, 0)),
                  pl.BlockSpec((out_h, h), lambda i: (0, 0)),
                  pl.BlockSpec((w, out_w), lambda i: (0, 0))],
        out_specs=pl.BlockSpec((1, out_h, out_w), lambda i: (i, 0, 0)),
        out_shape=jax.ShapeDtypeStruct((b * c, out_h, out_w), jnp.float32),
        compiler_params=pltpu.CompilerParams(dimension_semantics=("parallel",)),
    )(planes, rh, rwT)
    return out.reshape(b, c, out_h, out_w)


# -------------------------------- patch embed ---------------------------------
def _matmul_bias_kernel(a_ref, w_ref, b_ref, o_ref):
    o_ref[...] = (jnp.dot(a_ref[...], w_ref[...],
                          preferred_element_type=jnp.float32) + b_ref[...])


def pallas_matmul_bias(a16, w16, b32, *, block_m=128):
    """(M,K)@(K,N)+bias: bf16 MXU inputs, f32 accumulation, M-tiled grid."""
    m, k = a16.shape
    _, n = w16.shape
    bm = block_m if m % block_m == 0 else m
    return pl.pallas_call(
        _matmul_bias_kernel,
        grid=(m // bm,),
        in_specs=[pl.BlockSpec((bm, k), lambda i: (i, 0)),
                  pl.BlockSpec((k, n), lambda i: (0, 0)),
                  pl.BlockSpec((1, n), lambda i: (0, 0))],
        out_specs=pl.BlockSpec((bm, n), lambda i: (i, 0)),
        out_shape=jax.ShapeDtypeStruct((m, n), jnp.float32),
        compiler_params=pltpu.CompilerParams(dimension_semantics=("parallel",)),
    )(a16, w16, b32)


def patch_embed(x, w16, bias):
    """Conv2d(IN_CHANS, DIM, 14, stride=14) as im2col + bf16 Pallas matmul -> NHWC."""
    b, c, h, ww = x.shape
    hp, wp = h // PATCH, ww // PATCH
    patches = (x.reshape(b, c, hp, PATCH, wp, PATCH)
                .transpose(0, 2, 4, 1, 3, 5)
                .reshape(b * hp * wp, c * PATCH * PATCH)).astype(jnp.bfloat16)
    out = pallas_matmul_bias(patches, w16, bias)
    return out.reshape(b, hp, wp, DIM)


def add_pos_and_prefix(feat_nhwc, pos, cls_tok, reg_tok):
    b, hp, wp, d = feat_nhwc.shape
    # no_embed_class=True: pos embed on patch tokens only, prefix prepended after.
    x = feat_nhwc.reshape(b, hp * wp, d) + pos
    prefix = jnp.concatenate(
        [jnp.broadcast_to(cls_tok, (b, 1, d)),
         jnp.broadcast_to(reg_tok, (b, REG_TOKENS, d))], axis=1)
    tokens = jnp.concatenate([prefix, x], axis=1)
    n_valid = tokens.shape[1]
    n_pad = ((n_valid + 7) // 8) * 8               # sublane-align the token count
    if n_pad != n_valid:
        tokens = jnp.pad(tokens, ((0, 0), (0, n_pad - n_valid), (0, 0)))
    return tokens, n_valid


# --------------------------------- parameters ---------------------------------
def init_params(key, num_patch_tokens):
    keys = iter(jax.random.split(key, 16))

    def nrm(shape, dtype=jnp.float32, std=0.02):
        return (std * jax.random.normal(next(keys), shape)).astype(dtype)

    d = DIM
    return {
        # Conv2d(3, D, 14, 14) stored matmul-ready: (C*P*P, D) bf16
        'patch_w': nrm((IN_CHANS * PATCH * PATCH, d), jnp.bfloat16),
        'patch_b': nrm((1, d)),
        'cls': nrm((1, 1, d)),
        'reg': nrm((1, REG_TOKENS, d)),
        'pos': nrm((1, num_patch_tokens, d)),
        'norm_w': jnp.ones((1, d), jnp.float32),
        'norm_b': jnp.zeros((1, d), jnp.float32),
        'blocks': {   # all per-layer weights stacked along a leading DEPTH axis
            'ln1_w': jnp.ones((DEPTH, 1, d), jnp.float32),
            'ln1_b': jnp.zeros((DEPTH, 1, d), jnp.float32),
            'qkv_w': nrm((DEPTH, d, 3 * d), jnp.bfloat16),
            'qkv_b': nrm((DEPTH, 1, 3 * d)),
            'proj_w': nrm((DEPTH, d, d), jnp.bfloat16),
            'proj_b': nrm((DEPTH, 1, d)),
            'ls1': jnp.full((DEPTH, 1, d), INIT_VALUES, jnp.float32),
            'ln2_w': jnp.ones((DEPTH, 1, d), jnp.float32),
            'ln2_b': jnp.zeros((DEPTH, 1, d), jnp.float32),
            'fc1_w': nrm((DEPTH, d, HIDDEN), jnp.bfloat16),
            'fc1_b': nrm((DEPTH, 1, HIDDEN)),
            'fc2_w': nrm((DEPTH, HID_HALF, d), jnp.bfloat16),
            'fc2_b': nrm((DEPTH, 1, d)),
            'ls2': jnp.full((DEPTH, 1, d), INIT_VALUES, jnp.float32),
        },
    }


# ----------------------------------- forward ----------------------------------
def uni2_forward(x, params):
    """UNI2Encoder.forward: resize -> ViT forward_intermediates (norm=True,
    stop_early=True, intermediates_only=True) -> list of NCHW feature maps."""
    b, _, h, w = x.shape
    rh = int(round(h * RESIZE_RATIO)) // PATCH * PATCH
    rw = int(round(w * RESIZE_RATIO)) // PATCH * PATCH
    x = bilinear_resize_nchw(x, rh, rw)

    feat = patch_embed(x, params['patch_w'], params['patch_b'])   # (B, Hp, Wp, D)
    hp, wp = feat.shape[1], feat.shape[2]
    tokens, n_valid = add_pos_and_prefix(feat, params['pos'],
                                         params['cls'], params['reg'])
    # norm_pre / patch_drop are Identity in this config.

    inters = encoder_trunk(tokens, params, n_valid)   # 4 x (B, Npad, D), normalized
    outs = []
    for y in inters:
        patch_tok = y[:, NUM_PREFIX:n_valid, :]       # drop prefix + pad rows (XLA)
        outs.append(patch_tok.reshape(b, hp, wp, DIM).transpose(0, 3, 1, 2))
    return outs


if __name__ == "__main__":
    key = jax.random.PRNGKey(0)
    pkey, xkey = jax.random.split(key)

    # (2, 3, 64, 64) -> resized to 56x56 -> 4x4 grid of 14x14 patches
    x = jax.random.normal(xkey, (2, IN_CHANS, 64, 64), dtype=jnp.float32)
    grid_hw = int(round(64 * RESIZE_RATIO)) // PATCH * PATCH // PATCH   # = 4
    params = init_params(pkey, grid_hw * grid_hw)

    outs = jax.jit(uni2_forward)(x, params)
    outs = [jax.block_until_ready(o) for o in outs]

    assert len(outs) == len(EXTRACT_LAYERS)
    for o in outs:
        assert o.shape == (2, DIM, grid_hw, grid_hw), o.shape
        assert o.dtype == jnp.float32
    print("KERNEL_OK")
</pallas_src>

<mosaic_0001>
module attributes {stable_mosaic.version = 11 : i64} {
  func.func @_resize_kernel(%arg0: i32, %arg1: memref<1x64x64xf32, #tpu.memory_space<vmem>>, %arg2: memref<56x64xf32, #tpu.memory_space<vmem>>, %arg3: memref<64x56xf32, #tpu.memory_space<vmem>>, %arg4: memref<1x56x56xf32, #tpu.memory_space<vmem>>) attributes {dimension_semantics = [#tpu.dimension_semantics<parallel>], iteration_bounds = array<i64: 6>, scalar_prefetch = 0 : i64, scratch_operands = 0 : i64, tpu.core_type = #tpu.core_type<tc>, window_params = [{transform_indices = @transform_0, window_bounds = array<i64: 1, 64, 64>}, {pipeline_mode = #tpu.pipeline_mode<synchronous>, transform_indices = @transform_1, window_bounds = array<i64: 56, 64>}, {pipeline_mode = #tpu.pipeline_mode<synchronous>, transform_indices = @transform_2, window_bounds = array<i64: 64, 56>}, {transform_indices = @transform_3, window_bounds = array<i64: 1, 56, 56>}]} {
    %c0 = arith.constant 0 : index
    %c0_0 = arith.constant 0 : index
    %0 = vector.load %arg2[%c0, %c0_0] : memref<56x64xf32, #tpu.memory_space<vmem>>, vector<56x64xf32>
    %c0_1 = arith.constant 0 : index
    %c0_2 = arith.constant 0 : index
    %c0_3 = arith.constant 0 : index
    %1 = vector.load %arg1[%c0_1, %c0_2, %c0_3] : memref<1x64x64xf32, #tpu.memory_space<vmem>>, vector<1x64x64xf32>
    %2 = vector.shape_cast %1 : vector<1x64x64xf32> to vector<64x64xf32>
    %cst = arith.constant dense<0.000000e+00> : vector<56x64xf32>
    %3 = tpu.matmul %0, %2, %cst {dimension_numbers = #tpu.dot_dimension_numbers<[1], [0], [0], [1], [0, 0, 1, 1], [], []>} : vector<56x64xf32>, vector<64x64xf32>, vector<56x64xf32> -> vector<56x64xf32>
    %c0_4 = arith.constant 0 : index
    %c0_5 = arith.constant 0 : index
    %4 = vector.load %arg3[%c0_4, %c0_5] : memref<64x56xf32, #tpu.memory_space<vmem>>, vector<64x56xf32>
    %cst_6 = arith.constant dense<0.000000e+00> : vector<56x56xf32>
    %5 = tpu.matmul %3, %4, %cst_6 {dimension_numbers = #tpu.dot_dimension_numbers<[1], [0], [0], [1], [0, 0, 1, 1], [], []>} : vector<56x64xf32>, vector<64x56xf32>, vector<56x56xf32> -> vector<56x56xf32>
    %c0_7 = arith.constant 0 : index
    %c0_8 = arith.constant 0 : index
    %c0_9 = arith.constant 0 : index
    %6 = vector.load %arg4[%c0_7, %c0_8, %c0_9] : memref<1x56x56xf32, #tpu.memory_space<vmem>>, vector<1x56x56xf32>
    %7 = vector.shape_cast %6 : vector<1x56x56xf32> to vector<56x56xf32>
    %8 = vector.shape_cast %5 : vector<56x56xf32> to vector<1x56x56xf32>
    tpu.vector_store %arg4[%c0_7, %c0_8, %c0_9], %8 {strides = array<i32>} : memref<1x56x56xf32, #tpu.memory_space<vmem>>, vector<1x56x56xf32>,
    return
  }
  func.func @transform_0(%arg0: i32) -> (i32, i32, i32) {
    %c0_i32 = arith.constant 0 : i32
    %c0_i32_0 = arith.constant 0 : i32
    %c0_i32_1 = arith.constant 0 : i32
    return %arg0, %c0_i32, %c0_i32_0 : i32, i32, i32
  }
  func.func @transform_1(%arg0: i32) -> (i32, i32) {
    %c0_i32 = arith.constant 0 : i32
    %c0_i32_0 = arith.constant 0 : i32
    %c0_i32_1 = arith.constant 0 : i32
    return %c0_i32, %c0_i32_0 : i32, i32
  }
  func.func @transform_2(%arg0: i32) -> (i32, i32) {
    %c0_i32 = arith.constant 0 : i32
    %c0_i32_0 = arith.constant 0 : i32
    %c0_i32_1 = arith.constant 0 : i32
    return %c0_i32, %c0_i32_0 : i32, i32
  }
  func.func @transform_3(%arg0: i32) -> (i32, i32, i32) {
    %c0_i32 = arith.constant 0 : i32
    %c0_i32_0 = arith.constant 0 : i32
    %c0_i32_1 = arith.constant 0 : i32
    return %arg0, %c0_i32, %c0_i32_0 : i32, i32, i32
  }
}

module attributes {stable_mosaic.version = 11 : i64} {
  func.func @_matmul_bias_kernel(%arg0: i32, %arg1: memref<32x588xbf16, #tpu.memory_space<vmem>>, %arg2: memref<588x128xbf16, #tpu.memory_space<vmem>>, %arg3: memref<1x128xf32, #tpu.memory_space<vmem>>, %arg4: memref<32x128xf32, #tpu.memory_space<vmem>>) attributes {dimension_semantics = [#tpu.dimension_semantics<parallel>], iteration_bounds = array<i64: 1>, scalar_prefetch = 0 : i64, scratch_operands = 0 : i64, tpu.core_type = #tpu.core_type<tc>, window_params = [{transform_indices = @transform_0, window_bounds = array<i64: 32, 588>}, {pipeline_mode = #tpu.pipeline_mode<synchronous>, transform_indices = @transform_1, window_bounds = array<i64: 588, 128>}, {pipeline_mode = #tpu.pipeline_mode<synchronous>, transform_indices = @transform_2, window_bounds = array<i64: 1, 128>}, {transform_indices = @transform_3, window_bounds = array<i64: 32, 128>}]} {
    %c0 = arith.constant 0 : index
    %c0_0 = arith.constant 0 : index
    %0 = vector.load %arg1[%c0, %c0_0] : memref<32x588xbf16, #tpu.memory_space<vmem>>, vector<32x588xbf16>
    %c0_1 = arith.constant 0 : index
    %c0_2 = arith.constant 0 : index
    %1 = vector.load %arg2[%c0_1, %c0_2] : memref<588x128xbf16, #tpu.memory_space<vmem>>, vector<588x128xbf16>
    %cst = arith.constant dense<0.000000e+00> : vector<32x128xf32>
    %2 = tpu.matmul %0, %1, %cst {dimension_numbers = #tpu.dot_dimension_numbers<[1], [0], [0], [1], [0, 0, 1, 1], [], []>} : vector<32x588xbf16>, vector<588x128xbf16>, vector<32x128xf32> -> vector<32x128xf32>
    %c0_3 = arith.constant 0 : index
    %c0_4 = arith.constant 0 : index
    %3 = vector.load %arg3[%c0_3, %c0_4] : memref<1x128xf32, #tpu.memory_space<vmem>>, vector<1x128xf32>
    %4 = vector.broadcast %3 : vector<1x128xf32> to vector<32x128xf32>
    %5 = arith.addf %2, %4 : vector<32x128xf32>
    %c0_5 = arith.constant 0 : index
    %c0_6 = arith.constant 0 : index
    %6 = vector.load %arg4[%c0_5, %c0_6] : memref<32x128xf32, #tpu.memory_space<vmem>>, vector<32x128xf32>
    tpu.vector_store %arg4[%c0_5, %c0_6], %5 {strides = array<i32>} : memref<32x128xf32, #tpu.memory_space<vmem>>, vector<32x128xf32>,
    return
  }
  func.func @transform_0(%arg0: i32) -> (i32, i32) {
    %c0_i32 = arith.constant 0 : i32
    %c0_i32_0 = arith.constant 0 : i32
    return %arg0, %c0_i32 : i32, i32
  }
  func.func @transform_1(%arg0: i32) -> (i32, i32) {
    %c0_i32 = arith.constant 0 : i32
    %c0_i32_0 = arith.constant 0 : i32
    %c0_i32_1 = arith.constant 0 : i32
    return %c0_i32, %c0_i32_0 : i32, i32
  }
  func.func @transform_2(%arg0: i32) -> (i32, i32) {
    %c0_i32 = arith.constant 0 : i32
    %c0_i32_0 = arith.constant 0 : i32
    %c0_i32_1 = arith.constant 0 : i32
    return %c0_i32, %c0_i32_0 : i32, i32
  }
  func.func @transform_3(%arg0: i32) -> (i32, i32) {
    %c0_i32 = arith.constant 0 : i32
    %c0_i32_0 = arith.constant 0 : i32
    return %arg0, %c0_i32 : i32, i32
  }
}

module attributes {stable_mosaic.version = 11 : i64} {
  func.func @kernel(%arg0: i32, %arg1: memref<2x32x128xf32, #tpu.memory_space<any>>, %arg2: memref<1x1x128xf32, #tpu.memory_space<vmem>>, %arg3: memref<1x1x128xf32, #tpu.memory_space<vmem>>, %arg4: memref<1x128x384xbf16, #tpu.memory_space<vmem>>, %arg5: memref<1x1x384xf32, #tpu.memory_space<vmem>>, %arg6: memref<1x128x128xbf16, #tpu.memory_space<vmem>>, %arg7: memref<1x1x128xf32, #tpu.memory_space<vmem>>, %arg8: memref<1x1x128xf32, #tpu.memory_space<vmem>>, %arg9: memref<1x1x128xf32, #tpu.memory_space<vmem>>, %arg10: memref<1x1x128xf32, #tpu.memory_space<vmem>>, %arg11: memref<1x128x768xbf16, #tpu.memory_space<vmem>>, %arg12: memref<1x1x768xf32, #tpu.memory_space<vmem>>, %arg13: memref<1x384x128xbf16, #tpu.memory_space<vmem>>, %arg14: memref<1x1x128xf32, #tpu.memory_space<vmem>>, %arg15: memref<1x1x128xf32, #tpu.memory_space<vmem>>, %arg16: memref<1x128xf32, #tpu.memory_space<vmem>>, %arg17: memref<1x128xf32, #tpu.memory_space<vmem>>, %arg18: memref<2x32x128xf32, #tpu.memory_space<vmem>>, %arg19: memref<2x32x128xf32, #tpu.memory_space<vmem>>, %arg20: memref<2x32x128xf32, #tpu.memory_space<vmem>>, %arg21: memref<2x32x128xf32, #tpu.memory_space<vmem>>, %arg22: memref<2x32x128xf32, #tpu.memory_space<vmem>>, %arg23: memref<!tpu.dma_semaphore, #tpu.memory_space<semaphore_mem>>) attributes {dimension_semantics = [#tpu.dimension_semantics<arbitrary>], iteration_bounds = array<i64: 8>, scalar_prefetch = 0 : i64, scratch_operands = 2 : i64, tpu.core_type = #tpu.core_type<tc>, window_params = [{}, {transform_indices = @transform_1, window_bounds = array<i64: 1, 1, 128>}, {transform_indices = @transform_2, window_bounds = array<i64: 1, 1, 128>}, {transform_indices = @transform_3, window_bounds = array<i64: 1, 128, 384>}, {transform_indices = @transform_4, window_bounds = array<i64: 1, 1, 384>}, {transform_indices = @transform_5, window_bounds = array<i64: 1, 128, 128>}, {transform_indices = @transform_6, window_bounds = array<i64: 1, 1, 128>}, {transform_indices = @transform_7, window_bounds = array<i64: 1, 1, 128>}, {transform_indices = @transform_8, window_bounds = array<i64: 1, 1, 128>}, {transform_indices = @transform_9, window_bounds = array<i64: 1, 1, 128>}, {transform_indices = @transform_10, window_bounds = array<i64: 1, 128, 768>}, {transform_indices = @transform_11, window_bounds = array<i64: 1, 1, 768>}, {transform_indices = @transform_12, window_bounds = array<i64: 1, 384, 128>}, {transform_indices = @transform_13, window_bounds = array<i64: 1, 1, 128>}, {transform_indices = @transform_14, window_bounds = array<i64: 1, 1, 128>}, {pipeline_mode = #tpu.pipeline_mode<synchronous>, transform_indices = @transform_15, window_bounds = array<i64: 1, 128>}, {pipeline_mode = #tpu.pipeline_mode<synchronous>, transform_indices = @transform_16, window_bounds = array<i64: 1, 128>}, {pipeline_mode = #tpu.pipeline_mode<synchronous>, transform_indices = @transform_17, window_bounds = array<i64: 2, 32, 128>}, {pipeline_mode = #tpu.pipeline_mode<synchronous>, transform_indices = @transform_18, window_bounds = array<i64: 2, 32, 128>}, {pipeline_mode = #tpu.pipeline_mode<synchronous>, transform_indices = @transform_19, window_bounds = array<i64: 2, 32, 128>}, {pipeline_mode = #tpu.pipeline_mode<synchronous>, transform_indices = @transform_20, window_bounds = array<i64: 2, 32, 128>}]} {
    %c0_i32 = arith.constant 0 : i32
    %0 = arith.cmpi eq, %arg0, %c0_i32 : i32
    %1 = arith.extui %0 : i1 to i32
    %c0_i32_0 = arith.constant 0 : i32
    %2 = arith.cmpi ne, %1, %c0_i32_0 : i32
    scf.if %2 {
      tpu.enqueue_dma source(%arg1 : memref<2x32x128xf32, #tpu.memory_space<any>>) target(%arg22 : memref<2x32x128xf32, #tpu.memory_space<vmem>>) target_semaphore(%arg23 : memref<!tpu.dma_semaphore, #tpu.memory_space<semaphore_mem>>)
      tpu.wait_dma2 semaphore(%arg23 : memref<!tpu.dma_semaphore, #tpu.memory_space<semaphore_mem>>) src(%arg1 : memref<2x32x128xf32, #tpu.memory_space<any>>) dst(%arg22 : memref<2x32x128xf32, #tpu.memory_space<vmem>>)
    } else {
    }
    %c0 = arith.constant 0 : index
    %c0_1 = arith.constant 0 : index
    %c0_2 = arith.constant 0 : index
    %3 = vector.load %arg22[%c0, %c0_1, %c0_2] : memref<2x32x128xf32, #tpu.memory_space<vmem>>, vector<2x32x128xf32>
    %4 = vector.shape_cast %3 : vector<2x32x128xf32> to vector<64x128xf32>
    %c0_3 = arith.constant 0 : index
    %c0_4 = arith.constant 0 : index
    %c0_5 = arith.constant 0 : index
    %5 = vector.load %arg2[%c0_3, %c0_4, %c0_5] : memref<1x1x128xf32, #tpu.memory_space<vmem>>, vector<1x1x128xf32>
    %6 = vector.shape_cast %5 : vector<1x1x128xf32> to vector<1x128xf32>
    %c0_6 = arith.constant 0 : index
    %c0_7 = arith.constant 0 : index
    %c0_8 = arith.constant 0 : index
    %7 = vector.load %arg3[%c0_6, %c0_7, %c0_8] : memref<1x1x128xf32, #tpu.memory_space<vmem>>, vector<1x1x128xf32>
    %8 = vector.shape_cast %7 : vector<1x1x128xf32> to vector<1x128xf32>
    %cst = arith.constant dense<0.000000e+00> : vector<64xf32>
    %9 = vector.multi_reduction <add>, %4, %cst [1] : vector<64x128xf32> to vector<64xf32>
    %10 = vector.shape_cast %9 : vector<64xf32> to vector<64x1xf32>
    %cst_9 = arith.constant 1.280000e+02 : f32
    %11 = vector.broadcast %cst_9 : f32 to vector<64x1xf32>
    %12 = arith.divf %10, %11 : vector<64x1xf32>
    %13 = vector.broadcast %12 : vector<64x1xf32> to vector<64x128xf32>
    %14 = arith.subf %4, %13 : vector<64x128xf32>
    %15 = arith.mulf %14, %14 : vector<64x128xf32>
    %cst_10 = arith.constant dense<0.000000e+00> : vector<64xf32>
    %16 = vector.multi_reduction <add>, %15, %cst_10 [1] : vector<64x128xf32> to vector<64xf32>
    %17 = vector.shape_cast %16 : vector<64xf32> to vector<64x1xf32>
    %cst_11 = arith.constant 1.280000e+02 : f32
    %18 = vector.broadcast %cst_11 : f32 to vector<64x1xf32>
    %19 = arith.divf %17, %18 : vector<64x1xf32>
    %cst_12 = arith.constant 9.99999997E-7 : f32
    %20 = vector.broadcast %cst_12 : f32 to vector<64x1xf32>
    %21 = arith.addf %19, %20 : vector<64x1xf32>
    %22 = math.rsqrt %21 : vector<64x1xf32>
    %23 = vector.broadcast %22 : vector<64x1xf32> to vector<64x128xf32>
    %24 = arith.mulf %14, %23 : vector<64x128xf32>
    %25 = vector.broadcast %6 : vector<1x128xf32> to vector<64x128xf32>
    %26 = arith.mulf %24, %25 : vector<64x128xf32>
    %27 = vector.broadcast %8 : vector<1x128xf32> to vector<64x128xf32>
    %28 = arith.addf %26, %27 : vector<64x128xf32>
    %29 = arith.truncf %28 : vector<64x128xf32> to vector<64x128xbf16>
    %c0_13 = arith.constant 0 : index
    %c0_14 = arith.constant 0 : index
    %c0_15 = arith.constant 0 : index
    %30 = vector.load %arg4[%c0_13, %c0_14, %c0_15] : memref<1x128x384xbf16, #tpu.memory_space<vmem>>, vector<1x128x384xbf16>
    %31 = vector.shape_cast %30 : vector<1x128x384xbf16> to vector<128x384xbf16>
    %cst_16 = arith.constant dense<0.000000e+00> : vector<64x384xf32>
    %32 = tpu.matmul %29, %31, %cst_16 {dimension_numbers = #tpu.dot_dimension_numbers<[1], [0], [0], [1], [0, 0, 1, 1], [], []>} : vector<64x128xbf16>, vector<128x384xbf16>, vector<64x384xf32> -> vector<64x384xf32>
    %c0_17 = arith.constant 0 : index
    %c0_18 = arith.constant 0 : index
    %c0_19 = arith.constant 0 : index
    %33 = vector.load %arg5[%c0_17, %c0_18, %c0_19] : memref<1x1x384xf32, #tpu.memory_space<vmem>>, vector<1x1x384xf32>
    %34 = vector.shape_cast %33 : vector<1x1x384xf32> to vector<1x384xf32>
    %35 = vector.broadcast %34 : vector<1x384xf32> to vector<64x384xf32>
    %36 = arith.addf %32, %35 : vector<64x384xf32>
    %37 = vector.extract_strided_slice %36 {offsets = [0, 0], sizes = [64, 128], strides = [1, 1]} : vector<64x384xf32> to vector<64x128xf32>
    %38 = vector.shape_cast %37 : vector<64x128xf32> to vector<2x32x128xf32>
    %39 = vector.extract_strided_slice %36 {offsets = [0, 128], sizes = [64, 128], strides = [1, 1]} : vector<64x384xf32> to vector<64x128xf32>
    %40 = vector.shape_cast %39 : vector<64x128xf32> to vector<2x32x128xf32>
    %41 = vector.extract_strided_slice %36 {offsets = [0, 256], sizes = [64, 128], strides = [1, 1]} : vector<64x384xf32> to vector<64x128xf32>
    %42 = vector.shape_cast %41 : vector<64x128xf32> to vector<2x32x128xf32>
    %43 = vector.extract_strided_slice %38 {offsets = [0, 0, 0], sizes = [2, 32, 32], strides = [1, 1, 1]} : vector<2x32x128xf32> to vector<2x32x32xf32>
    %44 = arith.truncf %43 : vector<2x32x32xf32> to vector<2x32x32xbf16>
    %45 = vector.extract_strided_slice %40 {offsets = [0, 0, 0], sizes = [2, 32, 32], strides = [1, 1, 1]} : vector<2x32x128xf32> to vector<2x32x32xf32>
    %46 = arith.truncf %45 : vector<2x32x32xf32> to vector<2x32x32xbf16>
    %47 = vector.extract_strided_slice %42 {offsets = [0, 0, 0], sizes = [2, 32, 32], strides = [1, 1, 1]} : vector<2x32x128xf32> to vector<2x32x32xf32>
    %48 = arith.truncf %47 : vector<2x32x32xf32> to vector<2x32x32xbf16>
    %cst_20 = arith.constant dense<0.000000e+00> : vector<2x32x32xf32>
    %49 = tpu.matmul %44, %46, %cst_20 {dimension_numbers = #tpu.dot_dimension_numbers<[2], [2], [1], [1], [0, 0, 0, 1, 1, 1], [0], [0]>} : vector<2x32x32xbf16>, vector<2x32x32xbf16>, vector<2x32x32xf32> -> vector<2x32x32xf32>
    %cst_21 = arith.constant 0.176776692 : f32
    %50 = vector.broadcast %cst_21 : f32 to vector<2x32x32xf32>
    %51 = arith.mulf %49, %50 : vector<2x32x32xf32>
    %52 = tpu.iota {dimensions = array<i32: 2>} : vector<1x1x32xi32>
    %c25_i32 = arith.constant 25 : i32
    %53 = vector.broadcast %c25_i32 : i32 to vector<1x1x32xi32>
    %54 = arith.cmpi slt, %52, %53 : vector<1x1x32xi32>
    %cst_22 = arith.constant 0.000000e+00 : f32
    %cst_23 = arith.constant -1.000000e+30 : f32
    %55 = vector.broadcast %cst_22 : f32 to vector<1x1x32xf32>
    %56 = vector.broadcast %cst_23 : f32 to vector<1x1x32xf32>
    %57 = arith.select %54, %55, %56 : vector<1x1x32xi1>, vector<1x1x32xf32>
    %58 = vector.broadcast %57 : vector<1x1x32xf32> to vector<2x32x32xf32>
    %59 = arith.addf %51, %58 : vector<2x32x32xf32>
    %cst_24 = arith.constant dense<0xFF800000> : vector<2x32xf32>
    %60 = vector.multi_reduction <maximumf>, %59, %cst_24 [2] : vector<2x32x32xf32> to vector<2x32xf32>
    %61 = vector.shape_cast %60 : vector<2x32xf32> to vector<2x32x1xf32>
    %62 = vector.broadcast %61 : vector<2x32x1xf32> to vector<2x32x32xf32>
    %63 = arith.subf %59, %62 : vector<2x32x32xf32>
    %64 = math.exp %63 : vector<2x32x32xf32>
    %cst_25 = arith.constant dense<0.000000e+00> : vector<2x32xf32>
    %65 = vector.multi_reduction <add>, %64, %cst_25 [2] : vector<2x32x32xf32> to vector<2x32xf32>
    %66 = vector.shape_cast %65 : vector<2x32xf32> to vector<2x32x1xf32>
    %67 = tpu.reciprocal %66 {approx = true} : vector<2x32x1xf32> -> vector<2x32x1xf32>
    %68 = vector.broadcast %67 : vector<2x32x1xf32> to vector<2x32x32xf32>
    %69 = arith.mulf %64, %68 : vector<2x32x32xf32>
    %70 = arith.truncf %69 : vector<2x32x32xf32> to vector<2x32x32xbf16>
    %cst_26 = arith.constant dense<0.000000e+00> : vector<2x32x32xf32>
    %71 = tpu.matmul %70, %48, %cst_26 {dimension_numbers = #tpu.dot_dimension_numbers<[2], [1], [1], [2], [0, 0, 0, 1, 1, 2], [0], [0]>} : vector<2x32x32xbf16>, vector<2x32x32xbf16>, vector<2x32x32xf32> -> vector<2x32x32xf32>
    %72 = vector.extract_strided_slice %38 {offsets = [0, 0, 32], sizes = [2, 32, 32], strides = [1, 1, 1]} : vector<2x32x128xf32> to vector<2x32x32xf32>
    %73 = arith.truncf %72 : vector<2x32x32xf32> to vector<2x32x32xbf16>
    %74 = vector.extract_strided_slice %40 {offsets = [0, 0, 32], sizes = [2, 32, 32], strides = [1, 1, 1]} : vector<2x32x128xf32> to vector<2x32x32xf32>
    %75 = arith.truncf %74 : vector<2x32x32xf32> to vector<2x32x32xbf16>
    %76 = vector.extract_strided_slice %42 {offsets = [0, 0, 32], sizes = [2, 32, 32], strides = [1, 1, 1]} : vector<2x32x128xf32> to vector<2x32x32xf32>
    %77 = arith.truncf %76 : vector<2x32x32xf32> to vector<2x32x32xbf16>
    %cst_27 = arith.constant dense<0.000000e+00> : vector<2x32x32xf32>
    %78 = tpu.matmul %73, %75, %cst_27 {dimension_numbers = #tpu.dot_dimension_numbers<[2], [2], [1], [1], [0, 0, 0, 1, 1, 1], [0], [0]>} : vector<2x32x32xbf16>, vector<2x32x32xbf16>, vector<2x32x32xf32> -> vector<2x32x32xf32>
    %cst_28 = arith.constant 0.176776692 : f32
    %79 = vector.broadcast %cst_28 : f32 to vector<2x32x32xf32>
    %80 = arith.mulf %78, %79 : vector<2x32x32xf32>
    %81 = tpu.iota {dimensions = array<i32: 2>} : vector<1x1x32xi32>
    %c25_i32_29 = arith.constant 25 : i32
    %82 = vector.broadcast %c25_i32_29 : i32 to vector<1x1x32xi32>
    %83 = arith.cmpi slt, %81, %82 : vector<1x1x32xi32>
    %cst_30 = arith.constant 0.000000e+00 : f32
    %cst_31 = arith.constant -1.000000e+30 : f32
    %84 = vector.broadcast %cst_30 : f32 to vector<1x1x32xf32>
    %85 = vector.broadcast %cst_31 : f32 to vector<1x1x32xf32>
    %86 = arith.select %83, %84, %85 : vector<1x1x32xi1>, vector<1x1x32xf32>
    %87 = vector.broadcast %86 : vector<1x1x32xf32> to vector<2x32x32xf32>
    %88 = arith.addf %80, %87 : vector<2x32x32xf32>
    %cst_32 = arith.constant dense<0xFF800000> : vector<2x32xf32>
    %89 = vector.multi_reduction <maximumf>, %88, %cst_32 [2] : vector<2x32x32xf32> to vector<2x32xf32>
    %90 = vector.shape_cast %89 : vector<2x32xf32> to vector<2x32x1xf32>
    %91 = vector.broadcast %90 : vector<2x32x1xf32> to vector<2x32x32xf32>
    %92 = arith.subf %88, %91 : vector<2x32x32xf32>
    %93 = math.exp %92 : vector<2x32x32xf32>
    %cst_33 = arith.constant dense<0.000000e+00> : vector<2x32xf32>
    %94 = vector.multi_reduction <add>, %93, %cst_33 [2] : vector<2x32x32xf32> to vector<2x32xf32>
    %95 = vector.shape_cast %94 : vector<2x32xf32> to vector<2x32x1xf32>
    %96 = tpu.reciprocal %95 {approx = true} : vector<2x32x1xf32> -> vector<2x32x1xf32>
    %97 = vector.broadcast %96 : vector<2x32x1xf32> to vector<2x32x32xf32>
    %98 = arith.mulf %93, %97 : vector<2x32x32xf32>
    %99 = arith.truncf %98 : vector<2x32x32xf32> to vector<2x32x32xbf16>
    %cst_34 = arith.constant dense<0.000000e+00> : vector<2x32x32xf32>
    %100 = tpu.matmul %99, %77, %cst_34 {dimension_numbers = #tpu.dot_dimension_numbers<[2], [1], [1], [2], [0, 0, 0, 1, 1, 2], [0], [0]>} : vector<2x32x32xbf16>, vector<2x32x32xbf16>, vector<2x32x32xf32> -> vector<2x32x32xf32>
    %101 = vector.extract_strided_slice %38 {offsets = [0, 0, 64], sizes = [2, 32, 32], strides = [1, 1, 1]} : vector<2x32x128xf32> to vector<2x32x32xf32>
    %102 = arith.truncf %101 : vector<2x32x32xf32> to vector<2x32x32xbf16>
    %103 = vector.extract_strided_slice %40 {offsets = [0, 0, 64], sizes = [2, 32, 32], strides = [1, 1, 1]} : vector<2x32x128xf32> to vector<2x32x32xf32>
    %104 = arith.truncf %103 : vector<2x32x32xf32> to vector<2x32x32xbf16>
    %105 = vector.extract_strided_slice %42 {offsets = [0, 0, 64], sizes = [2, 32, 32], strides = [1, 1, 1]} : vector<2x32x128xf32> to vector<2x32x32xf32>
    %106 = arith.truncf %105 : vector<2x32x32xf32> to vector<2x32x32xbf16>
    %cst_35 = arith.constant dense<0.000000e+00> : vector<2x32x32xf32>
    %107 = tpu.matmul %102, %104, %cst_35 {dimension_numbers = #tpu.dot_dimension_numbers<[2], [2], [1], [1], [0, 0, 0, 1, 1, 1], [0], [0]>} : vector<2x32x32xbf16>, vector<2x32x32xbf16>, vector<2x32x32xf32> -> vector<2x32x32xf32>
    %cst_36 = arith.constant 0.176776692 : f32
    %108 = vector.broadcast %cst_36 : f32 to vector<2x32x32xf32>
    %109 = arith.mulf %107, %108 : vector<2x32x32xf32>
    %110 = tpu.iota {dimensions = array<i32: 2>} : vector<1x1x32xi32>
    %c25_i32_37 = arith.constant 25 : i32
    %111 = vector.broadcast %c25_i32_37 : i32 to vector<1x1x32xi32>
    %112 = arith.cmpi slt, %110, %111 : vector<1x1x32xi32>
    %cst_38 = arith.constant 0.000000e+00 : f32
    %cst_39 = arith.constant -1.000000e+30 : f32
    %113 = vector.broadcast %cst_38 : f32 to vector<1x1x32xf32>
    %114 = vector.broadcast %cst_39 : f32 to vector<1x1x32xf32>
    %115 = arith.select %112, %113, %114 : vector<1x1x32xi1>, vector<1x1x32xf32>
    %116 = vector.broadcast %115 : vector<1x1x32xf32> to vector<2x32x32xf32>
    %117 = arith.addf %109, %116 : vector<2x32x32xf32>
    %cst_40 = arith.constant dense<0xFF800000> : vector<2x32xf32>
    %118 = vector.multi_reduction <maximumf>, %117, %cst_40 [2] : vector<2x32x32xf32> to vector<2x32xf32>
    %119 = vector.shape_cast %118 : vector<2x32xf32> to vector<2x32x1xf32>
    %120 = vector.broadcast %119 : vector<2x32x1xf32> to vector<2x32x32xf32>
    %121 = arith.subf %117, %120 : vector<2x32x32xf32>
    %122 = math.exp %121 : vector<2x32x32xf32>
    %cst_41 = arith.constant dense<0.000000e+00> : vector<2x32xf32>
    %123 = vector.multi_reduction <add>, %122, %cst_41 [2] : vector<2x32x32xf32> to vector<2x32xf32>
    %124 = vector.shape_cast %123 : vector<2x32xf32> to vector<2x32x1xf32>
    %125 = tpu.reciprocal %124 {approx = true} : vector<2x32x1xf32> -> vector<2x32x1xf32>
    %126 = vector.broadcast %125 : vector<2x32x1xf32> to vector<2x32x32xf32>
    %127 = arith.mulf %122, %126 : vector<2x32x32xf32>
    %128 = arith.truncf %127 : vector<2x32x32xf32> to vector<2x32x32xbf16>
    %cst_42 = arith.constant dense<0.000000e+00> : vector<2x32x32xf32>
    %129 = tpu.matmul %128, %106, %cst_42 {dimension_numbers = #tpu.dot_dimension_numbers<[2], [1], [1], [2], [0, 0, 0, 1, 1, 2], [0], [0]>} : vector<2x32x32xbf16>, vector<2x32x32xbf16>, vector<2x32x32xf32> -> vector<2x32x32xf32>
    %130 = vector.extract_strided_slice %38 {offsets = [0, 0, 96], sizes = [2, 32, 32], strides = [1, 1, 1]} : vector<2x32x128xf32> to vector<2x32x32xf32>
    %131 = arith.truncf %130 : vector<2x32x32xf32> to vector<2x32x32xbf16>
    %132 = vector.extract_strided_slice %40 {offsets = [0, 0, 96], sizes = [2, 32, 32], strides = [1, 1, 1]} : vector<2x32x128xf32> to vector<2x32x32xf32>
    %133 = arith.truncf %132 : vector<2x32x32xf32> to vector<2x32x32xbf16>
    %134 = vector.extract_strided_slice %42 {offsets = [0, 0, 96], sizes = [2, 32, 32], strides = [1, 1, 1]} : vector<2x32x128xf32> to vector<2x32x32xf32>
    %135 = arith.truncf %134 : vector<2x32x32xf32> to vector<2x32x32xbf16>
    %cst_43 = arith.constant dense<0.000000e+00> : vector<2x32x32xf32>
    %136 = tpu.matmul %131, %133, %cst_43 {dimension_numbers = #tpu.dot_dimension_numbers<[2], [2], [1], [1], [0, 0, 0, 1, 1, 1], [0], [0]>} : vector<2x32x32xbf16>, vector<2x32x32xbf16>, vector<2x32x32xf32> -> vector<2x32x32xf32>
    %cst_44 = arith.constant 0.176776692 : f32
    %137 = vector.broadcast %cst_44 : f32 to vector<2x32x32xf32>
    %138 = arith.mulf %136, %137 : vector<2x32x32xf32>
    %139 = tpu.iota {dimensions = array<i32: 2>} : vector<1x1x32xi32>
    %c25_i32_45 = arith.constant 25 : i32
    %140 = vector.broadcast %c25_i32_45 : i32 to vector<1x1x32xi32>
    %141 = arith.cmpi slt, %139, %140 : vector<1x1x32xi32>
    %cst_46 = arith.constant 0.000000e+00 : f32
    %cst_47 = arith.constant -1.000000e+30 : f32
    %142 = vector.broadcast %cst_46 : f32 to vector<1x1x32xf32>
    %143 = vector.broadcast %cst_47 : f32 to vector<1x1x32xf32>
    %144 = arith.select %141, %142, %143 : vector<1x1x32xi1>, vector<1x1x32xf32>
    %145 = vector.broadcast %144 : vector<1x1x32xf32> to vector<2x32x32xf32>
    %146 = arith.addf %138, %145 : vector<2x32x32xf32>
    %cst_48 = arith.constant dense<0xFF800000> : vector<2x32xf32>
    %147 = vector.multi_reduction <maximumf>, %146, %cst_48 [2] : vector<2x32x32xf32> to vector<2x32xf32>
    %148 = vector.shape_cast %147 : vector<2x32xf32> to vector<2x32x1xf32>
    %149 = vector.broadcast %148 : vector<2x32x1xf32> to vector<2x32x32xf32>
    %150 = arith.subf %146, %149 : vector<2x32x32xf32>
    %151 = math.exp %150 : vector<2x32x32xf32>
    %cst_49 = arith.constant dense<0.000000e+00> : vector<2x32xf32>
    %152 = vector.multi_reduction <add>, %151, %cst_49 [2] : vector<2x32x32xf32> to vector<2x32xf32>
    %153 = vector.shape_cast %152 : vector<2x32xf32> to vector<2x32x1xf32>
    %154 = tpu.reciprocal %153 {approx = true} : vector<2x32x1xf32> -> vector<2x32x1xf32>
    %155 = vector.broadcast %154 : vector<2x32x1xf32> to vector<2x32x32xf32>
    %156 = arith.mulf %151, %155 : vector<2x32x32xf32>
    %157 = arith.truncf %156 : vector<2x32x32xf32> to vector<2x32x32xbf16>
    %cst_50 = arith.constant dense<0.000000e+00> : vector<2x32x32xf32>
    %158 = tpu.matmul %157, %135, %cst_50 {dimension_numbers = #tpu.dot_dimension_numbers<[2], [1], [1], [2], [0, 0, 0, 1, 1, 2], [0], [0]>} : vector<2x32x32xbf16>, vector<2x32x32xbf16>, vector<2x32x32xf32> -> vector<2x32x32xf32>
    %159 = tpu.concatenate %71, %100, %129, %158 in 2 : vector<2x32x32xf32>, vector<2x32x32xf32>, vector<2x32x32xf32>, vector<2x32x32xf32> -> vector<2x32x128xf32>
    %160 = vector.shape_cast %159 : vector<2x32x128xf32> to vector<64x128xf32>
    %161 = arith.truncf %160 : vector<64x128xf32> to vector<64x128xbf16>
    %c0_51 = arith.constant 0 : index
    %c0_52 = arith.constant 0 : index
    %c0_53 = arith.constant 0 : index
    %162 = vector.load %arg6[%c0_51, %c0_52, %c0_53] : memref<1x128x128xbf16, #tpu.memory_space<vmem>>, vector<1x128x128xbf16>
    %163 = vector.shape_cast %162 : vector<1x128x128xbf16> to vector<128x128xbf16>
    %cst_54 = arith.constant dense<0.000000e+00> : vector<64x128xf32>
    %164 = tpu.matmul %161, %163, %cst_54 {dimension_numbers = #tpu.dot_dimension_numbers<[1], [0], [0], [1], [0, 0, 1, 1], [], []>} : vector<64x128xbf16>, vector<128x128xbf16>, vector<64x128xf32> -> vector<64x128xf32>
    %c0_55 = arith.constant 0 : index
    %c0_56 = arith.constant 0 : index
    %c0_57 = arith.constant 0 : index
    %165 = vector.load %arg7[%c0_55, %c0_56, %c0_57] : memref<1x1x128xf32, #tpu.memory_space<vmem>>, vector<1x1x128xf32>
    %166 = vector.shape_cast %165 : vector<1x1x128xf32> to vector<1x128xf32>
    %167 = vector.broadcast %166 : vector<1x128xf32> to vector<64x128xf32>
    %168 = arith.addf %164, %167 : vector<64x128xf32>
    %c0_58 = arith.constant 0 : index
    %c0_59 = arith.constant 0 : index
    %c0_60 = arith.constant 0 : index
    %169 = vector.load %arg8[%c0_58, %c0_59, %c0_60] : memref<1x1x128xf32, #tpu.memory_space<vmem>>, vector<1x1x128xf32>
    %170 = vector.shape_cast %169 : vector<1x1x128xf32> to vector<1x128xf32>
    %171 = vector.broadcast %170 : vector<1x128xf32> to vector<64x128xf32>
    %172 = arith.mulf %171, %168 : vector<64x128xf32>
    %173 = arith.addf %4, %172 : vector<64x128xf32>
    %c0_61 = arith.constant 0 : index
    %c0_62 = arith.constant 0 : index
    %c0_63 = arith.constant 0 : index
    %174 = vector.load %arg9[%c0_61, %c0_62, %c0_63] : memref<1x1x128xf32, #tpu.memory_space<vmem>>, vector<1x1x128xf32>
    %175 = vector.shape_cast %174 : vector<1x1x128xf32> to vector<1x128xf32>
    %c0_64 = arith.constant 0 : index
    %c0_65 = arith.constant 0 : index
    %c0_66 = arith.constant 0 : index
    %176 = vector.load %arg10[%c0_64, %c0_65, %c0_66] : memref<1x1x128xf32, #tpu.memory_space<vmem>>, vector<1x1x128xf32>
    %177 = vector.shape_cast %176 : vector<1x1x128xf32> to vector<1x128xf32>
    %cst_67 = arith.constant dense<0.000000e+00> : vector<64xf32>
    %178 = vector.multi_reduction <add>, %173, %cst_67 [1] : vector<64x128xf32> to vector<64xf32>
    %179 = vector.shape_cast %178 : vector<64xf32> to vector<64x1xf32>
    %cst_68 = arith.constant 1.280000e+02 : f32
    %180 = vector.broadcast %cst_68 : f32 to vector<64x1xf32>
    %181 = arith.divf %179, %180 : vector<64x1xf32>
    %182 = vector.broadcast %181 : vector<64x1xf32> to vector<64x128xf32>
    %183 = arith.subf %173, %182 : vector<64x128xf32>
    %184 = arith.mulf %183, %183 : vector<64x128xf32>
    %cst_69 = arith.constant dense<0.000000e+00> : vector<64xf32>
    %185 = vector.multi_reduction <add>, %184, %cst_69 [1] : vector<64x128xf32> to vector<64xf32>
    %186 = vector.shape_cast %185 : vector<64xf32> to vector<64x1xf32>
    %cst_70 = arith.constant 1.280000e+02 : f32
    %187 = vector.broadcast %cst_70 : f32 to vector<64x1xf32>
    %188 = arith.divf %186, %187 : vector<64x1xf32>
    %cst_71 = arith.constant 9.99999997E-7 : f32
    %189 = vector.broadcast %cst_71 : f32 to vector<64x1xf32>
    %190 = arith.addf %188, %189 : vector<64x1xf32>
    %191 = math.rsqrt %190 : vector<64x1xf32>
    %192 = vector.broadcast %191 : vector<64x1xf32> to vector<64x128xf32>
    %193 = arith.mulf %183, %192 : vector<64x128xf32>
    %194 = vector.broadcast %175 : vector<1x128xf32> to vector<64x128xf32>
    %195 = arith.mulf %193, %194 : vector<64x128xf32>
    %196 = vector.broadcast %177 : vector<1x128xf32> to vector<64x128xf32>
    %197 = arith.addf %195, %196 : vector<64x128xf32>
    %198 = arith.truncf %197 : vector<64x128xf32> to vector<64x128xbf16>
    %c0_72 = arith.constant 0 : index
    %c0_73 = arith.constant 0 : index
    %c0_74 = arith.constant 0 : index
    %199 = vector.load %arg11[%c0_72, %c0_73, %c0_74] : memref<1x128x768xbf16, #tpu.memory_space<vmem>>, vector<1x128x768xbf16>
    %200 = vector.shape_cast %199 : vector<1x128x768xbf16> to vector<128x768xbf16>
    %cst_75 = arith.constant dense<0.000000e+00> : vector<64x768xf32>
    %201 = tpu.matmul %198, %200, %cst_75 {dimension_numbers = #tpu.dot_dimension_numbers<[1], [0], [0], [1], [0, 0, 1, 1], [], []>} : vector<64x128xbf16>, vector<128x768xbf16>, vector<64x768xf32> -> vector<64x768xf32>
    %c0_76 = arith.constant 0 : index
    %c0_77 = arith.constant 0 : index
    %c0_78 = arith.constant 0 : index
    %202 = vector.load %arg12[%c0_76, %c0_77, %c0_78] : memref<1x1x768xf32, #tpu.memory_space<vmem>>, vector<1x1x768xf32>
    %203 = vector.shape_cast %202 : vector<1x1x768xf32> to vector<1x768xf32>
    %204 = vector.broadcast %203 : vector<1x768xf32> to vector<64x768xf32>
    %205 = arith.addf %201, %204 : vector<64x768xf32>
    %206 = vector.extract_strided_slice %205 {offsets = [0, 0], sizes = [64, 384], strides = [1, 1]} : vector<64x768xf32> to vector<64x384xf32>
    %207 = arith.negf %206 : vector<64x384xf32>
    %208 = math.exp %207 : vector<64x384xf32>
    %cst_79 = arith.constant 1.000000e+00 : f32
    %209 = vector.broadcast %cst_79 : f32 to vector<64x384xf32>
    %210 = arith.addf %209, %208 : vector<64x384xf32>
    %211 = arith.divf %209, %210 : vector<64x384xf32>
    %212 = arith.mulf %206, %211 : vector<64x384xf32>
    %213 = vector.extract_strided_slice %205 {offsets = [0, 384], sizes = [64, 384], strides = [1, 1]} : vector<64x768xf32> to vector<64x384xf32>
    %214 = arith.mulf %212, %213 : vector<64x384xf32>
    %215 = arith.truncf %214 : vector<64x384xf32> to vector<64x384xbf16>
    %c0_80 = arith.constant 0 : index
    %c0_81 = arith.constant 0 : index
    %c0_82 = arith.constant 0 : index
    %216 = vector.load %arg13[%c0_80, %c0_81, %c0_82] : memref<1x384x128xbf16, #tpu.memory_space<vmem>>, vector<1x384x128xbf16>
    %217 = vector.shape_cast %216 : vector<1x384x128xbf16> to vector<384x128xbf16>
    %cst_83 = arith.constant dense<0.000000e+00> : vector<64x128xf32>
    %218 = tpu.matmul %215, %217, %cst_83 {dimension_numbers = #tpu.dot_dimension_numbers<[1], [0], [0], [1], [0, 0, 1, 1], [], []>} : vector<64x384xbf16>, vector<384x128xbf16>, vector<64x128xf32> -> vector<64x128xf32>
    %c0_84 = arith.constant 0 : index
    %c0_85 = arith.constant 0 : index
    %c0_86 = arith.constant 0 : index
    %219 = vector.load %arg14[%c0_84, %c0_85, %c0_86] : memref<1x1x128xf32, #tpu.memory_space<vmem>>, vector<1x1x128xf32>
    %220 = vector.shape_cast %219 : vector<1x1x128xf32> to vector<1x128xf32>
    %221 = vector.broadcast %220 : vector<1x128xf32> to vector<64x128xf32>
    %222 = arith.addf %218, %221 : vector<64x128xf32>
    %c0_87 = arith.constant 0 : index
    %c0_88 = arith.constant 0 : index
    %c0_89 = arith.constant 0 : index
    %223 = vector.load %arg15[%c0_87, %c0_88, %c0_89] : memref<1x1x128xf32, #tpu.memory_space<vmem>>, vector<1x1x128xf32>
    %224 = vector.shape_cast %223 : vector<1x1x128xf32> to vector<1x128xf32>
    %225 = vector.broadcast %224 : vector<1x128xf32> to vector<64x128xf32>
    %226 = arith.mulf %225, %222 : vector<64x128xf32>
    %227 = arith.addf %173, %226 : vector<64x128xf32>
    %228 = vector.shape_cast %227 : vector<64x128xf32> to vector<2x32x128xf32>
    %c0_90 = arith.constant 0 : index
    %c0_91 = arith.constant 0 : index
    %c0_92 = arith.constant 0 : index
    %229 = vector.load %arg22[%c0_90, %c0_91, %c0_92] : memref<2x32x128xf32, #tpu.memory_space<vmem>>, vector<2x32x128xf32>
    tpu.vector_store %arg22[%c0_90, %c0_91, %c0_92], %228 {strides = array<i32>} : memref<2x32x128xf32, #tpu.memory_space<vmem>>, vector<2x32x128xf32>,
    %c1_i32 = arith.constant 1 : i32
    %230 = arith.cmpi eq, %arg0, %c1_i32 : i32
    %231 = arith.extui %230 : i1 to i32
    %c0_i32_93 = arith.constant 0 : i32
    %232 = arith.cmpi ne, %231, %c0_i32_93 : i32
    scf.if %232 {
      %c0_97 = arith.constant 0 : index
      %c0_98 = arith.constant 0 : index
      %242 = vector.load %arg16[%c0_97, %c0_98] : memref<1x128xf32, #tpu.memory_space<vmem>>, vector<1x128xf32>
      %c0_99 = arith.constant 0 : index
      %c0_100 = arith.constant 0 : index
      %243 = vector.load %arg17[%c0_99, %c0_100] : memref<1x128xf32, #tpu.memory_space<vmem>>, vector<1x128xf32>
      %cst_101 = arith.constant dense<0.000000e+00> : vector<64xf32>
      %244 = vector.multi_reduction <add>, %227, %cst_101 [1] : vector<64x128xf32> to vector<64xf32>
      %245 = vector.shape_cast %244 : vector<64xf32> to vector<64x1xf32>
      %cst_102 = arith.constant 1.280000e+02 : f32
      %246 = vector.broadcast %cst_102 : f32 to vector<64x1xf32>
      %247 = arith.divf %245, %246 : vector<64x1xf32>
      %248 = vector.broadcast %247 : vector<64x1xf32> to vector<64x128xf32>
      %249 = arith.subf %227, %248 : vector<64x128xf32>
      %250 = arith.mulf %249, %249 : vector<64x128xf32>
      %cst_103 = arith.constant dense<0.000000e+00> : vector<64xf32>
      %251 = vector.multi_reduction <add>, %250, %cst_103 [1] : vector<64x128xf32> to vector<64xf32>
      %252 = vector.shape_cast %251 : vector<64xf32> to vector<64x1xf32>
      %cst_104 = arith.constant 1.280000e+02 : f32
      %253 = vector.broadcast %cst_104 : f32 to vector<64x1xf32>
      %254 = arith.divf %252, %253 : vector<64x1xf32>
      %cst_105 = arith.constant 9.99999997E-7 : f32
      %255 = vector.broadcast %cst_105 : f32 to vector<64x1xf32>
      %256 = arith.addf %254, %255 : vector<64x1xf32>
      %257 = math.rsqrt %256 : vector<64x1xf32>
      %258 = vector.broadcast %257 : vector<64x1xf32> to vector<64x128xf32>
      %259 = arith.mulf %249, %258 : vector<64x128xf32>
      %260 = vector.broadcast %242 : vector<1x128xf32> to vector<64x128xf32>
      %261 = arith.mulf %259, %260 : vector<64x128xf32>
      %262 = vector.broadcast %243 : vector<1x128xf32> to vector<64x128xf32>
      %263 = arith.addf %261, %262 : vector<64x128xf32>
      %264 = vector.shape_cast %263 : vector<64x128xf32> to vector<2x32x128xf32>
      %c0_106 = arith.constant 0 : index
      %c0_107 = arith.constant 0 : index
      %c0_108 = arith.constant 0 : index
      %265 = vector.load %arg18[%c0_106, %c0_107, %c0_108] : memref<2x32x128xf32, #tpu.memory_space<vmem>>, vector<2x32x128xf32>
      tpu.vector_store %arg18[%c0_106, %c0_107, %c0_108], %264 {strides = array<i32>} : memref<2x32x128xf32, #tpu.memory_space<vmem>>, vector<2x32x128xf32>,
    } else {
    }
    %c3_i32 = arith.constant 3 : i32
    %233 = arith.cmpi eq, %arg0, %c3_i32 : i32
    %234 = arith.extui %233 : i1 to i32
    %c0_i32_94 = arith.constant 0 : i32
    %235 = arith.cmpi ne, %234, %c0_i32_94 : i32
    scf.if %235 {
      %c0_97 = arith.constant 0 : index
      %c0_98 = arith.constant 0 : index
      %242 = vector.load %arg16[%c0_97, %c0_98] : memref<1x128xf32, #tpu.memory_space<vmem>>, vector<1x128xf32>
      %c0_99 = arith.constant 0 : index
      %c0_100 = arith.constant 0 : index
      %243 = vector.load %arg17[%c0_99, %c0_100] : memref<1x128xf32, #tpu.memory_space<vmem>>, vector<1x128xf32>
      %cst_101 = arith.constant dense<0.000000e+00> : vector<64xf32>
      %244 = vector.multi_reduction <add>, %227, %cst_101 [1] : vector<64x128xf32> to vector<64xf32>
      %245 = vector.shape_cast %244 : vector<64xf32> to vector<64x1xf32>
      %cst_102 = arith.constant 1.280000e+02 : f32
      %246 = vector.broadcast %cst_102 : f32 to vector<64x1xf32>
      %247 = arith.divf %245, %246 : vector<64x1xf32>
      %248 = vector.broadcast %247 : vector<64x1xf32> to vector<64x128xf32>
      %249 = arith.subf %227, %248 : vector<64x128xf32>
      %250 = arith.mulf %249, %249 : vector<64x128xf32>
      %cst_103 = arith.constant dense<0.000000e+00> : vector<64xf32>
      %251 = vector.multi_reduction <add>, %250, %cst_103 [1] : vector<64x128xf32> to vector<64xf32>
      %252 = vector.shape_cast %251 : vector<64xf32> to vector<64x1xf32>
      %cst_104 = arith.constant 1.280000e+02 : f32
      %253 = vector.broadcast %cst_104 : f32 to vector<64x1xf32>
      %254 = arith.divf %252, %253 : vector<64x1xf32>
      %cst_105 = arith.constant 9.99999997E-7 : f32
      %255 = vector.broadcast %cst_105 : f32 to vector<64x1xf32>
      %256 = arith.addf %254, %255 : vector<64x1xf32>
      %257 = math.rsqrt %256 : vector<64x1xf32>
      %258 = vector.broadcast %257 : vector<64x1xf32> to vector<64x128xf32>
      %259 = arith.mulf %249, %258 : vector<64x128xf32>
      %260 = vector.broadcast %242 : vector<1x128xf32> to vector<64x128xf32>
      %261 = arith.mulf %259, %260 : vector<64x128xf32>
      %262 = vector.broadcast %243 : vector<1x128xf32> to vector<64x128xf32>
      %263 = arith.addf %261, %262 : vector<64x128xf32>
      %264 = vector.shape_cast %263 : vector<64x128xf32> to vector<2x32x128xf32>
      %c0_106 = arith.constant 0 : index
      %c0_107 = arith.constant 0 : index
      %c0_108 = arith.constant 0 : index
      %265 = vector.load %arg19[%c0_106, %c0_107, %c0_108] : memref<2x32x128xf32, #tpu.memory_space<vmem>>, vector<2x32x128xf32>
      tpu.vector_store %arg19[%c0_106, %c0_107, %c0_108], %264 {strides = array<i32>} : memref<2x32x128xf32, #tpu.memory_space<vmem>>, vector<2x32x128xf32>,
    } else {
    }
    %c5_i32 = arith.constant 5 : i32
    %236 = arith.cmpi eq, %arg0, %c5_i32 : i32
    %237 = arith.extui %236 : i1 to i32
    %c0_i32_95 = arith.constant 0 : i32
    %238 = arith.cmpi ne, %237, %c0_i32_95 : i32
    scf.if %238 {
      %c0_97 = arith.constant 0 : index
      %c0_98 = arith.constant 0 : index
      %242 = vector.load %arg16[%c0_97, %c0_98] : memref<1x128xf32, #tpu.memory_space<vmem>>, vector<1x128xf32>
      %c0_99 = arith.constant 0 : index
      %c0_100 = arith.constant 0 : index
      %243 = vector.load %arg17[%c0_99, %c0_100] : memref<1x128xf32, #tpu.memory_space<vmem>>, vector<1x128xf32>
      %cst_101 = arith.constant dense<0.000000e+00> : vector<64xf32>
      %244 = vector.multi_reduction <add>, %227, %cst_101 [1] : vector<64x128xf32> to vector<64xf32>
      %245 = vector.shape_cast %244 : vector<64xf32> to vector<64x1xf32>
      %cst_102 = arith.constant 1.280000e+02 : f32
      %246 = vector.broadcast %cst_102 : f32 to vector<64x1xf32>
      %247 = arith.divf %245, %246 : vector<64x1xf32>
      %248 = vector.broadcast %247 : vector<64x1xf32> to vector<64x128xf32>
      %249 = arith.subf %227, %248 : vector<64x128xf32>
      %250 = arith.mulf %249, %249 : vector<64x128xf32>
      %cst_103 = arith.constant dense<0.000000e+00> : vector<64xf32>
      %251 = vector.multi_reduction <add>, %250, %cst_103 [1] : vector<64x128xf32> to vector<64xf32>
      %252 = vector.shape_cast %251 : vector<64xf32> to vector<64x1xf32>
      %cst_104 = arith.constant 1.280000e+02 : f32
      %253 = vector.broadcast %cst_104 : f32 to vector<64x1xf32>
      %254 = arith.divf %252, %253 : vector<64x1xf32>
      %cst_105 = arith.constant 9.99999997E-7 : f32
      %255 = vector.broadcast %cst_105 : f32 to vector<64x1xf32>
      %256 = arith.addf %254, %255 : vector<64x1xf32>
      %257 = math.rsqrt %256 : vector<64x1xf32>
      %258 = vector.broadcast %257 : vector<64x1xf32> to vector<64x128xf32>
      %259 = arith.mulf %249, %258 : vector<64x128xf32>
      %260 = vector.broadcast %242 : vector<1x128xf32> to vector<64x128xf32>
      %261 = arith.mulf %259, %260 : vector<64x128xf32>
      %262 = vector.broadcast %243 : vector<1x128xf32> to vector<64x128xf32>
      %263 = arith.addf %261, %262 : vector<64x128xf32>
      %264 = vector.shape_cast %263 : vector<64x128xf32> to vector<2x32x128xf32>
      %c0_106 = arith.constant 0 : index
      %c0_107 = arith.constant 0 : index
      %c0_108 = arith.constant 0 : index
      %265 = vector.load %arg20[%c0_106, %c0_107, %c0_108] : memref<2x32x128xf32, #tpu.memory_space<vmem>>, vector<2x32x128xf32>
      tpu.vector_store %arg20[%c0_106, %c0_107, %c0_108], %264 {strides = array<i32>} : memref<2x32x128xf32, #tpu.memory_space<vmem>>, vector<2x32x128xf32>,
    } else {
    }
    %c7_i32 = arith.constant 7 : i32
    %239 = arith.cmpi eq, %arg0, %c7_i32 : i32
    %240 = arith.extui %239 : i1 to i32
    %c0_i32_96 = arith.constant 0 : i32
    %241 = arith.cmpi ne, %240, %c0_i32_96 : i32
    scf.if %241 {
      %c0_97 = arith.constant 0 : index
      %c0_98 = arith.constant 0 : index
      %242 = vector.load %arg16[%c0_97, %c0_98] : memref<1x128xf32, #tpu.memory_space<vmem>>, vector<1x128xf32>
      %c0_99 = arith.constant 0 : index
      %c0_100 = arith.constant 0 : index
      %243 = vector.load %arg17[%c0_99, %c0_100] : memref<1x128xf32, #tpu.memory_space<vmem>>, vector<1x128xf32>
      %cst_101 = arith.constant dense<0.000000e+00> : vector<64xf32>
      %244 = vector.multi_reduction <add>, %227, %cst_101 [1] : vector<64x128xf32> to vector<64xf32>
      %245 = vector.shape_cast %244 : vector<64xf32> to vector<64x1xf32>
      %cst_102 = arith.constant 1.280000e+02 : f32
      %246 = vector.broadcast %cst_102 : f32 to vector<64x1xf32>
      %247 = arith.divf %245, %246 : vector<64x1xf32>
      %248 = vector.broadcast %247 : vector<64x1xf32> to vector<64x128xf32>
      %249 = arith.subf %227, %248 : vector<64x128xf32>
      %250 = arith.mulf %249, %249 : vector<64x128xf32>
      %cst_103 = arith.constant dense<0.000000e+00> : vector<64xf32>
      %251 = vector.multi_reduction <add>, %250, %cst_103 [1] : vector<64x128xf32> to vector<64xf32>
      %252 = vector.shape_cast %251 : vector<64xf32> to vector<64x1xf32>
      %cst_104 = arith.constant 1.280000e+02 : f32
      %253 = vector.broadcast %cst_104 : f32 to vector<64x1xf32>
      %254 = arith.divf %252, %253 : vector<64x1xf32>
      %cst_105 = arith.constant 9.99999997E-7 : f32
      %255 = vector.broadcast %cst_105 : f32 to vector<64x1xf32>
      %256 = arith.addf %254, %255 : vector<64x1xf32>
      %257 = math.rsqrt %256 : vector<64x1xf32>
      %258 = vector.broadcast %257 : vector<64x1xf32> to vector<64x128xf32>
      %259 = arith.mulf %249, %258 : vector<64x128xf32>
      %260 = vector.broadcast %242 : vector<1x128xf32> to vector<64x128xf32>
      %261 = arith.mulf %259, %260 : vector<64x128xf32>
      %262 = vector.broadcast %243 : vector<1x128xf32> to vector<64x128xf32>
      %263 = arith.addf %261, %262 : vector<64x128xf32>
      %264 = vector.shape_cast %263 : vector<64x128xf32> to vector<2x32x128xf32>
      %c0_106 = arith.constant 0 : index
      %c0_107 = arith.constant 0 : index
      %c0_108 = arith.constant 0 : index
      %265 = vector.load %arg21[%c0_106, %c0_107, %c0_108] : memref<2x32x128xf32, #tpu.memory_space<vmem>>, vector<2x32x128xf32>
      tpu.vector_store %arg21[%c0_106, %c0_107, %c0_108], %264 {strides = array<i32>} : memref<2x32x128xf32, #tpu.memory_space<vmem>>, vector<2x32x128xf32>,
    } else {
    }
    return
  }
  func.func @transform_1(%arg0: i32) -> (i32, i32, i32) {
    %c0_i32 = arith.constant 0 : i32
    %c0_i32_0 = arith.constant 0 : i32
    %c0_i32_1 = arith.constant 0 : i32
    return %arg0, %c0_i32, %c0_i32_0 : i32, i32, i32
  }
  func.func @transform_2(%arg0: i32) -> (i32, i32, i32) {
    %c0_i32 = arith.constant 0 : i32
    %c0_i32_0 = arith.constant 0 : i32
    %c0_i32_1 = arith.constant 0 : i32
    return %arg0, %c0_i32, %c0_i32_0 : i32, i32, i32
  }
  func.func @transform_3(%arg0: i32) -> (i32, i32, i32) {
    %c0_i32 = arith.constant 0 : i32
    %c0_i32_0 = arith.constant 0 : i32
    %c0_i32_1 = arith.constant 0 : i32
    return %arg0, %c0_i32, %c0_i32_0 : i32, i32, i32
  }
  func.func @transform_4(%arg0: i32) -> (i32, i32, i32) {
    %c0_i32 = arith.constant 0 : i32
    %c0_i32_0 = arith.constant 0 : i32
    %c0_i32_1 = arith.constant 0 : i32
    return %arg0, %c0_i32, %c0_i32_0 : i32, i32, i32
  }
  func.func @transform_5(%arg0: i32) -> (i32, i32, i32) {
    %c0_i32 = arith.constant 0 : i32
    %c0_i32_0 = arith.constant 0 : i32
    %c0_i32_1 = arith.constant 0 : i32
    return %arg0, %c0_i32, %c0_i32_0 : i32, i32, i32
  }
  func.func @transform_6(%arg0: i32) -> (i32, i32, i32) {
    %c0_i32 = arith.constant 0 : i32
    %c0_i32_0 = arith.constant 0 : i32
    %c0_i32_1 = arith.constant 0 : i32
    return %arg0, %c0_i32, %c0_i32_0 : i32, i32, i32
  }
  func.func @transform_7(%arg0: i32) -> (i32, i32, i32) {
    %c0_i32 = arith.constant 0 : i32
    %c0_i32_0 = arith.constant 0 : i32
    %c0_i32_1 = arith.constant 0 : i32
    return %arg0, %c0_i32, %c0_i32_0 : i32, i32, i32
  }
  func.func @transform_8(%arg0: i32) -> (i32, i32, i32) {
    %c0_i32 = arith.constant 0 : i32
    %c0_i32_0 = arith.constant 0 : i32
    %c0_i32_1 = arith.constant 0 : i32
    return %arg0, %c0_i32, %c0_i32_0 : i32, i32, i32
  }
  func.func @transform_9(%arg0: i32) -> (i32, i32, i32) {
    %c0_i32 = arith.constant 0 : i32
    %c0_i32_0 = arith.constant 0 : i32
    %c0_i32_1 = arith.constant 0 : i32
    return %arg0, %c0_i32, %c0_i32_0 : i32, i32, i32
  }
  func.func @transform_10(%arg0: i32) -> (i32, i32, i32) {
    %c0_i32 = arith.constant 0 : i32
    %c0_i32_0 = arith.constant 0 : i32
    %c0_i32_1 = arith.constant 0 : i32
    return %arg0, %c0_i32, %c0_i32_0 : i32, i32, i32
  }
  func.func @transform_11(%arg0: i32) -> (i32, i32, i32) {
    %c0_i32 = arith.constant 0 : i32
    %c0_i32_0 = arith.constant 0 : i32
    %c0_i32_1 = arith.constant 0 : i32
    return %arg0, %c0_i32, %c0_i32_0 : i32, i32, i32
  }
  func.func @transform_12(%arg0: i32) -> (i32, i32, i32) {
    %c0_i32 = arith.constant 0 : i32
    %c0_i32_0 = arith.constant 0 : i32
    %c0_i32_1 = arith.constant 0 : i32
    return %arg0, %c0_i32, %c0_i32_0 : i32, i32, i32
  }
  func.func @transform_13(%arg0: i32) -> (i32, i32, i32) {
    %c0_i32 = arith.constant 0 : i32
    %c0_i32_0 = arith.constant 0 : i32
    %c0_i32_1 = arith.constant 0 : i32
    return %arg0, %c0_i32, %c0_i32_0 : i32, i32, i32
  }
  func.func @transform_14(%arg0: i32) -> (i32, i32, i32) {
    %c0_i32 = arith.constant 0 : i32
    %c0_i32_0 = arith.constant 0 : i32
    %c0_i32_1 = arith.constant 0 : i32
    return %arg0, %c0_i32, %c0_i32_0 : i32, i32, i32
  }
  func.func @transform_15(%arg0: i32) -> (i32, i32) {
    %c0_i32 = arith.constant 0 : i32
    %c0_i32_0 = arith.constant 0 : i32
    %c0_i32_1 = arith.constant 0 : i32
    return %c0_i32, %c0_i32_0 : i32, i32
  }
  func.func @transform_16(%arg0: i32) -> (i32, i32) {
    %c0_i32 = arith.constant 0 : i32
    %c0_i32_0 = arith.constant 0 : i32
    %c0_i32_1 = arith.constant 0 : i32
    return %c0_i32, %c0_i32_0 : i32, i32
  }
  func.func @transform_17(%arg0: i32) -> (i32, i32, i32) {
    %c0_i32 = arith.constant 0 : i32
    %c0_i32_0 = arith.constant 0 : i32
    %c0_i32_1 = arith.constant 0 : i32
    %c0_i32_2 = arith.constant 0 : i32
    return %c0_i32, %c0_i32_0, %c0_i32_1 : i32, i32, i32
  }
  func.func @transform_18(%arg0: i32) -> (i32, i32, i32) {
    %c0_i32 = arith.constant 0 : i32
    %c0_i32_0 = arith.constant 0 : i32
    %c0_i32_1 = arith.constant 0 : i32
    %c0_i32_2 = arith.constant 0 : i32
    return %c0_i32, %c0_i32_0, %c0_i32_1 : i32, i32, i32
  }
  func.func @transform_19(%arg0: i32) -> (i32, i32, i32) {
    %c0_i32 = arith.constant 0 : i32
    %c0_i32_0 = arith.constant 0 : i32
    %c0_i32_1 = arith.constant 0 : i32
    %c0_i32_2 = arith.constant 0 : i32
    return %c0_i32, %c0_i32_0, %c0_i32_1 : i32, i32, i32
  }
  func.func @transform_20(%arg0: i32) -> (i32, i32, i32) {
    %c0_i32 = arith.constant 0 : i32
    %c0_i32_0 = arith.constant 0 : i32
    %c0_i32_1 = arith.constant 0 : i32
    %c0_i32_2 = arith.constant 0 : i32
    return %c0_i32, %c0_i32_0, %c0_i32_1 : i32, i32, i32
  }
}

</mosaic_0001>

<llo_original>
// kernel: uni2_forward.3
$region0: #{uni2_forward.3}
  #allocation0 [shape = 'u32[]', space=smem, size = 0x4, offset = 0x4, fixed_abs, tag = 'smem constant byte address 0x4 - core index']
  #allocation1 [shape = 'u32[144,128]{1,0:T(1,128)}', space=vmem, size = 0x12000, scoped, tag = 'internal scratch']
  %s0 = inlined_call_operand.hbm [shape: f32[6,64,64], index: 0, kind: input, shape index: {}]
  %s1 = inlined_call_operand.vmem [shape: f32[56,64], index: 1, kind: input, shape index: {}]
  %s2 = inlined_call_operand.vmem [shape: f32[64,56], index: 2, kind: input, shape index: {}]
  %s3 = inlined_call_operand.vmem [shape: f32[6,56,56], index: 3, kind: output, shape index: {}]
  %s4 = sld [smem:[#allocation0]]
  $region49: #{uni2_forward.3} parent=0
    _
  %s6 = ssub.s32 1, %s4
  %s7 = scalar_select 0, %s6, %s4
  $region1: #{uni2_forward.3} parent=0
    #allocation2 [shape = 'u8[65536]{0}', space=vmem, size = 0x10000, scoped, tag = 'input window, operand 0']
    #allocation3 [shape = 's32[2]{0}', space=sflag, size = 0x8, scoped, tag = 'scoped memory for uni2_forward.3']
    %8 = vsyncpa [#allocation3], 0
    %s9 = scalar_lea.sflag [#allocation3], 1
    %10 = vsyncpa %s9, 0
    loop: start=0, step=1, limit=8
    $region2: #{uni2_forward.3} parent=1 // loop_pre_header
      _
    $region3: #{uni2_forward.3} parent=1 // loop_header
      %s12 = sphi 0, %s16
      %p13 = scmp.ge.s32.totalorder %s12, 8
      %s22 = sphi 0, %s24
      %s25 = sphi 0, %s22
      %s26 = sphi 0, %s25
      %s42 = sphi 0, %s26
      %s46 = sphi 0, %s46
      %s48 = sphi 0, %s46
      %s49 = sphi 0, %s48
      %s63 = sphi 0, %s49
      %s67 = sphi 0, %s67
      %s69 = sphi 0, %s67
      %s70 = sphi 0, %s69
      %s84 = sphi 0, %s70
      %s90 = sphi 0, %s92
      %s93 = sphi 0, %s90
      %s94 = sphi 0, %s93
      %s110 = sphi 0, %s94
    $region4: #{uni2_forward.3} parent=1 // loop_header_branch
      %15 = sbr.rel (%p13) target = $region8
    $region5: #{uni2_forward.3} parent=1 // loop_body
      %s17 = ssub.s32 %s12, 1
      %s18 = ssub.s32 %s12, 2
      %s19 = sadd.s32 %s12, 1
      %s20 = ssub.s32 %s12, %s19
      %p21 = scmp.eq.s32.totalorder %s20, 0
      %s23 = sadd.s32 %s22, 1
      %s24 = scalar_select %p21, %s22, %s23
      %p27 = pneg %p21
      %p28 = scmp.eq.s32.totalorder %s12, 5
      %p29 = por %p27, %p28
      %p30 = scmp.ne.s32.totalorder %s22, %s25
      %p31 = scmp.eq.s32.totalorder %s12, 0
      %p32 = por %p30, %p31
      %p33 = scmp.ne.s32.totalorder %s22, %s25
      %p34 = scmp.eq.s32.totalorder %s17, 5
      %p35 = por %p33, %p34
      %p36 = scmp.ne.s32.totalorder %s25, %s26
      %p37 = scmp.eq.s32.totalorder %s17, 0
      %p38 = por %p36, %p37
      %p39 = scmp.ne.s32.totalorder %s25, %s26
      %p40 = scmp.eq.s32.totalorder %s18, 5
      %p41 = por %p39, %p40
      %p43 = scmp.ne.s32.totalorder %s26, %s42
      %p44 = scmp.eq.s32.totalorder %s18, 0
      %p45 = por %p43, %p44
      %s47 = sadd.s32 %s46, 1
      %p50 = scmp.eq.s32.totalorder %s12, 5
      %p51 = scmp.ne.s32.totalorder %s46, %s48
      %p52 = scmp.eq.s32.totalorder %s12, 0
      %p53 = por %p51, %p52
      %p54 = scmp.ne.s32.totalorder %s46, %s48
      %p55 = scmp.eq.s32.totalorder %s17, 5
      %p56 = por %p54, %p55
      %p57 = scmp.ne.s32.totalorder %s48, %s49
      %p58 = scmp.eq.s32.totalorder %s17, 0
      %p59 = por %p57, %p58
      %p60 = scmp.ne.s32.totalorder %s48, %s49
      %p61 = scmp.eq.s32.totalorder %s18, 5
      %p62 = por %p60, %p61
      %p64 = scmp.ne.s32.totalorder %s49, %s63
      %p65 = scmp.eq.s32.totalorder %s18, 0
      %p66 = por %p64, %p65
      %s68 = sadd.s32 %s67, 1
      %p71 = scmp.eq.s32.totalorder %s12, 5
      %p72 = scmp.ne.s32.totalorder %s67, %s69
      %p73 = scmp.eq.s32.totalorder %s12, 0
      %p74 = por %p72, %p73
      %p75 = scmp.ne.s32.totalorder %s67, %s69
      %p76 = scmp.eq.s32.totalorder %s17, 5
      %p77 = por %p75, %p76
      %p78 = scmp.ne.s32.totalorder %s69, %s70
      %p79 = scmp.eq.s32.totalorder %s17, 0
      %p80 = por %p78, %p79
      %p81 = scmp.ne.s32.totalorder %s69, %s70
      %p82 = scmp.eq.s32.totalorder %s18, 5
      %p83 = por %p81, %p82
      %p85 = scmp.ne.s32.totalorder %s70, %s84
      %p86 = scmp.eq.s32.totalorder %s18, 0
      %p87 = por %p85, %p86
      %s88 = ssub.s32 %s12, %s19
      %p89 = scmp.eq.s32.totalorder %s88, 0
      %s91 = sadd.s32 %s90, 1
      %s92 = scalar_select %p89, %s90, %s91
      %p95 = pneg %p89
      %p96 = scmp.eq.s32.totalorder %s12, 5
      %p97 = por %p95, %p96
      %p98 = scmp.ne.s32.totalorder %s90, %s93
      %p99 = scmp.eq.s32.totalorder %s12, 0
      %p100 = por %p98, %p99
      %p101 = scmp.ne.s32.totalorder %s90, %s93
      %p102 = scmp.eq.s32.totalorder %s17, 5
      %p103 = por %p101, %p102
      %p104 = scmp.ne.s32.totalorder %s93, %s94
      %p105 = scmp.eq.s32.totalorder %s17, 0
      %p106 = por %p104, %p105
      %p107 = scmp.ne.s32.totalorder %s93, %s94
      %p108 = scmp.eq.s32.totalorder %s18, 5
      %p109 = por %p107, %p108
      %p111 = scmp.ne.s32.totalorder %s94, %s110
      %p112 = scmp.eq.s32.totalorder %s18, 0
      %p113 = por %p111, %p112
      %p114 = scmp.le.s32.totalorder 1, %s12
      %p115 = scmp.lt.s32.totalorder %s12, 7
      %p116 = pnand %p114, %p115
      %p117 = pneg %p116
      // Predicated region
      $region9: #{uni2_forward.3} parent=5 // pred_check
        _
      $region10: #{uni2_forward.3} parent=5 // pred_check_branch
        %119 = sbr.rel (%p116) target = $region12
      $region11: #{uni2_forward.3} parent=5 // pred_region
        %s120 = ssub.s32 %s12, 1
        // Predicated region
        $region13: #{uni2_forward.3} parent=11 // pred_check
          %p121 = pneg %p59
        $region14: #{uni2_forward.3} parent=11 // pred_check_branch
          %123 = sbr.rel (%p121) target = $region16
        $region15: #{uni2_forward.3} parent=11 // pred_region
          _
        $region16: #{uni2_forward.3} parent=11 // pred_fallthru
          _
        // Predicated region
        $region17: #{uni2_forward.3} parent=11 // pred_check
          %p124 = pneg %p80
        $region18: #{uni2_forward.3} parent=11 // pred_check_branch
          %126 = sbr.rel (%p124) target = $region20
        $region19: #{uni2_forward.3} parent=11 // pred_region
          _
        $region20: #{uni2_forward.3} parent=11 // pred_fallthru
          _
      $region12: #{uni2_forward.3} parent=5 // pred_fallthru
        _
      %p127 = scmp.lt.s32.totalorder %s12, 6
      // Predicated region
      $region21: #{uni2_forward.3} parent=5 // pred_check
        %p128 = pneg %p127
      $region22: #{uni2_forward.3} parent=5 // pred_check_branch
        %130 = sbr.rel (%p128) target = $region24
      $region23: #{uni2_forward.3} parent=5 // pred_region
        // Predicated region
        $region25: #{uni2_forward.3} parent=23 // pred_check
          %p131 = pneg %p32
        $region26: #{uni2_forward.3} parent=23 // pred_check_branch
          %133 = sbr.rel (%p131) target = $region28
        $region27: #{uni2_forward.3} parent=23 // pred_region
          %s134 = sand.u32 %s22, 1
          %s135 = scalar_lea.sflag [#allocation3], %s134
          %s136 = sand.u32 %s22, 1
          %s137 = smul.addr %s136, 64
          %s138 = scalar_lea.vmem [#allocation2], %s137
          %s140 = ssub.s32 1024, 1024
          %141 = vsyncadd %s135, %s140
          %s142 = smul.addr %s12, 8
          %s143 = smul.addr %s142, 128
          %s144 = scalar_lea.hbm %s0, %s143
          %s145 = sshll.u32 %s138, 4
          %s146 = int_to_ptr.vmem [resolvable:$true] %s145
          %151 = dma.hbm_to_vmem [thread:$0]  %s144, 1024, %s146, %s135, 128, 128, 8
        $region28: #{uni2_forward.3} parent=23 // pred_fallthru
          _
      $region24: #{uni2_forward.3} parent=5 // pred_fallthru
        _
      %p152 = scmp.le.s32.totalorder 1, %s12
      %p153 = scmp.lt.s32.totalorder %s12, 7
      %p154 = pnand %p152, %p153
      %p155 = pneg %p154
      // Predicated region
      $region29: #{uni2_forward.3} parent=5 // pred_check
        _
      $region30: #{uni2_forward.3} parent=5 // pred_check_branch
        %157 = sbr.rel (%p154) target = $region32
      $region31: #{uni2_forward.3} parent=5 // pred_region
        %s158 = ssub.s32 %s12, 1
        %s159 = sand.u32 %s25, 1
        %s160 = scalar_lea.sflag [#allocation3], %s159
        %s161 = sand.u32 %s25, 1
        %s162 = smul.addr %s161, 64
        %s163 = scalar_lea.vmem [#allocation2], %s162
        // Predicated region
        $region33: #{uni2_forward.3} parent=31 // pred_check
          %p164 = pneg %p38
        $region34: #{uni2_forward.3} parent=31 // pred_check_branch
          %166 = sbr.rel (%p164) target = $region36
        $region35: #{uni2_forward.3} parent=31 // pred_region
          %167 = dma.done %s160, 1024
        $region36: #{uni2_forward.3} parent=31 // pred_fallthru
          _
        %s168 = sand.u32 %s25, 1
        %s169 = scalar_lea.sflag [#allocation3], %s168
        %s170 = sand.u32 %s25, 1
        %s171 = smul.addr %s170, 64
        %s172 = scalar_lea.vmem [#allocation2], %s171
        %p173 = pneg %p38
        %p174 = pneg %p35
        %p175 = pneg %p59
        %p176 = pneg %p56
        %p177 = pneg %p80
        %p178 = pneg %p77
        %p179 = pneg %p106
        %p180 = pneg %p103
        %p181 = scmp.lt.s32.totalorder %s17, 5
        %s182 = scalar_select %p181, %s17, 5
        %s183 = smul.addr %s182, 7
        %s184 = smul.addr %s183, 8
        %s185 = scalar_lea.vmem %s3, %s184
        %p186 = scmp.lt.s32.totalorder %s17, 5
        %s187 = scalar_select %p186, %s17, 5
        %s188 = smul.addr %s187, 7
        %s189 = smul.addr %s188, 8
        %s190 = scalar_lea.vmem %s3, %s189
        %v191 = vld [vmem:[%s1] sm:$0xff]
        %v192 = vld [vmem:[%s1 + $0x8] sm:$0xff]
        %v193 = vld [vmem:[%s1 + $0x10] sm:$0xff]
        %v194 = vld [vmem:[%s1 + $0x18] sm:$0xff]
        %v195 = vld [vmem:[%s1 + $0x20] sm:$0xff]
        %v196 = vld [vmem:[%s1 + $0x28] sm:$0xff]
        %v197 = vld [vmem:[%s1 + $0x30] sm:$0xff]
        %v198 = vld [vmem:[%s163] sm:$0xff]
        %v199 = vld [vmem:[%s163 + $0x8] sm:$0xff]
        %v200 = vld [vmem:[%s163 + $0x10] sm:$0xff]
        %v201 = vld [vmem:[%s163 + $0x18] sm:$0xff]
        %v202 = vld [vmem:[%s163 + $0x20] sm:$0xff]
        %v203 = vld [vmem:[%s163 + $0x28] sm:$0xff]
        %v204 = vld [vmem:[%s163 + $0x30] sm:$0xff]
        %v205 = vld [vmem:[%s163 + $0x38] sm:$0xff]
        %vm206 = vcmask 523264
        %v208 = vsel %vm206, %v191, 0
        %v211 = vsel %vm206, %v192, 0
        %v214 = vsel %vm206, %v193, 0
        %v217 = vsel %vm206, %v194, 0
        %v220 = vsel %vm206, %v195, 0
        %v223 = vsel %vm206, %v196, 0
        %v226 = vsel %vm206, %v197, 0
        %228 = vmatprep.subr.mxu0 0.0
        %229 = vmatpush1.msra.mxu0 0.0
        %230 = vmatprep.subr.mxu0 0.0
        %231 = vmatpush1.msra.mxu0 0.0
        %232 = vmatprep.subr.mxu0 0.0
        %233 = vmatpush1.msra.mxu0 0.0
        %234 = vmatprep.subr.mxu0 0.0
        %235 = vmatpush1.msra.mxu0 0.0
        %236 = vmatprep.subr.mxu0 0.0
        %237 = vmatpush1.msra.mxu0 0.0
        %238 = vmatprep.subr.mxu0 0.0
        %239 = vmatpush1.msra.mxu0 0.0
        %240 = vmatprep.subr.mxu0 0.0
        %241 = vmatpush1.msra.mxu0 0.0
        %242 = vmatprep.subr.mxu0 0.0
        %243 = vmatpush1.msra.mxu0 0.0
        %244 = vmatprep.subr.mxu0 0.0
        %245 = vmatpush1.msra.mxu0 %v205
        %246 = vmatprep.subr.mxu0 0.0
        %247 = vmatpush1.msra.mxu0 %v204
        %248 = vmatprep.subr.mxu0 0.0
        %249 = vmatpush1.msra.mxu0 %v203
        %250 = vmatprep.subr.mxu0 0.0
        %251 = vmatpush1.msra.mxu0 %v202
        %252 = vmatprep.subr.mxu0 0.0
        %253 = vmatpush1.msra.mxu0 %v201
        %254 = vmatprep.subr.mxu0 0.0
        %255 = vmatpush1.msra.mxu0 %v200
        %256 = vmatprep.subr.mxu0 0.0
        %257 = vmatpush1.msra.mxu0 %v199
        %258 = vmatprep.subr.mxu0 0.0
        %259 = vmatpush1.msra.mxu0 %v198
        %260 = vmatprep.subr.mxu0 0.0
        %261 = vmatpush2.msra.mxu0 0.0
        %262 = vmatprep.subr.mxu0 0.0
        %263 = vmatpush2.msra.mxu0 0.0
        %264 = vmatprep.subr.mxu0 0.0
        %265 = vmatpush2.msra.mxu0 0.0
        %266 = vmatprep.subr.mxu0 0.0
        %267 = vmatpush2.msra.mxu0 0.0
        %268 = vmatprep.subr.mxu0 0.0
        %269 = vmatpush2.msra.mxu0 0.0
        %270 = vmatprep.subr.mxu0 0.0
        %271 = vmatpush2.msra.mxu0 0.0
        %272 = vmatprep.subr.mxu0 0.0
        %273 = vmatpush2.msra.mxu0 0.0
        %274 = vmatprep.subr.mxu0 0.0
        %275 = vmatpush2.msra.mxu0 0.0
        %276 = vmatprep.subr.mxu0 0.0
        %277 = vmatpush2.msra.mxu0 0.0
        %278 = vmatprep.subr.mxu0 0.0
        %279 = vmatpush2.msra.mxu0 0.0
        %280 = vmatprep.subr.mxu0 0.0
        %281 = vmatpush2.msra.mxu0 0.0
        %282 = vmatprep.subr.mxu0 0.0
        %283 = vmatpush2.msra.mxu0 0.0
        %284 = vmatprep.subr.mxu0 0.0
        %285 = vmatpush2.msra.mxu0 0.0
        %286 = vmatprep.subr.mxu0 0.0
        %287 = vmatpush2.msra.mxu0 0.0
        %288 = vmatprep.subr.mxu0 0.0
        %289 = vmatpush2.msra.mxu0 0.0
        %290 = vmatprep.subr.mxu0 0.0
        %291 = vmatpush2.msra.mxu0 0.0
        %292 = vmatprep.mubr.f32.mxu0 0.0
        %293 = vmatmul.mubr.f32.gmra.mxu0 %v208
        %v294 = vpop.f32.mrf.mxu0
        %v295 = vadd.f32 0.0, %v294
        %v296 = vpop.f32.mrf.mxu0
        %297 = vmatprep.mubr.f32.mxu0 0.0
        %298 = vmatmul.mubr.f32.gmra.mxu0 %v211
        %v299 = vpop.f32.mrf.mxu0
        %v300 = vadd.f32 0.0, %v299
        %v301 = vpop.f32.mrf.mxu0
        %302 = vmatprep.mubr.f32.mxu0 0.0
        %303 = vmatmul.mubr.f32.gmra.mxu0 %v214
        %v304 = vpop.f32.mrf.mxu0
        %v305 = vadd.f32 0.0, %v304
        %v306 = vpop.f32.mrf.mxu0
        %307 = vmatprep.mubr.f32.mxu0 0.0
        %308 = vmatmul.mubr.f32.gmra.mxu0 %v217
        %v309 = vpop.f32.mrf.mxu0
        %v310 = vadd.f32 0.0, %v309
        %v311 = vpop.f32.mrf.mxu0
        %312 = vmatprep.mubr.f32.mxu0 0.0
        %313 = vmatmul.mubr.f32.gmra.mxu0 %v220
        %v314 = vpop.f32.mrf.mxu0
        %v315 = vadd.f32 0.0, %v314
        %v316 = vpop.f32.mrf.mxu0
        %317 = vmatprep.mubr.f32.mxu0 0.0
        %318 = vmatmul.mubr.f32.gmra.mxu0 %v223
        %v319 = vpop.f32.mrf.mxu0
        %v320 = vadd.f32 0.0, %v319
        %v321 = vpop.f32.mrf.mxu0
        %322 = vmatprep.mubr.f32.mxu0 0.0
        %323 = vmatmul.mubr.f32.gmra.mxu0 %v226
        %v324 = vpop.f32.mrf.mxu0
        %v325 = vadd.f32 0.0, %v324
        %v326 = vpop.f32.mrf.mxu0
        %327 = vdwg.mxu0
        %v328 = vld [vmem:[%s2] sm:$0xff]
        %v329 = vld [vmem:[%s2 + $0x8] sm:$0xff]
        %v330 = vld [vmem:[%s2 + $0x10] sm:$0xff]
        %v331 = vld [vmem:[%s2 + $0x18] sm:$0xff]
        %v332 = vld [vmem:[%s2 + $0x20] sm:$0xff]
        %v333 = vld [vmem:[%s2 + $0x28] sm:$0xff]
        %v334 = vld [vmem:[%s2 + $0x30] sm:$0xff]
        %v335 = vld [vmem:[%s2 + $0x38] sm:$0xff]
        %v337 = vsel %vm206, %v295, 0
        %v340 = vsel %vm206, %v300, 0
        %v343 = vsel %vm206, %v305, 0
        %v346 = vsel %vm206, %v310, 0
        %v349 = vsel %vm206, %v315, 0
        %v352 = vsel %vm206, %v320, 0
        %v355 = vsel %vm206, %v325, 0
        %357 = vmatprep.subr.mxu0 0.0
        %358 = vmatpush1.msra.mxu0 0.0
        %359 = vmatprep.subr.mxu0 0.0
        %360 = vmatpush1.msra.mxu0 0.0
        %361 = vmatprep.subr.mxu0 0.0
        %362 = vmatpush1.msra.mxu0 0.0
        %363 = vmatprep.subr.mxu0 0.0
        %364 = vmatpush1.msra.mxu0 0.0
        %365 = vmatprep.subr.mxu0 0.0
        %366 = vmatpush1.msra.mxu0 0.0
        %367 = vmatprep.subr.mxu0 0.0
        %368 = vmatpush1.msra.mxu0 0.0
        %369 = vmatprep.subr.mxu0 0.0
        %370 = vmatpush1.msra.mxu0 0.0
        %371 = vmatprep.subr.mxu0 0.0
        %372 = vmatpush1.msra.mxu0 0.0
        %373 = vmatprep.subr.mxu0 0.0
        %374 = vmatpush1.msra.mxu0 %v335
        %375 = vmatprep.subr.mxu0 0.0
        %376 = vmatpush1.msra.mxu0 %v334
        %377 = vmatprep.subr.mxu0 0.0
        %378 = vmatpush1.msra.mxu0 %v333
        %379 = vmatprep.subr.mxu0 0.0
        %380 = vmatpush1.msra.mxu0 %v332
        %381 = vmatprep.subr.mxu0 0.0
        %382 = vmatpush1.msra.mxu0 %v331
        %383 = vmatprep.subr.mxu0 0.0
        %384 = vmatpush1.msra.mxu0 %v330
        %385 = vmatprep.subr.mxu0 0.0
        %386 = vmatpush1.msra.mxu0 %v329
        %387 = vmatprep.subr.mxu0 0.0
        %388 = vmatpush1.msra.mxu0 %v328
        %389 = vmatprep.subr.mxu0 0.0
        %390 = vmatpush2.msra.mxu0 0.0
        %391 = vmatprep.subr.mxu0 0.0
        %392 = vmatpush2.msra.mxu0 0.0
        %393 = vmatprep.subr.mxu0 0.0
        %394 = vmatpush2.msra.mxu0 0.0
        %395 = vmatprep.subr.mxu0 0.0
        %396 = vmatpush2.msra.mxu0 0.0
        %397 = vmatprep.subr.mxu0 0.0
        %398 = vmatpush2.msra.mxu0 0.0
        %399 = vmatprep.subr.mxu0 0.0
        %400 = vmatpush2.msra.mxu0 0.0
        %401 = vmatprep.subr.mxu0 0.0
        %402 = vmatpush2.msra.mxu0 0.0
        %403 = vmatprep.subr.mxu0 0.0
        %404 = vmatpush2.msra.mxu0 0.0
        %405 = vmatprep.subr.mxu0 0.0
        %406 = vmatpush2.msra.mxu0 0.0
        %407 = vmatprep.subr.mxu0 0.0
        %408 = vmatpush2.msra.mxu0 0.0
        %409 = vmatprep.subr.mxu0 0.0
        %410 = vmatpush2.msra.mxu0 0.0
        %411 = vmatprep.subr.mxu0 0.0
        %412 = vmatpush2.msra.mxu0 0.0
        %413 = vmatprep.subr.mxu0 0.0
        %414 = vmatpush2.msra.mxu0 0.0
        %415 = vmatprep.subr.mxu0 0.0
        %416 = vmatpush2.msra.mxu0 0.0
        %417 = vmatprep.subr.mxu0 0.0
        %418 = vmatpush2.msra.mxu0 0.0
        %419 = vmatprep.subr.mxu0 0.0
        %420 = vmatpush2.msra.mxu0 0.0
        %421 = vmatprep.mubr.f32.mxu0 0.0
        %422 = vmatmul.mubr.f32.gmra.mxu0 %v337
        %v423 = vpop.f32.mrf.mxu0
        %v424 = vadd.f32 0.0, %v423
        %v425 = vpop.f32.mrf.mxu0
        %426 = vmatprep.mubr.f32.mxu0 0.0
        %427 = vmatmul.mubr.f32.gmra.mxu0 %v340
        %v428 = vpop.f32.mrf.mxu0
        %v429 = vadd.f32 0.0, %v428
        %v430 = vpop.f32.mrf.mxu0
        %431 = vmatprep.mubr.f32.mxu0 0.0
        %432 = vmatmul.mubr.f32.gmra.mxu0 %v343
        %v433 = vpop.f32.mrf.mxu0
        %v434 = vadd.f32 0.0, %v433
        %v435 = vpop.f32.mrf.mxu0
        %436 = vmatprep.mubr.f32.mxu0 0.0
        %437 = vmatmul.mubr.f32.gmra.mxu0 %v346
        %v438 = vpop.f32.mrf.mxu0
        %v439 = vadd.f32 0.0, %v438
        %v440 = vpop.f32.mrf.mxu0
        %441 = vmatprep.mubr.f32.mxu0 0.0
        %442 = vmatmul.mubr.f32.gmra.mxu0 %v349
        %v443 = vpop.f32.mrf.mxu0
        %v444 = vadd.f32 0.0, %v443
        %v445 = vpop.f32.mrf.mxu0
        %446 = vmatprep.mubr.f32.mxu0 0.0
        %447 = vmatmul.mubr.f32.gmra.mxu0 %v352
        %v448 = vpop.f32.mrf.mxu0
        %v449 = vadd.f32 0.0, %v448
        %v450 = vpop.f32.mrf.mxu0
        %451 = vmatprep.mubr.f32.mxu0 0.0
        %452 = vmatmul.mubr.f32.gmra.mxu0 %v355
        %v453 = vpop.f32.mrf.mxu0
        %v454 = vadd.f32 0.0, %v453
        %v455 = vpop.f32.mrf.mxu0
        %456 = vdwg.mxu0
        %vm457 = vcmask 457728
        %458 = vst.msk [vmem:[%s190] sm:$0xff] %vm457, %v424
        %459 = vst.msk [vmem:[%s190 + $0x8] sm:$0xff] %vm457, %v429
        %460 = vst.msk [vmem:[%s190 + $0x10] sm:$0xff] %vm457, %v434
        %461 = vst.msk [vmem:[%s190 + $0x18] sm:$0xff] %vm457, %v439
        %462 = vst.msk [vmem:[%s190 + $0x20] sm:$0xff] %vm457, %v444
        %463 = vst.msk [vmem:[%s190 + $0x28] sm:$0xff] %vm457, %v449
        %464 = vst.msk [vmem:[%s190 + $0x30] sm:$0xff] %vm457, %v454
        %p465 = scmp.lt.s32.totalorder %s17, 5
        %s466 = scalar_select %p465, %s17, 5
        %s467 = smul.addr %s466, 7
        %s468 = smul.addr %s467, 8
        %s469 = scalar_lea.vmem %s3, %s468
        // Predicated region
        $region37: #{uni2_forward.3} parent=31 // pred_check
          %p470 = pneg %p103
        $region38: #{uni2_forward.3} parent=31 // pred_check_branch
          %472 = sbr.rel (%p470) target = $region40
        $region39: #{uni2_forward.3} parent=31 // pred_region
          _
        $region40: #{uni2_forward.3} parent=31 // pred_fallthru
          _
      $region32: #{uni2_forward.3} parent=5 // pred_fallthru
        _
      %p473 = scmp.le.s32.totalorder 2, %s12
      // Predicated region
      $region41: #{uni2_forward.3} parent=5 // pred_check
        %p474 = pneg %p473
      $region42: #{uni2_forward.3} parent=5 // pred_check_branch
        %476 = sbr.rel (%p474) target = $region44
      $region43: #{uni2_forward.3} parent=5 // pred_region
        %s477 = ssub.s32 %s12, 2
        // Predicated region
        $region45: #{uni2_forward.3} parent=43 // pred_check
          %p478 = pneg %p109
        $region46: #{uni2_forward.3} parent=43 // pred_check_branch
          %480 = sbr.rel (%p478) target = $region48
        $region47: #{uni2_forward.3} parent=43 // pred_region
          %p481 = scmp.lt.s32.totalorder %s18, 5
          %s482 = scalar_select %p481, %s18, 5
          %s483 = smul.addr %s482, 7
          %s484 = smul.addr %s483, 8
          %s485 = scalar_lea.vmem %s3, %s484
        $region48: #{uni2_forward.3} parent=43 // pred_fallthru
          _
      $region44: #{uni2_forward.3} parent=5 // pred_fallthru
        _
    $region6: #{uni2_forward.3} parent=1 // loop_footer
      %s16 = sadd.s32 1, %s12
    $region7: #{uni2_forward.3} parent=1 // loop_footer_branch
      %11 = sbr.rel target = $region3
    $region8: #{uni2_forward.3} parent=1 // loop_exit
      _
    %486 = vsyncpa [#allocation3], 1
    %s487 = scalar_lea.sflag [#allocation3], 1
    %488 = vsyncpa %s487, 1

// kernel: uni2_forward.4
$region0: #{uni2_forward.4}
  #allocation0 [shape = 'u32[]', space=smem, size = 0x4, offset = 0x4, fixed_abs, tag = 'smem constant byte address 0x4 - core index']
  #allocation1 [shape = 'u32[144,128]{1,0:T(1,128)}', space=vmem, size = 0x12000, scoped, tag = 'internal scratch']
  %s0 = inlined_call_operand.vmem [shape: bf16[32,588], index: 0, kind: input, shape index: {}]
  %s1 = inlined_call_operand.hbm [shape: bf16[588,128], index: 1, kind: input, shape index: {}]
  %s2 = inlined_call_operand.vmem [shape: f32[1,128], index: 2, kind: input, shape index: {}]
  %s3 = inlined_call_operand.vmem [shape: f32[32,128], index: 3, kind: output, shape index: {}]
  %s4 = sld [smem:[#allocation0]]
  $region26: #{uni2_forward.4} parent=0
    _
  %s6 = ssub.s32 1, %s4
  %s7 = scalar_select 0, %s6, %s4
  $region1: #{uni2_forward.4} parent=0
    #allocation2 [shape = 'u8[151552]{0}', space=vmem, size = 0x25000, scoped, tag = 'input window, operand 1, single buffered']
    #allocation3 [shape = 's32[1]{0}', space=sflag, size = 0x4, scoped, tag = 'scoped memory for uni2_forward.4']
    %8 = vsyncpa [#allocation3], 0
    // Predicated region
    $region2: #{uni2_forward.4} parent=1 // pred_check
      _
    $region3: #{uni2_forward.4} parent=1 // pred_check_branch
      %10 = sbr.rel (0) target = $region5
    $region4: #{uni2_forward.4} parent=1 // pred_region
      _
    $region5: #{uni2_forward.4} parent=1 // pred_fallthru
      _
    // Predicated region
    $region6: #{uni2_forward.4} parent=1 // pred_check
      _
    $region7: #{uni2_forward.4} parent=1 // pred_check_branch
      %12 = sbr.rel (0) target = $region9
    $region8: #{uni2_forward.4} parent=1 // pred_region
      %s14 = ssub.s32 4736, 4736
      %15 = vsyncadd [#allocation3], %s14
      %s16 = sshll.u32 [#allocation2], 4
      %s17 = int_to_ptr.vmem [resolvable:$true] %s16
      %22 = dma.hbm_to_vmem [thread:$0]  %s1, 4736, %s17, [#allocation3], 64, 64, 4
    $region9: #{uni2_forward.4} parent=1 // pred_fallthru
      _
    // Predicated region
    $region10: #{uni2_forward.4} parent=1 // pred_check
      _
    $region11: #{uni2_forward.4} parent=1 // pred_check_branch
      %24 = sbr.rel (0) target = $region13
    $region12: #{uni2_forward.4} parent=1 // pred_region
      _
    $region13: #{uni2_forward.4} parent=1 // pred_fallthru
      _
    // Predicated region
    $region14: #{uni2_forward.4} parent=1 // pred_check
      _
    $region15: #{uni2_forward.4} parent=1 // pred_check_branch
      %26 = sbr.rel (0) target = $region17
    $region16: #{uni2_forward.4} parent=1 // pred_region
      %27 = dma.done [#allocation3], 4736
    $region17: #{uni2_forward.4} parent=1 // pred_fallthru
      _
    %v29 = vld [vmem:[%s0] sm:$0xff]
    %v30 = vld [vmem:[%s0 + $0x8] sm:$0xff]
    %v31 = vld [vmem:[%s0 + $0x10] sm:$0xf]
    %v32 = vld [vmem:[%s0 + $0x14] sm:$0xff]
    %v33 = vld [vmem:[%s0 + $0x1c] sm:$0xff]
    %v34 = vld [vmem:[%s0 + $0x24] sm:$0xf]
    %v35 = vld [vmem:[%s0 + $0x28] sm:$0xff]
    %v36 = vld [vmem:[%s0 + $0x30] sm:$0xff]
    %v37 = vld [vmem:[%s0 + $0x38] sm:$0xf]
    %v38 = vld [vmem:[%s0 + $0x3c] sm:$0xff]
    %v39 = vld [vmem:[%s0 + $0x44] sm:$0xff]
    %v40 = vld [vmem:[%s0 + $0x4c] sm:$0xf]
    %v41 = vld [vmem:[#allocation2] sm:$0xf]
    %v42 = vld [vmem:[#allocation2 + $0x4] sm:$0xf]
    %v43 = vld [vmem:[#allocation2 + $0x8] sm:$0xf]
    %v44 = vld [vmem:[#allocation2 + $0xc] sm:$0xf]
    %v45 = vld [vmem:[#allocation2 + $0x10] sm:$0xf]
    %v46 = vld [vmem:[#allocation2 + $0x14] sm:$0xf]
    %v47 = vld [vmem:[#allocation2 + $0x18] sm:$0xf]
    %v48 = vld [vmem:[#allocation2 + $0x1c] sm:$0xf]
    %v49 = vld [vmem:[#allocation2 + $0x20] sm:$0xf]
    %v50 = vld [vmem:[#allocation2 + $0x24] sm:$0xf]
    %v51 = vld [vmem:[#allocation2 + $0x28] sm:$0xf]
    %v52 = vld [vmem:[#allocation2 + $0x2c] sm:$0xf]
    %v53 = vld [vmem:[#allocation2 + $0x30] sm:$0xf]
    %v54 = vld [vmem:[#allocation2 + $0x34] sm:$0xf]
    %v55 = vld [vmem:[#allocation2 + $0x38] sm:$0xf]
    %v56 = vld [vmem:[#allocation2 + $0x3c] sm:$0xf]
    %v57 = vld [vmem:[#allocation2 + $0x40] sm:$0xf]
    %v58 = vld [vmem:[#allocation2 + $0x44] sm:$0xf]
    %v59 = vld [vmem:[#allocation2 + $0x48] sm:$0xf]
    %v60 = vld [vmem:[#allocation2 + $0x4c] sm:$0xf]
    %v61 = vld [vmem:[#allocation2 + $0x50] sm:$0xf]
    %v62 = vld [vmem:[#allocation2 + $0x54] sm:$0xf]
    %v63 = vld [vmem:[#allocation2 + $0x58] sm:$0xf]
    %v64 = vld [vmem:[#allocation2 + $0x5c] sm:$0xf]
    %v65 = vld [vmem:[#allocation2 + $0x60] sm:$0xf]
    %v66 = vld [vmem:[#allocation2 + $0x64] sm:$0xf]
    %v67 = vld [vmem:[#allocation2 + $0x68] sm:$0xf]
    %v68 = vld [vmem:[#allocation2 + $0x6c] sm:$0xf]
    %v69 = vld [vmem:[#allocation2 + $0x70] sm:$0xf]
    %v70 = vld [vmem:[#allocation2 + $0x74] sm:$0xf]
    %v71 = vld [vmem:[#allocation2 + $0x78] sm:$0xf]
    %v72 = vld [vmem:[#allocation2 + $0x7c] sm:$0xf]
    %v73 = vld [vmem:[#allocation2 + $0x80] sm:$0xf]
    %v74 = vld [vmem:[#allocation2 + $0x84] sm:$0xf]
    %v75 = vld [vmem:[#allocation2 + $0x88] sm:$0xf]
    %v76 = vld [vmem:[#allocation2 + $0x8c] sm:$0xf]
    %v77 = vld [vmem:[#allocation2 + $0x90] sm:$0xf]
    %v78 = vld [vmem:[#allocation2 + $0x94] sm:$0xf]
    %v79 = vld [vmem:[#allocation2 + $0x98] sm:$0xf]
    %v80 = vld [vmem:[#allocation2 + $0x9c] sm:$0xf]
    %v81 = vld [vmem:[#allocation2 + $0xa0] sm:$0xf]
    %v82 = vld [vmem:[#allocation2 + $0xa4] sm:$0xf]
    %v83 = vld [vmem:[#allocation2 + $0xa8] sm:$0xf]
    %v84 = vld [vmem:[#allocation2 + $0xac] sm:$0xf]
    %v85 = vld [vmem:[#allocation2 + $0xb0] sm:$0xf]
    %v86 = vld [vmem:[#allocation2 + $0xb4] sm:$0xf]
    %v87 = vld [vmem:[#allocation2 + $0xb8] sm:$0xf]
    %v88 = vld [vmem:[#allocation2 + $0xbc] sm:$0xf]
    %v89 = vld [vmem:[#allocation2 + $0xc0] sm:$0xf]
    %v90 = vld [vmem:[#allocation2 + $0xc4] sm:$0xf]
    %v91 = vld [vmem:[#allocation2 + $0xc8] sm:$0xf]
    %v92 = vld [vmem:[#allocation2 + $0xcc] sm:$0xf]
    %v93 = vld [vmem:[#allocation2 + $0xd0] sm:$0xf]
    %v94 = vld [vmem:[#allocation2 + $0xd4] sm:$0xf]
    %v95 = vld [vmem:[#allocation2 + $0xd8] sm:$0xf]
    %v96 = vld [vmem:[#allocation2 + $0xdc] sm:$0xf]
    %v97 = vld [vmem:[#allocation2 + $0xe0] sm:$0xf]
    %v98 = vld [vmem:[#allocation2 + $0xe4] sm:$0xf]
    %v99 = vld [vmem:[#allocation2 + $0xe8] sm:$0xf]
    %v100 = vld [vmem:[#allocation2 + $0xec] sm:$0xf]
    %v101 = vld [vmem:[#allocation2 + $0xf0] sm:$0xf]
    %v102 = vld [vmem:[#allocation2 + $0xf4] sm:$0xf]
    %v103 = vld [vmem:[#allocation2 + $0xf8] sm:$0xf]
    %v104 = vld [vmem:[#allocation2 + $0xfc] sm:$0xf]
    %v105 = vld [vmem:[#allocation2 + $0x100] sm:$0xf]
    %v106 = vld [vmem:[#allocation2 + $0x104] sm:$0xf]
    %v107 = vld [vmem:[#allocation2 + $0x108] sm:$0xf]
    %v108 = vld [vmem:[#allocation2 + $0x10c] sm:$0xf]
    %v109 = vld [vmem:[#allocation2 + $0x110] sm:$0xf]
    %v110 = vld [vmem:[#allocation2 + $0x114] sm:$0xf]
    %v111 = vld [vmem:[#allocation2 + $0x118] sm:$0xf]
    %v112 = vld [vmem:[#allocation2 + $0x11c] sm:$0xf]
    %v113 = vld [vmem:[#allocation2 + $0x120] sm:$0xf]
    %v114 = vld [vmem:[#allocation2 + $0x124] sm:$0x3]
    %v115 = vld [vmem:[%s2] sm:$0x1]
    %v117 = vlaneseq
    %v118 = vshrl.u32 %v117, 7
    %v119 = vsub.s32 0, %v118
    %v120 = vrot.slane %v115, %v119
    %v134 = vunpack.c.l.b16 %v29
    %v135 = vunpack.c.h.b16 %v29
    %v136 = vunpack.c.l.b16 %v30
    %v137 = vunpack.c.h.b16 %v30
    %v138 = vunpack.c.l.b16 %v31
    %v139 = vunpack.c.l.b16 %v32
    %v140 = vunpack.c.h.b16 %v32
    %v141 = vunpack.c.l.b16 %v33
    %v142 = vunpack.c.h.b16 %v33
    %v143 = vunpack.c.l.b16 %v34
    %v144 = vunpack.c.l.b16 %v35
    %v145 = vunpack.c.h.b16 %v35
    %v146 = vunpack.c.l.b16 %v36
    %v147 = vunpack.c.h.b16 %v36
    %v148 = vunpack.c.l.b16 %v37
    %v149 = vunpack.c.l.b16 %v38
    %v150 = vunpack.c.h.b16 %v38
    %v151 = vunpack.c.l.b16 %v39
    %v152 = vunpack.c.h.b16 %v39
    %v153 = vunpack.c.l.b16 %v40
    %v154 = vpack.c.b16 %v139, %v134
    %v155 = vpack.c.b16 %v140, %v135
    %v156 = vpack.c.b16 %v141, %v136
    %v157 = vpack.c.b16 %v142, %v137
    %v158 = vpack.c.b16 %v143, %v138
    %v159 = vpack.c.b16 %v149, %v144
    %v160 = vpack.c.b16 %v150, %v145
    %v161 = vpack.c.b16 %v151, %v146
    %v162 = vpack.c.b16 %v152, %v147
    %v163 = vpack.c.b16 %v153, %v148
    %v246 = vunpack.c.l.b16 %v41
    %v247 = vunpack.c.l.b16 %v42
    %v248 = vunpack.c.l.b16 %v43
    %v249 = vunpack.c.l.b16 %v44
    %v250 = vunpack.c.l.b16 %v45
    %v251 = vunpack.c.l.b16 %v46
    %v252 = vunpack.c.l.b16 %v47
    %v253 = vunpack.c.l.b16 %v48
    %v254 = vunpack.c.l.b16 %v49
    %v255 = vunpack.c.l.b16 %v50
    %v256 = vunpack.c.l.b16 %v51
    %v257 = vunpack.c.l.b16 %v52
    %v258 = vunpack.c.l.b16 %v53
    %v259 = vunpack.c.l.b16 %v54
    %v260 = vunpack.c.l.b16 %v55
    %v261 = vunpack.c.l.b16 %v56
    %v262 = vunpack.c.l.b16 %v57
    %v263 = vunpack.c.l.b16 %v58
    %v264 = vunpack.c.l.b16 %v59
    %v265 = vunpack.c.l.b16 %v60
    %v266 = vunpack.c.l.b16 %v61
    %v267 = vunpack.c.l.b16 %v62
    %v268 = vunpack.c.l.b16 %v63
    %v269 = vunpack.c.l.b16 %v64
    %v270 = vunpack.c.l.b16 %v65
    %v271 = vunpack.c.l.b16 %v66
    %v272 = vunpack.c.l.b16 %v67
    %v273 = vunpack.c.l.b16 %v68
    %v274 = vunpack.c.l.b16 %v69
    %v275 = vunpack.c.l.b16 %v70
    %v276 = vunpack.c.l.b16 %v71
    %v277 = vunpack.c.l.b16 %v72
    %v278 = vunpack.c.l.b16 %v73
    %v279 = vunpack.c.l.b16 %v74
    %v280 = vunpack.c.l.b16 %v75
    %v281 = vunpack.c.l.b16 %v76
    %v282 = vunpack.c.l.b16 %v77
    %v283 = vunpack.c.l.b16 %v78
    %v284 = vunpack.c.l.b16 %v79
    %v285 = vunpack.c.l.b16 %v80
    %v286 = vunpack.c.l.b16 %v81
    %v287 = vunpack.c.l.b16 %v82
    %v288 = vunpack.c.l.b16 %v83
    %v289 = vunpack.c.l.b16 %v84
    %v290 = vunpack.c.l.b16 %v85
    %v291 = vunpack.c.l.b16 %v86
    %v292 = vunpack.c.l.b16 %v87
    %v293 = vunpack.c.l.b16 %v88
    %v294 = vunpack.c.l.b16 %v89
    %v295 = vunpack.c.l.b16 %v90
    %v296 = vunpack.c.l.b16 %v91
    %v297 = vunpack.c.l.b16 %v92
    %v298 = vunpack.c.l.b16 %v93
    %v299 = vunpack.c.l.b16 %v94
    %v300 = vunpack.c.l.b16 %v95
    %v301 = vunpack.c.l.b16 %v96
    %v302 = vunpack.c.l.b16 %v97
    %v303 = vunpack.c.l.b16 %v98
    %v304 = vunpack.c.l.b16 %v99
    %v305 = vunpack.c.l.b16 %v100
    %v306 = vunpack.c.l.b16 %v101
    %v307 = vunpack.c.l.b16 %v102
    %v308 = vunpack.c.l.b16 %v103
    %v309 = vunpack.c.l.b16 %v104
    %v310 = vunpack.c.l.b16 %v105
    %v311 = vunpack.c.l.b16 %v106
    %v312 = vunpack.c.l.b16 %v107
    %v313 = vunpack.c.l.b16 %v108
    %v314 = vunpack.c.l.b16 %v109
    %v315 = vunpack.c.l.b16 %v110
    %v316 = vunpack.c.l.b16 %v111
    %v317 = vunpack.c.l.b16 %v112
    %v318 = vunpack.c.l.b16 %v113
    %v319 = vunpack.c.l.b16 %v114
    %v320 = vpack.c.b16 %v247, %v246
    %v321 = vpack.c.b16 %v249, %v248
    %v322 = vpack.c.b16 %v251, %v250
    %v323 = vpack.c.b16 %v253, %v252
    %v324 = vpack.c.b16 %v255, %v254
    %v325 = vpack.c.b16 %v257, %v256
    %v326 = vpack.c.b16 %v259, %v258
    %v327 = vpack.c.b16 %v261, %v260
    %v328 = vpack.c.b16 %v263, %v262
    %v329 = vpack.c.b16 %v265, %v264
    %v330 = vpack.c.b16 %v267, %v266
    %v331 = vpack.c.b16 %v269, %v268
    %v332 = vpack.c.b16 %v271, %v270
    %v333 = vpack.c.b16 %v273, %v272
    %v334 = vpack.c.b16 %v275, %v274
    %v335 = vpack.c.b16 %v277, %v276
    %v336 = vpack.c.b16 %v279, %v278
    %v337 = vpack.c.b16 %v281, %v280
    %v338 = vpack.c.b16 %v283, %v282
    %v339 = vpack.c.b16 %v285, %v284
    %v340 = vpack.c.b16 %v287, %v286
    %v341 = vpack.c.b16 %v289, %v288
    %v342 = vpack.c.b16 %v291, %v290
    %v343 = vpack.c.b16 %v293, %v292
    %v344 = vpack.c.b16 %v295, %v294
    %v345 = vpack.c.b16 %v297, %v296
    %v346 = vpack.c.b16 %v299, %v298
    %v347 = vpack.c.b16 %v301, %v300
    %v348 = vpack.c.b16 %v303, %v302
    %v349 = vpack.c.b16 %v305, %v304
    %v350 = vpack.c.b16 %v307, %v306
    %v351 = vpack.c.b16 %v309, %v308
    %v352 = vpack.c.b16 %v311, %v310
    %v353 = vpack.c.b16 %v313, %v312
    %v354 = vpack.c.b16 %v315, %v314
    %v355 = vpack.c.b16 %v317, %v316
    %v356 = vpack.c.b16 %v319, %v318
    %vm393 = vcmask 621568
    %v395 = vsel %vm393, %v158, 0
    %v398 = vsel %vm393, %v163, 0
    %vm400 = vcmask 1045504
    %v402 = vsel %vm400, %v356, 0
    %404 = vmatprep.subr.bf16.mxu0 0
    %405 = vmatpush1.bf16.msra.mxu0 %v327
    %406 = vmatprep.subr.bf16.mxu0 0
    %407 = vmatpush1.bf16.msra.mxu0 %v326
    %408 = vmatprep.subr.bf16.mxu0 0
    %409 = vmatpush1.bf16.msra.mxu0 %v325
    %410 = vmatprep.subr.bf16.mxu0 0
    %411 = vmatpush1.bf16.msra.mxu0 %v324
    %412 = vmatprep.subr.bf16.mxu0 0
    %413 = vmatpush1.bf16.msra.mxu0 %v323
    %414 = vmatprep.subr.bf16.mxu0 0
    %415 = vmatpush1.bf16.msra.mxu0 %v322
    %416 = vmatprep.subr.bf16.mxu0 0
    %417 = vmatpush1.bf16.msra.mxu0 %v321
    %418 = vmatprep.subr.bf16.mxu0 0
    %419 = vmatpush1.bf16.msra.mxu0 %v320
    %420 = vmatprep.subr.bf16.mxu0 0
    %421 = vmatpush2.bf16.msra.mxu0 %v335
    %422 = vmatprep.subr.bf16.mxu0 0
    %423 = vmatpush2.bf16.msra.mxu0 %v334
    %424 = vmatprep.subr.bf16.mxu0 0
    %425 = vmatpush2.bf16.msra.mxu0 %v333
    %426 = vmatprep.subr.bf16.mxu0 0
    %427 = vmatpush2.bf16.msra.mxu0 %v332
    %428 = vmatprep.subr.bf16.mxu0 0
    %429 = vmatpush2.bf16.msra.mxu0 %v331
    %430 = vmatprep.subr.bf16.mxu0 0
    %431 = vmatpush2.bf16.msra.mxu0 %v330
    %432 = vmatprep.subr.bf16.mxu0 0
    %433 = vmatpush2.bf16.msra.mxu0 %v329
    %434 = vmatprep.subr.bf16.mxu0 0
    %435 = vmatpush2.bf16.msra.mxu0 %v328
    %436 = vmatprep.mubr.bf16.mxu0 %v155
    %437 = vmatmul.mubr.bf16.gmra.mxu0 %v154
    %v438 = vpop.f32.mrf.mxu0
    %v439 = vadd.f32 %v120, %v438
    %v440 = vpop.f32.mrf.mxu0
    %v441 = vpop.f32.mrf.mxu0
    %v442 = vadd.f32 %v120, %v441
    %v443 = vpop.f32.mrf.mxu0
    %444 = vmatprep.mubr.bf16.mxu0 %v160
    %445 = vmatmul.mubr.bf16.gmra.mxu0 %v159
    %v446 = vpop.f32.mrf.mxu0
    %v447 = vadd.f32 %v120, %v446
    %v448 = vpop.f32.mrf.mxu0
    %v449 = vpop.f32.mrf.mxu0
    %v450 = vadd.f32 %v120, %v449
    %v451 = vpop.f32.mrf.mxu0
    %452 = vdwg.mxu0
    %453 = vmatprep.subr.bf16.mxu0 0
    %454 = vmatpush1.bf16.msra.mxu0 %v343
    %455 = vmatprep.subr.bf16.mxu0 0
    %456 = vmatpush1.bf16.msra.mxu0 %v342
    %457 = vmatprep.subr.bf16.mxu0 0
    %458 = vmatpush1.bf16.msra.mxu0 %v341
    %459 = vmatprep.subr.bf16.mxu0 0
    %460 = vmatpush1.bf16.msra.mxu0 %v340
    %461 = vmatprep.subr.bf16.mxu0 0
    %462 = vmatpush1.bf16.msra.mxu0 %v339
    %463 = vmatprep.subr.bf16.mxu0 0
    %464 = vmatpush1.bf16.msra.mxu0 %v338
    %465 = vmatprep.subr.bf16.mxu0 0
    %466 = vmatpush1.bf16.msra.mxu0 %v337
    %467 = vmatprep.subr.bf16.mxu0 0
    %468 = vmatpush1.bf16.msra.mxu0 %v336
    %469 = vmatprep.subr.bf16.mxu0 0
    %470 = vmatpush2.bf16.msra.mxu0 %v351
    %471 = vmatprep.subr.bf16.mxu0 0
    %472 = vmatpush2.bf16.msra.mxu0 %v350
    %473 = vmatprep.subr.bf16.mxu0 0
    %474 = vmatpush2.bf16.msra.mxu0 %v349
    %475 = vmatprep.subr.bf16.mxu0 0
    %476 = vmatpush2.bf16.msra.mxu0 %v348
    %477 = vmatprep.subr.bf16.mxu0 0
    %478 = vmatpush2.bf16.msra.mxu0 %v347
    %479 = vmatprep.subr.bf16.mxu0 0
    %480 = vmatpush2.bf16.msra.mxu0 %v346
    %481 = vmatprep.subr.bf16.mxu0 0
    %482 = vmatpush2.bf16.msra.mxu0 %v345
    %483 = vmatprep.subr.bf16.mxu0 0
    %484 = vmatpush2.bf16.msra.mxu0 %v344
    %485 = vmatprep.mubr.bf16.mxu0 %v157
    %486 = vmatmul.mubr.bf16.gmra.mxu0 %v156
    %v487 = vpop.f32.mrf.mxu0
    %v488 = vadd.f32 %v439, %v487
    %v489 = vpop.f32.mrf.mxu0
    %v490 = vpop.f32.mrf.mxu0
    %v491 = vadd.f32 %v442, %v490
    %v492 = vpop.f32.mrf.mxu0
    %493 = vmatprep.mubr.bf16.mxu0 %v162
    %494 = vmatmul.mubr.bf16.gmra.mxu0 %v161
    %v495 = vpop.f32.mrf.mxu0
    %v496 = vadd.f32 %v447, %v495
    %v497 = vpop.f32.mrf.mxu0
    %v498 = vpop.f32.mrf.mxu0
    %v499 = vadd.f32 %v450, %v498
    %v500 = vpop.f32.mrf.mxu0
    %501 = vdwg.mxu0
    %502 = vmatprep.subr.bf16.mxu0 0
    %503 = vmatpush1.bf16.msra.mxu0 0
    %504 = vmatprep.subr.bf16.mxu0 0
    %505 = vmatpush1.bf16.msra.mxu0 0
    %506 = vmatprep.subr.bf16.mxu0 0
    %507 = vmatpush1.bf16.msra.mxu0 0
    %508 = vmatprep.subr.bf16.mxu0 0
    %509 = vmatpush1.bf16.msra.mxu0 %v402
    %510 = vmatprep.subr.bf16.mxu0 0
    %511 = vmatpush1.bf16.msra.mxu0 %v355
    %512 = vmatprep.subr.bf16.mxu0 0
    %513 = vmatpush1.bf16.msra.mxu0 %v354
    %514 = vmatprep.subr.bf16.mxu0 0
    %515 = vmatpush1.bf16.msra.mxu0 %v353
    %516 = vmatprep.subr.bf16.mxu0 0
    %517 = vmatpush1.bf16.msra.mxu0 %v352
    %518 = vmatprep.subr.bf16.mxu0 0
    %519 = vmatpush2.bf16.msra.mxu0 0
    %520 = vmatprep.subr.bf16.mxu0 0
    %521 = vmatpush2.bf16.msra.mxu0 0
    %522 = vmatprep.subr.bf16.mxu0 0
    %523 = vmatpush2.bf16.msra.mxu0 0
    %524 = vmatprep.subr.bf16.mxu0 0
    %525 = vmatpush2.bf16.msra.mxu0 0
    %526 = vmatprep.subr.bf16.mxu0 0
    %527 = vmatpush2.bf16.msra.mxu0 0
    %528 = vmatprep.subr.bf16.mxu0 0
    %529 = vmatpush2.bf16.msra.mxu0 0
    %530 = vmatprep.subr.bf16.mxu0 0
    %531 = vmatpush2.bf16.msra.mxu0 0
    %532 = vmatprep.subr.bf16.mxu0 0
    %533 = vmatpush2.bf16.msra.mxu0 0
    %534 = vmatprep.mubr.bf16.mxu0 0
    %535 = vmatmul.mubr.bf16.gmra.mxu0 %v395
    %v536 = vpop.f32.mrf.mxu0
    %v537 = vadd.f32 %v488, %v536
    %v538 = vpop.f32.mrf.mxu0
    %v539 = vpop.f32.mrf.mxu0
    %v540 = vadd.f32 %v491, %v539
    %v541 = vpop.f32.mrf.mxu0
    %542 = vmatprep.mubr.bf16.mxu0 0
    %543 = vmatmul.mubr.bf16.gmra.mxu0 %v398
    %v544 = vpop.f32.mrf.mxu0
    %v545 = vadd.f32 %v496, %v544
    %v546 = vpop.f32.mrf.mxu0
    %v547 = vpop.f32.mrf.mxu0
    %v548 = vadd.f32 %v499, %v547
    %v549 = vpop.f32.mrf.mxu0
    %550 = vdwg.mxu0
    %551 = vst [vmem:[%s3] sm:$0xff] %v537
    %552 = vst [vmem:[%s3 + $0x8] sm:$0xff] %v540
    %553 = vst [vmem:[%s3 + $0x10] sm:$0xff] %v545
    %554 = vst [vmem:[%s3 + $0x18] sm:$0xff] %v548
    // Predicated region
    $region18: #{uni2_forward.4} parent=1 // pred_check
      _
    $region19: #{uni2_forward.4} parent=1 // pred_check_branch
      %556 = sbr.rel (0) target = $region21
    $region20: #{uni2_forward.4} parent=1 // pred_region
      _
    $region21: #{uni2_forward.4} parent=1 // pred_fallthru
      _
    // Predicated region
    $region22: #{uni2_forward.4} parent=1 // pred_check
      _
    $region23: #{uni2_forward.4} parent=1 // pred_check_branch
      %558 = sbr.rel (0) target = $region25
    $region24: #{uni2_forward.4} parent=1 // pred_region
      _
    $region25: #{uni2_forward.4} parent=1 // pred_fallthru
      _
    %559 = vsyncpa [#allocation3], 1

// kernel: uni2_forward.5
$region0: #{uni2_forward.5}
  #allocation0 [shape = 'u32[]', space=smem, size = 0x4, offset = 0x4, fixed_abs, tag = 'smem constant byte address 0x4 - core index']
  #allocation1 [shape = 'u32[144,128]{1,0:T(1,128)}', space=vmem, size = 0x12000, scoped, tag = 'internal scratch']
  #allocation2 [shape = 'f32[2,32,128]{2,1,0:T(8,128)}', space=vmem, size = 0x8000, scoped, tag = 'scratch operand']
  #allocation3 [shape = 's32[1]{0}', space=sflag, size = 0x4, scoped, tag = 'scratch operand']
  #allocation6 [shape = 's32[]', space=sflag, size = 0x4, offset = 0, fixed_abs, tag = 'sflag constant byte address 0x0 - dummy sync flag']
  %s0 = inlined_call_operand.vmem [shape: f32[2,32,128], index: 0, kind: input, shape index: {}]
  %s1 = inlined_call_operand.vmem [shape: f32[8,1,128], index: 1, kind: input, shape index: {}]
  %s2 = inlined_call_operand.vmem [shape: f32[8,1,128], index: 2, kind: input, shape index: {}]
  %s3 = inlined_call_operand.vmem [shape: bf16[8,128,384], index: 3, kind: input, shape index: {}]
  %s4 = inlined_call_operand.vmem [shape: f32[8,1,384], index: 4, kind: input, shape index: {}]
  %s5 = inlined_call_operand.vmem [shape: bf16[8,128,128], index: 5, kind: input, shape index: {}]
  %s6 = inlined_call_operand.vmem [shape: f32[8,1,128], index: 6, kind: input, shape index: {}]
  %s7 = inlined_call_operand.vmem [shape: f32[8,1,128], index: 7, kind: input, shape index: {}]
  %s8 = inlined_call_operand.vmem [shape: f32[8,1,128], index: 8, kind: input, shape index: {}]
  %s9 = inlined_call_operand.vmem [shape: f32[8,1,128], index: 9, kind: input, shape index: {}]
  %s10 = inlined_call_operand.vmem [shape: bf16[8,128,768], index: 10, kind: input, shape index: {}]
  %s11 = inlined_call_operand.vmem [shape: f32[8,1,768], index: 11, kind: input, shape index: {}]
  %s12 = inlined_call_operand.hbm [shape: bf16[8,384,128], index: 12, kind: input, shape index: {}]
  %s13 = inlined_call_operand.vmem [shape: f32[8,1,128], index: 13, kind: input, shape index: {}]
  %s14 = inlined_call_operand.vmem [shape: f32[8,1,128], index: 14, kind: input, shape index: {}]
  %s15 = inlined_call_operand.vmem [shape: f32[1,128], index: 15, kind: input, shape index: {}]
  %s16 = inlined_call_operand.vmem [shape: f32[1,128], index: 16, kind: input, shape index: {}]
  %s17 = inlined_call_operand.vmem [shape: f32[2,32,128], index: 17, kind: output, shape index: {0}]
  %s18 = inlined_call_operand.vmem [shape: f32[2,32,128], index: 18, kind: output, shape index: {1}]
  %s19 = inlined_call_operand.vmem [shape: f32[2,32,128], index: 19, kind: output, shape index: {2}]
  %s20 = inlined_call_operand.vmem [shape: f32[2,32,128], index: 20, kind: output, shape index: {3}]
  %21 = xla_tuple %s17, %s18, %s19, %s20
  %s22 = sld [smem:[#allocation0]]
  $region179: #{uni2_forward.5} parent=0
    _
  %s24 = ssub.s32 1, %s22
  %s25 = scalar_select 0, %s24, %s22
  $region1: #{uni2_forward.5} parent=0
    #allocation4 [shape = 'u8[196608]{0}', space=vmem, size = 0x30000, scoped, tag = 'input window, operand 12']
    #allocation5 [shape = 's32[2]{0}', space=sflag, size = 0x8, scoped, tag = 'scoped memory for uni2_forward.5']
    %26 = vsyncpa [#allocation5], 0
    %s27 = scalar_lea.sflag [#allocation5], 1
    %28 = vsyncpa %s27, 0
    loop: start=0, step=1, limit=10
    $region2: #{uni2_forward.5} parent=1 // loop_pre_header
      _
    $region3: #{uni2_forward.5} parent=1 // loop_header
      %s30 = sphi 0, %s34
      %p31 = scmp.ge.s32.totalorder %s30, 10
      %s40 = sphi 0, %s42
      %s43 = sphi 0, %s40
      %s44 = sphi 0, %s43
      %s60 = sphi 0, %s44
      %s66 = sphi 0, %s68
      %s69 = sphi 0, %s66
      %s70 = sphi 0, %s69
      %s86 = sphi 0, %s70
      %s92 = sphi 0, %s94
      %s95 = sphi 0, %s92
      %s96 = sphi 0, %s95
      %s112 = sphi 0, %s96
      %s118 = sphi 0, %s120
      %s121 = sphi 0, %s118
      %s122 = sphi 0, %s121
      %s138 = sphi 0, %s122
      %s144 = sphi 0, %s146
      %s147 = sphi 0, %s144
      %s148 = sphi 0, %s147
      %s164 = sphi 0, %s148
      %s170 = sphi 0, %s172
      %s173 = sphi 0, %s170
      %s174 = sphi 0, %s173
      %s190 = sphi 0, %s174
      %s196 = sphi 0, %s198
      %s199 = sphi 0, %s196
      %s200 = sphi 0, %s199
      %s216 = sphi 0, %s200
      %s222 = sphi 0, %s224
      %s225 = sphi 0, %s222
      %s226 = sphi 0, %s225
      %s242 = sphi 0, %s226
      %s248 = sphi 0, %s250
      %s251 = sphi 0, %s248
      %s252 = sphi 0, %s251
      %s268 = sphi 0, %s252
      %s274 = sphi 0, %s276
      %s277 = sphi 0, %s274
      %s278 = sphi 0, %s277
      %s294 = sphi 0, %s278
      %s300 = sphi 0, %s302
      %s303 = sphi 0, %s300
      %s304 = sphi 0, %s303
      %s320 = sphi 0, %s304
      %s326 = sphi 0, %s328
      %s329 = sphi 0, %s326
      %s330 = sphi 0, %s329
      %s346 = sphi 0, %s330
      %s352 = sphi 0, %s354
      %s355 = sphi 0, %s352
      %s356 = sphi 0, %s355
      %s372 = sphi 0, %s356
      %s378 = sphi 0, %s380
      %s381 = sphi 0, %s378
      %s382 = sphi 0, %s381
      %s398 = sphi 0, %s382
      %s402 = sphi 0, %s402
      %s404 = sphi 0, %s402
      %s405 = sphi 0, %s404
      %s419 = sphi 0, %s405
      %s423 = sphi 0, %s423
      %s425 = sphi 0, %s423
      %s426 = sphi 0, %s425
      %s440 = sphi 0, %s426
      %s444 = sphi 0, %s444
      %s446 = sphi 0, %s444
      %s447 = sphi 0, %s446
      %s461 = sphi 0, %s447
      %s465 = sphi 0, %s465
      %s467 = sphi 0, %s465
      %s468 = sphi 0, %s467
      %s482 = sphi 0, %s468
      %s486 = sphi 0, %s486
      %s488 = sphi 0, %s486
      %s489 = sphi 0, %s488
      %s503 = sphi 0, %s489
      %s507 = sphi 0, %s507
      %s509 = sphi 0, %s507
      %s510 = sphi 0, %s509
      %s524 = sphi 0, %s510
    $region4: #{uni2_forward.5} parent=1 // loop_header_branch
      %33 = sbr.rel (%p31) target = $region8
    $region5: #{uni2_forward.5} parent=1 // loop_body
      %s35 = ssub.s32 %s30, 1
      %s36 = ssub.s32 %s30, 2
      %s37 = sadd.s32 %s30, 1
      %s38 = ssub.s32 %s30, %s37
      %p39 = scmp.eq.s32.totalorder %s38, 0
      %s41 = sadd.s32 %s40, 1
      %s42 = scalar_select %p39, %s40, %s41
      %p45 = pneg %p39
      %p46 = scmp.eq.s32.totalorder %s30, 7
      %p47 = por %p45, %p46
      %p48 = scmp.ne.s32.totalorder %s40, %s43
      %p49 = scmp.eq.s32.totalorder %s30, 0
      %p50 = por %p48, %p49
      %p51 = scmp.ne.s32.totalorder %s40, %s43
      %p52 = scmp.eq.s32.totalorder %s35, 7
      %p53 = por %p51, %p52
      %p54 = scmp.ne.s32.totalorder %s43, %s44
      %p55 = scmp.eq.s32.totalorder %s35, 0
      %p56 = por %p54, %p55
      %p57 = scmp.ne.s32.totalorder %s43, %s44
      %p58 = scmp.eq.s32.totalorder %s36, 7
      %p59 = por %p57, %p58
      %p61 = scmp.ne.s32.totalorder %s44, %s60
      %p62 = scmp.eq.s32.totalorder %s36, 0
      %p63 = por %p61, %p62
      %s64 = ssub.s32 %s30, %s37
      %p65 = scmp.eq.s32.totalorder %s64, 0
      %s67 = sadd.s32 %s66, 1
      %s68 = scalar_select %p65, %s66, %s67
      %p71 = pneg %p65
      %p72 = scmp.eq.s32.totalorder %s30, 7
      %p73 = por %p71, %p72
      %p74 = scmp.ne.s32.totalorder %s66, %s69
      %p75 = scmp.eq.s32.totalorder %s30, 0
      %p76 = por %p74, %p75
      %p77 = scmp.ne.s32.totalorder %s66, %s69
      %p78 = scmp.eq.s32.totalorder %s35, 7
      %p79 = por %p77, %p78
      %p80 = scmp.ne.s32.totalorder %s69, %s70
      %p81 = scmp.eq.s32.totalorder %s35, 0
      %p82 = por %p80, %p81
      %p83 = scmp.ne.s32.totalorder %s69, %s70
      %p84 = scmp.eq.s32.totalorder %s36, 7
      %p85 = por %p83, %p84
      %p87 = scmp.ne.s32.totalorder %s70, %s86
      %p88 = scmp.eq.s32.totalorder %s36, 0
      %p89 = por %p87, %p88
      %s90 = ssub.s32 %s30, %s37
      %p91 = scmp.eq.s32.totalorder %s90, 0
      %s93 = sadd.s32 %s92, 1
      %s94 = scalar_select %p91, %s92, %s93
      %p97 = pneg %p91
      %p98 = scmp.eq.s32.totalorder %s30, 7
      %p99 = por %p97, %p98
      %p100 = scmp.ne.s32.totalorder %s92, %s95
      %p101 = scmp.eq.s32.totalorder %s30, 0
      %p102 = por %p100, %p101
      %p103 = scmp.ne.s32.totalorder %s92, %s95
      %p104 = scmp.eq.s32.totalorder %s35, 7
      %p105 = por %p103, %p104
      %p106 = scmp.ne.s32.totalorder %s95, %s96
      %p107 = scmp.eq.s32.totalorder %s35, 0
      %p108 = por %p106, %p107
      %p109 = scmp.ne.s32.totalorder %s95, %s96
      %p110 = scmp.eq.s32.totalorder %s36, 7
      %p111 = por %p109, %p110
      %p113 = scmp.ne.s32.totalorder %s96, %s112
      %p114 = scmp.eq.s32.totalorder %s36, 0
      %p115 = por %p113, %p114
      %s116 = ssub.s32 %s30, %s37
      %p117 = scmp.eq.s32.totalorder %s116, 0
      %s119 = sadd.s32 %s118, 1
      %s120 = scalar_select %p117, %s118, %s119
      %p123 = pneg %p117
      %p124 = scmp.eq.s32.totalorder %s30, 7
      %p125 = por %p123, %p124
      %p126 = scmp.ne.s32.totalorder %s118, %s121
      %p127 = scmp.eq.s32.totalorder %s30, 0
      %p128 = por %p126, %p127
      %p129 = scmp.ne.s32.totalorder %s118, %s121
      %p130 = scmp.eq.s32.totalorder %s35, 7
      %p131 = por %p129, %p130
      %p132 = scmp.ne.s32.totalorder %s121, %s122
      %p133 = scmp.eq.s32.totalorder %s35, 0
      %p134 = por %p132, %p133
      %p135 = scmp.ne.s32.totalorder %s121, %s122
      %p136 = scmp.eq.s32.totalorder %s36, 7
      %p137 = por %p135, %p136
      %p139 = scmp.ne.s32.totalorder %s122, %s138
      %p140 = scmp.eq.s32.totalorder %s36, 0
      %p141 = por %p139, %p140
      %s142 = ssub.s32 %s30, %s37
      %p143 = scmp.eq.s32.totalorder %s142, 0
      %s145 = sadd.s32 %s144, 1
      %s146 = scalar_select %p143, %s144, %s145
      %p149 = pneg %p143
      %p150 = scmp.eq.s32.totalorder %s30, 7
      %p151 = por %p149, %p150
      %p152 = scmp.ne.s32.totalorder %s144, %s147
      %p153 = scmp.eq.s32.totalorder %s30, 0
      %p154 = por %p152, %p153
      %p155 = scmp.ne.s32.totalorder %s144, %s147
      %p156 = scmp.eq.s32.totalorder %s35, 7
      %p157 = por %p155, %p156
      %p158 = scmp.ne.s32.totalorder %s147, %s148
      %p159 = scmp.eq.s32.totalorder %s35, 0
      %p160 = por %p158, %p159
      %p161 = scmp.ne.s32.totalorder %s147, %s148
      %p162 = scmp.eq.s32.totalorder %s36, 7
      %p163 = por %p161, %p162
      %p165 = scmp.ne.s32.totalorder %s148, %s164
      %p166 = scmp.eq.s32.totalorder %s36, 0
      %p167 = por %p165, %p166
      %s168 = ssub.s32 %s30, %s37
      %p169 = scmp.eq.s32.totalorder %s168, 0
      %s171 = sadd.s32 %s170, 1
      %s172 = scalar_select %p169, %s170, %s171
      %p175 = pneg %p169
      %p176 = scmp.eq.s32.totalorder %s30, 7
      %p177 = por %p175, %p176
      %p178 = scmp.ne.s32.totalorder %s170, %s173
      %p179 = scmp.eq.s32.totalorder %s30, 0
      %p180 = por %p178, %p179
      %p181 = scmp.ne.s32.totalorder %s170, %s173
      %p182 = scmp.eq.s32.totalorder %s35, 7
      %p183 = por %p181, %p182
      %p184 = scmp.ne.s32.totalorder %s173, %s174
      %p185 = scmp.eq.s32.totalorder %s35, 0
      %p186 = por %p184, %p185
      %p187 = scmp.ne.s32.totalorder %s173, %s174
      %p188 = scmp.eq.s32.totalorder %s36, 7
      %p189 = por %p187, %p188
      %p191 = scmp.ne.s32.totalorder %s174, %s190
      %p192 = scmp.eq.s32.totalorder %s36, 0
      %p193 = por %p191, %p192
      %s194 = ssub.s32 %s30, %s37
      %p195 = scmp.eq.s32.totalorder %s194, 0
      %s197 = sadd.s32 %s196, 1
      %s198 = scalar_select %p195, %s196, %s197
      %p201 = pneg %p195
      %p202 = scmp.eq.s32.totalorder %s30, 7
      %p203 = por %p201, %p202
      %p204 = scmp.ne.s32.totalorder %s196, %s199
      %p205 = scmp.eq.s32.totalorder %s30, 0
      %p206 = por %p204, %p205
      %p207 = scmp.ne.s32.totalorder %s196, %s199
      %p208 = scmp.eq.s32.totalorder %s35, 7
      %p209 = por %p207, %p208
      %p210 = scmp.ne.s32.totalorder %s199, %s200
      %p211 = scmp.eq.s32.totalorder %s35, 0
      %p212 = por %p210, %p211
      %p213 = scmp.ne.s32.totalorder %s199, %s200
      %p214 = scmp.eq.s32.totalorder %s36, 7
      %p215 = por %p213, %p214
      %p217 = scmp.ne.s32.totalorder %s200, %s216
      %p218 = scmp.eq.s32.totalorder %s36, 0
      %p219 = por %p217, %p218
      %s220 = ssub.s32 %s30, %s37
      %p221 = scmp.eq.s32.totalorder %s220, 0
      %s223 = sadd.s32 %s222, 1
      %s224 = scalar_select %p221, %s222, %s223
      %p227 = pneg %p221
      %p228 = scmp.eq.s32.totalorder %s30, 7
      %p229 = por %p227, %p228
      %p230 = scmp.ne.s32.totalorder %s222, %s225
      %p231 = scmp.eq.s32.totalorder %s30, 0
      %p232 = por %p230, %p231
      %p233 = scmp.ne.s32.totalorder %s222, %s225
      %p234 = scmp.eq.s32.totalorder %s35, 7
      %p235 = por %p233, %p234
      %p236 = scmp.ne.s32.totalorder %s225, %s226
      %p237 = scmp.eq.s32.totalorder %s35, 0
      %p238 = por %p236, %p237
      %p239 = scmp.ne.s32.totalorder %s225, %s226
      %p240 = scmp.eq.s32.totalorder %s36, 7
      %p241 = por %p239, %p240
      %p243 = scmp.ne.s32.totalorder %s226, %s242
      %p244 = scmp.eq.s32.totalorder %s36, 0
      %p245 = por %p243, %p244
      %s246 = ssub.s32 %s30, %s37
      %p247 = scmp.eq.s32.totalorder %s246, 0
      %s249 = sadd.s32 %s248, 1
      %s250 = scalar_select %p247, %s248, %s249
      %p253 = pneg %p247
      %p254 = scmp.eq.s32.totalorder %s30, 7
      %p255 = por %p253, %p254
      %p256 = scmp.ne.s32.totalorder %s248, %s251
      %p257 = scmp.eq.s32.totalorder %s30, 0
      %p258 = por %p256, %p257
      %p259 = scmp.ne.s32.totalorder %s248, %s251
      %p260 = scmp.eq.s32.totalorder %s35, 7
      %p261 = por %p259, %p260
      %p262 = scmp.ne.s32.totalorder %s251, %s252
      %p263 = scmp.eq.s32.totalorder %s35, 0
      %p264 = por %p262, %p263
      %p265 = scmp.ne.s32.totalorder %s251, %s252
      %p266 = scmp.eq.s32.totalorder %s36, 7
      %p267 = por %p265, %p266
      %p269 = scmp.ne.s32.totalorder %s252, %s268
      %p270 = scmp.eq.s32.totalorder %s36, 0
      %p271 = por %p269, %p270
      %s272 = ssub.s32 %s30, %s37
      %p273 = scmp.eq.s32.totalorder %s272, 0
      %s275 = sadd.s32 %s274, 1
      %s276 = scalar_select %p273, %s274, %s275
      %p279 = pneg %p273
      %p280 = scmp.eq.s32.totalorder %s30, 7
      %p281 = por %p279, %p280
      %p282 = scmp.ne.s32.totalorder %s274, %s277
      %p283 = scmp.eq.s32.totalorder %s30, 0
      %p284 = por %p282, %p283
      %p285 = scmp.ne.s32.totalorder %s274, %s277
      %p286 = scmp.eq.s32.totalorder %s35, 7
      %p287 = por %p285, %p286
      %p288 = scmp.ne.s32.totalorder %s277, %s278
      %p289 = scmp.eq.s32.totalorder %s35, 0
      %p290 = por %p288, %p289
      %p291 = scmp.ne.s32.totalorder %s277, %s278
      %p292 = scmp.eq.s32.totalorder %s36, 7
      %p293 = por %p291, %p292
      %p295 = scmp.ne.s32.totalorder %s278, %s294
      %p296 = scmp.eq.s32.totalorder %s36, 0
      %p297 = por %p295, %p296
      %s298 = ssub.s32 %s30, %s37
      %p299 = scmp.eq.s32.totalorder %s298, 0
      %s301 = sadd.s32 %s300, 1
      %s302 = scalar_select %p299, %s300, %s301
      %p305 = pneg %p299
      %p306 = scmp.eq.s32.totalorder %s30, 7
      %p307 = por %p305, %p306
      %p308 = scmp.ne.s32.totalorder %s300, %s303
      %p309 = scmp.eq.s32.totalorder %s30, 0
      %p310 = por %p308, %p309
      %p311 = scmp.ne.s32.totalorder %s300, %s303
      %p312 = scmp.eq.s32.totalorder %s35, 7
      %p313 = por %p311, %p312
      %p314 = scmp.ne.s32.totalorder %s303, %s304
      %p315 = scmp.eq.s32.totalorder %s35, 0
      %p316 = por %p314, %p315
      %p317 = scmp.ne.s32.totalorder %s303, %s304
      %p318 = scmp.eq.s32.totalorder %s36, 7
      %p319 = por %p317, %p318
      %p321 = scmp.ne.s32.totalorder %s304, %s320
      %p322 = scmp.eq.s32.totalorder %s36, 0
      %p323 = por %p321, %p322
      %s324 = ssub.s32 %s30, %s37
      %p325 = scmp.eq.s32.totalorder %s324, 0
      %s327 = sadd.s32 %s326, 1
      %s328 = scalar_select %p325, %s326, %s327
      %p331 = pneg %p325
      %p332 = scmp.eq.s32.totalorder %s30, 7
      %p333 = por %p331, %p332
      %p334 = scmp.ne.s32.totalorder %s326, %s329
      %p335 = scmp.eq.s32.totalorder %s30, 0
      %p336 = por %p334, %p335
      %p337 = scmp.ne.s32.totalorder %s326, %s329
      %p338 = scmp.eq.s32.totalorder %s35, 7
      %p339 = por %p337, %p338
      %p340 = scmp.ne.s32.totalorder %s329, %s330
      %p341 = scmp.eq.s32.totalorder %s35, 0
      %p342 = por %p340, %p341
      %p343 = scmp.ne.s32.totalorder %s329, %s330
      %p344 = scmp.eq.s32.totalorder %s36, 7
      %p345 = por %p343, %p344
      %p347 = scmp.ne.s32.totalorder %s330, %s346
      %p348 = scmp.eq.s32.totalorder %s36, 0
      %p349 = por %p347, %p348
      %s350 = ssub.s32 %s30, %s37
      %p351 = scmp.eq.s32.totalorder %s350, 0
      %s353 = sadd.s32 %s352, 1
      %s354 = scalar_select %p351, %s352, %s353
      %p357 = pneg %p351
      %p358 = scmp.eq.s32.totalorder %s30, 7
      %p359 = por %p357, %p358
      %p360 = scmp.ne.s32.totalorder %s352, %s355
      %p361 = scmp.eq.s32.totalorder %s30, 0
      %p362 = por %p360, %p361
      %p363 = scmp.ne.s32.totalorder %s352, %s355
      %p364 = scmp.eq.s32.totalorder %s35, 7
      %p365 = por %p363, %p364
      %p366 = scmp.ne.s32.totalorder %s355, %s356
      %p367 = scmp.eq.s32.totalorder %s35, 0
      %p368 = por %p366, %p367
      %p369 = scmp.ne.s32.totalorder %s355, %s356
      %p370 = scmp.eq.s32.totalorder %s36, 7
      %p371 = por %p369, %p370
      %p373 = scmp.ne.s32.totalorder %s356, %s372
      %p374 = scmp.eq.s32.totalorder %s36, 0
      %p375 = por %p373, %p374
      %s376 = ssub.s32 %s30, %s37
      %p377 = scmp.eq.s32.totalorder %s376, 0
      %s379 = sadd.s32 %s378, 1
      %s380 = scalar_select %p377, %s378, %s379
      %p383 = pneg %p377
      %p384 = scmp.eq.s32.totalorder %s30, 7
      %p385 = por %p383, %p384
      %p386 = scmp.ne.s32.totalorder %s378, %s381
      %p387 = scmp.eq.s32.totalorder %s30, 0
      %p388 = por %p386, %p387
      %p389 = scmp.ne.s32.totalorder %s378, %s381
      %p390 = scmp.eq.s32.totalorder %s35, 7
      %p391 = por %p389, %p390
      %p392 = scmp.ne.s32.totalorder %s381, %s382
      %p393 = scmp.eq.s32.totalorder %s35, 0
      %p394 = por %p392, %p393
      %p395 = scmp.ne.s32.totalorder %s381, %s382
      %p396 = scmp.eq.s32.totalorder %s36, 7
      %p397 = por %p395, %p396
      %p399 = scmp.ne.s32.totalorder %s382, %s398
      %p400 = scmp.eq.s32.totalorder %s36, 0
      %p401 = por %p399, %p400
      %s403 = sadd.s32 %s402, 1
      %p406 = scmp.eq.s32.totalorder %s30, 7
      %p407 = scmp.ne.s32.totalorder %s402, %s404
      %p408 = scmp.eq.s32.totalorder %s30, 0
      %p409 = por %p407, %p408
      %p410 = scmp.ne.s32.totalorder %s402, %s404
      %p411 = scmp.eq.s32.totalorder %s35, 7
      %p412 = por %p410, %p411
      %p413 = scmp.ne.s32.totalorder %s404, %s405
      %p414 = scmp.eq.s32.totalorder %s35, 0
      %p415 = por %p413, %p414
      %p416 = scmp.ne.s32.totalorder %s404, %s405
      %p417 = scmp.eq.s32.totalorder %s36, 7
      %p418 = por %p416, %p417
      %p420 = scmp.ne.s32.totalorder %s405, %s419
      %p421 = scmp.eq.s32.totalorder %s36, 0
      %p422 = por %p420, %p421
      %s424 = sadd.s32 %s423, 1
      %p427 = scmp.eq.s32.totalorder %s30, 7
      %p428 = scmp.ne.s32.totalorder %s423, %s425
      %p429 = scmp.eq.s32.totalorder %s30, 0
      %p430 = por %p428, %p429
      %p431 = scmp.ne.s32.totalorder %s423, %s425
      %p432 = scmp.eq.s32.totalorder %s35, 7
      %p433 = por %p431, %p432
      %p434 = scmp.ne.s32.totalorder %s425, %s426
      %p435 = scmp.eq.s32.totalorder %s35, 0
      %p436 = por %p434, %p435
      %p437 = scmp.ne.s32.totalorder %s425, %s426
      %p438 = scmp.eq.s32.totalorder %s36, 7
      %p439 = por %p437, %p438
      %p441 = scmp.ne.s32.totalorder %s426, %s440
      %p442 = scmp.eq.s32.totalorder %s36, 0
      %p443 = por %p441, %p442
      %s445 = sadd.s32 %s444, 1
      %p448 = scmp.eq.s32.totalorder %s30, 7
      %p449 = scmp.ne.s32.totalorder %s444, %s446
      %p450 = scmp.eq.s32.totalorder %s30, 0
      %p451 = por %p449, %p450
      %p452 = scmp.ne.s32.totalorder %s444, %s446
      %p453 = scmp.eq.s32.totalorder %s35, 7
      %p454 = por %p452, %p453
      %p455 = scmp.ne.s32.totalorder %s446, %s447
      %p456 = scmp.eq.s32.totalorder %s35, 0
      %p457 = por %p455, %p456
      %p458 = scmp.ne.s32.totalorder %s446, %s447
      %p459 = scmp.eq.s32.totalorder %s36, 7
      %p460 = por %p458, %p459
      %p462 = scmp.ne.s32.totalorder %s447, %s461
      %p463 = scmp.eq.s32.totalorder %s36, 0
      %p464 = por %p462, %p463
      %s466 = sadd.s32 %s465, 1
      %p469 = scmp.eq.s32.totalorder %s30, 7
      %p470 = scmp.ne.s32.totalorder %s465, %s467
      %p471 = scmp.eq.s32.totalorder %s30, 0
      %p472 = por %p470, %p471
      %p473 = scmp.ne.s32.totalorder %s465, %s467
      %p474 = scmp.eq.s32.totalorder %s35, 7
      %p475 = por %p473, %p474
      %p476 = scmp.ne.s32.totalorder %s467, %s468
      %p477 = scmp.eq.s32.totalorder %s35, 0
      %p478 = por %p476, %p477
      %p479 = scmp.ne.s32.totalorder %s467, %s468
      %p480 = scmp.eq.s32.totalorder %s36, 7
      %p481 = por %p479, %p480
      %p483 = scmp.ne.s32.totalorder %s468, %s482
      %p484 = scmp.eq.s32.totalorder %s36, 0
      %p485 = por %p483, %p484
      %s487 = sadd.s32 %s486, 1
      %p490 = scmp.eq.s32.totalorder %s30, 7
      %p491 = scmp.ne.s32.totalorder %s486, %s488
      %p492 = scmp.eq.s32.totalorder %s30, 0
      %p493 = por %p491, %p492
      %p494 = scmp.ne.s32.totalorder %s486, %s488
      %p495 = scmp.eq.s32.totalorder %s35, 7
      %p496 = por %p494, %p495
      %p497 = scmp.ne.s32.totalorder %s488, %s489
      %p498 = scmp.eq.s32.totalorder %s35, 0
      %p499 = por %p497, %p498
      %p500 = scmp.ne.s32.totalorder %s488, %s489
      %p501 = scmp.eq.s32.totalorder %s36, 7
      %p502 = por %p500, %p501
      %p504 = scmp.ne.s32.totalorder %s489, %s503
      %p505 = scmp.eq.s32.totalorder %s36, 0
      %p506 = por %p504, %p505
      %s508 = sadd.s32 %s507, 1
      %p511 = scmp.eq.s32.totalorder %s30, 7
      %p512 = scmp.ne.s32.totalorder %s507, %s509
      %p513 = scmp.eq.s32.totalorder %s30, 0
      %p514 = por %p512, %p513
      %p515 = scmp.ne.s32.totalorder %s507, %s509
      %p516 = scmp.eq.s32.totalorder %s35, 7
      %p517 = por %p515, %p516
      %p518 = scmp.ne.s32.totalorder %s509, %s510
      %p519 = scmp.eq.s32.totalorder %s35, 0
      %p520 = por %p518, %p519
      %p521 = scmp.ne.s32.totalorder %s509, %s510
      %p522 = scmp.eq.s32.totalorder %s36, 7
      %p523 = por %p521, %p522
      %p525 = scmp.ne.s32.totalorder %s510, %s524
      %p526 = scmp.eq.s32.totalorder %s36, 0
      %p527 = por %p525, %p526
      %p528 = scmp.le.s32.totalorder 1, %s30
      %p529 = scmp.lt.s32.totalorder %s30, 9
      %p530 = pnand %p528, %p529
      %p531 = pneg %p530
      // Predicated region
      $region9: #{uni2_forward.5} parent=5 // pred_check
        _
      $region10: #{uni2_forward.5} parent=5 // pred_check_branch
        %533 = sbr.rel (%p530) target = $region12
      $region11: #{uni2_forward.5} parent=5 // pred_region
        %s534 = ssub.s32 %s30, 1
        // Predicated region
        $region13: #{uni2_forward.5} parent=11 // pred_check
          %p535 = pneg %p415
        $region14: #{uni2_forward.5} parent=11 // pred_check_branch
          %537 = sbr.rel (%p535) target = $region16
        $region15: #{uni2_forward.5} parent=11 // pred_region
          _
        $region16: #{uni2_forward.5} parent=11 // pred_fallthru
          _
        // Predicated region
        $region17: #{uni2_forward.5} parent=11 // pred_check
          %p538 = pneg %p436
        $region18: #{uni2_forward.5} parent=11 // pred_check_branch
          %540 = sbr.rel (%p538) target = $region20
        $region19: #{uni2_forward.5} parent=11 // pred_region
          _
        $region20: #{uni2_forward.5} parent=11 // pred_fallthru
          _
      $region12: #{uni2_forward.5} parent=5 // pred_fallthru
        _
      %p541 = scmp.lt.s32.totalorder %s30, 8
      // Predicated region
      $region21: #{uni2_forward.5} parent=5 // pred_check
        %p542 = pneg %p541
      $region22: #{uni2_forward.5} parent=5 // pred_check_branch
        %544 = sbr.rel (%p542) target = $region24
      $region23: #{uni2_forward.5} parent=5 // pred_region
        // Predicated region
        $region25: #{uni2_forward.5} parent=23 // pred_check
          %p545 = pneg %p50
        $region26: #{uni2_forward.5} parent=23 // pred_check_branch
          %547 = sbr.rel (%p545) target = $region28
        $region27: #{uni2_forward.5} parent=23 // pred_region
          %p548 = scmp.lt.s32.totalorder %s30, 7
          %s549 = scalar_select %p548, %s30, 7
          %s550 = scalar_lea.vmem %s1, %s549
        $region28: #{uni2_forward.5} parent=23 // pred_fallthru
          _
        // Predicated region
        $region29: #{uni2_forward.5} parent=23 // pred_check
          %p551 = pneg %p76
        $region30: #{uni2_forward.5} parent=23 // pred_check_branch
          %553 = sbr.rel (%p551) target = $region32
        $region31: #{uni2_forward.5} parent=23 // pred_region
          %p554 = scmp.lt.s32.totalorder %s30, 7
          %s555 = scalar_select %p554, %s30, 7
          %s556 = scalar_lea.vmem %s2, %s555
        $region32: #{uni2_forward.5} parent=23 // pred_fallthru
          _
        // Predicated region
        $region33: #{uni2_forward.5} parent=23 // pred_check
          %p557 = pneg %p102
        $region34: #{uni2_forward.5} parent=23 // pred_check_branch
          %559 = sbr.rel (%p557) target = $region36
        $region35: #{uni2_forward.5} parent=23 // pred_region
          %p560 = scmp.lt.s32.totalorder %s30, 7
          %s561 = scalar_select %p560, %s30, 7
          %s562 = smul.addr %s561, 48
          %s563 = smul.addr %s562, 4
          %s564 = scalar_lea.vmem %s3, %s563
        $region36: #{uni2_forward.5} parent=23 // pred_fallthru
          _
        // Predicated region
        $region37: #{uni2_forward.5} parent=23 // pred_check
          %p565 = pneg %p128
        $region38: #{uni2_forward.5} parent=23 // pred_check_branch
          %567 = sbr.rel (%p565) target = $region40
        $region39: #{uni2_forward.5} parent=23 // pred_region
          %p568 = scmp.lt.s32.totalorder %s30, 7
          %s569 = scalar_select %p568, %s30, 7
          %s570 = smul.addr %s569, 3
          %s571 = scalar_lea.vmem %s4, %s570
        $region40: #{uni2_forward.5} parent=23 // pred_fallthru
          _
        // Predicated region
        $region41: #{uni2_forward.5} parent=23 // pred_check
          %p572 = pneg %p154
        $region42: #{uni2_forward.5} parent=23 // pred_check_branch
          %574 = sbr.rel (%p572) target = $region44
        $region43: #{uni2_forward.5} parent=23 // pred_region
          %p575 = scmp.lt.s32.totalorder %s30, 7
          %s576 = scalar_select %p575, %s30, 7
          %s577 = smul.addr %s576, 16
          %s578 = smul.addr %s577, 4
          %s579 = scalar_lea.vmem %s5, %s578
        $region44: #{uni2_forward.5} parent=23 // pred_fallthru
          _
        // Predicated region
        $region45: #{uni2_forward.5} parent=23 // pred_check
          %p580 = pneg %p180
        $region46: #{uni2_forward.5} parent=23 // pred_check_branch
          %582 = sbr.rel (%p580) target = $region48
        $region47: #{uni2_forward.5} parent=23 // pred_region
          %p583 = scmp.lt.s32.totalorder %s30, 7
          %s584 = scalar_select %p583, %s30, 7
          %s585 = scalar_lea.vmem %s6, %s584
        $region48: #{uni2_forward.5} parent=23 // pred_fallthru
          _
        // Predicated region
        $region49: #{uni2_forward.5} parent=23 // pred_check
          %p586 = pneg %p206
        $region50: #{uni2_forward.5} parent=23 // pred_check_branch
          %588 = sbr.rel (%p586) target = $region52
        $region51: #{uni2_forward.5} parent=23 // pred_region
          %p589 = scmp.lt.s32.totalorder %s30, 7
          %s590 = scalar_select %p589, %s30, 7
          %s591 = scalar_lea.vmem %s7, %s590
        $region52: #{uni2_forward.5} parent=23 // pred_fallthru
          _
        // Predicated region
        $region53: #{uni2_forward.5} parent=23 // pred_check
          %p592 = pneg %p232
        $region54: #{uni2_forward.5} parent=23 // pred_check_branch
          %594 = sbr.rel (%p592) target = $region56
        $region55: #{uni2_forward.5} parent=23 // pred_region
          %p595 = scmp.lt.s32.totalorder %s30, 7
          %s596 = scalar_select %p595, %s30, 7
          %s597 = scalar_lea.vmem %s8, %s596
        $region56: #{uni2_forward.5} parent=23 // pred_fallthru
          _
        // Predicated region
        $region57: #{uni2_forward.5} parent=23 // pred_check
          %p598 = pneg %p258
        $region58: #{uni2_forward.5} parent=23 // pred_check_branch
          %600 = sbr.rel (%p598) target = $region60
        $region59: #{uni2_forward.5} parent=23 // pred_region
          %p601 = scmp.lt.s32.totalorder %s30, 7
          %s602 = scalar_select %p601, %s30, 7
          %s603 = scalar_lea.vmem %s9, %s602
        $region60: #{uni2_forward.5} parent=23 // pred_fallthru
          _
        // Predicated region
        $region61: #{uni2_forward.5} parent=23 // pred_check
          %p604 = pneg %p284
        $region62: #{uni2_forward.5} parent=23 // pred_check_branch
          %606 = sbr.rel (%p604) target = $region64
        $region63: #{uni2_forward.5} parent=23 // pred_region
          %p607 = scmp.lt.s32.totalorder %s30, 7
          %s608 = scalar_select %p607, %s30, 7
          %s609 = smul.addr %s608, 96
          %s610 = smul.addr %s609, 4
          %s611 = scalar_lea.vmem %s10, %s610
        $region64: #{uni2_forward.5} parent=23 // pred_fallthru
          _
        // Predicated region
        $region65: #{uni2_forward.5} parent=23 // pred_check
          %p612 = pneg %p310
        $region66: #{uni2_forward.5} parent=23 // pred_check_branch
          %614 = sbr.rel (%p612) target = $region68
        $region67: #{uni2_forward.5} parent=23 // pred_region
          %p615 = scmp.lt.s32.totalorder %s30, 7
          %s616 = scalar_select %p615, %s30, 7
          %s617 = smul.addr %s616, 6
          %s618 = scalar_lea.vmem %s11, %s617
        $region68: #{uni2_forward.5} parent=23 // pred_fallthru
          _
        // Predicated region
        $region69: #{uni2_forward.5} parent=23 // pred_check
          %p619 = pneg %p336
        $region70: #{uni2_forward.5} parent=23 // pred_check_branch
          %621 = sbr.rel (%p619) target = $region72
        $region71: #{uni2_forward.5} parent=23 // pred_region
          %s622 = sand.u32 %s326, 1
          %s623 = scalar_lea.sflag [#allocation5], %s622
          %s624 = sand.u32 %s326, 1
          %s625 = smul.addr %s624, 192
          %s626 = scalar_lea.vmem [#allocation4], %s625
          %s628 = ssub.s32 3072, 3072
          %629 = vsyncadd %s623, %s628
          %s630 = smul.addr %s30, 48
          %s631 = smul.addr %s630, 64
          %s632 = scalar_lea.hbm %s12, %s631
          %s633 = sshll.u32 %s626, 4
          %s634 = int_to_ptr.vmem [resolvable:$true] %s633
          %639 = dma.hbm_to_vmem [thread:$0]  %s632, 3072, %s634, %s623, 64, 64, 4
        $region72: #{uni2_forward.5} parent=23 // pred_fallthru
          _
        // Predicated region
        $region73: #{uni2_forward.5} parent=23 // pred_check
          %p640 = pneg %p362
        $region74: #{uni2_forward.5} parent=23 // pred_check_branch
          %642 = sbr.rel (%p640) target = $region76
        $region75: #{uni2_forward.5} parent=23 // pred_region
          %p643 = scmp.lt.s32.totalorder %s30, 7
          %s644 = scalar_select %p643, %s30, 7
          %s645 = scalar_lea.vmem %s13, %s644
        $region76: #{uni2_forward.5} parent=23 // pred_fallthru
          _
        // Predicated region
        $region77: #{uni2_forward.5} parent=23 // pred_check
          %p646 = pneg %p388
        $region78: #{uni2_forward.5} parent=23 // pred_check_branch
          %648 = sbr.rel (%p646) target = $region80
        $region79: #{uni2_forward.5} parent=23 // pred_region
          %p649 = scmp.lt.s32.totalorder %s30, 7
          %s650 = scalar_select %p649, %s30, 7
          %s651 = scalar_lea.vmem %s14, %s650
        $region80: #{uni2_forward.5} parent=23 // pred_fallthru
          _
      $region24: #{uni2_forward.5} parent=5 // pred_fallthru
        _
      %p652 = scmp.le.s32.totalorder 1, %s30
      %p653 = scmp.lt.s32.totalorder %s30, 9
      %p654 = pnand %p652, %p653
      %p655 = pneg %p654
      // Predicated region
      $region81: #{uni2_forward.5} parent=5 // pred_check
        _
      $region82: #{uni2_forward.5} parent=5 // pred_check_branch
        %657 = sbr.rel (%p654) target = $region84
      $region83: #{uni2_forward.5} parent=5 // pred_region
        %s658 = ssub.s32 %s30, 1
        %s659 = sand.u32 %s329, 1
        %s660 = scalar_lea.sflag [#allocation5], %s659
        %s661 = sand.u32 %s329, 1
        %s662 = smul.addr %s661, 192
        %s663 = scalar_lea.vmem [#allocation4], %s662
        // Predicated region
        $region85: #{uni2_forward.5} parent=83 // pred_check
          %p664 = pneg %p342
        $region86: #{uni2_forward.5} parent=83 // pred_check_branch
          %666 = sbr.rel (%p664) target = $region88
        $region87: #{uni2_forward.5} parent=83 // pred_region
          %667 = dma.done %s660, 3072
        $region88: #{uni2_forward.5} parent=83 // pred_fallthru
          _
        %p668 = scmp.lt.s32.totalorder %s35, 7
        %s669 = scalar_select %p668, %s35, 7
        %s670 = scalar_lea.vmem %s1, %s669
        %p671 = pneg %p56
        %p672 = pneg %p53
        %p673 = scmp.lt.s32.totalorder %s35, 7
        %s674 = scalar_select %p673, %s35, 7
        %s675 = scalar_lea.vmem %s2, %s674
        %p676 = pneg %p82
        %p677 = pneg %p79
        %p678 = scmp.lt.s32.totalorder %s35, 7
        %s679 = scalar_select %p678, %s35, 7
        %s680 = smul.addr %s679, 48
        %s681 = smul.addr %s680, 4
        %s682 = scalar_lea.vmem %s3, %s681
        %p683 = pneg %p108
        %p684 = pneg %p105
        %p685 = scmp.lt.s32.totalorder %s35, 7
        %s686 = scalar_select %p685, %s35, 7
        %s687 = smul.addr %s686, 3
        %s688 = scalar_lea.vmem %s4, %s687
        %p689 = pneg %p134
        %p690 = pneg %p131
        %p691 = scmp.lt.s32.totalorder %s35, 7
        %s692 = scalar_select %p691, %s35, 7
        %s693 = smul.addr %s692, 16
        %s694 = smul.addr %s693, 4
        %s695 = scalar_lea.vmem %s5, %s694
        %p696 = pneg %p160
        %p697 = pneg %p157
        %p698 = scmp.lt.s32.totalorder %s35, 7
        %s699 = scalar_select %p698, %s35, 7
        %s700 = scalar_lea.vmem %s6, %s699
        %p701 = pneg %p186
        %p702 = pneg %p183
        %p703 = scmp.lt.s32.totalorder %s35, 7
        %s704 = scalar_select %p703, %s35, 7
        %s705 = scalar_lea.vmem %s7, %s704
        %p706 = pneg %p212
        %p707 = pneg %p209
        %p708 = scmp.lt.s32.totalorder %s35, 7
        %s709 = scalar_select %p708, %s35, 7
        %s710 = scalar_lea.vmem %s8, %s709
        %p711 = pneg %p238
        %p712 = pneg %p235
        %p713 = scmp.lt.s32.totalorder %s35, 7
        %s714 = scalar_select %p713, %s35, 7
        %s715 = scalar_lea.vmem %s9, %s714
        %p716 = pneg %p264
        %p717 = pneg %p261
        %p718 = scmp.lt.s32.totalorder %s35, 7
        %s719 = scalar_select %p718, %s35, 7
        %s720 = smul.addr %s719, 96
        %s721 = smul.addr %s720, 4
        %s722 = scalar_lea.vmem %s10, %s721
        %p723 = pneg %p290
        %p724 = pneg %p287
        %p725 = scmp.lt.s32.totalorder %s35, 7
        %s726 = scalar_select %p725, %s35, 7
        %s727 = smul.addr %s726, 6
        %s728 = scalar_lea.vmem %s11, %s727
        %p729 = pneg %p316
        %p730 = pneg %p313
        %s731 = sand.u32 %s329, 1
        %s732 = scalar_lea.sflag [#allocation5], %s731
        %s733 = sand.u32 %s329, 1
        %s734 = smul.addr %s733, 192
        %s735 = scalar_lea.vmem [#allocation4], %s734
        %p736 = pneg %p342
        %p737 = pneg %p339
        %p738 = scmp.lt.s32.totalorder %s35, 7
        %s739 = scalar_select %p738, %s35, 7
        %s740 = scalar_lea.vmem %s13, %s739
        %p741 = pneg %p368
        %p742 = pneg %p365
        %p743 = scmp.lt.s32.totalorder %s35, 7
        %s744 = scalar_select %p743, %s35, 7
        %s745 = scalar_lea.vmem %s14, %s744
        %p746 = pneg %p394
        %p747 = pneg %p391
        %p748 = pneg %p415
        %p749 = pneg %p412
        %p750 = pneg %p436
        %p751 = pneg %p433
        %p752 = pneg %p457
        %p753 = pneg %p454
        %p754 = pneg %p478
        %p755 = pneg %p475
        %p756 = pneg %p499
        %p757 = pneg %p496
        %p758 = pneg %p520
        %p759 = pneg %p517
        %p760 = scmp.lt.s32.totalorder %s35, 7
        %s761 = scalar_select %p760, %s35, 7
        %s762 = scalar_lea.vmem %s1, %s761
        %p763 = scmp.lt.s32.totalorder %s35, 7
        %s764 = scalar_select %p763, %s35, 7
        %s765 = scalar_lea.vmem %s2, %s764
        %p766 = scmp.lt.s32.totalorder %s35, 7
        %s767 = scalar_select %p766, %s35, 7
        %s768 = smul.addr %s767, 48
        %s769 = smul.addr %s768, 4
        %s770 = scalar_lea.vmem %s3, %s769
        %p771 = scmp.lt.s32.totalorder %s35, 7
        %s772 = scalar_select %p771, %s35, 7
        %s773 = smul.addr %s772, 3
        %s774 = scalar_lea.vmem %s4, %s773
        %p775 = scmp.lt.s32.totalorder %s35, 7
        %s776 = scalar_select %p775, %s35, 7
        %s777 = smul.addr %s776, 16
        %s778 = smul.addr %s777, 4
        %s779 = scalar_lea.vmem %s5, %s778
        %p780 = scmp.lt.s32.totalorder %s35, 7
        %s781 = scalar_select %p780, %s35, 7
        %s782 = scalar_lea.vmem %s6, %s781
        %p783 = scmp.lt.s32.totalorder %s35, 7
        %s784 = scalar_select %p783, %s35, 7
        %s785 = scalar_lea.vmem %s7, %s784
        %p786 = scmp.lt.s32.totalorder %s35, 7
        %s787 = scalar_select %p786, %s35, 7
        %s788 = scalar_lea.vmem %s8, %s787
        %p789 = scmp.lt.s32.totalorder %s35, 7
        %s790 = scalar_select %p789, %s35, 7
        %s791 = scalar_lea.vmem %s9, %s790
        %p792 = scmp.lt.s32.totalorder %s35, 7
        %s793 = scalar_select %p792, %s35, 7
        %s794 = smul.addr %s793, 96
        %s795 = smul.addr %s794, 4
        %s796 = scalar_lea.vmem %s10, %s795
        %p797 = scmp.lt.s32.totalorder %s35, 7
        %s798 = scalar_select %p797, %s35, 7
        %s799 = smul.addr %s798, 6
        %s800 = scalar_lea.vmem %s11, %s799
        %p801 = scmp.lt.s32.totalorder %s35, 7
        %s802 = scalar_select %p801, %s35, 7
        %s803 = scalar_lea.vmem %s13, %s802
        %p804 = scmp.lt.s32.totalorder %s35, 7
        %s805 = scalar_select %p804, %s35, 7
        %s806 = scalar_lea.vmem %s14, %s805
        %p808 = scmp.eq.s32.totalorder %s35, 0
        // Predicated region
        $region89: #{uni2_forward.5} parent=83 // pred_check
          %p809 = pneg %p808
        $region90: #{uni2_forward.5} parent=83 // pred_check_branch
          %811 = sbr.rel (%p809) target = $region92
        $region91: #{uni2_forward.5} parent=83 // pred_region
          %p813 = scmp.lt.u32.totalorder 64, 8
          %p814 = pneg %p813
          // Predicated region
          $region93: #{uni2_forward.5} parent=91 // pred_check
            _
          $region94: #{uni2_forward.5} parent=91 // pred_check_branch
            %816 = sbr.rel (%p813) target = $region96
          $region95: #{uni2_forward.5} parent=91 // pred_region
            %s832 = sand.u32 64, 7
            %p833 = scmp.eq.s32.totalorder %s832, 0
            // Predicated region
            $region108: #{uni2_forward.5} parent=95 // pred_check
              %p834 = pneg %p833
            $region109: #{uni2_forward.5} parent=95 // pred_check_branch
              %836 = sbr.rel (%p834) target = $region111
            $region110: #{uni2_forward.5} parent=95 // pred_region
              loop: start=0, step=1, limit=1
              $region112: #{uni2_forward.5} parent=110 // loop_pre_header
                _
              $region113: #{uni2_forward.5} parent=110 // loop_header
                %s838 = sphi 0, %s842
                %p839 = scmp.ge.s32.totalorder %s838, 1
                %s843 = sphi %s0, %s0
                %s844 = sphi [#allocation2], [#allocation2]
              $region114: #{uni2_forward.5} parent=110 // loop_header_branch
                %841 = sbr.rel (%p839) target = $region118
              $region115: #{uni2_forward.5} parent=110 // loop_body
                %v845 = vld [vmem:[%s843] sm:$0xff]
                %846 = vst [vmem:[%s844] sm:$0xff] %v845
                %v847 = vld [vmem:[%s843 + $0x8] sm:$0xff]
                %848 = vst [vmem:[%s844 + $0x8] sm:$0xff] %v847
                %v849 = vld [vmem:[%s843 + $0x10] sm:$0xff]
                %850 = vst [vmem:[%s844 + $0x10] sm:$0xff] %v849
                %v851 = vld [vmem:[%s843 + $0x18] sm:$0xff]
                %852 = vst [vmem:[%s844 + $0x18] sm:$0xff] %v851
                %v853 = vld [vmem:[%s843 + $0x20] sm:$0xff]
                %854 = vst [vmem:[%s844 + $0x20] sm:$0xff] %v853
                %v855 = vld [vmem:[%s843 + $0x28] sm:$0xff]
                %856 = vst [vmem:[%s844 + $0x28] sm:$0xff] %v855
                %v857 = vld [vmem:[%s843 + $0x30] sm:$0xff]
                %858 = vst [vmem:[%s844 + $0x30] sm:$0xff] %v857
                %v859 = vld [vmem:[%s843 + $0x38] sm:$0xff]
                %860 = vst [vmem:[%s844 + $0x38] sm:$0xff] %v859
              $region116: #{uni2_forward.5} parent=110 // loop_footer
                %s842 = sadd.s32 1, %s838
              $region117: #{uni2_forward.5} parent=110 // loop_footer_branch
                %837 = sbr.rel target = $region113
              $region118: #{uni2_forward.5} parent=110 // loop_exit
                _
            $region111: #{uni2_forward.5} parent=95 // pred_fallthru
              _
            %p861 = pneg %p833
            // Predicated region
            $region119: #{uni2_forward.5} parent=95 // pred_check
              _
            $region120: #{uni2_forward.5} parent=95 // pred_check_branch
              %863 = sbr.rel (%p833) target = $region122
            $region121: #{uni2_forward.5} parent=95 // pred_region
              %s864 = sand.u32 64, 7
            $region122: #{uni2_forward.5} parent=95 // pred_fallthru
              _
          $region96: #{uni2_forward.5} parent=91 // pred_fallthru
            _
          // Predicated region
          $region97: #{uni2_forward.5} parent=91 // pred_check
            %p817 = pneg %p813
          $region98: #{uni2_forward.5} parent=91 // pred_check_branch
            %819 = sbr.rel (%p817) target = $region100
          $region99: #{uni2_forward.5} parent=91 // pred_region
            %s820 = sshll.u32 1, 64
            %s821 = ssub.s32 %s820, 1
            loop: start=0, step=1, limit=1
            $region101: #{uni2_forward.5} parent=99 // loop_pre_header
              _
            $region102: #{uni2_forward.5} parent=99 // loop_header
              %s823 = sphi 0, %s827
              %p824 = scmp.ge.s32.totalorder %s823, 1
              %s828 = sphi %s0, %s0
              %s829 = sphi [#allocation2], [#allocation2]
            $region103: #{uni2_forward.5} parent=99 // loop_header_branch
              %826 = sbr.rel (%p824) target = $region107
            $region104: #{uni2_forward.5} parent=99 // loop_body
              %v830 = vld [vmem:[%s828] sm:%s821]
              %831 = vst [vmem:[%s829] sm:%s821] %v830
            $region105: #{uni2_forward.5} parent=99 // loop_footer
              %s827 = sadd.s32 1, %s823
            $region106: #{uni2_forward.5} parent=99 // loop_footer_branch
              %822 = sbr.rel target = $region102
            $region107: #{uni2_forward.5} parent=99 // loop_exit
              _
          $region100: #{uni2_forward.5} parent=91 // pred_fallthru
            _
          // Predicated region
          $region123: #{uni2_forward.5} parent=91 // pred_check
            _
          $region124: #{uni2_forward.5} parent=91 // pred_check_branch
            %867 = sbr.rel (0) target = $region126
          $region125: #{uni2_forward.5} parent=91 // pred_region
            %868 = vsyncadd [#allocation3], 1024
          $region126: #{uni2_forward.5} parent=91 // pred_fallthru
            _
          %s869 = smul.u32 2, 32
          %s870 = smul.u32 %s869, 1
          %s871 = sshll.u32 %s870, 4
          %872 = dma.done [#allocation3], %s871
        $region92: #{uni2_forward.5} parent=83 // pred_fallthru
          _
        %v873 = vld [vmem:[#allocation2] sm:$0xff]
        %v874 = vld [vmem:[#allocation2 + $0x8] sm:$0xff]
        %v875 = vld [vmem:[#allocation2 + $0x10] sm:$0xff]
        %v876 = vld [vmem:[#allocation2 + $0x18] sm:$0xff]
        %v877 = vld [vmem:[#allocation2 + $0x20] sm:$0xff]
        %v878 = vld [vmem:[#allocation2 + $0x28] sm:$0xff]
        %v879 = vld [vmem:[#allocation2 + $0x30] sm:$0xff]
        %v880 = vld [vmem:[#allocation2 + $0x38] sm:$0xff]
        %v881 = vld [vmem:[%s762] sm:$0x1]
        %v882 = vld [vmem:[%s765] sm:$0x1]
        %883 = vadd.xlane.f32.xlu0 %v873
        %v884 = vpop.xlane.xlu0 %883
        %885 = vadd.xlane.f32.xlu0 %v874
        %v886 = vpop.xlane.xlu0 %885
        %887 = vadd.xlane.f32.xlu0 %v875
        %v888 = vpop.xlane.xlu0 %887
        %889 = vadd.xlane.f32.xlu0 %v876
        %v890 = vpop.xlane.xlu0 %889
        %891 = vadd.xlane.f32.xlu0 %v877
        %v892 = vpop.xlane.xlu0 %891
        %893 = vadd.xlane.f32.xlu0 %v878
        %v894 = vpop.xlane.xlu0 %893
        %895 = vadd.xlane.f32.xlu0 %v879
        %v896 = vpop.xlane.xlu0 %895
        %897 = vadd.xlane.f32.xlu0 %v880
        %v898 = vpop.xlane.xlu0 %897
        %v899 = vrcp.pop 128.0
        %v900 = vmul.f32 %v884, %v899
        %v901 = vmul.f32 %v886, %v899
        %v902 = vmul.f32 %v888, %v899
        %v903 = vmul.f32 %v890, %v899
        %v904 = vmul.f32 %v892, %v899
        %v905 = vmul.f32 %v894, %v899
        %v906 = vmul.f32 %v896, %v899
        %v907 = vmul.f32 %v898, %v899
        %v908 = vsub.f32 %v873, %v900
        %v909 = vsub.f32 %v874, %v901
        %v910 = vsub.f32 %v875, %v902
        %v911 = vsub.f32 %v876, %v903
        %v912 = vsub.f32 %v877, %v904
        %v913 = vsub.f32 %v878, %v905
        %v914 = vsub.f32 %v879, %v906
        %v915 = vsub.f32 %v880, %v907
        %v916 = vmul.f32 %v908, %v908
        %v917 = vmul.f32 %v909, %v909
        %v918 = vmul.f32 %v910, %v910
        %v919 = vmul.f32 %v911, %v911
        %v920 = vmul.f32 %v912, %v912
        %v921 = vmul.f32 %v913, %v913
        %v922 = vmul.f32 %v914, %v914
        %v923 = vmul.f32 %v915, %v915
        %924 = vadd.xlane.f32.xlu0 %v916
        %v925 = vpop.xlane.xlu0 %924
        %926 = vadd.xlane.f32.xlu0 %v917
        %v927 = vpop.xlane.xlu0 %926
        %928 = vadd.xlane.f32.xlu0 %v918
        %v929 = vpop.xlane.xlu0 %928
        %930 = vadd.xlane.f32.xlu0 %v919
        %v931 = vpop.xlane.xlu0 %930
        %932 = vadd.xlane.f32.xlu0 %v920
        %v933 = vpop.xlane.xlu0 %932
        %934 = vadd.xlane.f32.xlu0 %v921
        %v935 = vpop.xlane.xlu0 %934
        %936 = vadd.xlane.f32.xlu0 %v922
        %v937 = vpop.xlane.xlu0 %936
        %938 = vadd.xlane.f32.xlu0 %v923
        %v939 = vpop.xlane.xlu0 %938
        %v940 = vmul.f32 %v925, %v899
        %v941 = vmul.f32 %v927, %v899
        %v942 = vmul.f32 %v929, %v899
        %v943 = vmul.f32 %v931, %v899
        %v944 = vmul.f32 %v933, %v899
        %v945 = vmul.f32 %v935, %v899
        %v946 = vmul.f32 %v937, %v899
        %v947 = vmul.f32 %v939, %v899
        %v948 = vadd.f32 %v940, 1e-06
        %v949 = vadd.f32 %v941, 1e-06
        %v950 = vadd.f32 %v942, 1e-06
        %v951 = vadd.f32 %v943, 1e-06
        %v952 = vadd.f32 %v944, 1e-06
        %v953 = vadd.f32 %v945, 1e-06
        %v954 = vadd.f32 %v946, 1e-06
        %v955 = vadd.f32 %v947, 1e-06
        %v956 = vrsqrt.pop %v948
        %v957 = vrsqrt.pop %v949
        %v958 = vrsqrt.pop %v950
        %v959 = vrsqrt.pop %v951
        %v960 = vrsqrt.pop %v952
        %v961 = vrsqrt.pop %v953
        %v962 = vrsqrt.pop %v954
        %v963 = vrsqrt.pop %v955
        %v964 = vmul.f32 %v908, %v956
        %v965 = vmul.f32 %v909, %v957
        %v966 = vmul.f32 %v910, %v958
        %v967 = vmul.f32 %v911, %v959
        %v968 = vmul.f32 %v912, %v960
        %v969 = vmul.f32 %v913, %v961
        %v970 = vmul.f32 %v914, %v962
        %v971 = vmul.f32 %v915, %v963
        %v973 = vlaneseq
        %v974 = vshrl.u32 %v973, 7
        %v975 = vsub.s32 0, %v974
        %v976 = vrot.slane %v881, %v975
        %v978 = vmul.f32 %v964, %v976
        %v979 = vmul.f32 %v965, %v976
        %v980 = vmul.f32 %v966, %v976
        %v981 = vmul.f32 %v967, %v976
        %v982 = vmul.f32 %v968, %v976
        %v983 = vmul.f32 %v969, %v976
        %v984 = vmul.f32 %v970, %v976
        %v985 = vmul.f32 %v971, %v976
        %v987 = vlaneseq
        %v988 = vshrl.u32 %v987, 7
        %v989 = vsub.s32 0, %v988
        %v990 = vrot.slane %v882, %v989
        %v992 = vadd.f32 %v978, %v990
        %v993 = vadd.f32 %v979, %v990
        %v994 = vadd.f32 %v980, %v990
        %v995 = vadd.f32 %v981, %v990
        %v996 = vadd.f32 %v982, %v990
        %v997 = vadd.f32 %v983, %v990
        %v998 = vadd.f32 %v984, %v990
        %v999 = vadd.f32 %v985, %v990
        %v1000 = vpack.c.bf16 %v993, %v992
        %v1001 = vpack.c.bf16 %v995, %v994
        %v1002 = vpack.c.bf16 %v997, %v996
        %v1003 = vpack.c.bf16 %v999, %v998
        %v1004 = vld [vmem:[%s770] sm:$0xff]
        %v1005 = vld [vmem:[%s770 + $0x8] sm:$0xf]
        %v1006 = vld [vmem:[%s770 + $0xc] sm:$0xff]
        %v1007 = vld [vmem:[%s770 + $0x14] sm:$0xf]
        %v1008 = vld [vmem:[%s770 + $0x18] sm:$0xff]
        %v1009 = vld [vmem:[%s770 + $0x20] sm:$0xf]
        %v1010 = vld [vmem:[%s770 + $0x24] sm:$0xff]
        %v1011 = vld [vmem:[%s770 + $0x2c] sm:$0xf]
        %v1012 = vld [vmem:[%s770 + $0x30] sm:$0xff]
        %v1013 = vld [vmem:[%s770 + $0x38] sm:$0xf]
        %v1014 = vld [vmem:[%s770 + $0x3c] sm:$0xff]
        %v1015 = vld [vmem:[%s770 + $0x44] sm:$0xf]
        %v1016 = vld [vmem:[%s770 + $0x48] sm:$0xff]
        %v1017 = vld [vmem:[%s770 + $0x50] sm:$0xf]
        %v1018 = vld [vmem:[%s770 + $0x54] sm:$0xff]
        %v1019 = vld [vmem:[%s770 + $0x5c] sm:$0xf]
        %v1020 = vld [vmem:[%s770 + $0x60] sm:$0xff]
        %v1021 = vld [vmem:[%s770 + $0x68] sm:$0xf]
        %v1022 = vld [vmem:[%s770 + $0x6c] sm:$0xff]
        %v1023 = vld [vmem:[%s770 + $0x74] sm:$0xf]
        %v1024 = vld [vmem:[%s770 + $0x78] sm:$0xff]
        %v1025 = vld [vmem:[%s770 + $0x80] sm:$0xf]
        %v1026 = vld [vmem:[%s770 + $0x84] sm:$0xff]
        %v1027 = vld [vmem:[%s770 + $0x8c] sm:$0xf]
        %v1028 = vld [vmem:[%s770 + $0x90] sm:$0xff]
        %v1029 = vld [vmem:[%s770 + $0x98] sm:$0xf]
        %v1030 = vld [vmem:[%s770 + $0x9c] sm:$0xff]
        %v1031 = vld [vmem:[%s770 + $0xa4] sm:$0xf]
        %v1032 = vld [vmem:[%s770 + $0xa8] sm:$0xff]
        %v1033 = vld [vmem:[%s770 + $0xb0] sm:$0xf]
        %v1034 = vld [vmem:[%s770 + $0xb4] sm:$0xff]
        %v1035 = vld [vmem:[%s770 + $0xbc] sm:$0xf]
        %v1036 = vld [vmem:[%s774] sm:$0x7]
        %v1038 = vlaneseq
        %v1039 = vshrl.u32 %v1038, 7
        %v1040 = vsub.s32 0, %v1039
        %v1041 = vrot.slane %v1036, %v1040
        %v1042 = vlaneseq
        %v1043 = vshrl.u32 %v1042, 7
        %v1044 = vsub.s32 1, %v1043
        %v1045 = vrot.slane %v1036, %v1044
        %v1046 = vlaneseq
        %v1047 = vshrl.u32 %v1046, 7
        %v1048 = vsub.s32 2, %v1047
        %v1049 = vrot.slane %v1036, %v1048
        %v1085 = vunpack.c.l.b16 %v1004
        %v1086 = vunpack.c.h.b16 %v1004
        %v1087 = vunpack.c.l.b16 %v1005
        %v1088 = vunpack.c.l.b16 %v1006
        %v1089 = vunpack.c.h.b16 %v1006
        %v1090 = vunpack.c.l.b16 %v1007
        %v1091 = vunpack.c.l.b16 %v1008
        %v1092 = vunpack.c.h.b16 %v1008
        %v1093 = vunpack.c.l.b16 %v1009
        %v1094 = vunpack.c.l.b16 %v1010
        %v1095 = vunpack.c.h.b16 %v1010
        %v1096 = vunpack.c.l.b16 %v1011
        %v1097 = vunpack.c.l.b16 %v1012
        %v1098 = vunpack.c.h.b16 %v1012
        %v1099 = vunpack.c.l.b16 %v1013
        %v1100 = vunpack.c.l.b16 %v1014
        %v1101 = vunpack.c.h.b16 %v1014
        %v1102 = vunpack.c.l.b16 %v1015
        %v1103 = vunpack.c.l.b16 %v1016
        %v1104 = vunpack.c.h.b16 %v1016
        %v1105 = vunpack.c.l.b16 %v1017
        %v1106 = vunpack.c.l.b16 %v1018
        %v1107 = vunpack.c.h.b16 %v1018
        %v1108 = vunpack.c.l.b16 %v1019
        %v1109 = vunpack.c.l.b16 %v1020
        %v1110 = vunpack.c.h.b16 %v1020
        %v1111 = vunpack.c.l.b16 %v1021
        %v1112 = vunpack.c.l.b16 %v1022
        %v1113 = vunpack.c.h.b16 %v1022
        %v1114 = vunpack.c.l.b16 %v1023
        %v1115 = vunpack.c.l.b16 %v1024
        %v1116 = vunpack.c.h.b16 %v1024
        %v1117 = vunpack.c.l.b16 %v1025
        %v1118 = vunpack.c.l.b16 %v1026
        %v1119 = vunpack.c.h.b16 %v1026
        %v1120 = vunpack.c.l.b16 %v1027
        %v1121 = vunpack.c.l.b16 %v1028
        %v1122 = vunpack.c.h.b16 %v1028
        %v1123 = vunpack.c.l.b16 %v1029
        %v1124 = vunpack.c.l.b16 %v1030
        %v1125 = vunpack.c.h.b16 %v1030
        %v1126 = vunpack.c.l.b16 %v1031
        %v1127 = vunpack.c.l.b16 %v1032
        %v1128 = vunpack.c.h.b16 %v1032
        %v1129 = vunpack.c.l.b16 %v1033
        %v1130 = vunpack.c.l.b16 %v1034
        %v1131 = vunpack.c.h.b16 %v1034
        %v1132 = vunpack.c.l.b16 %v1035
        %v1133 = vpack.c.b16 %v1088, %v1085
        %v1134 = vpack.c.b16 %v1089, %v1086
        %v1135 = vpack.c.b16 %v1090, %v1087
        %v1136 = vpack.c.b16 %v1094, %v1091
        %v1137 = vpack.c.b16 %v1095, %v1092
        %v1138 = vpack.c.b16 %v1096, %v1093
        %v1139 = vpack.c.b16 %v1100, %v1097
        %v1140 = vpack.c.b16 %v1101, %v1098
        %v1141 = vpack.c.b16 %v1102, %v1099
        %v1142 = vpack.c.b16 %v1106, %v1103
        %v1143 = vpack.c.b16 %v1107, %v1104
        %v1144 = vpack.c.b16 %v1108, %v1105
        %v1145 = vpack.c.b16 %v1112, %v1109
        %v1146 = vpack.c.b16 %v1113, %v1110
        %v1147 = vpack.c.b16 %v1114, %v1111
        %v1148 = vpack.c.b16 %v1118, %v1115
        %v1149 = vpack.c.b16 %v1119, %v1116
        %v1150 = vpack.c.b16 %v1120, %v1117
        %v1151 = vpack.c.b16 %v1124, %v1121
        %v1152 = vpack.c.b16 %v1125, %v1122
        %v1153 = vpack.c.b16 %v1126, %v1123
        %v1154 = vpack.c.b16 %v1130, %v1127
        %v1155 = vpack.c.b16 %v1131, %v1128
        %v1156 = vpack.c.b16 %v1132, %v1129
        %1181 = vmatprep.subr.bf16.mxu0 %v1155
        %1182 = vmatpush1.bf16.msra.mxu0 %v1154
        %1183 = vmatprep.subr.bf16.mxu0 %v1152
        %1184 = vmatpush1.bf16.msra.mxu0 %v1151
        %1185 = vmatprep.subr.bf16.mxu0 %v1149
        %1186 = vmatpush1.bf16.msra.mxu0 %v1148
        %1187 = vmatprep.subr.bf16.mxu0 %v1146
        %1188 = vmatpush1.bf16.msra.mxu0 %v1145
        %1189 = vmatprep.subr.bf16.mxu0 %v1143
        %1190 = vmatpush1.bf16.msra.mxu0 %v1142
        %1191 = vmatprep.subr.bf16.mxu0 %v1140
        %1192 = vmatpush1.bf16.msra.mxu0 %v1139
        %1193 = vmatprep.subr.bf16.mxu0 %v1137
        %1194 = vmatpush1.bf16.msra.mxu0 %v1136
        %1195 = vmatprep.subr.bf16.mxu0 %v1134
        %1196 = vmatpush1.bf16.msra.mxu0 %v1133
        %1197 = vmatprep.subr.bf16.mxu0 0
        %1198 = vmatpush2.bf16.msra.mxu0 0
        %1199 = vmatprep.subr.bf16.mxu0 0
        %1200 = vmatpush2.bf16.msra.mxu0 0
        %1201 = vmatprep.subr.bf16.mxu0 0
        %1202 = vmatpush2.bf16.msra.mxu0 0
        %1203 = vmatprep.subr.bf16.mxu0 0
        %1204 = vmatpush2.bf16.msra.mxu0 0
        %1205 = vmatprep.subr.bf16.mxu0 0
        %1206 = vmatpush2.bf16.msra.mxu0 0
        %1207 = vmatprep.subr.bf16.mxu0 0
        %1208 = vmatpush2.bf16.msra.mxu0 0
        %1209 = vmatprep.subr.bf16.mxu0 0
        %1210 = vmatpush2.bf16.msra.mxu0 0
        %1211 = vmatprep.subr.bf16.mxu0 0
        %1212 = vmatpush2.bf16.msra.mxu0 0
        %1213 = vmatprep.mubr.bf16.mxu0 0
        %1214 = vmatmul.mubr.bf16.gmra.mxu0 %v1000
        %v1215 = vpop.f32.mrf.mxu0
        %v1216 = vadd.f32 %v1041, %v1215
        %v1217 = vpop.f32.mrf.mxu0
        %v1218 = vadd.f32 %v1045, %v1217
        %v1219 = vpop.f32.mrf.mxu0
        %v1220 = vadd.f32 %v1041, %v1219
        %v1221 = vpop.f32.mrf.mxu0
        %v1222 = vadd.f32 %v1045, %v1221
        %1223 = vmatprep.mubr.bf16.mxu0 0
        %1224 = vmatmul.mubr.bf16.gmra.mxu0 %v1001
        %v1225 = vpop.f32.mrf.mxu0
        %v1226 = vadd.f32 %v1041, %v1225
        %v1227 = vpop.f32.mrf.mxu0
        %v1228 = vadd.f32 %v1045, %v1227
        %v1229 = vpop.f32.mrf.mxu0
        %v1230 = vadd.f32 %v1041, %v1229
        %v1231 = vpop.f32.mrf.mxu0
        %v1232 = vadd.f32 %v1045, %v1231
        %1233 = vmatprep.mubr.bf16.mxu0 0
        %1234 = vmatmul.mubr.bf16.gmra.mxu0 %v1002
        %v1235 = vpop.f32.mrf.mxu0
        %v1236 = vadd.f32 %v1041, %v1235
        %v1237 = vpop.f32.mrf.mxu0
        %v1238 = vadd.f32 %v1045, %v1237
        %v1239 = vpop.f32.mrf.mxu0
        %v1240 = vadd.f32 %v1041, %v1239
        %v1241 = vpop.f32.mrf.mxu0
        %v1242 = vadd.f32 %v1045, %v1241
        %1243 = vmatprep.mubr.bf16.mxu0 0
        %1244 = vmatmul.mubr.bf16.gmra.mxu0 %v1003
        %v1245 = vpop.f32.mrf.mxu0
        %v1246 = vadd.f32 %v1041, %v1245
        %v1247 = vpop.f32.mrf.mxu0
        %v1248 = vadd.f32 %v1045, %v1247
        %v1249 = vpop.f32.mrf.mxu0
        %v1250 = vadd.f32 %v1041, %v1249
        %v1251 = vpop.f32.mrf.mxu0
        %v1252 = vadd.f32 %v1045, %v1251
        %1253 = vdwg.mxu0
        %1254 = vmatprep.subr.bf16.mxu0 0
        %1255 = vmatpush1.bf16.msra.mxu0 %v1156
        %1256 = vmatprep.subr.bf16.mxu0 0
        %1257 = vmatpush1.bf16.msra.mxu0 %v1153
        %1258 = vmatprep.subr.bf16.mxu0 0
        %1259 = vmatpush1.bf16.msra.mxu0 %v1150
        %1260 = vmatprep.subr.bf16.mxu0 0
        %1261 = vmatpush1.bf16.msra.mxu0 %v1147
        %1262 = vmatprep.subr.bf16.mxu0 0
        %1263 = vmatpush1.bf16.msra.mxu0 %v1144
        %1264 = vmatprep.subr.bf16.mxu0 0
        %1265 = vmatpush1.bf16.msra.mxu0 %v1141
        %1266 = vmatprep.subr.bf16.mxu0 0
        %1267 = vmatpush1.bf16.msra.mxu0 %v1138
        %1268 = vmatprep.subr.bf16.mxu0 0
        %1269 = vmatpush1.bf16.msra.mxu0 %v1135
        %1270 = vmatprep.subr.bf16.mxu0 0
        %1271 = vmatpush2.bf16.msra.mxu0 0
        %1272 = vmatprep.subr.bf16.mxu0 0
        %1273 = vmatpush2.bf16.msra.mxu0 0
        %1274 = vmatprep.subr.bf16.mxu0 0
        %1275 = vmatpush2.bf16.msra.mxu0 0
        %1276 = vmatprep.subr.bf16.mxu0 0
        %1277 = vmatpush2.bf16.msra.mxu0 0
        %1278 = vmatprep.subr.bf16.mxu0 0
        %1279 = vmatpush2.bf16.msra.mxu0 0
        %1280 = vmatprep.subr.bf16.mxu0 0
        %1281 = vmatpush2.bf16.msra.mxu0 0
        %1282 = vmatprep.subr.bf16.mxu0 0
        %1283 = vmatpush2.bf16.msra.mxu0 0
        %1284 = vmatprep.subr.bf16.mxu0 0
        %1285 = vmatpush2.bf16.msra.mxu0 0
        %1286 = vmatprep.mubr.bf16.mxu0 0
        %1287 = vmatmul.mubr.bf16.gmra.mxu0 %v1000
        %v1288 = vpop.f32.mrf.mxu0
        %v1289 = vadd.f32 %v1049, %v1288
        %v1290 = vpop.f32.mrf.mxu0
        %v1291 = vpop.f32.mrf.mxu0
        %v1292 = vadd.f32 %v1049, %v1291
        %v1293 = vpop.f32.mrf.mxu0
        %1294 = vmatprep.mubr.bf16.mxu0 0
        %1295 = vmatmul.mubr.bf16.gmra.mxu0 %v1001
        %v1296 = vpop.f32.mrf.mxu0
        %v1297 = vadd.f32 %v1049, %v1296
        %v1298 = vpop.f32.mrf.mxu0
        %v1299 = vpop.f32.mrf.mxu0
        %v1300 = vadd.f32 %v1049, %v1299
        %v1301 = vpop.f32.mrf.mxu0
        %1302 = vmatprep.mubr.bf16.mxu0 0
        %1303 = vmatmul.mubr.bf16.gmra.mxu0 %v1002
        %v1304 = vpop.f32.mrf.mxu0
        %v1305 = vadd.f32 %v1049, %v1304
        %v1306 = vpop.f32.mrf.mxu0
        %v1307 = vpop.f32.mrf.mxu0
        %v1308 = vadd.f32 %v1049, %v1307
        %v1309 = vpop.f32.mrf.mxu0
        %1310 = vmatprep.mubr.bf16.mxu0 0
        %1311 = vmatmul.mubr.bf16.gmra.mxu0 %v1003
        %v1312 = vpop.f32.mrf.mxu0
        %v1313 = vadd.f32 %v1049, %v1312
        %v1314 = vpop.f32.mrf.mxu0
        %v1315 = vpop.f32.mrf.mxu0
        %v1316 = vadd.f32 %v1049, %v1315
        %v1317 = vpop.f32.mrf.mxu0
        %1318 = vdwg.mxu0
        %v1319 = vpack.c.bf16 %v1220, %v1216
        %v1320 = vpack.c.bf16 %v1230, %v1226
        %v1321 = vpack.c.bf16 %v1240, %v1236
        %v1322 = vpack.c.bf16 %v1250, %v1246
        %v1323 = vpack.c.bf16 %v1222, %v1218
        %v1324 = vpack.c.bf16 %v1232, %v1228
        %v1325 = vpack.c.bf16 %v1242, %v1238
        %v1326 = vpack.c.bf16 %v1252, %v1248
        %v1327 = vpack.c.bf16 %v1292, %v1289
        %v1328 = vpack.c.bf16 %v1300, %v1297
        %v1329 = vpack.c.bf16 %v1308, %v1305
        %v1330 = vpack.c.bf16 %v1316, %v1313
        %vm1331 = vcmask 261120
        %v1333 = vsel %vm1331, %v1319, 0
        %v1336 = vsel %vm1331, %v1320, 0
        %v1339 = vsel %vm1331, %v1323, 0
        %v1342 = vsel %vm1331, %v1324, 0
        %1344 = vmatprep.subr.bf16.mxu0 0
        %1345 = vmatpush1.bf16.xpose.msra.mxu0 0
        %1346 = vmatprep.subr.bf16.mxu0 0
        %1347 = vmatpush1.bf16.xpose.msra.mxu0 0
        %1348 = vmatprep.subr.bf16.mxu0 0
        %1349 = vmatpush1.bf16.xpose.msra.mxu0 0
        %1350 = vmatprep.subr.bf16.mxu0 0
        %1351 = vmatpush1.bf16.xpose.msra.mxu0 0
        %1352 = vmatprep.subr.bf16.mxu0 0
        %1353 = vmatpush1.bf16.xpose.msra.mxu0 0
        %1354 = vmatprep.subr.bf16.mxu0 0
        %1355 = vmatpush1.bf16.xpose.msra.mxu0 0
        %1356 = vmatprep.subr.bf16.mxu0 0
        %1357 = vmatpush1.bf16.xpose.msra.mxu0 %v1342
        %1358 = vmatprep.subr.bf16.mxu0 0
        %1359 = vmatpush1.bf16.xpose.msra.mxu0 %v1339
        %1360 = vmatprep.subr.bf16.mxu0 0
        %1361 = vmatpush2.bf16.xpose.msra.mxu0 0
        %1362 = vmatprep.subr.bf16.mxu0 0
        %1363 = vmatpush2.bf16.xpose.msra.mxu0 0
        %1364 = vmatprep.subr.bf16.mxu0 0
        %1365 = vmatpush2.bf16.xpose.msra.mxu0 0
        %1366 = vmatprep.subr.bf16.mxu0 0
        %1367 = vmatpush2.bf16.xpose.msra.mxu0 0
        %1368 = vmatprep.subr.bf16.mxu0 0
        %1369 = vmatpush2.bf16.xpose.msra.mxu0 0
        %1370 = vmatprep.subr.bf16.mxu0 0
        %1371 = vmatpush2.bf16.xpose.msra.mxu0 0
        %1372 = vmatprep.subr.bf16.mxu0 0
        %1373 = vmatpush2.bf16.xpose.msra.mxu0 0
        %1374 = vmatprep.subr.bf16.mxu0 0
        %1375 = vmatpush2.bf16.xpose.msra.mxu0 0
        %1376 = vmatprep.mubr.bf16.mxu0 0
        %1377 = vmatmul.mubr.bf16.gmra.mxu0 %v1333
        %v1378 = vpop.f32.mrf.mxu0
        %v1379 = vadd.f32 0.0, %v1378
        %v1380 = vpop.f32.mrf.mxu0
        %v1381 = vpop.f32.mrf.mxu0
        %v1382 = vadd.f32 0.0, %v1381
        %v1383 = vpop.f32.mrf.mxu0
        %1384 = vmatprep.mubr.bf16.mxu0 0
        %1385 = vmatmul.mubr.bf16.gmra.mxu0 %v1336
        %v1386 = vpop.f32.mrf.mxu0
        %v1387 = vadd.f32 0.0, %v1386
        %v1388 = vpop.f32.mrf.mxu0
        %v1389 = vpop.f32.mrf.mxu0
        %v1390 = vadd.f32 0.0, %v1389
        %v1391 = vpop.f32.mrf.mxu0
        %1392 = vdwg.mxu0
        %v1394 = vsel %vm1331, %v1321, 0
        %v1397 = vsel %vm1331, %v1322, 0
        %v1400 = vsel %vm1331, %v1325, 0
        %v1403 = vsel %vm1331, %v1326, 0
        %1405 = vmatprep.subr.bf16.mxu0 0
        %1406 = vmatpush1.bf16.xpose.msra.mxu0 0
        %1407 = vmatprep.subr.bf16.mxu0 0
        %1408 = vmatpush1.bf16.xpose.msra.mxu0 0
        %1409 = vmatprep.subr.bf16.mxu0 0
        %1410 = vmatpush1.bf16.xpose.msra.mxu0 0
        %1411 = vmatprep.subr.bf16.mxu0 0
        %1412 = vmatpush1.bf16.xpose.msra.mxu0 0
        %1413 = vmatprep.subr.bf16.mxu0 0
        %1414 = vmatpush1.bf16.xpose.msra.mxu0 0
        %1415 = vmatprep.subr.bf16.mxu0 0
        %1416 = vmatpush1.bf16.xpose.msra.mxu0 0
        %1417 = vmatprep.subr.bf16.mxu0 0
        %1418 = vmatpush1.bf16.xpose.msra.mxu0 %v1403
        %1419 = vmatprep.subr.bf16.mxu0 0
        %1420 = vmatpush1.bf16.xpose.msra.mxu0 %v1400
        %1421 = vmatprep.subr.bf16.mxu0 0
        %1422 = vmatpush2.bf16.xpose.msra.mxu0 0
        %1423 = vmatprep.subr.bf16.mxu0 0
        %1424 = vmatpush2.bf16.xpose.msra.mxu0 0
        %1425 = vmatprep.subr.bf16.mxu0 0
        %1426 = vmatpush2.bf16.xpose.msra.mxu0 0
        %1427 = vmatprep.subr.bf16.mxu0 0
        %1428 = vmatpush2.bf16.xpose.msra.mxu0 0
        %1429 = vmatprep.subr.bf16.mxu0 0
        %1430 = vmatpush2.bf16.xpose.msra.mxu0 0
        %1431 = vmatprep.subr.bf16.mxu0 0
        %1432 = vmatpush2.bf16.xpose.msra.mxu0 0
        %1433 = vmatprep.subr.bf16.mxu0 0
        %1434 = vmatpush2.bf16.xpose.msra.mxu0 0
        %1435 = vmatprep.subr.bf16.mxu0 0
        %1436 = vmatpush2.bf16.xpose.msra.mxu0 0
        %1437 = vmatprep.mubr.bf16.mxu0 0
        %1438 = vmatmul.mubr.bf16.gmra.mxu0 %v1394
        %v1439 = vpop.f32.mrf.mxu0
        %v1440 = vadd.f32 0.0, %v1439
        %v1441 = vpop.f32.mrf.mxu0
        %v1442 = vpop.f32.mrf.mxu0
        %v1443 = vadd.f32 0.0, %v1442
        %v1444 = vpop.f32.mrf.mxu0
        %1445 = vmatprep.mubr.bf16.mxu0 0
        %1446 = vmatmul.mubr.bf16.gmra.mxu0 %v1397
        %v1447 = vpop.f32.mrf.mxu0
        %v1448 = vadd.f32 0.0, %v1447
        %v1449 = vpop.f32.mrf.mxu0
        %v1450 = vpop.f32.mrf.mxu0
        %v1451 = vadd.f32 0.0, %v1450
        %v1452 = vpop.f32.mrf.mxu0
        %1453 = vdwg.mxu0
        %v1454 = vmul.f32 %v1379, 0.17677669
        %v1455 = vmul.f32 %v1382, 0.17677669
        %v1456 = vmul.f32 %v1387, 0.17677669
        %v1457 = vmul.f32 %v1390, 0.17677669
        %v1458 = vmul.f32 %v1440, 0.17677669
        %v1459 = vmul.f32 %v1443, 0.17677669
        %v1460 = vmul.f32 %v1448, 0.17677669
        %v1461 = vmul.f32 %v1451, 0.17677669
        %v1462 = vlaneseq
        %v1463 = vand.u32 %v1462, 127
        %vm1464 = vcmp.lt.s32.totalorder %v1463, 25
        %v1465 = vsel %vm1464, 0.0, -1e+30
        %v1466 = vadd.f32 %v1454, %v1465
        %v1467 = vadd.f32 %v1455, %v1465
        %v1468 = vadd.f32 %v1456, %v1465
        %v1469 = vadd.f32 %v1457, %v1465
        %v1470 = vadd.f32 %v1458, %v1465
        %v1471 = vadd.f32 %v1459, %v1465
        %v1472 = vadd.f32 %v1460, %v1465
        %v1473 = vadd.f32 %v1461, %v1465
        %v1474 = vsel %vm1331, %v1466, -inf
        %1475 = vmax.xlane.f32.xlu0 %v1474
        %v1476 = vpop.xlane.xlu0 %1475
        %v1477 = vsel %vm1331, %v1467, -inf
        %1478 = vmax.xlane.f32.xlu0 %v1477
        %v1479 = vpop.xlane.xlu0 %1478
        %v1480 = vsel %vm1331, %v1468, -inf
        %1481 = vmax.xlane.f32.xlu0 %v1480
        %v1482 = vpop.xlane.xlu0 %1481
        %v1483 = vsel %vm1331, %v1469, -inf
        %1484 = vmax.xlane.f32.xlu0 %v1483
        %v1485 = vpop.xlane.xlu0 %1484
        %v1486 = vsel %vm1331, %v1470, -inf
        %1487 = vmax.xlane.f32.xlu0 %v1486
        %v1488 = vpop.xlane.xlu0 %1487
        %v1489 = vsel %vm1331, %v1471, -inf
        %1490 = vmax.xlane.f32.xlu0 %v1489
        %v1491 = vpop.xlane.xlu0 %1490
        %v1492 = vsel %vm1331, %v1472, -inf
        %1493 = vmax.xlane.f32.xlu0 %v1492
        %v1494 = vpop.xlane.xlu0 %1493
        %v1495 = vsel %vm1331, %v1473, -inf
        %1496 = vmax.xlane.f32.xlu0 %v1495
        %v1497 = vpop.xlane.xlu0 %1496
        %v1498 = vsub.f32 %v1466, %v1476
        %v1499 = vsub.f32 %v1467, %v1479
        %v1500 = vsub.f32 %v1468, %v1482
        %v1501 = vsub.f32 %v1469, %v1485
        %v1502 = vsub.f32 %v1470, %v1488
        %v1503 = vsub.f32 %v1471, %v1491
        %v1504 = vsub.f32 %v1472, %v1494
        %v1505 = vsub.f32 %v1473, %v1497
        %v1506 = vmul.f32 %v1498, 1.442695
        %v1507 = vpow.pop %v1506
        %v1508 = vmul.f32 %v1499, 1.442695
        %v1509 = vpow.pop %v1508
        %v1510 = vmul.f32 %v1500, 1.442695
        %v1511 = vpow.pop %v1510
        %v1512 = vmul.f32 %v1501, 1.442695
        %v1513 = vpow.pop %v1512
        %v1514 = vmul.f32 %v1502, 1.442695
        %v1515 = vpow.pop %v1514
        %v1516 = vmul.f32 %v1503, 1.442695
        %v1517 = vpow.pop %v1516
        %v1518 = vmul.f32 %v1504, 1.442695
        %v1519 = vpow.pop %v1518
        %v1520 = vmul.f32 %v1505, 1.442695
        %v1521 = vpow.pop %v1520
        %v1522 = vsel %vm1331, %v1507, 0.0
        %1523 = vadd.xlane.f32.xlu0 %v1522
        %v1524 = vpop.xlane.xlu0 %1523
        %v1525 = vsel %vm1331, %v1509, 0.0
        %1526 = vadd.xlane.f32.xlu0 %v1525
        %v1527 = vpop.xlane.xlu0 %1526
        %v1528 = vsel %vm1331, %v1511, 0.0
        %1529 = vadd.xlane.f32.xlu0 %v1528
        %v1530 = vpop.xlane.xlu0 %1529
        %v1531 = vsel %vm1331, %v1513, 0.0
        %1532 = vadd.xlane.f32.xlu0 %v1531
        %v1533 = vpop.xlane.xlu0 %1532
        %v1534 = vsel %vm1331, %v1515, 0.0
        %1535 = vadd.xlane.f32.xlu0 %v1534
        %v1536 = vpop.xlane.xlu0 %1535
        %v1537 = vsel %vm1331, %v1517, 0.0
        %1538 = vadd.xlane.f32.xlu0 %v1537
        %v1539 = vpop.xlane.xlu0 %1538
        %v1540 = vsel %vm1331, %v1519, 0.0
        %1541 = vadd.xlane.f32.xlu0 %v1540
        %v1542 = vpop.xlane.xlu0 %1541
        %v1543 = vsel %vm1331, %v1521, 0.0
        %1544 = vadd.xlane.f32.xlu0 %v1543
        %v1545 = vpop.xlane.xlu0 %1544
        %v1546 = vrcp.pop %v1524
        %v1547 = vrcp.pop %v1527
        %v1548 = vrcp.pop %v1530
        %v1549 = vrcp.pop %v1533
        %v1550 = vrcp.pop %v1536
        %v1551 = vrcp.pop %v1539
        %v1552 = vrcp.pop %v1542
        %v1553 = vrcp.pop %v1545
        %v1554 = vmul.f32 %v1507, %v1546
        %v1555 = vmul.f32 %v1509, %v1547
        %v1556 = vmul.f32 %v1511, %v1548
        %v1557 = vmul.f32 %v1513, %v1549
        %v1558 = vmul.f32 %v1515, %v1550
        %v1559 = vmul.f32 %v1517, %v1551
        %v1560 = vmul.f32 %v1519, %v1552
        %v1561 = vmul.f32 %v1521, %v1553
        %v1562 = vpack.c.bf16 %v1555, %v1554
        %v1563 = vpack.c.bf16 %v1557, %v1556
        %v1564 = vpack.c.bf16 %v1559, %v1558
        %v1565 = vpack.c.bf16 %v1561, %v1560
        %v1567 = vsel %vm1331, %v1562, 0
        %v1570 = vsel %vm1331, %v1563, 0
        %1572 = vmatprep.subr.bf16.mxu0 0
        %1573 = vmatpush1.bf16.msra.mxu0 0
        %1574 = vmatprep.subr.bf16.mxu0 0
        %1575 = vmatpush1.bf16.msra.mxu0 0
        %1576 = vmatprep.subr.bf16.mxu0 0
        %1577 = vmatpush1.bf16.msra.mxu0 0
        %1578 = vmatprep.subr.bf16.mxu0 0
        %1579 = vmatpush1.bf16.msra.mxu0 0
        %1580 = vmatprep.subr.bf16.mxu0 0
        %1581 = vmatpush1.bf16.msra.mxu0 0
        %1582 = vmatprep.subr.bf16.mxu0 0
        %1583 = vmatpush1.bf16.msra.mxu0 0
        %1584 = vmatprep.subr.bf16.mxu0 0
        %1585 = vmatpush1.bf16.msra.mxu0 %v1328
        %1586 = vmatprep.subr.bf16.mxu0 0
        %1587 = vmatpush1.bf16.msra.mxu0 %v1327
        %1588 = vmatprep.subr.bf16.mxu0 0
        %1589 = vmatpush2.bf16.msra.mxu0 0
        %1590 = vmatprep.subr.bf16.mxu0 0
        %1591 = vmatpush2.bf16.msra.mxu0 0
        %1592 = vmatprep.subr.bf16.mxu0 0
        %1593 = vmatpush2.bf16.msra.mxu0 0
        %1594 = vmatprep.subr.bf16.mxu0 0
        %1595 = vmatpush2.bf16.msra.mxu0 0
        %1596 = vmatprep.subr.bf16.mxu0 0
        %1597 = vmatpush2.bf16.msra.mxu0 0
        %1598 = vmatprep.subr.bf16.mxu0 0
        %1599 = vmatpush2.bf16.msra.mxu0 0
        %1600 = vmatprep.subr.bf16.mxu0 0
        %1601 = vmatpush2.bf16.msra.mxu0 0
        %1602 = vmatprep.subr.bf16.mxu0 0
        %1603 = vmatpush2.bf16.msra.mxu0 0
        %1604 = vmatprep.mubr.bf16.mxu0 0
        %1605 = vmatmul.mubr.bf16.gmra.mxu0 %v1567
        %v1606 = vpop.f32.mrf.mxu0
        %v1607 = vadd.f32 0.0, %v1606
        %v1608 = vpop.f32.mrf.mxu0
        %v1609 = vpop.f32.mrf.mxu0
        %v1610 = vadd.f32 0.0, %v1609
        %v1611 = vpop.f32.mrf.mxu0
        %1612 = vmatprep.mubr.bf16.mxu0 0
        %1613 = vmatmul.mubr.bf16.gmra.mxu0 %v1570
        %v1614 = vpop.f32.mrf.mxu0
        %v1615 = vadd.f32 0.0, %v1614
        %v1616 = vpop.f32.mrf.mxu0
        %v1617 = vpop.f32.mrf.mxu0
        %v1618 = vadd.f32 0.0, %v1617
        %v1619 = vpop.f32.mrf.mxu0
        %1620 = vdwg.mxu0
        %v1622 = vsel %vm1331, %v1564, 0
        %v1625 = vsel %vm1331, %v1565, 0
        %1627 = vmatprep.subr.bf16.mxu0 0
        %1628 = vmatpush1.bf16.msra.mxu0 0
        %1629 = vmatprep.subr.bf16.mxu0 0
        %1630 = vmatpush1.bf16.msra.mxu0 0
        %1631 = vmatprep.subr.bf16.mxu0 0
        %1632 = vmatpush1.bf16.msra.mxu0 0
        %1633 = vmatprep.subr.bf16.mxu0 0
        %1634 = vmatpush1.bf16.msra.mxu0 0
        %1635 = vmatprep.subr.bf16.mxu0 0
        %1636 = vmatpush1.bf16.msra.mxu0 0
        %1637 = vmatprep.subr.bf16.mxu0 0
        %1638 = vmatpush1.bf16.msra.mxu0 0
        %1639 = vmatprep.subr.bf16.mxu0 0
        %1640 = vmatpush1.bf16.msra.mxu0 %v1330
        %1641 = vmatprep.subr.bf16.mxu0 0
        %1642 = vmatpush1.bf16.msra.mxu0 %v1329
        %1643 = vmatprep.subr.bf16.mxu0 0
        %1644 = vmatpush2.bf16.msra.mxu0 0
        %1645 = vmatprep.subr.bf16.mxu0 0
        %1646 = vmatpush2.bf16.msra.mxu0 0
        %1647 = vmatprep.subr.bf16.mxu0 0
        %1648 = vmatpush2.bf16.msra.mxu0 0
        %1649 = vmatprep.subr.bf16.mxu0 0
        %1650 = vmatpush2.bf16.msra.mxu0 0
        %1651 = vmatprep.subr.bf16.mxu0 0
        %1652 = vmatpush2.bf16.msra.mxu0 0
        %1653 = vmatprep.subr.bf16.mxu0 0
        %1654 = vmatpush2.bf16.msra.mxu0 0
        %1655 = vmatprep.subr.bf16.mxu0 0
        %1656 = vmatpush2.bf16.msra.mxu0 0
        %1657 = vmatprep.subr.bf16.mxu0 0
        %1658 = vmatpush2.bf16.msra.mxu0 0
        %1659 = vmatprep.mubr.bf16.mxu0 0
        %1660 = vmatmul.mubr.bf16.gmra.mxu0 %v1622
        %v1661 = vpop.f32.mrf.mxu0
        %v1662 = vadd.f32 0.0, %v1661
        %v1663 = vpop.f32.mrf.mxu0
        %v1664 = vpop.f32.mrf.mxu0
        %v1665 = vadd.f32 0.0, %v1664
        %v1666 = vpop.f32.mrf.mxu0
        %1667 = vmatprep.mubr.bf16.mxu0 0
        %1668 = vmatmul.mubr.bf16.gmra.mxu0 %v1625
        %v1669 = vpop.f32.mrf.mxu0
        %v1670 = vadd.f32 0.0, %v1669
        %v1671 = vpop.f32.mrf.mxu0
        %v1672 = vpop.f32.mrf.mxu0
        %v1673 = vadd.f32 0.0, %v1672
        %v1674 = vpop.f32.mrf.mxu0
        %1675 = vdwg.mxu0
        %1678 = vrot.lane.b32.xlu0 %v1319, 96
        %v1679 = vpop.permute.xlu0 %1678
        %1680 = vrot.lane.b32.xlu0 %v1320, 96
        %v1681 = vpop.permute.xlu0 %1680
        %1684 = vrot.lane.b32.xlu0 %v1323, 96
        %v1685 = vpop.permute.xlu0 %1684
        %1686 = vrot.lane.b32.xlu0 %v1324, 96
        %v1687 = vpop.permute.xlu0 %1686
        %v1689 = vsel %vm1331, %v1679, 0
        %v1692 = vsel %vm1331, %v1681, 0
        %v1695 = vsel %vm1331, %v1685, 0
        %v1698 = vsel %vm1331, %v1687, 0
        %1700 = vmatprep.subr.bf16.mxu0 0
        %1701 = vmatpush1.bf16.xpose.msra.mxu0 0
        %1702 = vmatprep.subr.bf16.mxu0 0
        %1703 = vmatpush1.bf16.xpose.msra.mxu0 0
        %1704 = vmatprep.subr.bf16.mxu0 0
        %1705 = vmatpush1.bf16.xpose.msra.mxu0 0
        %1706 = vmatprep.subr.bf16.mxu0 0
        %1707 = vmatpush1.bf16.xpose.msra.mxu0 0
        %1708 = vmatprep.subr.bf16.mxu0 0
        %1709 = vmatpush1.bf16.xpose.msra.mxu0 0
        %1710 = vmatprep.subr.bf16.mxu0 0
        %1711 = vmatpush1.bf16.xpose.msra.mxu0 0
        %1712 = vmatprep.subr.bf16.mxu0 0
        %1713 = vmatpush1.bf16.xpose.msra.mxu0 %v1698
        %1714 = vmatprep.subr.bf16.mxu0 0
        %1715 = vmatpush1.bf16.xpose.msra.mxu0 %v1695
        %1716 = vmatprep.subr.bf16.mxu0 0
        %1717 = vmatpush2.bf16.xpose.msra.mxu0 0
        %1718 = vmatprep.subr.bf16.mxu0 0
        %1719 = vmatpush2.bf16.xpose.msra.mxu0 0
        %1720 = vmatprep.subr.bf16.mxu0 0
        %1721 = vmatpush2.bf16.xpose.msra.mxu0 0
        %1722 = vmatprep.subr.bf16.mxu0 0
        %1723 = vmatpush2.bf16.xpose.msra.mxu0 0
        %1724 = vmatprep.subr.bf16.mxu0 0
        %1725 = vmatpush2.bf16.xpose.msra.mxu0 0
        %1726 = vmatprep.subr.bf16.mxu0 0
        %1727 = vmatpush2.bf16.xpose.msra.mxu0 0
        %1728 = vmatprep.subr.bf16.mxu0 0
        %1729 = vmatpush2.bf16.xpose.msra.mxu0 0
        %1730 = vmatprep.subr.bf16.mxu0 0
        %1731 = vmatpush2.bf16.xpose.msra.mxu0 0
        %1732 = vmatprep.mubr.bf16.mxu0 0
        %1733 = vmatmul.mubr.bf16.gmra.mxu0 %v1689
        %v1734 = vpop.f32.mrf.mxu0
        %v1735 = vadd.f32 0.0, %v1734
        %v1736 = vpop.f32.mrf.mxu0
        %v1737 = vpop.f32.mrf.mxu0
        %v1738 = vadd.f32 0.0, %v1737
        %v1739 = vpop.f32.mrf.mxu0
        %1740 = vmatprep.mubr.bf16.mxu0 0
        %1741 = vmatmul.mubr.bf16.gmra.mxu0 %v1692
        %v1742 = vpop.f32.mrf.mxu0
        %v1743 = vadd.f32 0.0, %v1742
        %v1744 = vpop.f32.mrf.mxu0
        %v1745 = vpop.f32.mrf.mxu0
        %v1746 = vadd.f32 0.0, %v1745
        %v1747 = vpop.f32.mrf.mxu0
        %1748 = vdwg.mxu0
        %1751 = vrot.lane.b32.xlu0 %v1321, 96
        %v1752 = vpop.permute.xlu0 %1751
        %1753 = vrot.lane.b32.xlu0 %v1322, 96
        %v1754 = vpop.permute.xlu0 %1753
        %1757 = vrot.lane.b32.xlu0 %v1325, 96
        %v1758 = vpop.permute.xlu0 %1757
        %1759 = vrot.lane.b32.xlu0 %v1326, 96
        %v1760 = vpop.permute.xlu0 %1759
        %v1762 = vsel %vm1331, %v1752, 0
        %v1765 = vsel %vm1331, %v1754, 0
        %v1768 = vsel %vm1331, %v1758, 0
        %v1771 = vsel %vm1331, %v1760, 0
        %1773 = vmatprep.subr.bf16.mxu0 0
        %1774 = vmatpush1.bf16.xpose.msra.mxu0 0
        %1775 = vmatprep.subr.bf16.mxu0 0
        %1776 = vmatpush1.bf16.xpose.msra.mxu0 0
        %1777 = vmatprep.subr.bf16.mxu0 0
        %1778 = vmatpush1.bf16.xpose.msra.mxu0 0
        %1779 = vmatprep.subr.bf16.mxu0 0
        %1780 = vmatpush1.bf16.xpose.msra.mxu0 0
        %1781 = vmatprep.subr.bf16.mxu0 0
        %1782 = vmatpush1.bf16.xpose.msra.mxu0 0
        %1783 = vmatprep.subr.bf16.mxu0 0
        %1784 = vmatpush1.bf16.xpose.msra.mxu0 0
        %1785 = vmatprep.subr.bf16.mxu0 0
        %1786 = vmatpush1.bf16.xpose.msra.mxu0 %v1771
        %1787 = vmatprep.subr.bf16.mxu0 0
        %1788 = vmatpush1.bf16.xpose.msra.mxu0 %v1768
        %1789 = vmatprep.subr.bf16.mxu0 0
        %1790 = vmatpush2.bf16.xpose.msra.mxu0 0
        %1791 = vmatprep.subr.bf16.mxu0 0
        %1792 = vmatpush2.bf16.xpose.msra.mxu0 0
        %1793 = vmatprep.subr.bf16.mxu0 0
        %1794 = vmatpush2.bf16.xpose.msra.mxu0 0
        %1795 = vmatprep.subr.bf16.mxu0 0
        %1796 = vmatpush2.bf16.xpose.msra.mxu0 0
        %1797 = vmatprep.subr.bf16.mxu0 0
        %1798 = vmatpush2.bf16.xpose.msra.mxu0 0
        %1799 = vmatprep.subr.bf16.mxu0 0
        %1800 = vmatpush2.bf16.xpose.msra.mxu0 0
        %1801 = vmatprep.subr.bf16.mxu0 0
        %1802 = vmatpush2.bf16.xpose.msra.mxu0 0
        %1803 = vmatprep.subr.bf16.mxu0 0
        %1804 = vmatpush2.bf16.xpose.msra.mxu0 0
        %1805 = vmatprep.mubr.bf16.mxu0 0
        %1806 = vmatmul.mubr.bf16.gmra.mxu0 %v1762
        %v1807 = vpop.f32.mrf.mxu0
        %v1808 = vadd.f32 0.0, %v1807
        %v1809 = vpop.f32.mrf.mxu0
        %v1810 = vpop.f32.mrf.mxu0
        %v1811 = vadd.f32 0.0, %v1810
        %v1812 = vpop.f32.mrf.mxu0
        %1813 = vmatprep.mubr.bf16.mxu0 0
        %1814 = vmatmul.mubr.bf16.gmra.mxu0 %v1765
        %v1815 = vpop.f32.mrf.mxu0
        %v1816 = vadd.f32 0.0, %v1815
        %v1817 = vpop.f32.mrf.mxu0
        %v1818 = vpop.f32.mrf.mxu0
        %v1819 = vadd.f32 0.0, %v1818
        %v1820 = vpop.f32.mrf.mxu0
        %1821 = vdwg.mxu0
        %v1822 = vmul.f32 %v1735, 0.17677669
        %v1823 = vmul.f32 %v1738, 0.17677669
        %v1824 = vmul.f32 %v1743, 0.17677669
        %v1825 = vmul.f32 %v1746, 0.17677669
        %v1826 = vmul.f32 %v1808, 0.17677669
        %v1827 = vmul.f32 %v1811, 0.17677669
        %v1828 = vmul.f32 %v1816, 0.17677669
        %v1829 = vmul.f32 %v1819, 0.17677669
        %v1830 = vadd.f32 %v1822, %v1465
        %v1831 = vadd.f32 %v1823, %v1465
        %v1832 = vadd.f32 %v1824, %v1465
        %v1833 = vadd.f32 %v1825, %v1465
        %v1834 = vadd.f32 %v1826, %v1465
        %v1835 = vadd.f32 %v1827, %v1465
        %v1836 = vadd.f32 %v1828, %v1465
        %v1837 = vadd.f32 %v1829, %v1465
        %v1838 = vsel %vm1331, %v1830, -inf
        %1839 = vmax.xlane.f32.xlu0 %v1838
        %v1840 = vpop.xlane.xlu0 %1839
        %v1841 = vsel %vm1331, %v1831, -inf
        %1842 = vmax.xlane.f32.xlu0 %v1841
        %v1843 = vpop.xlane.xlu0 %1842
        %v1844 = vsel %vm1331, %v1832, -inf
        %1845 = vmax.xlane.f32.xlu0 %v1844
        %v1846 = vpop.xlane.xlu0 %1845
        %v1847 = vsel %vm1331, %v1833, -inf
        %1848 = vmax.xlane.f32.xlu0 %v1847
        %v1849 = vpop.xlane.xlu0 %1848
        %v1850 = vsel %vm1331, %v1834, -inf
        %1851 = vmax.xlane.f32.xlu0 %v1850
        %v1852 = vpop.xlane.xlu0 %1851
        %v1853 = vsel %vm1331, %v1835, -inf
        %1854 = vmax.xlane.f32.xlu0 %v1853
        %v1855 = vpop.xlane.xlu0 %1854
        %v1856 = vsel %vm1331, %v1836, -inf
        %1857 = vmax.xlane.f32.xlu0 %v1856
        %v1858 = vpop.xlane.xlu0 %1857
        %v1859 = vsel %vm1331, %v1837, -inf
        %1860 = vmax.xlane.f32.xlu0 %v1859
        %v1861 = vpop.xlane.xlu0 %1860
        %v1862 = vsub.f32 %v1830, %v1840
        %v1863 = vsub.f32 %v1831, %v1843
        %v1864 = vsub.f32 %v1832, %v1846
        %v1865 = vsub.f32 %v1833, %v1849
        %v1866 = vsub.f32 %v1834, %v1852
        %v1867 = vsub.f32 %v1835, %v1855
        %v1868 = vsub.f32 %v1836, %v1858
        %v1869 = vsub.f32 %v1837, %v1861
        %v1870 = vmul.f32 %v1862, 1.442695
        %v1871 = vpow.pop %v1870
        %v1872 = vmul.f32 %v1863, 1.442695
        %v1873 = vpow.pop %v1872
        %v1874 = vmul.f32 %v1864, 1.442695
        %v1875 = vpow.pop %v1874
        %v1876 = vmul.f32 %v1865, 1.442695
        %v1877 = vpow.pop %v1876
        %v1878 = vmul.f32 %v1866, 1.442695
        %v1879 = vpow.pop %v1878
        %v1880 = vmul.f32 %v1867, 1.442695
        %v1881 = vpow.pop %v1880
        %v1882 = vmul.f32 %v1868, 1.442695
        %v1883 = vpow.pop %v1882
        %v1884 = vmul.f32 %v1869, 1.442695
        %v1885 = vpow.pop %v1884
        %v1886 = vsel %vm1331, %v1871, 0.0
        %1887 = vadd.xlane.f32.xlu0 %v1886
        %v1888 = vpop.xlane.xlu0 %1887
        %v1889 = vsel %vm1331, %v1873, 0.0
        %1890 = vadd.xlane.f32.xlu0 %v1889
        %v1891 = vpop.xlane.xlu0 %1890
        %v1892 = vsel %vm1331, %v1875, 0.0
        %1893 = vadd.xlane.f32.xlu0 %v1892
        %v1894 = vpop.xlane.xlu0 %1893
        %v1895 = vsel %vm1331, %v1877, 0.0
        %1896 = vadd.xlane.f32.xlu0 %v1895
        %v1897 = vpop.xlane.xlu0 %1896
        %v1898 = vsel %vm1331, %v1879, 0.0
        %1899 = vadd.xlane.f32.xlu0 %v1898
        %v1900 = vpop.xlane.xlu0 %1899
        %v1901 = vsel %vm1331, %v1881, 0.0
        %1902 = vadd.xlane.f32.xlu0 %v1901
        %v1903 = vpop.xlane.xlu0 %1902
        %v1904 = vsel %vm1331, %v1883, 0.0
        %1905 = vadd.xlane.f32.xlu0 %v1904
        %v1906 = vpop.xlane.xlu0 %1905
        %v1907 = vsel %vm1331, %v1885, 0.0
        %1908 = vadd.xlane.f32.xlu0 %v1907
        %v1909 = vpop.xlane.xlu0 %1908
        %v1910 = vrcp.pop %v1888
        %v1911 = vrcp.pop %v1891
        %v1912 = vrcp.pop %v1894
        %v1913 = vrcp.pop %v1897
        %v1914 = vrcp.pop %v1900
        %v1915 = vrcp.pop %v1903
        %v1916 = vrcp.pop %v1906
        %v1917 = vrcp.pop %v1909
        %v1918 = vmul.f32 %v1871, %v1910
        %v1919 = vmul.f32 %v1873, %v1911
        %v1920 = vmul.f32 %v1875, %v1912
        %v1921 = vmul.f32 %v1877, %v1913
        %v1922 = vmul.f32 %v1879, %v1914
        %v1923 = vmul.f32 %v1881, %v1915
        %v1924 = vmul.f32 %v1883, %v1916
        %v1925 = vmul.f32 %v1885, %v1917
        %v1926 = vpack.c.bf16 %v1919, %v1918
        %v1927 = vpack.c.bf16 %v1921, %v1920
        %v1928 = vpack.c.bf16 %v1923, %v1922
        %v1929 = vpack.c.bf16 %v1925, %v1924
        %1932 = vrot.lane.b32.xlu0 %v1327, 96
        %v1933 = vpop.permute.xlu0 %1932
        %1934 = vrot.lane.b32.xlu0 %v1328, 96
        %v1935 = vpop.permute.xlu0 %1934
        %v1939 = vsel %vm1331, %v1926, 0
        %v1942 = vsel %vm1331, %v1927, 0
        %1944 = vmatprep.subr.bf16.mxu0 0
        %1945 = vmatpush1.bf16.msra.mxu0 0
        %1946 = vmatprep.subr.bf16.mxu0 0
        %1947 = vmatpush1.bf16.msra.mxu0 0
        %1948 = vmatprep.subr.bf16.mxu0 0
        %1949 = vmatpush1.bf16.msra.mxu0 0
        %1950 = vmatprep.subr.bf16.mxu0 0
        %1951 = vmatpush1.bf16.msra.mxu0 0
        %1952 = vmatprep.subr.bf16.mxu0 0
        %1953 = vmatpush1.bf16.msra.mxu0 0
        %1954 = vmatprep.subr.bf16.mxu0 0
        %1955 = vmatpush1.bf16.msra.mxu0 0
        %1956 = vmatprep.subr.bf16.mxu0 0
        %1957 = vmatpush1.bf16.msra.mxu0 %v1935
        %1958 = vmatprep.subr.bf16.mxu0 0
        %1959 = vmatpush1.bf16.msra.mxu0 %v1933
        %1960 = vmatprep.subr.bf16.mxu0 0
        %1961 = vmatpush2.bf16.msra.mxu0 0
        %1962 = vmatprep.subr.bf16.mxu0 0
        %1963 = vmatpush2.bf16.msra.mxu0 0
        %1964 = vmatprep.subr.bf16.mxu0 0
        %1965 = vmatpush2.bf16.msra.mxu0 0
        %1966 = vmatprep.subr.bf16.mxu0 0
        %1967 = vmatpush2.bf16.msra.mxu0 0
        %1968 = vmatprep.subr.bf16.mxu0 0
        %1969 = vmatpush2.bf16.msra.mxu0 0
        %1970 = vmatprep.subr.bf16.mxu0 0
        %1971 = vmatpush2.bf16.msra.mxu0 0
        %1972 = vmatprep.subr.bf16.mxu0 0
        %1973 = vmatpush2.bf16.msra.mxu0 0
        %1974 = vmatprep.subr.bf16.mxu0 0
        %1975 = vmatpush2.bf16.msra.mxu0 0
        %1976 = vmatprep.mubr.bf16.mxu0 0
        %1977 = vmatmul.mubr.bf16.gmra.mxu0 %v1939
        %v1978 = vpop.f32.mrf.mxu0
        %v1979 = vadd.f32 0.0, %v1978
        %v1980 = vpop.f32.mrf.mxu0
        %v1981 = vpop.f32.mrf.mxu0
        %v1982 = vadd.f32 0.0, %v1981
        %v1983 = vpop.f32.mrf.mxu0
        %1984 = vmatprep.mubr.bf16.mxu0 0
        %1985 = vmatmul.mubr.bf16.gmra.mxu0 %v1942
        %v1986 = vpop.f32.mrf.mxu0
        %v1987 = vadd.f32 0.0, %v1986
        %v1988 = vpop.f32.mrf.mxu0
        %v1989 = vpop.f32.mrf.mxu0
        %v1990 = vadd.f32 0.0, %v1989
        %v1991 = vpop.f32.mrf.mxu0
        %1992 = vdwg.mxu0
        %1995 = vrot.lane.b32.xlu0 %v1329, 96
        %v1996 = vpop.permute.xlu0 %1995
        %1997 = vrot.lane.b32.xlu0 %v1330, 96
        %v1998 = vpop.permute.xlu0 %1997
        %v2002 = vsel %vm1331, %v1928, 0
        %v2005 = vsel %vm1331, %v1929, 0
        %2007 = vmatprep.subr.bf16.mxu0 0
        %2008 = vmatpush1.bf16.msra.mxu0 0
        %2009 = vmatprep.subr.bf16.mxu0 0
        %2010 = vmatpush1.bf16.msra.mxu0 0
        %2011 = vmatprep.subr.bf16.mxu0 0
        %2012 = vmatpush1.bf16.msra.mxu0 0
        %2013 = vmatprep.subr.bf16.mxu0 0
        %2014 = vmatpush1.bf16.msra.mxu0 0
        %2015 = vmatprep.subr.bf16.mxu0 0
        %2016 = vmatpush1.bf16.msra.mxu0 0
        %2017 = vmatprep.subr.bf16.mxu0 0
        %2018 = vmatpush1.bf16.msra.mxu0 0
        %2019 = vmatprep.subr.bf16.mxu0 0
        %2020 = vmatpush1.bf16.msra.mxu0 %v1998
        %2021 = vmatprep.subr.bf16.mxu0 0
        %2022 = vmatpush1.bf16.msra.mxu0 %v1996
        %2023 = vmatprep.subr.bf16.mxu0 0
        %2024 = vmatpush2.bf16.msra.mxu0 0
        %2025 = vmatprep.subr.bf16.mxu0 0
        %2026 = vmatpush2.bf16.msra.mxu0 0
        %2027 = vmatprep.subr.bf16.mxu0 0
        %2028 = vmatpush2.bf16.msra.mxu0 0
        %2029 = vmatprep.subr.bf16.mxu0 0
        %2030 = vmatpush2.bf16.msra.mxu0 0
        %2031 = vmatprep.subr.bf16.mxu0 0
        %2032 = vmatpush2.bf16.msra.mxu0 0
        %2033 = vmatprep.subr.bf16.mxu0 0
        %2034 = vmatpush2.bf16.msra.mxu0 0
        %2035 = vmatprep.subr.bf16.mxu0 0
        %2036 = vmatpush2.bf16.msra.mxu0 0
        %2037 = vmatprep.subr.bf16.mxu0 0
        %2038 = vmatpush2.bf16.msra.mxu0 0
        %2039 = vmatprep.mubr.bf16.mxu0 0
        %2040 = vmatmul.mubr.bf16.gmra.mxu0 %v2002
        %v2041 = vpop.f32.mrf.mxu0
        %v2042 = vadd.f32 0.0, %v2041
        %v2043 = vpop.f32.mrf.mxu0
        %v2044 = vpop.f32.mrf.mxu0
        %v2045 = vadd.f32 0.0, %v2044
        %v2046 = vpop.f32.mrf.mxu0
        %2047 = vmatprep.mubr.bf16.mxu0 0
        %2048 = vmatmul.mubr.bf16.gmra.mxu0 %v2005
        %v2049 = vpop.f32.mrf.mxu0
        %v2050 = vadd.f32 0.0, %v2049
        %v2051 = vpop.f32.mrf.mxu0
        %v2052 = vpop.f32.mrf.mxu0
        %v2053 = vadd.f32 0.0, %v2052
        %v2054 = vpop.f32.mrf.mxu0
        %2055 = vdwg.mxu0
        %2056 = vrot.lane.b32.xlu0 %v1319, 64
        %v2057 = vpop.permute.xlu0 %2056
        %2058 = vrot.lane.b32.xlu0 %v1320, 64
        %v2059 = vpop.permute.xlu0 %2058
        %2060 = vrot.lane.b32.xlu0 %v1323, 64
        %v2061 = vpop.permute.xlu0 %2060
        %2062 = vrot.lane.b32.xlu0 %v1324, 64
        %v2063 = vpop.permute.xlu0 %2062
        %v2065 = vsel %vm1331, %v2057, 0
        %v2068 = vsel %vm1331, %v2059, 0
        %v2071 = vsel %vm1331, %v2061, 0
        %v2074 = vsel %vm1331, %v2063, 0
        %2076 = vmatprep.subr.bf16.mxu0 0
        %2077 = vmatpush1.bf16.xpose.msra.mxu0 0
        %2078 = vmatprep.subr.bf16.mxu0 0
        %2079 = vmatpush1.bf16.xpose.msra.mxu0 0
        %2080 = vmatprep.subr.bf16.mxu0 0
        %2081 = vmatpush1.bf16.xpose.msra.mxu0 0
        %2082 = vmatprep.subr.bf16.mxu0 0
        %2083 = vmatpush1.bf16.xpose.msra.mxu0 0
        %2084 = vmatprep.subr.bf16.mxu0 0
        %2085 = vmatpush1.bf16.xpose.msra.mxu0 0
        %2086 = vmatprep.subr.bf16.mxu0 0
        %2087 = vmatpush1.bf16.xpose.msra.mxu0 0
        %2088 = vmatprep.subr.bf16.mxu0 0
        %2089 = vmatpush1.bf16.xpose.msra.mxu0 %v2074
        %2090 = vmatprep.subr.bf16.mxu0 0
        %2091 = vmatpush1.bf16.xpose.msra.mxu0 %v2071
        %2092 = vmatprep.subr.bf16.mxu0 0
        %2093 = vmatpush2.bf16.xpose.msra.mxu0 0
        %2094 = vmatprep.subr.bf16.mxu0 0
        %2095 = vmatpush2.bf16.xpose.msra.mxu0 0
        %2096 = vmatprep.subr.bf16.mxu0 0
        %2097 = vmatpush2.bf16.xpose.msra.mxu0 0
        %2098 = vmatprep.subr.bf16.mxu0 0
        %2099 = vmatpush2.bf16.xpose.msra.mxu0 0
        %2100 = vmatprep.subr.bf16.mxu0 0
        %2101 = vmatpush2.bf16.xpose.msra.mxu0 0
        %2102 = vmatprep.subr.bf16.mxu0 0
        %2103 = vmatpush2.bf16.xpose.msra.mxu0 0
        %2104 = vmatprep.subr.bf16.mxu0 0
        %2105 = vmatpush2.bf16.xpose.msra.mxu0 0
        %2106 = vmatprep.subr.bf16.mxu0 0
        %2107 = vmatpush2.bf16.xpose.msra.mxu0 0
        %2108 = vmatprep.mubr.bf16.mxu0 0
        %2109 = vmatmul.mubr.bf16.gmra.mxu0 %v2065
        %v2110 = vpop.f32.mrf.mxu0
        %v2111 = vadd.f32 0.0, %v2110
        %v2112 = vpop.f32.mrf.mxu0
        %v2113 = vpop.f32.mrf.mxu0
        %v2114 = vadd.f32 0.0, %v2113
        %v2115 = vpop.f32.mrf.mxu0
        %2116 = vmatprep.mubr.bf16.mxu0 0
        %2117 = vmatmul.mubr.bf16.gmra.mxu0 %v2068
        %v2118 = vpop.f32.mrf.mxu0
        %v2119 = vadd.f32 0.0, %v2118
        %v2120 = vpop.f32.mrf.mxu0
        %v2121 = vpop.f32.mrf.mxu0
        %v2122 = vadd.f32 0.0, %v2121
        %v2123 = vpop.f32.mrf.mxu0
        %2124 = vdwg.mxu0
        %2125 = vrot.lane.b32.xlu0 %v1321, 64
        %v2126 = vpop.permute.xlu0 %2125
        %2127 = vrot.lane.b32.xlu0 %v1322, 64
        %v2128 = vpop.permute.xlu0 %2127
        %2129 = vrot.lane.b32.xlu0 %v1325, 64
        %v2130 = vpop.permute.xlu0 %2129
        %2131 = vrot.lane.b32.xlu0 %v1326, 64
        %v2132 = vpop.permute.xlu0 %2131
        %v2134 = vsel %vm1331, %v2126, 0
        %v2137 = vsel %vm1331, %v2128, 0
        %v2140 = vsel %vm1331, %v2130, 0
        %v2143 = vsel %vm1331, %v2132, 0
        %2145 = vmatprep.subr.bf16.mxu0 0
        %2146 = vmatpush1.bf16.xpose.msra.mxu0 0
        %2147 = vmatprep.subr.bf16.mxu0 0
        %2148 = vmatpush1.bf16.xpose.msra.mxu0 0
        %2149 = vmatprep.subr.bf16.mxu0 0
        %2150 = vmatpush1.bf16.xpose.msra.mxu0 0
        %2151 = vmatprep.subr.bf16.mxu0 0
        %2152 = vmatpush1.bf16.xpose.msra.mxu0 0
        %2153 = vmatprep.subr.bf16.mxu0 0
        %2154 = vmatpush1.bf16.xpose.msra.mxu0 0
        %2155 = vmatprep.subr.bf16.mxu0 0
        %2156 = vmatpush1.bf16.xpose.msra.mxu0 0
        %2157 = vmatprep.subr.bf16.mxu0 0
        %2158 = vmatpush1.bf16.xpose.msra.mxu0 %v2143
        %2159 = vmatprep.subr.bf16.mxu0 0
        %2160 = vmatpush1.bf16.xpose.msra.mxu0 %v2140
        %2161 = vmatprep.subr.bf16.mxu0 0
        %2162 = vmatpush2.bf16.xpose.msra.mxu0 0
        %2163 = vmatprep.subr.bf16.mxu0 0
        %2164 = vmatpush2.bf16.xpose.msra.mxu0 0
        %2165 = vmatprep.subr.bf16.mxu0 0
        %2166 = vmatpush2.bf16.xpose.msra.mxu0 0
        %2167 = vmatprep.subr.bf16.mxu0 0
        %2168 = vmatpush2.bf16.xpose.msra.mxu0 0
        %2169 = vmatprep.subr.bf16.mxu0 0
        %2170 = vmatpush2.bf16.xpose.msra.mxu0 0
        %2171 = vmatprep.subr.bf16.mxu0 0
        %2172 = vmatpush2.bf16.xpose.msra.mxu0 0
        %2173 = vmatprep.subr.bf16.mxu0 0
        %2174 = vmatpush2.bf16.xpose.msra.mxu0 0
        %2175 = vmatprep.subr.bf16.mxu0 0
        %2176 = vmatpush2.bf16.xpose.msra.mxu0 0
        %2177 = vmatprep.mubr.bf16.mxu0 0
        %2178 = vmatmul.mubr.bf16.gmra.mxu0 %v2134
        %v2179 = vpop.f32.mrf.mxu0
        %v2180 = vadd.f32 0.0, %v2179
        %v2181 = vpop.f32.mrf.mxu0
        %v2182 = vpop.f32.mrf.mxu0
        %v2183 = vadd.f32 0.0, %v2182
        %v2184 = vpop.f32.mrf.mxu0
        %2185 = vmatprep.mubr.bf16.mxu0 0
        %2186 = vmatmul.mubr.bf16.gmra.mxu0 %v2137
        %v2187 = vpop.f32.mrf.mxu0
        %v2188 = vadd.f32 0.0, %v2187
        %v2189 = vpop.f32.mrf.mxu0
        %v2190 = vpop.f32.mrf.mxu0
        %v2191 = vadd.f32 0.0, %v2190
        %v2192 = vpop.f32.mrf.mxu0
        %2193 = vdwg.mxu0
        %v2194 = vmul.f32 %v2111, 0.17677669
        %v2195 = vmul.f32 %v2114, 0.17677669
        %v2196 = vmul.f32 %v2119, 0.17677669
        %v2197 = vmul.f32 %v2122, 0.17677669
        %v2198 = vmul.f32 %v2180, 0.17677669
        %v2199 = vmul.f32 %v2183, 0.17677669
        %v2200 = vmul.f32 %v2188, 0.17677669
        %v2201 = vmul.f32 %v2191, 0.17677669
        %v2202 = vadd.f32 %v2194, %v1465
        %v2203 = vadd.f32 %v2195, %v1465
        %v2204 = vadd.f32 %v2196, %v1465
        %v2205 = vadd.f32 %v2197, %v1465
        %v2206 = vadd.f32 %v2198, %v1465
        %v2207 = vadd.f32 %v2199, %v1465
        %v2208 = vadd.f32 %v2200, %v1465
        %v2209 = vadd.f32 %v2201, %v1465
        %v2210 = vsel %vm1331, %v2202, -inf
        %2211 = vmax.xlane.f32.xlu0 %v2210
        %v2212 = vpop.xlane.xlu0 %2211
        %v2213 = vsel %vm1331, %v2203, -inf
        %2214 = vmax.xlane.f32.xlu0 %v2213
        %v2215 = vpop.xlane.xlu0 %2214
        %v2216 = vsel %vm1331, %v2204, -inf
        %2217 = vmax.xlane.f32.xlu0 %v2216
        %v2218 = vpop.xlane.xlu0 %2217
        %v2219 = vsel %vm1331, %v2205, -inf
        %2220 = vmax.xlane.f32.xlu0 %v2219
        %v2221 = vpop.xlane.xlu0 %2220
        %v2222 = vsel %vm1331, %v2206, -inf
        %2223 = vmax.xlane.f32.xlu0 %v2222
        %v2224 = vpop.xlane.xlu0 %2223
        %v2225 = vsel %vm1331, %v2207, -inf
        %2226 = vmax.xlane.f32.xlu0 %v2225
        %v2227 = vpop.xlane.xlu0 %2226
        %v2228 = vsel %vm1331, %v2208, -inf
        %2229 = vmax.xlane.f32.xlu0 %v2228
        %v2230 = vpop.xlane.xlu0 %2229
        %v2231 = vsel %vm1331, %v2209, -inf
        %2232 = vmax.xlane.f32.xlu0 %v2231
        %v2233 = vpop.xlane.xlu0 %2232
        %v2234 = vsub.f32 %v2202, %v2212
        %v2235 = vsub.f32 %v2203, %v2215
        %v2236 = vsub.f32 %v2204, %v2218
        %v2237 = vsub.f32 %v2205, %v2221
        %v2238 = vsub.f32 %v2206, %v2224
        %v2239 = vsub.f32 %v2207, %v2227
        %v2240 = vsub.f32 %v2208, %v2230
        %v2241 = vsub.f32 %v2209, %v2233
        %v2242 = vmul.f32 %v2234, 1.442695
        %v2243 = vpow.pop %v2242
        %v2244 = vmul.f32 %v2235, 1.442695
        %v2245 = vpow.pop %v2244
        %v2246 = vmul.f32 %v2236, 1.442695
        %v2247 = vpow.pop %v2246
        %v2248 = vmul.f32 %v2237, 1.442695
        %v2249 = vpow.pop %v2248
        %v2250 = vmul.f32 %v2238, 1.442695
        %v2251 = vpow.pop %v2250
        %v2252 = vmul.f32 %v2239, 1.442695
        %v2253 = vpow.pop %v2252
        %v2254 = vmul.f32 %v2240, 1.442695
        %v2255 = vpow.pop %v2254
        %v2256 = vmul.f32 %v2241, 1.442695
        %v2257 = vpow.pop %v2256
        %v2258 = vsel %vm1331, %v2243, 0.0
        %2259 = vadd.xlane.f32.xlu0 %v2258
        %v2260 = vpop.xlane.xlu0 %2259
        %v2261 = vsel %vm1331, %v2245, 0.0
        %2262 = vadd.xlane.f32.xlu0 %v2261
        %v2263 = vpop.xlane.xlu0 %2262
        %v2264 = vsel %vm1331, %v2247, 0.0
        %2265 = vadd.xlane.f32.xlu0 %v2264
        %v2266 = vpop.xlane.xlu0 %2265
        %v2267 = vsel %vm1331, %v2249, 0.0
        %2268 = vadd.xlane.f32.xlu0 %v2267
        %v2269 = vpop.xlane.xlu0 %2268
        %v2270 = vsel %vm1331, %v2251, 0.0
        %2271 = vadd.xlane.f32.xlu0 %v2270
        %v2272 = vpop.xlane.xlu0 %2271
        %v2273 = vsel %vm1331, %v2253, 0.0
        %2274 = vadd.xlane.f32.xlu0 %v2273
        %v2275 = vpop.xlane.xlu0 %2274
        %v2276 = vsel %vm1331, %v2255, 0.0
        %2277 = vadd.xlane.f32.xlu0 %v2276
        %v2278 = vpop.xlane.xlu0 %2277
        %v2279 = vsel %vm1331, %v2257, 0.0
        %2280 = vadd.xlane.f32.xlu0 %v2279
        %v2281 = vpop.xlane.xlu0 %2280
        %v2282 = vrcp.pop %v2260
        %v2283 = vrcp.pop %v2263
        %v2284 = vrcp.pop %v2266
        %v2285 = vrcp.pop %v2269
        %v2286 = vrcp.pop %v2272
        %v2287 = vrcp.pop %v2275
        %v2288 = vrcp.pop %v2278
        %v2289 = vrcp.pop %v2281
        %v2290 = vmul.f32 %v2243, %v2282
        %v2291 = vmul.f32 %v2245, %v2283
        %v2292 = vmul.f32 %v2247, %v2284
        %v2293 = vmul.f32 %v2249, %v2285
        %v2294 = vmul.f32 %v2251, %v2286
        %v2295 = vmul.f32 %v2253, %v2287
        %v2296 = vmul.f32 %v2255, %v2288
        %v2297 = vmul.f32 %v2257, %v2289
        %v2298 = vpack.c.bf16 %v2291, %v2290
        %v2299 = vpack.c.bf16 %v2293, %v2292
        %v2300 = vpack.c.bf16 %v2295, %v2294
        %v2301 = vpack.c.bf16 %v2297, %v2296
        %2302 = vrot.lane.b32.xlu0 %v1327, 64
        %v2303 = vpop.permute.xlu0 %2302
        %2304 = vrot.lane.b32.xlu0 %v1328, 64
        %v2305 = vpop.permute.xlu0 %2304
        %v2309 = vsel %vm1331, %v2298, 0
        %v2312 = vsel %vm1331, %v2299, 0
        %2314 = vmatprep.subr.bf16.mxu0 0
        %2315 = vmatpush1.bf16.msra.mxu0 0
        %2316 = vmatprep.subr.bf16.mxu0 0
        %2317 = vmatpush1.bf16.msra.mxu0 0
        %2318 = vmatprep.subr.bf16.mxu0 0
        %2319 = vmatpush1.bf16.msra.mxu0 0
        %2320 = vmatprep.subr.bf16.mxu0 0
        %2321 = vmatpush1.bf16.msra.mxu0 0
        %2322 = vmatprep.subr.bf16.mxu0 0
        %2323 = vmatpush1.bf16.msra.mxu0 0
        %2324 = vmatprep.subr.bf16.mxu0 0
        %2325 = vmatpush1.bf16.msra.mxu0 0
        %2326 = vmatprep.subr.bf16.mxu0 0
        %2327 = vmatpush1.bf16.msra.mxu0 %v2305
        %2328 = vmatprep.subr.bf16.mxu0 0
        %2329 = vmatpush1.bf16.msra.mxu0 %v2303
        %2330 = vmatprep.subr.bf16.mxu0 0
        %2331 = vmatpush2.bf16.msra.mxu0 0
        %2332 = vmatprep.subr.bf16.mxu0 0
        %2333 = vmatpush2.bf16.msra.mxu0 0
        %2334 = vmatprep.subr.bf16.mxu0 0
        %2335 = vmatpush2.bf16.msra.mxu0 0
        %2336 = vmatprep.subr.bf16.mxu0 0
        %2337 = vmatpush2.bf16.msra.mxu0 0
        %2338 = vmatprep.subr.bf16.mxu0 0
        %2339 = vmatpush2.bf16.msra.mxu0 0
        %2340 = vmatprep.subr.bf16.mxu0 0
        %2341 = vmatpush2.bf16.msra.mxu0 0
        %2342 = vmatprep.subr.bf16.mxu0 0
        %2343 = vmatpush2.bf16.msra.mxu0 0
        %2344 = vmatprep.subr.bf16.mxu0 0
        %2345 = vmatpush2.bf16.msra.mxu0 0
        %2346 = vmatprep.mubr.bf16.mxu0 0
        %2347 = vmatmul.mubr.bf16.gmra.mxu0 %v2309
        %v2348 = vpop.f32.mrf.mxu0
        %v2349 = vadd.f32 0.0, %v2348
        %v2350 = vpop.f32.mrf.mxu0
        %v2351 = vpop.f32.mrf.mxu0
        %v2352 = vadd.f32 0.0, %v2351
        %v2353 = vpop.f32.mrf.mxu0
        %2354 = vmatprep.mubr.bf16.mxu0 0
        %2355 = vmatmul.mubr.bf16.gmra.mxu0 %v2312
        %v2356 = vpop.f32.mrf.mxu0
        %v2357 = vadd.f32 0.0, %v2356
        %v2358 = vpop.f32.mrf.mxu0
        %v2359 = vpop.f32.mrf.mxu0
        %v2360 = vadd.f32 0.0, %v2359
        %v2361 = vpop.f32.mrf.mxu0
        %2362 = vdwg.mxu0
        %2363 = vrot.lane.b32.xlu0 %v1329, 64
        %v2364 = vpop.permute.xlu0 %2363
        %2365 = vrot.lane.b32.xlu0 %v1330, 64
        %v2366 = vpop.permute.xlu0 %2365
        %v2370 = vsel %vm1331, %v2300, 0
        %v2373 = vsel %vm1331, %v2301, 0
        %2375 = vmatprep.subr.bf16.mxu0 0
        %2376 = vmatpush1.bf16.msra.mxu0 0
        %2377 = vmatprep.subr.bf16.mxu0 0
        %2378 = vmatpush1.bf16.msra.mxu0 0
        %2379 = vmatprep.subr.bf16.mxu0 0
        %2380 = vmatpush1.bf16.msra.mxu0 0
        %2381 = vmatprep.subr.bf16.mxu0 0
        %2382 = vmatpush1.bf16.msra.mxu0 0
        %2383 = vmatprep.subr.bf16.mxu0 0
        %2384 = vmatpush1.bf16.msra.mxu0 0
        %2385 = vmatprep.subr.bf16.mxu0 0
        %2386 = vmatpush1.bf16.msra.mxu0 0
        %2387 = vmatprep.subr.bf16.mxu0 0
        %2388 = vmatpush1.bf16.msra.mxu0 %v2366
        %2389 = vmatprep.subr.bf16.mxu0 0
        %2390 = vmatpush1.bf16.msra.mxu0 %v2364
        %2391 = vmatprep.subr.bf16.mxu0 0
        %2392 = vmatpush2.bf16.msra.mxu0 0
        %2393 = vmatprep.subr.bf16.mxu0 0
        %2394 = vmatpush2.bf16.msra.mxu0 0
        %2395 = vmatprep.subr.bf16.mxu0 0
        %2396 = vmatpush2.bf16.msra.mxu0 0
        %2397 = vmatprep.subr.bf16.mxu0 0
        %2398 = vmatpush2.bf16.msra.mxu0 0
        %2399 = vmatprep.subr.bf16.mxu0 0
        %2400 = vmatpush2.bf16.msra.mxu0 0
        %2401 = vmatprep.subr.bf16.mxu0 0
        %2402 = vmatpush2.bf16.msra.mxu0 0
        %2403 = vmatprep.subr.bf16.mxu0 0
        %2404 = vmatpush2.bf16.msra.mxu0 0
        %2405 = vmatprep.subr.bf16.mxu0 0
        %2406 = vmatpush2.bf16.msra.mxu0 0
        %2407 = vmatprep.mubr.bf16.mxu0 0
        %2408 = vmatmul.mubr.bf16.gmra.mxu0 %v2370
        %v2409 = vpop.f32.mrf.mxu0
        %v2410 = vadd.f32 0.0, %v2409
        %v2411 = vpop.f32.mrf.mxu0
        %v2412 = vpop.f32.mrf.mxu0
        %v2413 = vadd.f32 0.0, %v2412
        %v2414 = vpop.f32.mrf.mxu0
        %2415 = vmatprep.mubr.bf16.mxu0 0
        %2416 = vmatmul.mubr.bf16.gmra.mxu0 %v2373
        %v2417 = vpop.f32.mrf.mxu0
        %v2418 = vadd.f32 0.0, %v2417
        %v2419 = vpop.f32.mrf.mxu0
        %v2420 = vpop.f32.mrf.mxu0
        %v2421 = vadd.f32 0.0, %v2420
        %v2422 = vpop.f32.mrf.mxu0
        %2423 = vdwg.mxu0
        %2424 = vrot.lane.b32.xlu0 %v1319, 32
        %v2425 = vpop.permute.xlu0 %2424
        %2426 = vrot.lane.b32.xlu0 %v1320, 32
        %v2427 = vpop.permute.xlu0 %2426
        %2428 = vrot.lane.b32.xlu0 %v1323, 32
        %v2429 = vpop.permute.xlu0 %2428
        %2430 = vrot.lane.b32.xlu0 %v1324, 32
        %v2431 = vpop.permute.xlu0 %2430
        %v2433 = vsel %vm1331, %v2425, 0
        %v2436 = vsel %vm1331, %v2427, 0
        %v2439 = vsel %vm1331, %v2429, 0
        %v2442 = vsel %vm1331, %v2431, 0
        %2444 = vmatprep.subr.bf16.mxu0 0
        %2445 = vmatpush1.bf16.xpose.msra.mxu0 0
        %2446 = vmatprep.subr.bf16.mxu0 0
        %2447 = vmatpush1.bf16.xpose.msra.mxu0 0
        %2448 = vmatprep.subr.bf16.mxu0 0
        %2449 = vmatpush1.bf16.xpose.msra.mxu0 0
        %2450 = vmatprep.subr.bf16.mxu0 0
        %2451 = vmatpush1.bf16.xpose.msra.mxu0 0
        %2452 = vmatprep.subr.bf16.mxu0 0
        %2453 = vmatpush1.bf16.xpose.msra.mxu0 0
        %2454 = vmatprep.subr.bf16.mxu0 0
        %2455 = vmatpush1.bf16.xpose.msra.mxu0 0
        %2456 = vmatprep.subr.bf16.mxu0 0
        %2457 = vmatpush1.bf16.xpose.msra.mxu0 %v2442
        %2458 = vmatprep.subr.bf16.mxu0 0
        %2459 = vmatpush1.bf16.xpose.msra.mxu0 %v2439
        %2460 = vmatprep.subr.bf16.mxu0 0
        %2461 = vmatpush2.bf16.xpose.msra.mxu0 0
        %2462 = vmatprep.subr.bf16.mxu0 0
        %2463 = vmatpush2.bf16.xpose.msra.mxu0 0
        %2464 = vmatprep.subr.bf16.mxu0 0
        %2465 = vmatpush2.bf16.xpose.msra.mxu0 0
        %2466 = vmatprep.subr.bf16.mxu0 0
        %2467 = vmatpush2.bf16.xpose.msra.mxu0 0
        %2468 = vmatprep.subr.bf16.mxu0 0
        %2469 = vmatpush2.bf16.xpose.msra.mxu0 0
        %2470 = vmatprep.subr.bf16.mxu0 0
        %2471 = vmatpush2.bf16.xpose.msra.mxu0 0
        %2472 = vmatprep.subr.bf16.mxu0 0
        %2473 = vmatpush2.bf16.xpose.msra.mxu0 0
        %2474 = vmatprep.subr.bf16.mxu0 0
        %2475 = vmatpush2.bf16.xpose.msra.mxu0 0
        %2476 = vmatprep.mubr.bf16.mxu0 0
        %2477 = vmatmul.mubr.bf16.gmra.mxu0 %v2433
        %v2478 = vpop.f32.mrf.mxu0
        %v2479 = vadd.f32 0.0, %v2478
        %v2480 = vpop.f32.mrf.mxu0
        %v2481 = vpop.f32.mrf.mxu0
        %v2482 = vadd.f32 0.0, %v2481
        %v2483 = vpop.f32.mrf.mxu0
        %2484 = vmatprep.mubr.bf16.mxu0 0
        %2485 = vmatmul.mubr.bf16.gmra.mxu0 %v2436
        %v2486 = vpop.f32.mrf.mxu0
        %v2487 = vadd.f32 0.0, %v2486
        %v2488 = vpop.f32.mrf.mxu0
        %v2489 = vpop.f32.mrf.mxu0
        %v2490 = vadd.f32 0.0, %v2489
        %v2491 = vpop.f32.mrf.mxu0
        %2492 = vdwg.mxu0
        %2493 = vrot.lane.b32.xlu0 %v1321, 32
        %v2494 = vpop.permute.xlu0 %2493
        %2495 = vrot.lane.b32.xlu0 %v1322, 32
        %v2496 = vpop.permute.xlu0 %2495
        %2497 = vrot.lane.b32.xlu0 %v1325, 32
        %v2498 = vpop.permute.xlu0 %2497
        %2499 = vrot.lane.b32.xlu0 %v1326, 32
        %v2500 = vpop.permute.xlu0 %2499
        %v2502 = vsel %vm1331, %v2494, 0
        %v2505 = vsel %vm1331, %v2496, 0
        %v2508 = vsel %vm1331, %v2498, 0
        %v2511 = vsel %vm1331, %v2500, 0
        %2513 = vmatprep.subr.bf16.mxu0 0
        %2514 = vmatpush1.bf16.xpose.msra.mxu0 0
        %2515 = vmatprep.subr.bf16.mxu0 0
        %2516 = vmatpush1.bf16.xpose.msra.mxu0 0
        %2517 = vmatprep.subr.bf16.mxu0 0
        %2518 = vmatpush1.bf16.xpose.msra.mxu0 0
        %2519 = vmatprep.subr.bf16.mxu0 0
        %2520 = vmatpush1.bf16.xpose.msra.mxu0 0
        %2521 = vmatprep.subr.bf16.mxu0 0
        %2522 = vmatpush1.bf16.xpose.msra.mxu0 0
        %2523 = vmatprep.subr.bf16.mxu0 0
        %2524 = vmatpush1.bf16.xpose.msra.mxu0 0
        %2525 = vmatprep.subr.bf16.mxu0 0
        %2526 = vmatpush1.bf16.xpose.msra.mxu0 %v2511
        %2527 = vmatprep.subr.bf16.mxu0 0
        %2528 = vmatpush1.bf16.xpose.msra.mxu0 %v2508
        %2529 = vmatprep.subr.bf16.mxu0 0
        %2530 = vmatpush2.bf16.xpose.msra.mxu0 0
        %2531 = vmatprep.subr.bf16.mxu0 0
        %2532 = vmatpush2.bf16.xpose.msra.mxu0 0
        %2533 = vmatprep.subr.bf16.mxu0 0
        %2534 = vmatpush2.bf16.xpose.msra.mxu0 0
        %2535 = vmatprep.subr.bf16.mxu0 0
        %2536 = vmatpush2.bf16.xpose.msra.mxu0 0
        %2537 = vmatprep.subr.bf16.mxu0 0
        %2538 = vmatpush2.bf16.xpose.msra.mxu0 0
        %2539 = vmatprep.subr.bf16.mxu0 0
        %2540 = vmatpush2.bf16.xpose.msra.mxu0 0
        %2541 = vmatprep.subr.bf16.mxu0 0
        %2542 = vmatpush2.bf16.xpose.msra.mxu0 0
        %2543 = vmatprep.subr.bf16.mxu0 0
        %2544 = vmatpush2.bf16.xpose.msra.mxu0 0
        %2545 = vmatprep.mubr.bf16.mxu0 0
        %2546 = vmatmul.mubr.bf16.gmra.mxu0 %v2502
        %v2547 = vpop.f32.mrf.mxu0
        %v2548 = vadd.f32 0.0, %v2547
        %v2549 = vpop.f32.mrf.mxu0
        %v2550 = vpop.f32.mrf.mxu0
        %v2551 = vadd.f32 0.0, %v2550
        %v2552 = vpop.f32.mrf.mxu0
        %2553 = vmatprep.mubr.bf16.mxu0 0
        %2554 = vmatmul.mubr.bf16.gmra.mxu0 %v2505
        %v2555 = vpop.f32.mrf.mxu0
        %v2556 = vadd.f32 0.0, %v2555
        %v2557 = vpop.f32.mrf.mxu0
        %v2558 = vpop.f32.mrf.mxu0
        %v2559 = vadd.f32 0.0, %v2558
        %v2560 = vpop.f32.mrf.mxu0
        %2561 = vdwg.mxu0
        %v2562 = vmul.f32 %v2479, 0.17677669
        %v2563 = vmul.f32 %v2482, 0.17677669
        %v2564 = vmul.f32 %v2487, 0.17677669
        %v2565 = vmul.f32 %v2490, 0.17677669
        %v2566 = vmul.f32 %v2548, 0.17677669
        %v2567 = vmul.f32 %v2551, 0.17677669
        %v2568 = vmul.f32 %v2556, 0.17677669
        %v2569 = vmul.f32 %v2559, 0.17677669
        %v2570 = vadd.f32 %v2562, %v1465
        %v2571 = vadd.f32 %v2563, %v1465
        %v2572 = vadd.f32 %v2564, %v1465
        %v2573 = vadd.f32 %v2565, %v1465
        %v2574 = vadd.f32 %v2566, %v1465
        %v2575 = vadd.f32 %v2567, %v1465
        %v2576 = vadd.f32 %v2568, %v1465
        %v2577 = vadd.f32 %v2569, %v1465
        %v2578 = vsel %vm1331, %v2570, -inf
        %2579 = vmax.xlane.f32.xlu0 %v2578
        %v2580 = vpop.xlane.xlu0 %2579
        %v2581 = vsel %vm1331, %v2571, -inf
        %2582 = vmax.xlane.f32.xlu0 %v2581
        %v2583 = vpop.xlane.xlu0 %2582
        %v2584 = vsel %vm1331, %v2572, -inf
        %2585 = vmax.xlane.f32.xlu0 %v2584
        %v2586 = vpop.xlane.xlu0 %2585
        %v2587 = vsel %vm1331, %v2573, -inf
        %2588 = vmax.xlane.f32.xlu0 %v2587
        %v2589 = vpop.xlane.xlu0 %2588
        %v2590 = vsel %vm1331, %v2574, -inf
        %2591 = vmax.xlane.f32.xlu0 %v2590
        %v2592 = vpop.xlane.xlu0 %2591
        %v2593 = vsel %vm1331, %v2575, -inf
        %2594 = vmax.xlane.f32.xlu0 %v2593
        %v2595 = vpop.xlane.xlu0 %2594
        %v2596 = vsel %vm1331, %v2576, -inf
        %2597 = vmax.xlane.f32.xlu0 %v2596
        %v2598 = vpop.xlane.xlu0 %2597
        %v2599 = vsel %vm1331, %v2577, -inf
        %2600 = vmax.xlane.f32.xlu0 %v2599
        %v2601 = vpop.xlane.xlu0 %2600
        %v2602 = vsub.f32 %v2570, %v2580
        %v2603 = vsub.f32 %v2571, %v2583
        %v2604 = vsub.f32 %v2572, %v2586
        %v2605 = vsub.f32 %v2573, %v2589
        %v2606 = vsub.f32 %v2574, %v2592
        %v2607 = vsub.f32 %v2575, %v2595
        %v2608 = vsub.f32 %v2576, %v2598
        %v2609 = vsub.f32 %v2577, %v2601
        %v2610 = vmul.f32 %v2602, 1.442695
        %v2611 = vpow.pop %v2610
        %v2612 = vmul.f32 %v2603, 1.442695
        %v2613 = vpow.pop %v2612
        %v2614 = vmul.f32 %v2604, 1.442695
        %v2615 = vpow.pop %v2614
        %v2616 = vmul.f32 %v2605, 1.442695
        %v2617 = vpow.pop %v2616
        %v2618 = vmul.f32 %v2606, 1.442695
        %v2619 = vpow.pop %v2618
        %v2620 = vmul.f32 %v2607, 1.442695
        %v2621 = vpow.pop %v2620
        %v2622 = vmul.f32 %v2608, 1.442695
        %v2623 = vpow.pop %v2622
        %v2624 = vmul.f32 %v2609, 1.442695
        %v2625 = vpow.pop %v2624
        %v2626 = vsel %vm1331, %v2611, 0.0
        %2627 = vadd.xlane.f32.xlu0 %v2626
        %v2628 = vpop.xlane.xlu0 %2627
        %v2629 = vsel %vm1331, %v2613, 0.0
        %2630 = vadd.xlane.f32.xlu0 %v2629
        %v2631 = vpop.xlane.xlu0 %2630
        %v2632 = vsel %vm1331, %v2615, 0.0
        %2633 = vadd.xlane.f32.xlu0 %v2632
        %v2634 = vpop.xlane.xlu0 %2633
        %v2635 = vsel %vm1331, %v2617, 0.0
        %2636 = vadd.xlane.f32.xlu0 %v2635
        %v2637 = vpop.xlane.xlu0 %2636
        %v2638 = vsel %vm1331, %v2619, 0.0
        %2639 = vadd.xlane.f32.xlu0 %v2638
        %v2640 = vpop.xlane.xlu0 %2639
        %v2641 = vsel %vm1331, %v2621, 0.0
        %2642 = vadd.xlane.f32.xlu0 %v2641
        %v2643 = vpop.xlane.xlu0 %2642
        %v2644 = vsel %vm1331, %v2623, 0.0
        %2645 = vadd.xlane.f32.xlu0 %v2644
        %v2646 = vpop.xlane.xlu0 %2645
        %v2647 = vsel %vm1331, %v2625, 0.0
        %2648 = vadd.xlane.f32.xlu0 %v2647
        %v2649 = vpop.xlane.xlu0 %2648
        %v2650 = vrcp.pop %v2628
        %v2651 = vrcp.pop %v2631
        %v2652 = vrcp.pop %v2634
        %v2653 = vrcp.pop %v2637
        %v2654 = vrcp.pop %v2640
        %v2655 = vrcp.pop %v2643
        %v2656 = vrcp.pop %v2646
        %v2657 = vrcp.pop %v2649
        %v2658 = vmul.f32 %v2611, %v2650
        %v2659 = vmul.f32 %v2613, %v2651
        %v2660 = vmul.f32 %v2615, %v2652
        %v2661 = vmul.f32 %v2617, %v2653
        %v2662 = vmul.f32 %v2619, %v2654
        %v2663 = vmul.f32 %v2621, %v2655
        %v2664 = vmul.f32 %v2623, %v2656
        %v2665 = vmul.f32 %v2625, %v2657
        %v2666 = vpack.c.bf16 %v2659, %v2658
        %v2667 = vpack.c.bf16 %v2661, %v2660
        %v2668 = vpack.c.bf16 %v2663, %v2662
        %v2669 = vpack.c.bf16 %v2665, %v2664
        %2670 = vrot.lane.b32.xlu0 %v1327, 32
        %v2671 = vpop.permute.xlu0 %2670
        %2672 = vrot.lane.b32.xlu0 %v1328, 32
        %v2673 = vpop.permute.xlu0 %2672
        %v2677 = vsel %vm1331, %v2666, 0
        %v2680 = vsel %vm1331, %v2667, 0
        %2682 = vmatprep.subr.bf16.mxu0 0
        %2683 = vmatpush1.bf16.msra.mxu0 0
        %2684 = vmatprep.subr.bf16.mxu0 0
        %2685 = vmatpush1.bf16.msra.mxu0 0
        %2686 = vmatprep.subr.bf16.mxu0 0
        %2687 = vmatpush1.bf16.msra.mxu0 0
        %2688 = vmatprep.subr.bf16.mxu0 0
        %2689 = vmatpush1.bf16.msra.mxu0 0
        %2690 = vmatprep.subr.bf16.mxu0 0
        %2691 = vmatpush1.bf16.msra.mxu0 0
        %2692 = vmatprep.subr.bf16.mxu0 0
        %2693 = vmatpush1.bf16.msra.mxu0 0
        %2694 = vmatprep.subr.bf16.mxu0 0
        %2695 = vmatpush1.bf16.msra.mxu0 %v2673
        %2696 = vmatprep.subr.bf16.mxu0 0
        %2697 = vmatpush1.bf16.msra.mxu0 %v2671
        %2698 = vmatprep.subr.bf16.mxu0 0
        %2699 = vmatpush2.bf16.msra.mxu0 0
        %2700 = vmatprep.subr.bf16.mxu0 0
        %2701 = vmatpush2.bf16.msra.mxu0 0
        %2702 = vmatprep.subr.bf16.mxu0 0
        %2703 = vmatpush2.bf16.msra.mxu0 0
        %2704 = vmatprep.subr.bf16.mxu0 0
        %2705 = vmatpush2.bf16.msra.mxu0 0
        %2706 = vmatprep.subr.bf16.mxu0 0
        %2707 = vmatpush2.bf16.msra.mxu0 0
        %2708 = vmatprep.subr.bf16.mxu0 0
        %2709 = vmatpush2.bf16.msra.mxu0 0
        %2710 = vmatprep.subr.bf16.mxu0 0
        %2711 = vmatpush2.bf16.msra.mxu0 0
        %2712 = vmatprep.subr.bf16.mxu0 0
        %2713 = vmatpush2.bf16.msra.mxu0 0
        %2714 = vmatprep.mubr.bf16.mxu0 0
        %2715 = vmatmul.mubr.bf16.gmra.mxu0 %v2677
        %v2716 = vpop.f32.mrf.mxu0
        %v2717 = vadd.f32 0.0, %v2716
        %v2718 = vpop.f32.mrf.mxu0
        %v2719 = vpop.f32.mrf.mxu0
        %v2720 = vadd.f32 0.0, %v2719
        %v2721 = vpop.f32.mrf.mxu0
        %2722 = vmatprep.mubr.bf16.mxu0 0
        %2723 = vmatmul.mubr.bf16.gmra.mxu0 %v2680
        %v2724 = vpop.f32.mrf.mxu0
        %v2725 = vadd.f32 0.0, %v2724
        %v2726 = vpop.f32.mrf.mxu0
        %v2727 = vpop.f32.mrf.mxu0
        %v2728 = vadd.f32 0.0, %v2727
        %v2729 = vpop.f32.mrf.mxu0
        %2730 = vdwg.mxu0
        %2731 = vrot.lane.b32.xlu0 %v1329, 32
        %v2732 = vpop.permute.xlu0 %2731
        %2733 = vrot.lane.b32.xlu0 %v1330, 32
        %v2734 = vpop.permute.xlu0 %2733
        %v2738 = vsel %vm1331, %v2668, 0
        %v2741 = vsel %vm1331, %v2669, 0
        %2743 = vmatprep.subr.bf16.mxu0 0
        %2744 = vmatpush1.bf16.msra.mxu0 0
        %2745 = vmatprep.subr.bf16.mxu0 0
        %2746 = vmatpush1.bf16.msra.mxu0 0
        %2747 = vmatprep.subr.bf16.mxu0 0
        %2748 = vmatpush1.bf16.msra.mxu0 0
        %2749 = vmatprep.subr.bf16.mxu0 0
        %2750 = vmatpush1.bf16.msra.mxu0 0
        %2751 = vmatprep.subr.bf16.mxu0 0
        %2752 = vmatpush1.bf16.msra.mxu0 0
        %2753 = vmatprep.subr.bf16.mxu0 0
        %2754 = vmatpush1.bf16.msra.mxu0 0
        %2755 = vmatprep.subr.bf16.mxu0 0
        %2756 = vmatpush1.bf16.msra.mxu0 %v2734
        %2757 = vmatprep.subr.bf16.mxu0 0
        %2758 = vmatpush1.bf16.msra.mxu0 %v2732
        %2759 = vmatprep.subr.bf16.mxu0 0
        %2760 = vmatpush2.bf16.msra.mxu0 0
        %2761 = vmatprep.subr.bf16.mxu0 0
        %2762 = vmatpush2.bf16.msra.mxu0 0
        %2763 = vmatprep.subr.bf16.mxu0 0
        %2764 = vmatpush2.bf16.msra.mxu0 0
        %2765 = vmatprep.subr.bf16.mxu0 0
        %2766 = vmatpush2.bf16.msra.mxu0 0
        %2767 = vmatprep.subr.bf16.mxu0 0
        %2768 = vmatpush2.bf16.msra.mxu0 0
        %2769 = vmatprep.subr.bf16.mxu0 0
        %2770 = vmatpush2.bf16.msra.mxu0 0
        %2771 = vmatprep.subr.bf16.mxu0 0
        %2772 = vmatpush2.bf16.msra.mxu0 0
        %2773 = vmatprep.subr.bf16.mxu0 0
        %2774 = vmatpush2.bf16.msra.mxu0 0
        %2775 = vmatprep.mubr.bf16.mxu0 0
        %2776 = vmatmul.mubr.bf16.gmra.mxu0 %v2738
        %v2777 = vpop.f32.mrf.mxu0
        %v2778 = vadd.f32 0.0, %v2777
        %v2779 = vpop.f32.mrf.mxu0
        %v2780 = vpop.f32.mrf.mxu0
        %v2781 = vadd.f32 0.0, %v2780
        %v2782 = vpop.f32.mrf.mxu0
        %2783 = vmatprep.mubr.bf16.mxu0 0
        %2784 = vmatmul.mubr.bf16.gmra.mxu0 %v2741
        %v2785 = vpop.f32.mrf.mxu0
        %v2786 = vadd.f32 0.0, %v2785
        %v2787 = vpop.f32.mrf.mxu0
        %v2788 = vpop.f32.mrf.mxu0
        %v2789 = vadd.f32 0.0, %v2788
        %v2790 = vpop.f32.mrf.mxu0
        %2791 = vdwg.mxu0
        %2800 = vrot.lane.b32.xlu0 %v1979, 32
        %v2801 = vpop.permute.xlu0 %2800
        %2802 = vrot.lane.b32.xlu0 %v1982, 32
        %v2803 = vpop.permute.xlu0 %2802
        %2804 = vrot.lane.b32.xlu0 %v1987, 32
        %v2805 = vpop.permute.xlu0 %2804
        %2806 = vrot.lane.b32.xlu0 %v1990, 32
        %v2807 = vpop.permute.xlu0 %2806
        %2808 = vrot.lane.b32.xlu0 %v2042, 32
        %v2809 = vpop.permute.xlu0 %2808
        %2810 = vrot.lane.b32.xlu0 %v2045, 32
        %v2811 = vpop.permute.xlu0 %2810
        %2812 = vrot.lane.b32.xlu0 %v2050, 32
        %v2813 = vpop.permute.xlu0 %2812
        %2814 = vrot.lane.b32.xlu0 %v2053, 32
        %v2815 = vpop.permute.xlu0 %2814
        %2832 = vrot.lane.b32.xlu0 %v2349, 64
        %v2833 = vpop.permute.xlu0 %2832
        %2834 = vrot.lane.b32.xlu0 %v2352, 64
        %v2835 = vpop.permute.xlu0 %2834
        %2836 = vrot.lane.b32.xlu0 %v2357, 64
        %v2837 = vpop.permute.xlu0 %2836
        %2838 = vrot.lane.b32.xlu0 %v2360, 64
        %v2839 = vpop.permute.xlu0 %2838
        %2840 = vrot.lane.b32.xlu0 %v2410, 64
        %v2841 = vpop.permute.xlu0 %2840
        %2842 = vrot.lane.b32.xlu0 %v2413, 64
        %v2843 = vpop.permute.xlu0 %2842
        %2844 = vrot.lane.b32.xlu0 %v2418, 64
        %v2845 = vpop.permute.xlu0 %2844
        %2846 = vrot.lane.b32.xlu0 %v2421, 64
        %v2847 = vpop.permute.xlu0 %2846
        %2864 = vrot.lane.b32.xlu0 %v2717, 96
        %v2865 = vpop.permute.xlu0 %2864
        %2866 = vrot.lane.b32.xlu0 %v2720, 96
        %v2867 = vpop.permute.xlu0 %2866
        %2868 = vrot.lane.b32.xlu0 %v2725, 96
        %v2869 = vpop.permute.xlu0 %2868
        %2870 = vrot.lane.b32.xlu0 %v2728, 96
        %v2871 = vpop.permute.xlu0 %2870
        %2872 = vrot.lane.b32.xlu0 %v2778, 96
        %v2873 = vpop.permute.xlu0 %2872
        %2874 = vrot.lane.b32.xlu0 %v2781, 96
        %v2875 = vpop.permute.xlu0 %2874
        %2876 = vrot.lane.b32.xlu0 %v2786, 96
        %v2877 = vpop.permute.xlu0 %2876
        %2878 = vrot.lane.b32.xlu0 %v2789, 96
        %v2879 = vpop.permute.xlu0 %2878
        %v2888 = vsel %vm1331, %v1607, %v2801
        %v2889 = vsel %vm1331, %v1610, %v2803
        %v2890 = vsel %vm1331, %v1615, %v2805
        %v2891 = vsel %vm1331, %v1618, %v2807
        %v2892 = vsel %vm1331, %v1662, %v2809
        %v2893 = vsel %vm1331, %v1665, %v2811
        %v2894 = vsel %vm1331, %v1670, %v2813
        %v2895 = vsel %vm1331, %v1673, %v2815
        %vm2896 = vcmask 523264
        %v2897 = vsel %vm2896, %v2888, %v2833
        %v2898 = vsel %vm2896, %v2889, %v2835
        %v2899 = vsel %vm2896, %v2890, %v2837
        %v2900 = vsel %vm2896, %v2891, %v2839
        %v2901 = vsel %vm2896, %v2892, %v2841
        %v2902 = vsel %vm2896, %v2893, %v2843
        %v2903 = vsel %vm2896, %v2894, %v2845
        %v2904 = vsel %vm2896, %v2895, %v2847
        %vm2905 = vcmask 785408
        %v2906 = vsel %vm2905, %v2897, %v2865
        %v2907 = vsel %vm2905, %v2898, %v2867
        %v2908 = vsel %vm2905, %v2899, %v2869
        %v2909 = vsel %vm2905, %v2900, %v2871
        %v2910 = vsel %vm2905, %v2901, %v2873
        %v2911 = vsel %vm2905, %v2902, %v2875
        %v2912 = vsel %vm2905, %v2903, %v2877
        %v2913 = vsel %vm2905, %v2904, %v2879
        %v2914 = vpack.c.bf16 %v2907, %v2906
        %v2915 = vpack.c.bf16 %v2909, %v2908
        %v2916 = vpack.c.bf16 %v2911, %v2910
        %v2917 = vpack.c.bf16 %v2913, %v2912
        %v2918 = vld [vmem:[%s779] sm:$0xf]
        %v2919 = vld [vmem:[%s779 + $0x4] sm:$0xf]
        %v2920 = vld [vmem:[%s779 + $0x8] sm:$0xf]
        %v2921 = vld [vmem:[%s779 + $0xc] sm:$0xf]
        %v2922 = vld [vmem:[%s779 + $0x10] sm:$0xf]
        %v2923 = vld [vmem:[%s779 + $0x14] sm:$0xf]
        %v2924 = vld [vmem:[%s779 + $0x18] sm:$0xf]
        %v2925 = vld [vmem:[%s779 + $0x1c] sm:$0xf]
        %v2926 = vld [vmem:[%s779 + $0x20] sm:$0xf]
        %v2927 = vld [vmem:[%s779 + $0x24] sm:$0xf]
        %v2928 = vld [vmem:[%s779 + $0x28] sm:$0xf]
        %v2929 = vld [vmem:[%s779 + $0x2c] sm:$0xf]
        %v2930 = vld [vmem:[%s779 + $0x30] sm:$0xf]
        %v2931 = vld [vmem:[%s779 + $0x34] sm:$0xf]
        %v2932 = vld [vmem:[%s779 + $0x38] sm:$0xf]
        %v2933 = vld [vmem:[%s779 + $0x3c] sm:$0xf]
        %v2934 = vld [vmem:[%s782] sm:$0x1]
        %v2936 = vlaneseq
        %v2937 = vshrl.u32 %v2936, 7
        %v2938 = vsub.s32 0, %v2937
        %v2939 = vrot.slane %v2934, %v2938
        %v2957 = vunpack.c.l.b16 %v2918
        %v2958 = vunpack.c.l.b16 %v2919
        %v2959 = vunpack.c.l.b16 %v2920
        %v2960 = vunpack.c.l.b16 %v2921
        %v2961 = vunpack.c.l.b16 %v2922
        %v2962 = vunpack.c.l.b16 %v2923
        %v2963 = vunpack.c.l.b16 %v2924
        %v2964 = vunpack.c.l.b16 %v2925
        %v2965 = vunpack.c.l.b16 %v2926
        %v2966 = vunpack.c.l.b16 %v2927
        %v2967 = vunpack.c.l.b16 %v2928
        %v2968 = vunpack.c.l.b16 %v2929
        %v2969 = vunpack.c.l.b16 %v2930
        %v2970 = vunpack.c.l.b16 %v2931
        %v2971 = vunpack.c.l.b16 %v2932
        %v2972 = vunpack.c.l.b16 %v2933
        %v2973 = vpack.c.b16 %v2958, %v2957
        %v2974 = vpack.c.b16 %v2960, %v2959
        %v2975 = vpack.c.b16 %v2962, %v2961
        %v2976 = vpack.c.b16 %v2964, %v2963
        %v2977 = vpack.c.b16 %v2966, %v2965
        %v2978 = vpack.c.b16 %v2968, %v2967
        %v2979 = vpack.c.b16 %v2970, %v2969
        %v2980 = vpack.c.b16 %v2972, %v2971
        %2989 = vmatprep.subr.bf16.mxu0 0
        %2990 = vmatpush1.bf16.msra.mxu0 %v2980
        %2991 = vmatprep.subr.bf16.mxu0 0
        %2992 = vmatpush1.bf16.msra.mxu0 %v2979
        %2993 = vmatprep.subr.bf16.mxu0 0
        %2994 = vmatpush1.bf16.msra.mxu0 %v2978
        %2995 = vmatprep.subr.bf16.mxu0 0
        %2996 = vmatpush1.bf16.msra.mxu0 %v2977
        %2997 = vmatprep.subr.bf16.mxu0 0
        %2998 = vmatpush1.bf16.msra.mxu0 %v2976
        %2999 = vmatprep.subr.bf16.mxu0 0
        %3000 = vmatpush1.bf16.msra.mxu0 %v2975
        %3001 = vmatprep.subr.bf16.mxu0 0
        %3002 = vmatpush1.bf16.msra.mxu0 %v2974
        %3003 = vmatprep.subr.bf16.mxu0 0
        %3004 = vmatpush1.bf16.msra.mxu0 %v2973
        %3005 = vmatprep.subr.bf16.mxu0 0
        %3006 = vmatpush2.bf16.msra.mxu0 0
        %3007 = vmatprep.subr.bf16.mxu0 0
        %3008 = vmatpush2.bf16.msra.mxu0 0
        %3009 = vmatprep.subr.bf16.mxu0 0
        %3010 = vmatpush2.bf16.msra.mxu0 0
        %3011 = vmatprep.subr.bf16.mxu0 0
        %3012 = vmatpush2.bf16.msra.mxu0 0
        %3013 = vmatprep.subr.bf16.mxu0 0
        %3014 = vmatpush2.bf16.msra.mxu0 0
        %3015 = vmatprep.subr.bf16.mxu0 0
        %3016 = vmatpush2.bf16.msra.mxu0 0
        %3017 = vmatprep.subr.bf16.mxu0 0
        %3018 = vmatpush2.bf16.msra.mxu0 0
        %3019 = vmatprep.subr.bf16.mxu0 0
        %3020 = vmatpush2.bf16.msra.mxu0 0
        %3021 = vmatprep.mubr.bf16.mxu0 0
        %3022 = vmatmul.mubr.bf16.gmra.mxu0 %v2914
        %v3023 = vpop.f32.mrf.mxu0
        %v3024 = vadd.f32 %v2939, %v3023
        %v3025 = vpop.f32.mrf.mxu0
        %v3026 = vpop.f32.mrf.mxu0
        %v3027 = vadd.f32 %v2939, %v3026
        %v3028 = vpop.f32.mrf.mxu0
        %3029 = vmatprep.mubr.bf16.mxu0 0
        %3030 = vmatmul.mubr.bf16.gmra.mxu0 %v2915
        %v3031 = vpop.f32.mrf.mxu0
        %v3032 = vadd.f32 %v2939, %v3031
        %v3033 = vpop.f32.mrf.mxu0
        %v3034 = vpop.f32.mrf.mxu0
        %v3035 = vadd.f32 %v2939, %v3034
        %v3036 = vpop.f32.mrf.mxu0
        %3037 = vmatprep.mubr.bf16.mxu0 0
        %3038 = vmatmul.mubr.bf16.gmra.mxu0 %v2916
        %v3039 = vpop.f32.mrf.mxu0
        %v3040 = vadd.f32 %v2939, %v3039
        %v3041 = vpop.f32.mrf.mxu0
        %v3042 = vpop.f32.mrf.mxu0
        %v3043 = vadd.f32 %v2939, %v3042
        %v3044 = vpop.f32.mrf.mxu0
        %3045 = vmatprep.mubr.bf16.mxu0 0
        %3046 = vmatmul.mubr.bf16.gmra.mxu0 %v2917
        %v3047 = vpop.f32.mrf.mxu0
        %v3048 = vadd.f32 %v2939, %v3047
        %v3049 = vpop.f32.mrf.mxu0
        %v3050 = vpop.f32.mrf.mxu0
        %v3051 = vadd.f32 %v2939, %v3050
        %v3052 = vpop.f32.mrf.mxu0
        %3053 = vdwg.mxu0
        %v3054 = vld [vmem:[%s785] sm:$0x1]
        %v3056 = vlaneseq
        %v3057 = vshrl.u32 %v3056, 7
        %v3058 = vsub.s32 0, %v3057
        %v3059 = vrot.slane %v3054, %v3058
        %v3061 = vmul.f32 %v3059, %v3024
        %v3062 = vmul.f32 %v3059, %v3027
        %v3063 = vmul.f32 %v3059, %v3032
        %v3064 = vmul.f32 %v3059, %v3035
        %v3065 = vmul.f32 %v3059, %v3040
        %v3066 = vmul.f32 %v3059, %v3043
        %v3067 = vmul.f32 %v3059, %v3048
        %v3068 = vmul.f32 %v3059, %v3051
        %v3069 = vadd.f32 %v873, %v3061
        %v3070 = vadd.f32 %v874, %v3062
        %v3071 = vadd.f32 %v875, %v3063
        %v3072 = vadd.f32 %v876, %v3064
        %v3073 = vadd.f32 %v877, %v3065
        %v3074 = vadd.f32 %v878, %v3066
        %v3075 = vadd.f32 %v879, %v3067
        %v3076 = vadd.f32 %v880, %v3068
        %v3077 = vld [vmem:[%s788] sm:$0x1]
        %v3078 = vld [vmem:[%s791] sm:$0x1]
        %3079 = vadd.xlane.f32.xlu0 %v3069
        %v3080 = vpop.xlane.xlu0 %3079
        %3081 = vadd.xlane.f32.xlu0 %v3070
        %v3082 = vpop.xlane.xlu0 %3081
        %3083 = vadd.xlane.f32.xlu0 %v3071
        %v3084 = vpop.xlane.xlu0 %3083
        %3085 = vadd.xlane.f32.xlu0 %v3072
        %v3086 = vpop.xlane.xlu0 %3085
        %3087 = vadd.xlane.f32.xlu0 %v3073
        %v3088 = vpop.xlane.xlu0 %3087
        %3089 = vadd.xlane.f32.xlu0 %v3074
        %v3090 = vpop.xlane.xlu0 %3089
        %3091 = vadd.xlane.f32.xlu0 %v3075
        %v3092 = vpop.xlane.xlu0 %3091
        %3093 = vadd.xlane.f32.xlu0 %v3076
        %v3094 = vpop.xlane.xlu0 %3093
        %v3095 = vmul.f32 %v3080, %v899
        %v3096 = vmul.f32 %v3082, %v899
        %v3097 = vmul.f32 %v3084, %v899
        %v3098 = vmul.f32 %v3086, %v899
        %v3099 = vmul.f32 %v3088, %v899
        %v3100 = vmul.f32 %v3090, %v899
        %v3101 = vmul.f32 %v3092, %v899
        %v3102 = vmul.f32 %v3094, %v899
        %v3103 = vsub.f32 %v3069, %v3095
        %v3104 = vsub.f32 %v3070, %v3096
        %v3105 = vsub.f32 %v3071, %v3097
        %v3106 = vsub.f32 %v3072, %v3098
        %v3107 = vsub.f32 %v3073, %v3099
        %v3108 = vsub.f32 %v3074, %v3100
        %v3109 = vsub.f32 %v3075, %v3101
        %v3110 = vsub.f32 %v3076, %v3102
        %v3111 = vmul.f32 %v3103, %v3103
        %v3112 = vmul.f32 %v3104, %v3104
        %v3113 = vmul.f32 %v3105, %v3105
        %v3114 = vmul.f32 %v3106, %v3106
        %v3115 = vmul.f32 %v3107, %v3107
        %v3116 = vmul.f32 %v3108, %v3108
        %v3117 = vmul.f32 %v3109, %v3109
        %v3118 = vmul.f32 %v3110, %v3110
        %3119 = vadd.xlane.f32.xlu0 %v3111
        %v3120 = vpop.xlane.xlu0 %3119
        %3121 = vadd.xlane.f32.xlu0 %v3112
        %v3122 = vpop.xlane.xlu0 %3121
        %3123 = vadd.xlane.f32.xlu0 %v3113
        %v3124 = vpop.xlane.xlu0 %3123
        %3125 = vadd.xlane.f32.xlu0 %v3114
        %v3126 = vpop.xlane.xlu0 %3125
        %3127 = vadd.xlane.f32.xlu0 %v3115
        %v3128 = vpop.xlane.xlu0 %3127
        %3129 = vadd.xlane.f32.xlu0 %v3116
        %v3130 = vpop.xlane.xlu0 %3129
        %3131 = vadd.xlane.f32.xlu0 %v3117
        %v3132 = vpop.xlane.xlu0 %3131
        %3133 = vadd.xlane.f32.xlu0 %v3118
        %v3134 = vpop.xlane.xlu0 %3133
        %v3135 = vmul.f32 %v3120, %v899
        %v3136 = vmul.f32 %v3122, %v899
        %v3137 = vmul.f32 %v3124, %v899
        %v3138 = vmul.f32 %v3126, %v899
        %v3139 = vmul.f32 %v3128, %v899
        %v3140 = vmul.f32 %v3130, %v899
        %v3141 = vmul.f32 %v3132, %v899
        %v3142 = vmul.f32 %v3134, %v899
        %v3143 = vadd.f32 %v3135, 1e-06
        %v3144 = vadd.f32 %v3136, 1e-06
        %v3145 = vadd.f32 %v3137, 1e-06
        %v3146 = vadd.f32 %v3138, 1e-06
        %v3147 = vadd.f32 %v3139, 1e-06
        %v3148 = vadd.f32 %v3140, 1e-06
        %v3149 = vadd.f32 %v3141, 1e-06
        %v3150 = vadd.f32 %v3142, 1e-06
        %v3151 = vrsqrt.pop %v3143
        %v3152 = vrsqrt.pop %v3144
        %v3153 = vrsqrt.pop %v3145
        %v3154 = vrsqrt.pop %v3146
        %v3155 = vrsqrt.pop %v3147
        %v3156 = vrsqrt.pop %v3148
        %v3157 = vrsqrt.pop %v3149
        %v3158 = vrsqrt.pop %v3150
        %v3159 = vmul.f32 %v3103, %v3151
        %v3160 = vmul.f32 %v3104, %v3152
        %v3161 = vmul.f32 %v3105, %v3153
        %v3162 = vmul.f32 %v3106, %v3154
        %v3163 = vmul.f32 %v3107, %v3155
        %v3164 = vmul.f32 %v3108, %v3156
        %v3165 = vmul.f32 %v3109, %v3157
        %v3166 = vmul.f32 %v3110, %v3158
        %v3168 = vlaneseq
        %v3169 = vshrl.u32 %v3168, 7
        %v3170 = vsub.s32 0, %v3169
        %v3171 = vrot.slane %v3077, %v3170
        %v3173 = vmul.f32 %v3159, %v3171
        %v3174 = vmul.f32 %v3160, %v3171
        %v3175 = vmul.f32 %v3161, %v3171
        %v3176 = vmul.f32 %v3162, %v3171
        %v3177 = vmul.f32 %v3163, %v3171
        %v3178 = vmul.f32 %v3164, %v3171
        %v3179 = vmul.f32 %v3165, %v3171
        %v3180 = vmul.f32 %v3166, %v3171
        %v3182 = vlaneseq
        %v3183 = vshrl.u32 %v3182, 7
        %v3184 = vsub.s32 0, %v3183
        %v3185 = vrot.slane %v3078, %v3184
        %v3187 = vadd.f32 %v3173, %v3185
        %v3188 = vadd.f32 %v3174, %v3185
        %v3189 = vadd.f32 %v3175, %v3185
        %v3190 = vadd.f32 %v3176, %v3185
        %v3191 = vadd.f32 %v3177, %v3185
        %v3192 = vadd.f32 %v3178, %v3185
        %v3193 = vadd.f32 %v3179, %v3185
        %v3194 = vadd.f32 %v3180, %v3185
        %v3195 = vpack.c.bf16 %v3188, %v3187
        %v3196 = vpack.c.bf16 %v3190, %v3189
        %v3197 = vpack.c.bf16 %v3192, %v3191
        %v3198 = vpack.c.bf16 %v3194, %v3193
        %v3199 = vld [vmem:[%s796] sm:$0xff]
        %v3200 = vld [vmem:[%s796 + $0x8] sm:$0xff]
        %v3201 = vld [vmem:[%s796 + $0x10] sm:$0xff]
        %v3202 = vld [vmem:[%s796 + $0x18] sm:$0xff]
        %v3203 = vld [vmem:[%s796 + $0x20] sm:$0xff]
        %v3204 = vld [vmem:[%s796 + $0x28] sm:$0xff]
        %v3205 = vld [vmem:[%s796 + $0x30] sm:$0xff]
        %v3206 = vld [vmem:[%s796 + $0x38] sm:$0xff]
        %v3207 = vld [vmem:[%s796 + $0x40] sm:$0xff]
        %v3208 = vld [vmem:[%s796 + $0x48] sm:$0xff]
        %v3209 = vld [vmem:[%s796 + $0x50] sm:$0xff]
        %v3210 = vld [vmem:[%s796 + $0x58] sm:$0xff]
        %v3211 = vld [vmem:[%s796 + $0x60] sm:$0xff]
        %v3212 = vld [vmem:[%s796 + $0x68] sm:$0xff]
        %v3213 = vld [vmem:[%s796 + $0x70] sm:$0xff]
        %v3214 = vld [vmem:[%s796 + $0x78] sm:$0xff]
        %v3215 = vld [vmem:[%s796 + $0x80] sm:$0xff]
        %v3216 = vld [vmem:[%s796 + $0x88] sm:$0xff]
        %v3217 = vld [vmem:[%s796 + $0x90] sm:$0xff]
        %v3218 = vld [vmem:[%s796 + $0x98] sm:$0xff]
        %v3219 = vld [vmem:[%s796 + $0xa0] sm:$0xff]
        %v3220 = vld [vmem:[%s796 + $0xa8] sm:$0xff]
        %v3221 = vld [vmem:[%s796 + $0xb0] sm:$0xff]
        %v3222 = vld [vmem:[%s796 + $0xb8] sm:$0xff]
        %v3223 = vld [vmem:[%s796 + $0xc0] sm:$0xff]
        %v3224 = vld [vmem:[%s796 + $0xc8] sm:$0xff]
        %v3225 = vld [vmem:[%s796 + $0xd0] sm:$0xff]
        %v3226 = vld [vmem:[%s796 + $0xd8] sm:$0xff]
        %v3227 = vld [vmem:[%s796 + $0xe0] sm:$0xff]
        %v3228 = vld [vmem:[%s796 + $0xe8] sm:$0xff]
        %v3229 = vld [vmem:[%s796 + $0xf0] sm:$0xff]
        %v3230 = vld [vmem:[%s796 + $0xf8] sm:$0xff]
        %v3231 = vld [vmem:[%s796 + $0x100] sm:$0xff]
        %v3232 = vld [vmem:[%s796 + $0x108] sm:$0xff]
        %v3233 = vld [vmem:[%s796 + $0x110] sm:$0xff]
        %v3234 = vld [vmem:[%s796 + $0x118] sm:$0xff]
        %v3235 = vld [vmem:[%s796 + $0x120] sm:$0xff]
        %v3236 = vld [vmem:[%s796 + $0x128] sm:$0xff]
        %v3237 = vld [vmem:[%s796 + $0x130] sm:$0xff]
        %v3238 = vld [vmem:[%s796 + $0x138] sm:$0xff]
        %v3239 = vld [vmem:[%s796 + $0x140] sm:$0xff]
        %v3240 = vld [vmem:[%s796 + $0x148] sm:$0xff]
        %v3241 = vld [vmem:[%s796 + $0x150] sm:$0xff]
        %v3242 = vld [vmem:[%s796 + $0x158] sm:$0xff]
        %v3243 = vld [vmem:[%s796 + $0x160] sm:$0xff]
        %v3244 = vld [vmem:[%s796 + $0x168] sm:$0xff]
        %v3245 = vld [vmem:[%s796 + $0x170] sm:$0xff]
        %v3246 = vld [vmem:[%s796 + $0x178] sm:$0xff]
        %v3247 = vld [vmem:[%s800] sm:$0x3f]
        %v3249 = vlaneseq
        %v3250 = vshrl.u32 %v3249, 7
        %v3251 = vsub.s32 0, %v3250
        %v3252 = vrot.slane %v3247, %v3251
        %v3253 = vlaneseq
        %v3254 = vshrl.u32 %v3253, 7
        %v3255 = vsub.s32 1, %v3254
        %v3256 = vrot.slane %v3247, %v3255
        %v3257 = vlaneseq
        %v3258 = vshrl.u32 %v3257, 7
        %v3259 = vsub.s32 2, %v3258
        %v3260 = vrot.slane %v3247, %v3259
        %v3261 = vlaneseq
        %v3262 = vshrl.u32 %v3261, 7
        %v3263 = vsub.s32 3, %v3262
        %v3264 = vrot.slane %v3247, %v3263
        %v3265 = vlaneseq
        %v3266 = vshrl.u32 %v3265, 7
        %v3267 = vsub.s32 4, %v3266
        %v3268 = vrot.slane %v3247, %v3267
        %v3269 = vlaneseq
        %v3270 = vshrl.u32 %v3269, 7
        %v3271 = vsub.s32 5, %v3270
        %v3272 = vrot.slane %v3247, %v3271
        %v3327 = vunpack.c.l.b16 %v3199
        %v3328 = vunpack.c.h.b16 %v3199
        %v3329 = vunpack.c.l.b16 %v3200
        %v3330 = vunpack.c.h.b16 %v3200
        %v3331 = vunpack.c.l.b16 %v3201
        %v3332 = vunpack.c.h.b16 %v3201
        %v3333 = vunpack.c.l.b16 %v3202
        %v3334 = vunpack.c.h.b16 %v3202
        %v3335 = vunpack.c.l.b16 %v3203
        %v3336 = vunpack.c.h.b16 %v3203
        %v3337 = vunpack.c.l.b16 %v3204
        %v3338 = vunpack.c.h.b16 %v3204
        %v3339 = vunpack.c.l.b16 %v3205
        %v3340 = vunpack.c.h.b16 %v3205
        %v3341 = vunpack.c.l.b16 %v3206
        %v3342 = vunpack.c.h.b16 %v3206
        %v3343 = vunpack.c.l.b16 %v3207
        %v3344 = vunpack.c.h.b16 %v3207
        %v3345 = vunpack.c.l.b16 %v3208
        %v3346 = vunpack.c.h.b16 %v3208
        %v3347 = vunpack.c.l.b16 %v3209
        %v3348 = vunpack.c.h.b16 %v3209
        %v3349 = vunpack.c.l.b16 %v3210
        %v3350 = vunpack.c.h.b16 %v3210
        %v3351 = vunpack.c.l.b16 %v3211
        %v3352 = vunpack.c.h.b16 %v3211
        %v3353 = vunpack.c.l.b16 %v3212
        %v3354 = vunpack.c.h.b16 %v3212
        %v3355 = vunpack.c.l.b16 %v3213
        %v3356 = vunpack.c.h.b16 %v3213
        %v3357 = vunpack.c.l.b16 %v3214
        %v3358 = vunpack.c.h.b16 %v3214
        %v3359 = vunpack.c.l.b16 %v3215
        %v3360 = vunpack.c.h.b16 %v3215
        %v3361 = vunpack.c.l.b16 %v3216
        %v3362 = vunpack.c.h.b16 %v3216
        %v3363 = vunpack.c.l.b16 %v3217
        %v3364 = vunpack.c.h.b16 %v3217
        %v3365 = vunpack.c.l.b16 %v3218
        %v3366 = vunpack.c.h.b16 %v3218
        %v3367 = vunpack.c.l.b16 %v3219
        %v3368 = vunpack.c.h.b16 %v3219
        %v3369 = vunpack.c.l.b16 %v3220
        %v3370 = vunpack.c.h.b16 %v3220
        %v3371 = vunpack.c.l.b16 %v3221
        %v3372 = vunpack.c.h.b16 %v3221
        %v3373 = vunpack.c.l.b16 %v3222
        %v3374 = vunpack.c.h.b16 %v3222
        %v3375 = vunpack.c.l.b16 %v3223
        %v3376 = vunpack.c.h.b16 %v3223
        %v3377 = vunpack.c.l.b16 %v3224
        %v3378 = vunpack.c.h.b16 %v3224
        %v3379 = vunpack.c.l.b16 %v3225
        %v3380 = vunpack.c.h.b16 %v3225
        %v3381 = vunpack.c.l.b16 %v3226
        %v3382 = vunpack.c.h.b16 %v3226
        %v3383 = vunpack.c.l.b16 %v3227
        %v3384 = vunpack.c.h.b16 %v3227
        %v3385 = vunpack.c.l.b16 %v3228
        %v3386 = vunpack.c.h.b16 %v3228
        %v3387 = vunpack.c.l.b16 %v3229
        %v3388 = vunpack.c.h.b16 %v3229
        %v3389 = vunpack.c.l.b16 %v3230
        %v3390 = vunpack.c.h.b16 %v3230
        %v3391 = vunpack.c.l.b16 %v3231
        %v3392 = vunpack.c.h.b16 %v3231
        %v3393 = vunpack.c.l.b16 %v3232
        %v3394 = vunpack.c.h.b16 %v3232
        %v3395 = vunpack.c.l.b16 %v3233
        %v3396 = vunpack.c.h.b16 %v3233
        %v3397 = vunpack.c.l.b16 %v3234
        %v3398 = vunpack.c.h.b16 %v3234
        %v3399 = vunpack.c.l.b16 %v3235
        %v3400 = vunpack.c.h.b16 %v3235
        %v3401 = vunpack.c.l.b16 %v3236
        %v3402 = vunpack.c.h.b16 %v3236
        %v3403 = vunpack.c.l.b16 %v3237
        %v3404 = vunpack.c.h.b16 %v3237
        %v3405 = vunpack.c.l.b16 %v3238
        %v3406 = vunpack.c.h.b16 %v3238
        %v3407 = vunpack.c.l.b16 %v3239
        %v3408 = vunpack.c.h.b16 %v3239
        %v3409 = vunpack.c.l.b16 %v3240
        %v3410 = vunpack.c.h.b16 %v3240
        %v3411 = vunpack.c.l.b16 %v3241
        %v3412 = vunpack.c.h.b16 %v3241
        %v3413 = vunpack.c.l.b16 %v3242
        %v3414 = vunpack.c.h.b16 %v3242
        %v3415 = vunpack.c.l.b16 %v3243
        %v3416 = vunpack.c.h.b16 %v3243
        %v3417 = vunpack.c.l.b16 %v3244
        %v3418 = vunpack.c.h.b16 %v3244
        %v3419 = vunpack.c.l.b16 %v3245
        %v3420 = vunpack.c.h.b16 %v3245
        %v3421 = vunpack.c.l.b16 %v3246
        %v3422 = vunpack.c.h.b16 %v3246
        %v3423 = vpack.c.b16 %v3333, %v3327
        %v3424 = vpack.c.b16 %v3334, %v3328
        %v3425 = vpack.c.b16 %v3335, %v3329
        %v3426 = vpack.c.b16 %v3336, %v3330
        %v3427 = vpack.c.b16 %v3337, %v3331
        %v3428 = vpack.c.b16 %v3338, %v3332
        %v3429 = vpack.c.b16 %v3345, %v3339
        %v3430 = vpack.c.b16 %v3346, %v3340
        %v3431 = vpack.c.b16 %v3347, %v3341
        %v3432 = vpack.c.b16 %v3348, %v3342
        %v3433 = vpack.c.b16 %v3349, %v3343
        %v3434 = vpack.c.b16 %v3350, %v3344
        %v3435 = vpack.c.b16 %v3357, %v3351
        %v3436 = vpack.c.b16 %v3358, %v3352
        %v3437 = vpack.c.b16 %v3359, %v3353
        %v3438 = vpack.c.b16 %v3360, %v3354
        %v3439 = vpack.c.b16 %v3361, %v3355
        %v3440 = vpack.c.b16 %v3362, %v3356
        %v3441 = vpack.c.b16 %v3369, %v3363
        %v3442 = vpack.c.b16 %v3370, %v3364
        %v3443 = vpack.c.b16 %v3371, %v3365
        %v3444 = vpack.c.b16 %v3372, %v3366
        %v3445 = vpack.c.b16 %v3373, %v3367
        %v3446 = vpack.c.b16 %v3374, %v3368
        %v3447 = vpack.c.b16 %v3381, %v3375
        %v3448 = vpack.c.b16 %v3382, %v3376
        %v3449 = vpack.c.b16 %v3383, %v3377
        %v3450 = vpack.c.b16 %v3384, %v3378
        %v3451 = vpack.c.b16 %v3385, %v3379
        %v3452 = vpack.c.b16 %v3386, %v3380
        %v3453 = vpack.c.b16 %v3393, %v3387
        %v3454 = vpack.c.b16 %v3394, %v3388
        %v3455 = vpack.c.b16 %v3395, %v3389
        %v3456 = vpack.c.b16 %v3396, %v3390
        %v3457 = vpack.c.b16 %v3397, %v3391
        %v3458 = vpack.c.b16 %v3398, %v3392
        %v3459 = vpack.c.b16 %v3405, %v3399
        %v3460 = vpack.c.b16 %v3406, %v3400
        %v3461 = vpack.c.b16 %v3407, %v3401
        %v3462 = vpack.c.b16 %v3408, %v3402
        %v3463 = vpack.c.b16 %v3409, %v3403
        %v3464 = vpack.c.b16 %v3410, %v3404
        %v3465 = vpack.c.b16 %v3417, %v3411
        %v3466 = vpack.c.b16 %v3418, %v3412
        %v3467 = vpack.c.b16 %v3419, %v3413
        %v3468 = vpack.c.b16 %v3420, %v3414
        %v3469 = vpack.c.b16 %v3421, %v3415
        %v3470 = vpack.c.b16 %v3422, %v3416
        %3519 = vmatprep.subr.bf16.mxu0 %v3466
        %3520 = vmatpush1.bf16.msra.mxu0 %v3465
        %3521 = vmatprep.subr.bf16.mxu0 %v3460
        %3522 = vmatpush1.bf16.msra.mxu0 %v3459
        %3523 = vmatprep.subr.bf16.mxu0 %v3454
        %3524 = vmatpush1.bf16.msra.mxu0 %v3453
        %3525 = vmatprep.subr.bf16.mxu0 %v3448
        %3526 = vmatpush1.bf16.msra.mxu0 %v3447
        %3527 = vmatprep.subr.bf16.mxu0 %v3442
        %3528 = vmatpush1.bf16.msra.mxu0 %v3441
        %3529 = vmatprep.subr.bf16.mxu0 %v3436
        %3530 = vmatpush1.bf16.msra.mxu0 %v3435
        %3531 = vmatprep.subr.bf16.mxu0 %v3430
        %3532 = vmatpush1.bf16.msra.mxu0 %v3429
        %3533 = vmatprep.subr.bf16.mxu0 %v3424
        %3534 = vmatpush1.bf16.msra.mxu0 %v3423
        %3535 = vmatprep.subr.bf16.mxu0 0
        %3536 = vmatpush2.bf16.msra.mxu0 0
        %3537 = vmatprep.subr.bf16.mxu0 0
        %3538 = vmatpush2.bf16.msra.mxu0 0
        %3539 = vmatprep.subr.bf16.mxu0 0
        %3540 = vmatpush2.bf16.msra.mxu0 0
        %3541 = vmatprep.subr.bf16.mxu0 0
        %3542 = vmatpush2.bf16.msra.mxu0 0
        %3543 = vmatprep.subr.bf16.mxu0 0
        %3544 = vmatpush2.bf16.msra.mxu0 0
        %3545 = vmatprep.subr.bf16.mxu0 0
        %3546 = vmatpush2.bf16.msra.mxu0 0
        %3547 = vmatprep.subr.bf16.mxu0 0
        %3548 = vmatpush2.bf16.msra.mxu0 0
        %3549 = vmatprep.subr.bf16.mxu0 0
        %3550 = vmatpush2.bf16.msra.mxu0 0
        %3551 = vmatprep.mubr.bf16.mxu0 0
        %3552 = vmatmul.mubr.bf16.gmra.mxu0 %v3195
        %v3553 = vpop.f32.mrf.mxu0
        %v3554 = vadd.f32 %v3252, %v3553
        %v3555 = vpop.f32.mrf.mxu0
        %v3556 = vadd.f32 %v3256, %v3555
        %v3557 = vpop.f32.mrf.mxu0
        %v3558 = vadd.f32 %v3252, %v3557
        %v3559 = vpop.f32.mrf.mxu0
        %v3560 = vadd.f32 %v3256, %v3559
        %3561 = vmatprep.mubr.bf16.mxu0 0
        %3562 = vmatmul.mubr.bf16.gmra.mxu0 %v3196
        %v3563 = vpop.f32.mrf.mxu0
        %v3564 = vadd.f32 %v3252, %v3563
        %v3565 = vpop.f32.mrf.mxu0
        %v3566 = vadd.f32 %v3256, %v3565
        %v3567 = vpop.f32.mrf.mxu0
        %v3568 = vadd.f32 %v3252, %v3567
        %v3569 = vpop.f32.mrf.mxu0
        %v3570 = vadd.f32 %v3256, %v3569
        %3571 = vmatprep.mubr.bf16.mxu0 0
        %3572 = vmatmul.mubr.bf16.gmra.mxu0 %v3197
        %v3573 = vpop.f32.mrf.mxu0
        %v3574 = vadd.f32 %v3252, %v3573
        %v3575 = vpop.f32.mrf.mxu0
        %v3576 = vadd.f32 %v3256, %v3575
        %v3577 = vpop.f32.mrf.mxu0
        %v3578 = vadd.f32 %v3252, %v3577
        %v3579 = vpop.f32.mrf.mxu0
        %v3580 = vadd.f32 %v3256, %v3579
        %3581 = vmatprep.mubr.bf16.mxu0 0
        %3582 = vmatmul.mubr.bf16.gmra.mxu0 %v3198
        %v3583 = vpop.f32.mrf.mxu0
        %v3584 = vadd.f32 %v3252, %v3583
        %v3585 = vpop.f32.mrf.mxu0
        %v3586 = vadd.f32 %v3256, %v3585
        %v3587 = vpop.f32.mrf.mxu0
        %v3588 = vadd.f32 %v3252, %v3587
        %v3589 = vpop.f32.mrf.mxu0
        %v3590 = vadd.f32 %v3256, %v3589
        %3591 = vdwg.mxu0
        %3592 = vmatprep.subr.bf16.mxu0 %v3468
        %3593 = vmatpush1.bf16.msra.mxu0 %v3467
        %3594 = vmatprep.subr.bf16.mxu0 %v3462
        %3595 = vmatpush1.bf16.msra.mxu0 %v3461
        %3596 = vmatprep.subr.bf16.mxu0 %v3456
        %3597 = vmatpush1.bf16.msra.mxu0 %v3455
        %3598 = vmatprep.subr.bf16.mxu0 %v3450
        %3599 = vmatpush1.bf16.msra.mxu0 %v3449
        %3600 = vmatprep.subr.bf16.mxu0 %v3444
        %3601 = vmatpush1.bf16.msra.mxu0 %v3443
        %3602 = vmatprep.subr.bf16.mxu0 %v3438
        %3603 = vmatpush1.bf16.msra.mxu0 %v3437
        %3604 = vmatprep.subr.bf16.mxu0 %v3432
        %3605 = vmatpush1.bf16.msra.mxu0 %v3431
        %3606 = vmatprep.subr.bf16.mxu0 %v3426
        %3607 = vmatpush1.bf16.msra.mxu0 %v3425
        %3608 = vmatprep.subr.bf16.mxu0 0
        %3609 = vmatpush2.bf16.msra.mxu0 0
        %3610 = vmatprep.subr.bf16.mxu0 0
        %3611 = vmatpush2.bf16.msra.mxu0 0
        %3612 = vmatprep.subr.bf16.mxu0 0
        %3613 = vmatpush2.bf16.msra.mxu0 0
        %3614 = vmatprep.subr.bf16.mxu0 0
        %3615 = vmatpush2.bf16.msra.mxu0 0
        %3616 = vmatprep.subr.bf16.mxu0 0
        %3617 = vmatpush2.bf16.msra.mxu0 0
        %3618 = vmatprep.subr.bf16.mxu0 0
        %3619 = vmatpush2.bf16.msra.mxu0 0
        %3620 = vmatprep.subr.bf16.mxu0 0
        %3621 = vmatpush2.bf16.msra.mxu0 0
        %3622 = vmatprep.subr.bf16.mxu0 0
        %3623 = vmatpush2.bf16.msra.mxu0 0
        %3624 = vmatprep.mubr.bf16.mxu0 0
        %3625 = vmatmul.mubr.bf16.gmra.mxu0 %v3195
        %v3626 = vpop.f32.mrf.mxu0
        %v3627 = vadd.f32 %v3260, %v3626
        %v3628 = vpop.f32.mrf.mxu0
        %v3629 = vadd.f32 %v3264, %v3628
        %v3630 = vpop.f32.mrf.mxu0
        %v3631 = vadd.f32 %v3260, %v3630
        %v3632 = vpop.f32.mrf.mxu0
        %v3633 = vadd.f32 %v3264, %v3632
        %3634 = vmatprep.mubr.bf16.mxu0 0
        %3635 = vmatmul.mubr.bf16.gmra.mxu0 %v3196
        %v3636 = vpop.f32.mrf.mxu0
        %v3637 = vadd.f32 %v3260, %v3636
        %v3638 = vpop.f32.mrf.mxu0
        %v3639 = vadd.f32 %v3264, %v3638
        %v3640 = vpop.f32.mrf.mxu0
        %v3641 = vadd.f32 %v3260, %v3640
        %v3642 = vpop.f32.mrf.mxu0
        %v3643 = vadd.f32 %v3264, %v3642
        %3644 = vmatprep.mubr.bf16.mxu0 0
        %3645 = vmatmul.mubr.bf16.gmra.mxu0 %v3197
        %v3646 = vpop.f32.mrf.mxu0
        %v3647 = vadd.f32 %v3260, %v3646
        %v3648 = vpop.f32.mrf.mxu0
        %v3649 = vadd.f32 %v3264, %v3648
        %v3650 = vpop.f32.mrf.mxu0
        %v3651 = vadd.f32 %v3260, %v3650
        %v3652 = vpop.f32.mrf.mxu0
        %v3653 = vadd.f32 %v3264, %v3652
        %3654 = vmatprep.mubr.bf16.mxu0 0
        %3655 = vmatmul.mubr.bf16.gmra.mxu0 %v3198
        %v3656 = vpop.f32.mrf.mxu0
        %v3657 = vadd.f32 %v3260, %v3656
        %v3658 = vpop.f32.mrf.mxu0
        %v3659 = vadd.f32 %v3264, %v3658
        %v3660 = vpop.f32.mrf.mxu0
        %v3661 = vadd.f32 %v3260, %v3660
        %v3662 = vpop.f32.mrf.mxu0
        %v3663 = vadd.f32 %v3264, %v3662
        %3664 = vdwg.mxu0
        %3665 = vmatprep.subr.bf16.mxu0 %v3470
        %3666 = vmatpush1.bf16.msra.mxu0 %v3469
        %3667 = vmatprep.subr.bf16.mxu0 %v3464
        %3668 = vmatpush1.bf16.msra.mxu0 %v3463
        %3669 = vmatprep.subr.bf16.mxu0 %v3458
        %3670 = vmatpush1.bf16.msra.mxu0 %v3457
        %3671 = vmatprep.subr.bf16.mxu0 %v3452
        %3672 = vmatpush1.bf16.msra.mxu0 %v3451
        %3673 = vmatprep.subr.bf16.mxu0 %v3446
        %3674 = vmatpush1.bf16.msra.mxu0 %v3445
        %3675 = vmatprep.subr.bf16.mxu0 %v3440
        %3676 = vmatpush1.bf16.msra.mxu0 %v3439
        %3677 = vmatprep.subr.bf16.mxu0 %v3434
        %3678 = vmatpush1.bf16.msra.mxu0 %v3433
        %3679 = vmatprep.subr.bf16.mxu0 %v3428
        %3680 = vmatpush1.bf16.msra.mxu0 %v3427
        %3681 = vmatprep.subr.bf16.mxu0 0
        %3682 = vmatpush2.bf16.msra.mxu0 0
        %3683 = vmatprep.subr.bf16.mxu0 0
        %3684 = vmatpush2.bf16.msra.mxu0 0
        %3685 = vmatprep.subr.bf16.mxu0 0
        %3686 = vmatpush2.bf16.msra.mxu0 0
        %3687 = vmatprep.subr.bf16.mxu0 0
        %3688 = vmatpush2.bf16.msra.mxu0 0
        %3689 = vmatprep.subr.bf16.mxu0 0
        %3690 = vmatpush2.bf16.msra.mxu0 0
        %3691 = vmatprep.subr.bf16.mxu0 0
        %3692 = vmatpush2.bf16.msra.mxu0 0
        %3693 = vmatprep.subr.bf16.mxu0 0
        %3694 = vmatpush2.bf16.msra.mxu0 0
        %3695 = vmatprep.subr.bf16.mxu0 0
        %3696 = vmatpush2.bf16.msra.mxu0 0
        %3697 = vmatprep.mubr.bf16.mxu0 0
        %3698 = vmatmul.mubr.bf16.gmra.mxu0 %v3195
        %v3699 = vpop.f32.mrf.mxu0
        %v3700 = vadd.f32 %v3268, %v3699
        %v3701 = vpop.f32.mrf.mxu0
        %v3702 = vadd.f32 %v3272, %v3701
        %v3703 = vpop.f32.mrf.mxu0
        %v3704 = vadd.f32 %v3268, %v3703
        %v3705 = vpop.f32.mrf.mxu0
        %v3706 = vadd.f32 %v3272, %v3705
        %3707 = vmatprep.mubr.bf16.mxu0 0
        %3708 = vmatmul.mubr.bf16.gmra.mxu0 %v3196
        %v3709 = vpop.f32.mrf.mxu0
        %v3710 = vadd.f32 %v3268, %v3709
        %v3711 = vpop.f32.mrf.mxu0
        %v3712 = vadd.f32 %v3272, %v3711
        %v3713 = vpop.f32.mrf.mxu0
        %v3714 = vadd.f32 %v3268, %v3713
        %v3715 = vpop.f32.mrf.mxu0
        %v3716 = vadd.f32 %v3272, %v3715
        %3717 = vmatprep.mubr.bf16.mxu0 0
        %3718 = vmatmul.mubr.bf16.gmra.mxu0 %v3197
        %v3719 = vpop.f32.mrf.mxu0
        %v3720 = vadd.f32 %v3268, %v3719
        %v3721 = vpop.f32.mrf.mxu0
        %v3722 = vadd.f32 %v3272, %v3721
        %v3723 = vpop.f32.mrf.mxu0
        %v3724 = vadd.f32 %v3268, %v3723
        %v3725 = vpop.f32.mrf.mxu0
        %v3726 = vadd.f32 %v3272, %v3725
        %3727 = vmatprep.mubr.bf16.mxu0 0
        %3728 = vmatmul.mubr.bf16.gmra.mxu0 %v3198
        %v3729 = vpop.f32.mrf.mxu0
        %v3730 = vadd.f32 %v3268, %v3729
        %v3731 = vpop.f32.mrf.mxu0
        %v3732 = vadd.f32 %v3272, %v3731
        %v3733 = vpop.f32.mrf.mxu0
        %v3734 = vadd.f32 %v3268, %v3733
        %v3735 = vpop.f32.mrf.mxu0
        %v3736 = vadd.f32 %v3272, %v3735
        %3737 = vdwg.mxu0
        %v3738 = vxor.u32 %v3554, 2147483648
        %v3739 = vxor.u32 %v3556, 2147483648
        %v3740 = vxor.u32 %v3627, 2147483648
        %v3741 = vxor.u32 %v3558, 2147483648
        %v3742 = vxor.u32 %v3560, 2147483648
        %v3743 = vxor.u32 %v3631, 2147483648
        %v3744 = vxor.u32 %v3564, 2147483648
        %v3745 = vxor.u32 %v3566, 2147483648
        %v3746 = vxor.u32 %v3637, 2147483648
        %v3747 = vxor.u32 %v3568, 2147483648
        %v3748 = vxor.u32 %v3570, 2147483648
        %v3749 = vxor.u32 %v3641, 2147483648
        %v3750 = vxor.u32 %v3574, 2147483648
        %v3751 = vxor.u32 %v3576, 2147483648
        %v3752 = vxor.u32 %v3647, 2147483648
        %v3753 = vxor.u32 %v3578, 2147483648
        %v3754 = vxor.u32 %v3580, 2147483648
        %v3755 = vxor.u32 %v3651, 2147483648
        %v3756 = vxor.u32 %v3584, 2147483648
        %v3757 = vxor.u32 %v3586, 2147483648
        %v3758 = vxor.u32 %v3657, 2147483648
        %v3759 = vxor.u32 %v3588, 2147483648
        %v3760 = vxor.u32 %v3590, 2147483648
        %v3761 = vxor.u32 %v3661, 2147483648
        %v3762 = vmul.f32 %v3738, 1.442695
        %v3763 = vpow.pop %v3762
        %v3764 = vmul.f32 %v3739, 1.442695
        %v3765 = vpow.pop %v3764
        %v3766 = vmul.f32 %v3740, 1.442695
        %v3767 = vpow.pop %v3766
        %v3768 = vmul.f32 %v3741, 1.442695
        %v3769 = vpow.pop %v3768
        %v3770 = vmul.f32 %v3742, 1.442695
        %v3771 = vpow.pop %v3770
        %v3772 = vmul.f32 %v3743, 1.442695
        %v3773 = vpow.pop %v3772
        %v3774 = vmul.f32 %v3744, 1.442695
        %v3775 = vpow.pop %v3774
        %v3776 = vmul.f32 %v3745, 1.442695
        %v3777 = vpow.pop %v3776
        %v3778 = vmul.f32 %v3746, 1.442695
        %v3779 = vpow.pop %v3778
        %v3780 = vmul.f32 %v3747, 1.442695
        %v3781 = vpow.pop %v3780
        %v3782 = vmul.f32 %v3748, 1.442695
        %v3783 = vpow.pop %v3782
        %v3784 = vmul.f32 %v3749, 1.442695
        %v3785 = vpow.pop %v3784
        %v3786 = vmul.f32 %v3750, 1.442695
        %v3787 = vpow.pop %v3786
        %v3788 = vmul.f32 %v3751, 1.442695
        %v3789 = vpow.pop %v3788
        %v3790 = vmul.f32 %v3752, 1.442695
        %v3791 = vpow.pop %v3790
        %v3792 = vmul.f32 %v3753, 1.442695
        %v3793 = vpow.pop %v3792
        %v3794 = vmul.f32 %v3754, 1.442695
        %v3795 = vpow.pop %v3794
        %v3796 = vmul.f32 %v3755, 1.442695
        %v3797 = vpow.pop %v3796
        %v3798 = vmul.f32 %v3756, 1.442695
        %v3799 = vpow.pop %v3798
        %v3800 = vmul.f32 %v3757, 1.442695
        %v3801 = vpow.pop %v3800
        %v3802 = vmul.f32 %v3758, 1.442695
        %v3803 = vpow.pop %v3802
        %v3804 = vmul.f32 %v3759, 1.442695
        %v3805 = vpow.pop %v3804
        %v3806 = vmul.f32 %v3760, 1.442695
        %v3807 = vpow.pop %v3806
        %v3808 = vmul.f32 %v3761, 1.442695
        %v3809 = vpow.pop %v3808
        %v3810 = vadd.f32 %v3763, 1.0
        %v3811 = vadd.f32 %v3765, 1.0
        %v3812 = vadd.f32 %v3767, 1.0
        %v3813 = vadd.f32 %v3769, 1.0
        %v3814 = vadd.f32 %v3771, 1.0
        %v3815 = vadd.f32 %v3773, 1.0
        %v3816 = vadd.f32 %v3775, 1.0
        %v3817 = vadd.f32 %v3777, 1.0
        %v3818 = vadd.f32 %v3779, 1.0
        %v3819 = vadd.f32 %v3781, 1.0
        %v3820 = vadd.f32 %v3783, 1.0
        %v3821 = vadd.f32 %v3785, 1.0
        %v3822 = vadd.f32 %v3787, 1.0
        %v3823 = vadd.f32 %v3789, 1.0
        %v3824 = vadd.f32 %v3791, 1.0
        %v3825 = vadd.f32 %v3793, 1.0
        %v3826 = vadd.f32 %v3795, 1.0
        %v3827 = vadd.f32 %v3797, 1.0
        %v3828 = vadd.f32 %v3799, 1.0
        %v3829 = vadd.f32 %v3801, 1.0
        %v3830 = vadd.f32 %v3803, 1.0
        %v3831 = vadd.f32 %v3805, 1.0
        %v3832 = vadd.f32 %v3807, 1.0
        %v3833 = vadd.f32 %v3809, 1.0
        %v3834 = vrcp.pop %v3810
        %v3835 = vmul.f32 1.0, %v3834
        %v3836 = vrcp.pop %v3811
        %v3837 = vmul.f32 1.0, %v3836
        %v3838 = vrcp.pop %v3812
        %v3839 = vmul.f32 1.0, %v3838
        %v3840 = vrcp.pop %v3813
        %v3841 = vmul.f32 1.0, %v3840
        %v3842 = vrcp.pop %v3814
        %v3843 = vmul.f32 1.0, %v3842
        %v3844 = vrcp.pop %v3815
        %v3845 = vmul.f32 1.0, %v3844
        %v3846 = vrcp.pop %v3816
        %v3847 = vmul.f32 1.0, %v3846
        %v3848 = vrcp.pop %v3817
        %v3849 = vmul.f32 1.0, %v3848
        %v3850 = vrcp.pop %v3818
        %v3851 = vmul.f32 1.0, %v3850
        %v3852 = vrcp.pop %v3819
        %v3853 = vmul.f32 1.0, %v3852
        %v3854 = vrcp.pop %v3820
        %v3855 = vmul.f32 1.0, %v3854
        %v3856 = vrcp.pop %v3821
        %v3857 = vmul.f32 1.0, %v3856
        %v3858 = vrcp.pop %v3822
        %v3859 = vmul.f32 1.0, %v3858
        %v3860 = vrcp.pop %v3823
        %v3861 = vmul.f32 1.0, %v3860
        %v3862 = vrcp.pop %v3824
        %v3863 = vmul.f32 1.0, %v3862
        %v3864 = vrcp.pop %v3825
        %v3865 = vmul.f32 1.0, %v3864
        %v3866 = vrcp.pop %v3826
        %v3867 = vmul.f32 1.0, %v3866
        %v3868 = vrcp.pop %v3827
        %v3869 = vmul.f32 1.0, %v3868
        %v3870 = vrcp.pop %v3828
        %v3871 = vmul.f32 1.0, %v3870
        %v3872 = vrcp.pop %v3829
        %v3873 = vmul.f32 1.0, %v3872
        %v3874 = vrcp.pop %v3830
        %v3875 = vmul.f32 1.0, %v3874
        %v3876 = vrcp.pop %v3831
        %v3877 = vmul.f32 1.0, %v3876
        %v3878 = vrcp.pop %v3832
        %v3879 = vmul.f32 1.0, %v3878
        %v3880 = vrcp.pop %v3833
        %v3881 = vmul.f32 1.0, %v3880
        %v3882 = vmul.f32 %v3554, %v3835
        %v3883 = vmul.f32 %v3556, %v3837
        %v3884 = vmul.f32 %v3627, %v3839
        %v3885 = vmul.f32 %v3558, %v3841
        %v3886 = vmul.f32 %v3560, %v3843
        %v3887 = vmul.f32 %v3631, %v3845
        %v3888 = vmul.f32 %v3564, %v3847
        %v3889 = vmul.f32 %v3566, %v3849
        %v3890 = vmul.f32 %v3637, %v3851
        %v3891 = vmul.f32 %v3568, %v3853
        %v3892 = vmul.f32 %v3570, %v3855
        %v3893 = vmul.f32 %v3641, %v3857
        %v3894 = vmul.f32 %v3574, %v3859
        %v3895 = vmul.f32 %v3576, %v3861
        %v3896 = vmul.f32 %v3647, %v3863
        %v3897 = vmul.f32 %v3578, %v3865
        %v3898 = vmul.f32 %v3580, %v3867
        %v3899 = vmul.f32 %v3651, %v3869
        %v3900 = vmul.f32 %v3584, %v3871
        %v3901 = vmul.f32 %v3586, %v3873
        %v3902 = vmul.f32 %v3657, %v3875
        %v3903 = vmul.f32 %v3588, %v3877
        %v3904 = vmul.f32 %v3590, %v3879
        %v3905 = vmul.f32 %v3661, %v3881
        %v3906 = vmul.f32 %v3882, %v3629
        %v3907 = vmul.f32 %v3883, %v3700
        %v3908 = vmul.f32 %v3884, %v3702
        %v3909 = vmul.f32 %v3885, %v3633
        %v3910 = vmul.f32 %v3886, %v3704
        %v3911 = vmul.f32 %v3887, %v3706
        %v3912 = vmul.f32 %v3888, %v3639
        %v3913 = vmul.f32 %v3889, %v3710
        %v3914 = vmul.f32 %v3890, %v3712
        %v3915 = vmul.f32 %v3891, %v3643
        %v3916 = vmul.f32 %v3892, %v3714
        %v3917 = vmul.f32 %v3893, %v3716
        %v3918 = vmul.f32 %v3894, %v3649
        %v3919 = vmul.f32 %v3895, %v3720
        %v3920 = vmul.f32 %v3896, %v3722
        %v3921 = vmul.f32 %v3897, %v3653
        %v3922 = vmul.f32 %v3898, %v3724
        %v3923 = vmul.f32 %v3899, %v3726
        %v3924 = vmul.f32 %v3900, %v3659
        %v3925 = vmul.f32 %v3901, %v3730
        %v3926 = vmul.f32 %v3902, %v3732
        %v3927 = vmul.f32 %v3903, %v3663
        %v3928 = vmul.f32 %v3904, %v3734
        %v3929 = vmul.f32 %v3905, %v3736
        %v3930 = vpack.c.bf16 %v3909, %v3906
        %v3931 = vpack.c.bf16 %v3910, %v3907
        %v3932 = vpack.c.bf16 %v3911, %v3908
        %v3933 = vpack.c.bf16 %v3915, %v3912
        %v3934 = vpack.c.bf16 %v3916, %v3913
        %v3935 = vpack.c.bf16 %v3917, %v3914
        %v3936 = vpack.c.bf16 %v3921, %v3918
        %v3937 = vpack.c.bf16 %v3922, %v3919
        %v3938 = vpack.c.bf16 %v3923, %v3920
        %v3939 = vpack.c.bf16 %v3927, %v3924
        %v3940 = vpack.c.bf16 %v3928, %v3925
        %v3941 = vpack.c.bf16 %v3929, %v3926
        %v3942 = vld [vmem:[%s663] sm:$0xf]
        %v3943 = vld [vmem:[%s663 + $0x4] sm:$0xf]
        %v3944 = vld [vmem:[%s663 + $0x8] sm:$0xf]
        %v3945 = vld [vmem:[%s663 + $0xc] sm:$0xf]
        %v3946 = vld [vmem:[%s663 + $0x10] sm:$0xf]
        %v3947 = vld [vmem:[%s663 + $0x14] sm:$0xf]
        %v3948 = vld [vmem:[%s663 + $0x18] sm:$0xf]
        %v3949 = vld [vmem:[%s663 + $0x1c] sm:$0xf]
        %v3950 = vld [vmem:[%s663 + $0x20] sm:$0xf]
        %v3951 = vld [vmem:[%s663 + $0x24] sm:$0xf]
        %v3952 = vld [vmem:[%s663 + $0x28] sm:$0xf]
        %v3953 = vld [vmem:[%s663 + $0x2c] sm:$0xf]
        %v3954 = vld [vmem:[%s663 + $0x30] sm:$0xf]
        %v3955 = vld [vmem:[%s663 + $0x34] sm:$0xf]
        %v3956 = vld [vmem:[%s663 + $0x38] sm:$0xf]
        %v3957 = vld [vmem:[%s663 + $0x3c] sm:$0xf]
        %v3958 = vld [vmem:[%s663 + $0x40] sm:$0xf]
        %v3959 = vld [vmem:[%s663 + $0x44] sm:$0xf]
        %v3960 = vld [vmem:[%s663 + $0x48] sm:$0xf]
        %v3961 = vld [vmem:[%s663 + $0x4c] sm:$0xf]
        %v3962 = vld [vmem:[%s663 + $0x50] sm:$0xf]
        %v3963 = vld [vmem:[%s663 + $0x54] sm:$0xf]
        %v3964 = vld [vmem:[%s663 + $0x58] sm:$0xf]
        %v3965 = vld [vmem:[%s663 + $0x5c] sm:$0xf]
        %v3966 = vld [vmem:[%s663 + $0x60] sm:$0xf]
        %v3967 = vld [vmem:[%s663 + $0x64] sm:$0xf]
        %v3968 = vld [vmem:[%s663 + $0x68] sm:$0xf]
        %v3969 = vld [vmem:[%s663 + $0x6c] sm:$0xf]
        %v3970 = vld [vmem:[%s663 + $0x70] sm:$0xf]
        %v3971 = vld [vmem:[%s663 + $0x74] sm:$0xf]
        %v3972 = vld [vmem:[%s663 + $0x78] sm:$0xf]
        %v3973 = vld [vmem:[%s663 + $0x7c] sm:$0xf]
        %v3974 = vld [vmem:[%s663 + $0x80] sm:$0xf]
        %v3975 = vld [vmem:[%s663 + $0x84] sm:$0xf]
        %v3976 = vld [vmem:[%s663 + $0x88] sm:$0xf]
        %v3977 = vld [vmem:[%s663 + $0x8c] sm:$0xf]
        %v3978 = vld [vmem:[%s663 + $0x90] sm:$0xf]
        %v3979 = vld [vmem:[%s663 + $0x94] sm:$0xf]
        %v3980 = vld [vmem:[%s663 + $0x98] sm:$0xf]
        %v3981 = vld [vmem:[%s663 + $0x9c] sm:$0xf]
        %v3982 = vld [vmem:[%s663 + $0xa0] sm:$0xf]
        %v3983 = vld [vmem:[%s663 + $0xa4] sm:$0xf]
        %v3984 = vld [vmem:[%s663 + $0xa8] sm:$0xf]
        %v3985 = vld [vmem:[%s663 + $0xac] sm:$0xf]
        %v3986 = vld [vmem:[%s663 + $0xb0] sm:$0xf]
        %v3987 = vld [vmem:[%s663 + $0xb4] sm:$0xf]
        %v3988 = vld [vmem:[%s663 + $0xb8] sm:$0xf]
        %v3989 = vld [vmem:[%s663 + $0xbc] sm:$0xf]
        %v3990 = vld [vmem:[%s803] sm:$0x1]
        %v3992 = vlaneseq
        %v3993 = vshrl.u32 %v3992, 7
        %v3994 = vsub.s32 0, %v3993
        %v3995 = vrot.slane %v3990, %v3994
        %v4045 = vunpack.c.l.b16 %v3942
        %v4046 = vunpack.c.l.b16 %v3943
        %v4047 = vunpack.c.l.b16 %v3944
        %v4048 = vunpack.c.l.b16 %v3945
        %v4049 = vunpack.c.l.b16 %v3946
        %v4050 = vunpack.c.l.b16 %v3947
        %v4051 = vunpack.c.l.b16 %v3948
        %v4052 = vunpack.c.l.b16 %v3949
        %v4053 = vunpack.c.l.b16 %v3950
        %v4054 = vunpack.c.l.b16 %v3951
        %v4055 = vunpack.c.l.b16 %v3952
        %v4056 = vunpack.c.l.b16 %v3953
        %v4057 = vunpack.c.l.b16 %v3954
        %v4058 = vunpack.c.l.b16 %v3955
        %v4059 = vunpack.c.l.b16 %v3956
        %v4060 = vunpack.c.l.b16 %v3957
        %v4061 = vunpack.c.l.b16 %v3958
        %v4062 = vunpack.c.l.b16 %v3959
        %v4063 = vunpack.c.l.b16 %v3960
        %v4064 = vunpack.c.l.b16 %v3961
        %v4065 = vunpack.c.l.b16 %v3962
        %v4066 = vunpack.c.l.b16 %v3963
        %v4067 = vunpack.c.l.b16 %v3964
        %v4068 = vunpack.c.l.b16 %v3965
        %v4069 = vunpack.c.l.b16 %v3966
        %v4070 = vunpack.c.l.b16 %v3967
        %v4071 = vunpack.c.l.b16 %v3968
        %v4072 = vunpack.c.l.b16 %v3969
        %v4073 = vunpack.c.l.b16 %v3970
        %v4074 = vunpack.c.l.b16 %v3971
        %v4075 = vunpack.c.l.b16 %v3972
        %v4076 = vunpack.c.l.b16 %v3973
        %v4077 = vunpack.c.l.b16 %v3974
        %v4078 = vunpack.c.l.b16 %v3975
        %v4079 = vunpack.c.l.b16 %v3976
        %v4080 = vunpack.c.l.b16 %v3977
        %v4081 = vunpack.c.l.b16 %v3978
        %v4082 = vunpack.c.l.b16 %v3979
        %v4083 = vunpack.c.l.b16 %v3980
        %v4084 = vunpack.c.l.b16 %v3981
        %v4085 = vunpack.c.l.b16 %v3982
        %v4086 = vunpack.c.l.b16 %v3983
        %v4087 = vunpack.c.l.b16 %v3984
        %v4088 = vunpack.c.l.b16 %v3985
        %v4089 = vunpack.c.l.b16 %v3986
        %v4090 = vunpack.c.l.b16 %v3987
        %v4091 = vunpack.c.l.b16 %v3988
        %v4092 = vunpack.c.l.b16 %v3989
        %v4093 = vpack.c.b16 %v4046, %v4045
        %v4094 = vpack.c.b16 %v4048, %v4047
        %v4095 = vpack.c.b16 %v4050, %v4049
        %v4096 = vpack.c.b16 %v4052, %v4051
        %v4097 = vpack.c.b16 %v4054, %v4053
        %v4098 = vpack.c.b16 %v4056, %v4055
        %v4099 = vpack.c.b16 %v4058, %v4057
        %v4100 = vpack.c.b16 %v4060, %v4059
        %v4101 = vpack.c.b16 %v4062, %v4061
        %v4102 = vpack.c.b16 %v4064, %v4063
        %v4103 = vpack.c.b16 %v4066, %v4065
        %v4104 = vpack.c.b16 %v4068, %v4067
        %v4105 = vpack.c.b16 %v4070, %v4069
        %v4106 = vpack.c.b16 %v4072, %v4071
        %v4107 = vpack.c.b16 %v4074, %v4073
        %v4108 = vpack.c.b16 %v4076, %v4075
        %v4109 = vpack.c.b16 %v4078, %v4077
        %v4110 = vpack.c.b16 %v4080, %v4079
        %v4111 = vpack.c.b16 %v4082, %v4081
        %v4112 = vpack.c.b16 %v4084, %v4083
        %v4113 = vpack.c.b16 %v4086, %v4085
        %v4114 = vpack.c.b16 %v4088, %v4087
        %v4115 = vpack.c.b16 %v4090, %v4089
        %v4116 = vpack.c.b16 %v4092, %v4091
        %4141 = vmatprep.subr.bf16.mxu0 0
        %4142 = vmatpush1.bf16.msra.mxu0 %v4100
        %4143 = vmatprep.subr.bf16.mxu0 0
        %4144 = vmatpush1.bf16.msra.mxu0 %v4099
        %4145 = vmatprep.subr.bf16.mxu0 0
        %4146 = vmatpush1.bf16.msra.mxu0 %v4098
        %4147 = vmatprep.subr.bf16.mxu0 0
        %4148 = vmatpush1.bf16.msra.mxu0 %v4097
        %4149 = vmatprep.subr.bf16.mxu0 0
        %4150 = vmatpush1.bf16.msra.mxu0 %v4096
        %4151 = vmatprep.subr.bf16.mxu0 0
        %4152 = vmatpush1.bf16.msra.mxu0 %v4095
        %4153 = vmatprep.subr.bf16.mxu0 0
        %4154 = vmatpush1.bf16.msra.mxu0 %v4094
        %4155 = vmatprep.subr.bf16.mxu0 0
        %4156 = vmatpush1.bf16.msra.mxu0 %v4093
        %4157 = vmatprep.subr.bf16.mxu0 0
        %4158 = vmatpush2.bf16.msra.mxu0 %v4108
        %4159 = vmatprep.subr.bf16.mxu0 0
        %4160 = vmatpush2.bf16.msra.mxu0 %v4107
        %4161 = vmatprep.subr.bf16.mxu0 0
        %4162 = vmatpush2.bf16.msra.mxu0 %v4106
        %4163 = vmatprep.subr.bf16.mxu0 0
        %4164 = vmatpush2.bf16.msra.mxu0 %v4105
        %4165 = vmatprep.subr.bf16.mxu0 0
        %4166 = vmatpush2.bf16.msra.mxu0 %v4104
        %4167 = vmatprep.subr.bf16.mxu0 0
        %4168 = vmatpush2.bf16.msra.mxu0 %v4103
        %4169 = vmatprep.subr.bf16.mxu0 0
        %4170 = vmatpush2.bf16.msra.mxu0 %v4102
        %4171 = vmatprep.subr.bf16.mxu0 0
        %4172 = vmatpush2.bf16.msra.mxu0 %v4101
        %4173 = vmatprep.mubr.bf16.mxu0 %v3931
        %4174 = vmatmul.mubr.bf16.gmra.mxu0 %v3930
        %v4175 = vpop.f32.mrf.mxu0
        %v4176 = vadd.f32 %v3995, %v4175
        %v4177 = vpop.f32.mrf.mxu0
        %v4178 = vpop.f32.mrf.mxu0
        %v4179 = vadd.f32 %v3995, %v4178
        %v4180 = vpop.f32.mrf.mxu0
        %4181 = vmatprep.mubr.bf16.mxu0 %v3934
        %4182 = vmatmul.mubr.bf16.gmra.mxu0 %v3933
        %v4183 = vpop.f32.mrf.mxu0
        %v4184 = vadd.f32 %v3995, %v4183
        %v4185 = vpop.f32.mrf.mxu0
        %v4186 = vpop.f32.mrf.mxu0
        %v4187 = vadd.f32 %v3995, %v4186
        %v4188 = vpop.f32.mrf.mxu0
        %4189 = vmatprep.mubr.bf16.mxu0 %v3937
        %4190 = vmatmul.mubr.bf16.gmra.mxu0 %v3936
        %v4191 = vpop.f32.mrf.mxu0
        %v4192 = vadd.f32 %v3995, %v4191
        %v4193 = vpop.f32.mrf.mxu0
        %v4194 = vpop.f32.mrf.mxu0
        %v4195 = vadd.f32 %v3995, %v4194
        %v4196 = vpop.f32.mrf.mxu0
        %4197 = vmatprep.mubr.bf16.mxu0 %v3940
        %4198 = vmatmul.mubr.bf16.gmra.mxu0 %v3939
        %v4199 = vpop.f32.mrf.mxu0
        %v4200 = vadd.f32 %v3995, %v4199
        %v4201 = vpop.f32.mrf.mxu0
        %v4202 = vpop.f32.mrf.mxu0
        %v4203 = vadd.f32 %v3995, %v4202
        %v4204 = vpop.f32.mrf.mxu0
        %4205 = vdwg.mxu0
        %4206 = vmatprep.subr.bf16.mxu0 0
        %4207 = vmatpush1.bf16.msra.mxu0 %v4116
        %4208 = vmatprep.subr.bf16.mxu0 0
        %4209 = vmatpush1.bf16.msra.mxu0 %v4115
        %4210 = vmatprep.subr.bf16.mxu0 0
        %4211 = vmatpush1.bf16.msra.mxu0 %v4114
        %4212 = vmatprep.subr.bf16.mxu0 0
        %4213 = vmatpush1.bf16.msra.mxu0 %v4113
        %4214 = vmatprep.subr.bf16.mxu0 0
        %4215 = vmatpush1.bf16.msra.mxu0 %v4112
        %4216 = vmatprep.subr.bf16.mxu0 0
        %4217 = vmatpush1.bf16.msra.mxu0 %v4111
        %4218 = vmatprep.subr.bf16.mxu0 0
        %4219 = vmatpush1.bf16.msra.mxu0 %v4110
        %4220 = vmatprep.subr.bf16.mxu0 0
        %4221 = vmatpush1.bf16.msra.mxu0 %v4109
        %4222 = vmatprep.subr.bf16.mxu0 0
        %4223 = vmatpush2.bf16.msra.mxu0 0
        %4224 = vmatprep.subr.bf16.mxu0 0
        %4225 = vmatpush2.bf16.msra.mxu0 0
        %4226 = vmatprep.subr.bf16.mxu0 0
        %4227 = vmatpush2.bf16.msra.mxu0 0
        %4228 = vmatprep.subr.bf16.mxu0 0
        %4229 = vmatpush2.bf16.msra.mxu0 0
        %4230 = vmatprep.subr.bf16.mxu0 0
        %4231 = vmatpush2.bf16.msra.mxu0 0
        %4232 = vmatprep.subr.bf16.mxu0 0
        %4233 = vmatpush2.bf16.msra.mxu0 0
        %4234 = vmatprep.subr.bf16.mxu0 0
        %4235 = vmatpush2.bf16.msra.mxu0 0
        %4236 = vmatprep.subr.bf16.mxu0 0
        %4237 = vmatpush2.bf16.msra.mxu0 0
        %4238 = vmatprep.mubr.bf16.mxu0 0
        %4239 = vmatmul.mubr.bf16.gmra.mxu0 %v3932
        %v4240 = vpop.f32.mrf.mxu0
        %v4241 = vadd.f32 %v4176, %v4240
        %v4242 = vpop.f32.mrf.mxu0
        %v4243 = vpop.f32.mrf.mxu0
        %v4244 = vadd.f32 %v4179, %v4243
        %v4245 = vpop.f32.mrf.mxu0
        %4246 = vmatprep.mubr.bf16.mxu0 0
        %4247 = vmatmul.mubr.bf16.gmra.mxu0 %v3935
        %v4248 = vpop.f32.mrf.mxu0
        %v4249 = vadd.f32 %v4184, %v4248
        %v4250 = vpop.f32.mrf.mxu0
        %v4251 = vpop.f32.mrf.mxu0
        %v4252 = vadd.f32 %v4187, %v4251
        %v4253 = vpop.f32.mrf.mxu0
        %4254 = vmatprep.mubr.bf16.mxu0 0
        %4255 = vmatmul.mubr.bf16.gmra.mxu0 %v3938
        %v4256 = vpop.f32.mrf.mxu0
        %v4257 = vadd.f32 %v4192, %v4256
        %v4258 = vpop.f32.mrf.mxu0
        %v4259 = vpop.f32.mrf.mxu0
        %v4260 = vadd.f32 %v4195, %v4259
        %v4261 = vpop.f32.mrf.mxu0
        %4262 = vmatprep.mubr.bf16.mxu0 0
        %4263 = vmatmul.mubr.bf16.gmra.mxu0 %v3941
        %v4264 = vpop.f32.mrf.mxu0
        %v4265 = vadd.f32 %v4200, %v4264
        %v4266 = vpop.f32.mrf.mxu0
        %v4267 = vpop.f32.mrf.mxu0
        %v4268 = vadd.f32 %v4203, %v4267
        %v4269 = vpop.f32.mrf.mxu0
        %4270 = vdwg.mxu0
        %v4271 = vld [vmem:[%s806] sm:$0x1]
        %v4273 = vlaneseq
        %v4274 = vshrl.u32 %v4273, 7
        %v4275 = vsub.s32 0, %v4274
        %v4276 = vrot.slane %v4271, %v4275
        %v4278 = vmul.f32 %v4276, %v4241
        %v4279 = vmul.f32 %v4276, %v4244
        %v4280 = vmul.f32 %v4276, %v4249
        %v4281 = vmul.f32 %v4276, %v4252
        %v4282 = vmul.f32 %v4276, %v4257
        %v4283 = vmul.f32 %v4276, %v4260
        %v4284 = vmul.f32 %v4276, %v4265
        %v4285 = vmul.f32 %v4276, %v4268
        %v4286 = vadd.f32 %v3069, %v4278
        %v4287 = vadd.f32 %v3070, %v4279
        %v4288 = vadd.f32 %v3071, %v4280
        %v4289 = vadd.f32 %v3072, %v4281
        %v4290 = vadd.f32 %v3073, %v4282
        %v4291 = vadd.f32 %v3074, %v4283
        %v4292 = vadd.f32 %v3075, %v4284
        %v4293 = vadd.f32 %v3076, %v4285
        %4294 = vst [vmem:[#allocation2] sm:$0xff] %v4286
        %4295 = vst [vmem:[#allocation2 + $0x8] sm:$0xff] %v4287
        %4296 = vst [vmem:[#allocation2 + $0x10] sm:$0xff] %v4288
        %4297 = vst [vmem:[#allocation2 + $0x18] sm:$0xff] %v4289
        %4298 = vst [vmem:[#allocation2 + $0x20] sm:$0xff] %v4290
        %4299 = vst [vmem:[#allocation2 + $0x28] sm:$0xff] %v4291
        %4300 = vst [vmem:[#allocation2 + $0x30] sm:$0xff] %v4292
        %4301 = vst [vmem:[#allocation2 + $0x38] sm:$0xff] %v4293
        %p4302 = scmp.eq.s32.totalorder %s35, 1
        // Predicated region
        $region127: #{uni2_forward.5} parent=83 // pred_check
          %p4303 = pneg %p4302
        $region128: #{uni2_forward.5} parent=83 // pred_check_branch
          %4305 = sbr.rel (%p4303) target = $region130
        $region129: #{uni2_forward.5} parent=83 // pred_region
          %v4306 = vld [vmem:[%s15] sm:$0x1]
          %v4307 = vld [vmem:[%s16] sm:$0x1]
          %4308 = vadd.xlane.f32.xlu0 %v4286
          %v4309 = vpop.xlane.xlu0 %4308
          %4310 = vadd.xlane.f32.xlu0 %v4287
          %v4311 = vpop.xlane.xlu0 %4310
          %4312 = vadd.xlane.f32.xlu0 %v4288
          %v4313 = vpop.xlane.xlu0 %4312
          %4314 = vadd.xlane.f32.xlu0 %v4289
          %v4315 = vpop.xlane.xlu0 %4314
          %4316 = vadd.xlane.f32.xlu0 %v4290
          %v4317 = vpop.xlane.xlu0 %4316
          %4318 = vadd.xlane.f32.xlu0 %v4291
          %v4319 = vpop.xlane.xlu0 %4318
          %4320 = vadd.xlane.f32.xlu0 %v4292
          %v4321 = vpop.xlane.xlu0 %4320
          %4322 = vadd.xlane.f32.xlu0 %v4293
          %v4323 = vpop.xlane.xlu0 %4322
          %v4324 = vmul.f32 %v4309, %v899
          %v4325 = vmul.f32 %v4311, %v899
          %v4326 = vmul.f32 %v4313, %v899
          %v4327 = vmul.f32 %v4315, %v899
          %v4328 = vmul.f32 %v4317, %v899
          %v4329 = vmul.f32 %v4319, %v899
          %v4330 = vmul.f32 %v4321, %v899
          %v4331 = vmul.f32 %v4323, %v899
          %v4332 = vsub.f32 %v4286, %v4324
          %v4333 = vsub.f32 %v4287, %v4325
          %v4334 = vsub.f32 %v4288, %v4326
          %v4335 = vsub.f32 %v4289, %v4327
          %v4336 = vsub.f32 %v4290, %v4328
          %v4337 = vsub.f32 %v4291, %v4329
          %v4338 = vsub.f32 %v4292, %v4330
          %v4339 = vsub.f32 %v4293, %v4331
          %v4340 = vmul.f32 %v4332, %v4332
          %v4341 = vmul.f32 %v4333, %v4333
          %v4342 = vmul.f32 %v4334, %v4334
          %v4343 = vmul.f32 %v4335, %v4335
          %v4344 = vmul.f32 %v4336, %v4336
          %v4345 = vmul.f32 %v4337, %v4337
          %v4346 = vmul.f32 %v4338, %v4338
          %v4347 = vmul.f32 %v4339, %v4339
          %4348 = vadd.xlane.f32.xlu0 %v4340
          %v4349 = vpop.xlane.xlu0 %4348
          %4350 = vadd.xlane.f32.xlu0 %v4341
          %v4351 = vpop.xlane.xlu0 %4350
          %4352 = vadd.xlane.f32.xlu0 %v4342
          %v4353 = vpop.xlane.xlu0 %4352
          %4354 = vadd.xlane.f32.xlu0 %v4343
          %v4355 = vpop.xlane.xlu0 %4354
          %4356 = vadd.xlane.f32.xlu0 %v4344
          %v4357 = vpop.xlane.xlu0 %4356
          %4358 = vadd.xlane.f32.xlu0 %v4345
          %v4359 = vpop.xlane.xlu0 %4358
          %4360 = vadd.xlane.f32.xlu0 %v4346
          %v4361 = vpop.xlane.xlu0 %4360
          %4362 = vadd.xlane.f32.xlu0 %v4347
          %v4363 = vpop.xlane.xlu0 %4362
          %v4364 = vmul.f32 %v4349, %v899
          %v4365 = vmul.f32 %v4351, %v899
          %v4366 = vmul.f32 %v4353, %v899
          %v4367 = vmul.f32 %v4355, %v899
          %v4368 = vmul.f32 %v4357, %v899
          %v4369 = vmul.f32 %v4359, %v899
          %v4370 = vmul.f32 %v4361, %v899
          %v4371 = vmul.f32 %v4363, %v899
          %v4372 = vadd.f32 %v4364, 1e-06
          %v4373 = vadd.f32 %v4365, 1e-06
          %v4374 = vadd.f32 %v4366, 1e-06
          %v4375 = vadd.f32 %v4367, 1e-06
          %v4376 = vadd.f32 %v4368, 1e-06
          %v4377 = vadd.f32 %v4369, 1e-06
          %v4378 = vadd.f32 %v4370, 1e-06
          %v4379 = vadd.f32 %v4371, 1e-06
          %v4380 = vrsqrt.pop %v4372
          %v4381 = vrsqrt.pop %v4373
          %v4382 = vrsqrt.pop %v4374
          %v4383 = vrsqrt.pop %v4375
          %v4384 = vrsqrt.pop %v4376
          %v4385 = vrsqrt.pop %v4377
          %v4386 = vrsqrt.pop %v4378
          %v4387 = vrsqrt.pop %v4379
          %v4388 = vmul.f32 %v4332, %v4380
          %v4389 = vmul.f32 %v4333, %v4381
          %v4390 = vmul.f32 %v4334, %v4382
          %v4391 = vmul.f32 %v4335, %v4383
          %v4392 = vmul.f32 %v4336, %v4384
          %v4393 = vmul.f32 %v4337, %v4385
          %v4394 = vmul.f32 %v4338, %v4386
          %v4395 = vmul.f32 %v4339, %v4387
          %v4397 = vlaneseq
          %v4398 = vshrl.u32 %v4397, 7
          %v4399 = vsub.s32 0, %v4398
          %v4400 = vrot.slane %v4306, %v4399
          %v4402 = vmul.f32 %v4388, %v4400
          %v4403 = vmul.f32 %v4389, %v4400
          %v4404 = vmul.f32 %v4390, %v4400
          %v4405 = vmul.f32 %v4391, %v4400
          %v4406 = vmul.f32 %v4392, %v4400
          %v4407 = vmul.f32 %v4393, %v4400
          %v4408 = vmul.f32 %v4394, %v4400
          %v4409 = vmul.f32 %v4395, %v4400
          %v4411 = vlaneseq
          %v4412 = vshrl.u32 %v4411, 7
          %v4413 = vsub.s32 0, %v4412
          %v4414 = vrot.slane %v4307, %v4413
          %v4416 = vadd.f32 %v4402, %v4414
          %v4417 = vadd.f32 %v4403, %v4414
          %v4418 = vadd.f32 %v4404, %v4414
          %v4419 = vadd.f32 %v4405, %v4414
          %v4420 = vadd.f32 %v4406, %v4414
          %v4421 = vadd.f32 %v4407, %v4414
          %v4422 = vadd.f32 %v4408, %v4414
          %v4423 = vadd.f32 %v4409, %v4414
          %4424 = vst [vmem:[%s17] sm:$0xff] %v4416
          %4425 = vst [vmem:[%s17 + $0x8] sm:$0xff] %v4417
          %4426 = vst [vmem:[%s17 + $0x10] sm:$0xff] %v4418
          %4427 = vst [vmem:[%s17 + $0x18] sm:$0xff] %v4419
          %4428 = vst [vmem:[%s17 + $0x20] sm:$0xff] %v4420
          %4429 = vst [vmem:[%s17 + $0x28] sm:$0xff] %v4421
          %4430 = vst [vmem:[%s17 + $0x30] sm:$0xff] %v4422
          %4431 = vst [vmem:[%s17 + $0x38] sm:$0xff] %v4423
        $region130: #{uni2_forward.5} parent=83 // pred_fallthru
          _
        %p4432 = scmp.eq.s32.totalorder %s35, 3
        // Predicated region
        $region131: #{uni2_forward.5} parent=83 // pred_check
          %p4433 = pneg %p4432
        $region132: #{uni2_forward.5} parent=83 // pred_check_branch
          %4435 = sbr.rel (%p4433) target = $region134
        $region133: #{uni2_forward.5} parent=83 // pred_region
          %v4436 = vld [vmem:[%s15] sm:$0x1]
          %v4437 = vld [vmem:[%s16] sm:$0x1]
          %4438 = vadd.xlane.f32.xlu0 %v4286
          %v4439 = vpop.xlane.xlu0 %4438
          %4440 = vadd.xlane.f32.xlu0 %v4287
          %v4441 = vpop.xlane.xlu0 %4440
          %4442 = vadd.xlane.f32.xlu0 %v4288
          %v4443 = vpop.xlane.xlu0 %4442
          %4444 = vadd.xlane.f32.xlu0 %v4289
          %v4445 = vpop.xlane.xlu0 %4444
          %4446 = vadd.xlane.f32.xlu0 %v4290
          %v4447 = vpop.xlane.xlu0 %4446
          %4448 = vadd.xlane.f32.xlu0 %v4291
          %v4449 = vpop.xlane.xlu0 %4448
          %4450 = vadd.xlane.f32.xlu0 %v4292
          %v4451 = vpop.xlane.xlu0 %4450
          %4452 = vadd.xlane.f32.xlu0 %v4293
          %v4453 = vpop.xlane.xlu0 %4452
          %v4454 = vmul.f32 %v4439, %v899
          %v4455 = vmul.f32 %v4441, %v899
          %v4456 = vmul.f32 %v4443, %v899
          %v4457 = vmul.f32 %v4445, %v899
          %v4458 = vmul.f32 %v4447, %v899
          %v4459 = vmul.f32 %v4449, %v899
          %v4460 = vmul.f32 %v4451, %v899
          %v4461 = vmul.f32 %v4453, %v899
          %v4462 = vsub.f32 %v4286, %v4454
          %v4463 = vsub.f32 %v4287, %v4455
          %v4464 = vsub.f32 %v4288, %v4456
          %v4465 = vsub.f32 %v4289, %v4457
          %v4466 = vsub.f32 %v4290, %v4458
          %v4467 = vsub.f32 %v4291, %v4459
          %v4468 = vsub.f32 %v4292, %v4460
          %v4469 = vsub.f32 %v4293, %v4461
          %v4470 = vmul.f32 %v4462, %v4462
          %v4471 = vmul.f32 %v4463, %v4463
          %v4472 = vmul.f32 %v4464, %v4464
          %v4473 = vmul.f32 %v4465, %v4465
          %v4474 = vmul.f32 %v4466, %v4466
          %v4475 = vmul.f32 %v4467, %v4467
          %v4476 = vmul.f32 %v4468, %v4468
          %v4477 = vmul.f32 %v4469, %v4469
          %4478 = vadd.xlane.f32.xlu0 %v4470
          %v4479 = vpop.xlane.xlu0 %4478
          %4480 = vadd.xlane.f32.xlu0 %v4471
          %v4481 = vpop.xlane.xlu0 %4480
          %4482 = vadd.xlane.f32.xlu0 %v4472
          %v4483 = vpop.xlane.xlu0 %4482
          %4484 = vadd.xlane.f32.xlu0 %v4473
          %v4485 = vpop.xlane.xlu0 %4484
          %4486 = vadd.xlane.f32.xlu0 %v4474
          %v4487 = vpop.xlane.xlu0 %4486
          %4488 = vadd.xlane.f32.xlu0 %v4475
          %v4489 = vpop.xlane.xlu0 %4488
          %4490 = vadd.xlane.f32.xlu0 %v4476
          %v4491 = vpop.xlane.xlu0 %4490
          %4492 = vadd.xlane.f32.xlu0 %v4477
          %v4493 = vpop.xlane.xlu0 %4492
          %v4494 = vmul.f32 %v4479, %v899
          %v4495 = vmul.f32 %v4481, %v899
          %v4496 = vmul.f32 %v4483, %v899
          %v4497 = vmul.f32 %v4485, %v899
          %v4498 = vmul.f32 %v4487, %v899
          %v4499 = vmul.f32 %v4489, %v899
          %v4500 = vmul.f32 %v4491, %v899
          %v4501 = vmul.f32 %v4493, %v899
          %v4502 = vadd.f32 %v4494, 1e-06
          %v4503 = vadd.f32 %v4495, 1e-06
          %v4504 = vadd.f32 %v4496, 1e-06
          %v4505 = vadd.f32 %v4497, 1e-06
          %v4506 = vadd.f32 %v4498, 1e-06
          %v4507 = vadd.f32 %v4499, 1e-06
          %v4508 = vadd.f32 %v4500, 1e-06
          %v4509 = vadd.f32 %v4501, 1e-06
          %v4510 = vrsqrt.pop %v4502
          %v4511 = vrsqrt.pop %v4503
          %v4512 = vrsqrt.pop %v4504
          %v4513 = vrsqrt.pop %v4505
          %v4514 = vrsqrt.pop %v4506
          %v4515 = vrsqrt.pop %v4507
          %v4516 = vrsqrt.pop %v4508
          %v4517 = vrsqrt.pop %v4509
          %v4518 = vmul.f32 %v4462, %v4510
          %v4519 = vmul.f32 %v4463, %v4511
          %v4520 = vmul.f32 %v4464, %v4512
          %v4521 = vmul.f32 %v4465, %v4513
          %v4522 = vmul.f32 %v4466, %v4514
          %v4523 = vmul.f32 %v4467, %v4515
          %v4524 = vmul.f32 %v4468, %v4516
          %v4525 = vmul.f32 %v4469, %v4517
          %v4527 = vlaneseq
          %v4528 = vshrl.u32 %v4527, 7
          %v4529 = vsub.s32 0, %v4528
          %v4530 = vrot.slane %v4436, %v4529
          %v4532 = vmul.f32 %v4518, %v4530
          %v4533 = vmul.f32 %v4519, %v4530
          %v4534 = vmul.f32 %v4520, %v4530
          %v4535 = vmul.f32 %v4521, %v4530
          %v4536 = vmul.f32 %v4522, %v4530
          %v4537 = vmul.f32 %v4523, %v4530
          %v4538 = vmul.f32 %v4524, %v4530
          %v4539 = vmul.f32 %v4525, %v4530
          %v4541 = vlaneseq
          %v4542 = vshrl.u32 %v4541, 7
          %v4543 = vsub.s32 0, %v4542
          %v4544 = vrot.slane %v4437, %v4543
          %v4546 = vadd.f32 %v4532, %v4544
          %v4547 = vadd.f32 %v4533, %v4544
          %v4548 = vadd.f32 %v4534, %v4544
          %v4549 = vadd.f32 %v4535, %v4544
          %v4550 = vadd.f32 %v4536, %v4544
          %v4551 = vadd.f32 %v4537, %v4544
          %v4552 = vadd.f32 %v4538, %v4544
          %v4553 = vadd.f32 %v4539, %v4544
          %4554 = vst [vmem:[%s18] sm:$0xff] %v4546
          %4555 = vst [vmem:[%s18 + $0x8] sm:$0xff] %v4547
          %4556 = vst [vmem:[%s18 + $0x10] sm:$0xff] %v4548
          %4557 = vst [vmem:[%s18 + $0x18] sm:$0xff] %v4549
          %4558 = vst [vmem:[%s18 + $0x20] sm:$0xff] %v4550
          %4559 = vst [vmem:[%s18 + $0x28] sm:$0xff] %v4551
          %4560 = vst [vmem:[%s18 + $0x30] sm:$0xff] %v4552
          %4561 = vst [vmem:[%s18 + $0x38] sm:$0xff] %v4553
        $region134: #{uni2_forward.5} parent=83 // pred_fallthru
          _
        %p4562 = scmp.eq.s32.totalorder %s35, 5
        // Predicated region
        $region135: #{uni2_forward.5} parent=83 // pred_check
          %p4563 = pneg %p4562
        $region136: #{uni2_forward.5} parent=83 // pred_check_branch
          %4565 = sbr.rel (%p4563) target = $region138
        $region137: #{uni2_forward.5} parent=83 // pred_region
          %v4566 = vld [vmem:[%s15] sm:$0x1]
          %v4567 = vld [vmem:[%s16] sm:$0x1]
          %4568 = vadd.xlane.f32.xlu0 %v4286
          %v4569 = vpop.xlane.xlu0 %4568
          %4570 = vadd.xlane.f32.xlu0 %v4287
          %v4571 = vpop.xlane.xlu0 %4570
          %4572 = vadd.xlane.f32.xlu0 %v4288
          %v4573 = vpop.xlane.xlu0 %4572
          %4574 = vadd.xlane.f32.xlu0 %v4289
          %v4575 = vpop.xlane.xlu0 %4574
          %4576 = vadd.xlane.f32.xlu0 %v4290
          %v4577 = vpop.xlane.xlu0 %4576
          %4578 = vadd.xlane.f32.xlu0 %v4291
          %v4579 = vpop.xlane.xlu0 %4578
          %4580 = vadd.xlane.f32.xlu0 %v4292
          %v4581 = vpop.xlane.xlu0 %4580
          %4582 = vadd.xlane.f32.xlu0 %v4293
          %v4583 = vpop.xlane.xlu0 %4582
          %v4584 = vmul.f32 %v4569, %v899
          %v4585 = vmul.f32 %v4571, %v899
          %v4586 = vmul.f32 %v4573, %v899
          %v4587 = vmul.f32 %v4575, %v899
          %v4588 = vmul.f32 %v4577, %v899
          %v4589 = vmul.f32 %v4579, %v899
          %v4590 = vmul.f32 %v4581, %v899
          %v4591 = vmul.f32 %v4583, %v899
          %v4592 = vsub.f32 %v4286, %v4584
          %v4593 = vsub.f32 %v4287, %v4585
          %v4594 = vsub.f32 %v4288, %v4586
          %v4595 = vsub.f32 %v4289, %v4587
          %v4596 = vsub.f32 %v4290, %v4588
          %v4597 = vsub.f32 %v4291, %v4589
          %v4598 = vsub.f32 %v4292, %v4590
          %v4599 = vsub.f32 %v4293, %v4591
          %v4600 = vmul.f32 %v4592, %v4592
          %v4601 = vmul.f32 %v4593, %v4593
          %v4602 = vmul.f32 %v4594, %v4594
          %v4603 = vmul.f32 %v4595, %v4595
          %v4604 = vmul.f32 %v4596, %v4596
          %v4605 = vmul.f32 %v4597, %v4597
          %v4606 = vmul.f32 %v4598, %v4598
          %v4607 = vmul.f32 %v4599, %v4599
          %4608 = vadd.xlane.f32.xlu0 %v4600
          %v4609 = vpop.xlane.xlu0 %4608
          %4610 = vadd.xlane.f32.xlu0 %v4601
          %v4611 = vpop.xlane.xlu0 %4610
          %4612 = vadd.xlane.f32.xlu0 %v4602
          %v4613 = vpop.xlane.xlu0 %4612
          %4614 = vadd.xlane.f32.xlu0 %v4603
          %v4615 = vpop.xlane.xlu0 %4614
          %4616 = vadd.xlane.f32.xlu0 %v4604
          %v4617 = vpop.xlane.xlu0 %4616
          %4618 = vadd.xlane.f32.xlu0 %v4605
          %v4619 = vpop.xlane.xlu0 %4618
          %4620 = vadd.xlane.f32.xlu0 %v4606
          %v4621 = vpop.xlane.xlu0 %4620
          %4622 = vadd.xlane.f32.xlu0 %v4607
          %v4623 = vpop.xlane.xlu0 %4622
          %v4624 = vmul.f32 %v4609, %v899
          %v4625 = vmul.f32 %v4611, %v899
          %v4626 = vmul.f32 %v4613, %v899
          %v4627 = vmul.f32 %v4615, %v899
          %v4628 = vmul.f32 %v4617, %v899
          %v4629 = vmul.f32 %v4619, %v899
          %v4630 = vmul.f32 %v4621, %v899
          %v4631 = vmul.f32 %v4623, %v899
          %v4632 = vadd.f32 %v4624, 1e-06
          %v4633 = vadd.f32 %v4625, 1e-06
          %v4634 = vadd.f32 %v4626, 1e-06
          %v4635 = vadd.f32 %v4627, 1e-06
          %v4636 = vadd.f32 %v4628, 1e-06
          %v4637 = vadd.f32 %v4629, 1e-06
          %v4638 = vadd.f32 %v4630, 1e-06
          %v4639 = vadd.f32 %v4631, 1e-06
          %v4640 = vrsqrt.pop %v4632
          %v4641 = vrsqrt.pop %v4633
          %v4642 = vrsqrt.pop %v4634
          %v4643 = vrsqrt.pop %v4635
          %v4644 = vrsqrt.pop %v4636
          %v4645 = vrsqrt.pop %v4637
          %v4646 = vrsqrt.pop %v4638
          %v4647 = vrsqrt.pop %v4639
          %v4648 = vmul.f32 %v4592, %v4640
          %v4649 = vmul.f32 %v4593, %v4641
          %v4650 = vmul.f32 %v4594, %v4642
          %v4651 = vmul.f32 %v4595, %v4643
          %v4652 = vmul.f32 %v4596, %v4644
          %v4653 = vmul.f32 %v4597, %v4645
          %v4654 = vmul.f32 %v4598, %v4646
          %v4655 = vmul.f32 %v4599, %v4647
          %v4657 = vlaneseq
          %v4658 = vshrl.u32 %v4657, 7
          %v4659 = vsub.s32 0, %v4658
          %v4660 = vrot.slane %v4566, %v4659
          %v4662 = vmul.f32 %v4648, %v4660
          %v4663 = vmul.f32 %v4649, %v4660
          %v4664 = vmul.f32 %v4650, %v4660
          %v4665 = vmul.f32 %v4651, %v4660
          %v4666 = vmul.f32 %v4652, %v4660
          %v4667 = vmul.f32 %v4653, %v4660
          %v4668 = vmul.f32 %v4654, %v4660
          %v4669 = vmul.f32 %v4655, %v4660
          %v4671 = vlaneseq
          %v4672 = vshrl.u32 %v4671, 7
          %v4673 = vsub.s32 0, %v4672
          %v4674 = vrot.slane %v4567, %v4673
          %v4676 = vadd.f32 %v4662, %v4674
          %v4677 = vadd.f32 %v4663, %v4674
          %v4678 = vadd.f32 %v4664, %v4674
          %v4679 = vadd.f32 %v4665, %v4674
          %v4680 = vadd.f32 %v4666, %v4674
          %v4681 = vadd.f32 %v4667, %v4674
          %v4682 = vadd.f32 %v4668, %v4674
          %v4683 = vadd.f32 %v4669, %v4674
          %4684 = vst [vmem:[%s19] sm:$0xff] %v4676
          %4685 = vst [vmem:[%s19 + $0x8] sm:$0xff] %v4677
          %4686 = vst [vmem:[%s19 + $0x10] sm:$0xff] %v4678
          %4687 = vst [vmem:[%s19 + $0x18] sm:$0xff] %v4679
          %4688 = vst [vmem:[%s19 + $0x20] sm:$0xff] %v4680
          %4689 = vst [vmem:[%s19 + $0x28] sm:$0xff] %v4681
          %4690 = vst [vmem:[%s19 + $0x30] sm:$0xff] %v4682
          %4691 = vst [vmem:[%s19 + $0x38] sm:$0xff] %v4683
        $region138: #{uni2_forward.5} parent=83 // pred_fallthru
          _
        %p4692 = scmp.eq.s32.totalorder %s35, 7
        // Predicated region
        $region139: #{uni2_forward.5} parent=83 // pred_check
          %p4693 = pneg %p4692
        $region140: #{uni2_forward.5} parent=83 // pred_check_branch
          %4695 = sbr.rel (%p4693) target = $region142
        $region141: #{uni2_forward.5} parent=83 // pred_region
          %v4696 = vld [vmem:[%s15] sm:$0x1]
          %v4697 = vld [vmem:[%s16] sm:$0x1]
          %4698 = vadd.xlane.f32.xlu0 %v4286
          %v4699 = vpop.xlane.xlu0 %4698
          %4700 = vadd.xlane.f32.xlu0 %v4287
          %v4701 = vpop.xlane.xlu0 %4700
          %4702 = vadd.xlane.f32.xlu0 %v4288
          %v4703 = vpop.xlane.xlu0 %4702
          %4704 = vadd.xlane.f32.xlu0 %v4289
          %v4705 = vpop.xlane.xlu0 %4704
          %4706 = vadd.xlane.f32.xlu0 %v4290
          %v4707 = vpop.xlane.xlu0 %4706
          %4708 = vadd.xlane.f32.xlu0 %v4291
          %v4709 = vpop.xlane.xlu0 %4708
          %4710 = vadd.xlane.f32.xlu0 %v4292
          %v4711 = vpop.xlane.xlu0 %4710
          %4712 = vadd.xlane.f32.xlu0 %v4293
          %v4713 = vpop.xlane.xlu0 %4712
          %v4714 = vmul.f32 %v4699, %v899
          %v4715 = vmul.f32 %v4701, %v899
          %v4716 = vmul.f32 %v4703, %v899
          %v4717 = vmul.f32 %v4705, %v899
          %v4718 = vmul.f32 %v4707, %v899
          %v4719 = vmul.f32 %v4709, %v899
          %v4720 = vmul.f32 %v4711, %v899
          %v4721 = vmul.f32 %v4713, %v899
          %v4722 = vsub.f32 %v4286, %v4714
          %v4723 = vsub.f32 %v4287, %v4715
          %v4724 = vsub.f32 %v4288, %v4716
          %v4725 = vsub.f32 %v4289, %v4717
          %v4726 = vsub.f32 %v4290, %v4718
          %v4727 = vsub.f32 %v4291, %v4719
          %v4728 = vsub.f32 %v4292, %v4720
          %v4729 = vsub.f32 %v4293, %v4721
          %v4730 = vmul.f32 %v4722, %v4722
          %v4731 = vmul.f32 %v4723, %v4723
          %v4732 = vmul.f32 %v4724, %v4724
          %v4733 = vmul.f32 %v4725, %v4725
          %v4734 = vmul.f32 %v4726, %v4726
          %v4735 = vmul.f32 %v4727, %v4727
          %v4736 = vmul.f32 %v4728, %v4728
          %v4737 = vmul.f32 %v4729, %v4729
          %4738 = vadd.xlane.f32.xlu0 %v4730
          %v4739 = vpop.xlane.xlu0 %4738
          %4740 = vadd.xlane.f32.xlu0 %v4731
          %v4741 = vpop.xlane.xlu0 %4740
          %4742 = vadd.xlane.f32.xlu0 %v4732
          %v4743 = vpop.xlane.xlu0 %4742
          %4744 = vadd.xlane.f32.xlu0 %v4733
          %v4745 = vpop.xlane.xlu0 %4744
          %4746 = vadd.xlane.f32.xlu0 %v4734
          %v4747 = vpop.xlane.xlu0 %4746
          %4748 = vadd.xlane.f32.xlu0 %v4735
          %v4749 = vpop.xlane.xlu0 %4748
          %4750 = vadd.xlane.f32.xlu0 %v4736
          %v4751 = vpop.xlane.xlu0 %4750
          %4752 = vadd.xlane.f32.xlu0 %v4737
          %v4753 = vpop.xlane.xlu0 %4752
          %v4754 = vmul.f32 %v4739, %v899
          %v4755 = vmul.f32 %v4741, %v899
          %v4756 = vmul.f32 %v4743, %v899
          %v4757 = vmul.f32 %v4745, %v899
          %v4758 = vmul.f32 %v4747, %v899
          %v4759 = vmul.f32 %v4749, %v899
          %v4760 = vmul.f32 %v4751, %v899
          %v4761 = vmul.f32 %v4753, %v899
          %v4762 = vadd.f32 %v4754, 1e-06
          %v4763 = vadd.f32 %v4755, 1e-06
          %v4764 = vadd.f32 %v4756, 1e-06
          %v4765 = vadd.f32 %v4757, 1e-06
          %v4766 = vadd.f32 %v4758, 1e-06
          %v4767 = vadd.f32 %v4759, 1e-06
          %v4768 = vadd.f32 %v4760, 1e-06
          %v4769 = vadd.f32 %v4761, 1e-06
          %v4770 = vrsqrt.pop %v4762
          %v4771 = vrsqrt.pop %v4763
          %v4772 = vrsqrt.pop %v4764
          %v4773 = vrsqrt.pop %v4765
          %v4774 = vrsqrt.pop %v4766
          %v4775 = vrsqrt.pop %v4767
          %v4776 = vrsqrt.pop %v4768
          %v4777 = vrsqrt.pop %v4769
          %v4778 = vmul.f32 %v4722, %v4770
          %v4779 = vmul.f32 %v4723, %v4771
          %v4780 = vmul.f32 %v4724, %v4772
          %v4781 = vmul.f32 %v4725, %v4773
          %v4782 = vmul.f32 %v4726, %v4774
          %v4783 = vmul.f32 %v4727, %v4775
          %v4784 = vmul.f32 %v4728, %v4776
          %v4785 = vmul.f32 %v4729, %v4777
          %v4787 = vlaneseq
          %v4788 = vshrl.u32 %v4787, 7
          %v4789 = vsub.s32 0, %v4788
          %v4790 = vrot.slane %v4696, %v4789
          %v4792 = vmul.f32 %v4778, %v4790
          %v4793 = vmul.f32 %v4779, %v4790
          %v4794 = vmul.f32 %v4780, %v4790
          %v4795 = vmul.f32 %v4781, %v4790
          %v4796 = vmul.f32 %v4782, %v4790
          %v4797 = vmul.f32 %v4783, %v4790
          %v4798 = vmul.f32 %v4784, %v4790
          %v4799 = vmul.f32 %v4785, %v4790
          %v4801 = vlaneseq
          %v4802 = vshrl.u32 %v4801, 7
          %v4803 = vsub.s32 0, %v4802
          %v4804 = vrot.slane %v4697, %v4803
          %v4806 = vadd.f32 %v4792, %v4804
          %v4807 = vadd.f32 %v4793, %v4804
          %v4808 = vadd.f32 %v4794, %v4804
          %v4809 = vadd.f32 %v4795, %v4804
          %v4810 = vadd.f32 %v4796, %v4804
          %v4811 = vadd.f32 %v4797, %v4804
          %v4812 = vadd.f32 %v4798, %v4804
          %v4813 = vadd.f32 %v4799, %v4804
          %4814 = vst [vmem:[%s20] sm:$0xff] %v4806
          %4815 = vst [vmem:[%s20 + $0x8] sm:$0xff] %v4807
          %4816 = vst [vmem:[%s20 + $0x10] sm:$0xff] %v4808
          %4817 = vst [vmem:[%s20 + $0x18] sm:$0xff] %v4809
          %4818 = vst [vmem:[%s20 + $0x20] sm:$0xff] %v4810
          %4819 = vst [vmem:[%s20 + $0x28] sm:$0xff] %v4811
          %4820 = vst [vmem:[%s20 + $0x30] sm:$0xff] %v4812
          %4821 = vst [vmem:[%s20 + $0x38] sm:$0xff] %v4813
        $region142: #{uni2_forward.5} parent=83 // pred_fallthru
          _
        // Predicated region
        $region143: #{uni2_forward.5} parent=83 // pred_check
          %p4822 = pneg %p454
        $region144: #{uni2_forward.5} parent=83 // pred_check_branch
          %4824 = sbr.rel (%p4822) target = $region146
        $region145: #{uni2_forward.5} parent=83 // pred_region
          _
        $region146: #{uni2_forward.5} parent=83 // pred_fallthru
          _
        // Predicated region
        $region147: #{uni2_forward.5} parent=83 // pred_check
          %p4825 = pneg %p475
        $region148: #{uni2_forward.5} parent=83 // pred_check_branch
          %4827 = sbr.rel (%p4825) target = $region150
        $region149: #{uni2_forward.5} parent=83 // pred_region
          _
        $region150: #{uni2_forward.5} parent=83 // pred_fallthru
          _
        // Predicated region
        $region151: #{uni2_forward.5} parent=83 // pred_check
          %p4828 = pneg %p496
        $region152: #{uni2_forward.5} parent=83 // pred_check_branch
          %4830 = sbr.rel (%p4828) target = $region154
        $region153: #{uni2_forward.5} parent=83 // pred_region
          _
        $region154: #{uni2_forward.5} parent=83 // pred_fallthru
          _
        // Predicated region
        $region155: #{uni2_forward.5} parent=83 // pred_check
          %p4831 = pneg %p517
        $region156: #{uni2_forward.5} parent=83 // pred_check_branch
          %4833 = sbr.rel (%p4831) target = $region158
        $region157: #{uni2_forward.5} parent=83 // pred_region
          _
        $region158: #{uni2_forward.5} parent=83 // pred_fallthru
          _
        // Predicated region
        $region159: #{uni2_forward.5} parent=83 // pred_check
          %p4834 = pneg %p454
        $region160: #{uni2_forward.5} parent=83 // pred_check_branch
          %4836 = sbr.rel (%p4834) target = $region162
        $region161: #{uni2_forward.5} parent=83 // pred_region
          _
        $region162: #{uni2_forward.5} parent=83 // pred_fallthru
          _
        // Predicated region
        $region163: #{uni2_forward.5} parent=83 // pred_check
          %p4837 = pneg %p475
        $region164: #{uni2_forward.5} parent=83 // pred_check_branch
          %4839 = sbr.rel (%p4837) target = $region166
        $region165: #{uni2_forward.5} parent=83 // pred_region
          _
        $region166: #{uni2_forward.5} parent=83 // pred_fallthru
          _
        // Predicated region
        $region167: #{uni2_forward.5} parent=83 // pred_check
          %p4840 = pneg %p496
        $region168: #{uni2_forward.5} parent=83 // pred_check_branch
          %4842 = sbr.rel (%p4840) target = $region170
        $region169: #{uni2_forward.5} parent=83 // pred_region
          _
        $region170: #{uni2_forward.5} parent=83 // pred_fallthru
          _
        // Predicated region
        $region171: #{uni2_forward.5} parent=83 // pred_check
          %p4843 = pneg %p517
        $region172: #{uni2_forward.5} parent=83 // pred_check_branch
          %4845 = sbr.rel (%p4843) target = $region174
        $region173: #{uni2_forward.5} parent=83 // pred_region
          _
        $region174: #{uni2_forward.5} parent=83 // pred_fallthru
          _
      $region84: #{uni2_forward.5} parent=5 // pred_fallthru
        _
      %p4846 = scmp.le.s32.totalorder 2, %s30
      // Predicated region
      $region175: #{uni2_forward.5} parent=5 // pred_check
        %p4847 = pneg %p4846
      $region176: #{uni2_forward.5} parent=5 // pred_check_branch
        %4849 = sbr.rel (%p4847) target = $region178
      $region177: #{uni2_forward.5} parent=5 // pred_region
        %s4850 = ssub.s32 %s30, 2
      $region178: #{uni2_forward.5} parent=5 // pred_fallthru
        _
    $region6: #{uni2_forward.5} parent=1 // loop_footer
      %s34 = sadd.s32 1, %s30
    $region7: #{uni2_forward.5} parent=1 // loop_footer_branch
      %29 = sbr.rel target = $region3
    $region8: #{uni2_forward.5} parent=1 // loop_exit
      _
    %4851 = vsyncpa [#allocation5], 1
    %s4852 = scalar_lea.sflag [#allocation5], 1
    %4853 = vsyncpa %s4852, 1
  %4854 = vsyncmov [#allocation3]
  %s4855 = vpop.sfrf %4854
  %p4856 = scmp.eq.s32.totalorder %s4855, 0
  %p4857 = pneg %p4856
  %4859 = shalt.err (%p4857)

</llo_original>
